<compile_context>
chip_gen: v5e
topology: v5e:2x2
jax: 0.10.0
libtpu: 0.0.40
codegen_flags: <defaults>
</compile_context>

<pallas_src>
import jax
import jax.numpy as jnp
from jax.experimental import pallas as pl
from jax.experimental.pallas import tpu as pltpu

EPS = 1e-5


def _round_up(x, m):
    return (x + m - 1) // m * m


# ----------------------------- fused Pallas kernel ----------------------------- #

def _make_fused_kernel(B, H, W, Cin, Cout):
    Wp = W + 2                        # padded row width
    S = (H + 2) * Wp                  # per-image padded-row count
    M = B * S                         # batch folded into the matmul M dimension
    lead = _round_up(Wp + 1, 8)       # sublane-aligned leading halo of conv2 buffer
    n_h2 = _round_up(M + lead + Wp + 1, 8)
    tail = n_h2 - lead - M
    base = lead - (Wp + 1)            # shift so all conv2 tap offsets are >= 0

    def kernel(cols_ref, mask_ref, w1_ref, b1_ref, w2_ref, b2_ref,
               wse_ref, bse_ref, o_ref, xh2_ref):
        # Zero only the halo fringes of the conv2 padded-row buffer; the data region
        # is fully overwritten below (no full-scratch memset).
        xh2_ref[pl.ds(0, lead), :] = jnp.zeros((lead, Cout), jnp.bfloat16)
        xh2_ref[pl.ds(lead + M, tail), :] = jnp.zeros((tail, Cout), jnp.bfloat16)

        # ---- conv1 + folded BN + ReLU: one packed MXU matmul (K = 9*Cin) ----------
        y1 = jnp.dot(cols_ref[...], w1_ref[...], preferred_element_type=jnp.float32)
        y1 = jnp.maximum(y1 + b1_ref[...], 0.0) * mask_ref[...]   # zero halo rows/cols
        # One contiguous, sublane-aligned bf16 store: y1 becomes conv2's padded input.
        xh2_ref[pl.ds(lead, M), :] = y1.astype(jnp.bfloat16)

        # ---- conv2 + folded BN + ReLU: 9 shifted sublane slices packed along lanes
        #      (K = 9*Cout), single MXU matmul with a single f32 accumulator ---------
        taps2 = jnp.concatenate(
            [xh2_ref[pl.ds(base + dy * Wp + dx, M), :]
             for dy in range(3) for dx in range(3)],
            axis=1)
        y2 = jnp.dot(taps2, w2_ref[...], preferred_element_type=jnp.float32)
        y2 = jnp.maximum(y2 + b2_ref[...], 0.0)

        # ---- sSE: collapsed (C -> C//16 -> 1) projection + BN(1) + sigmoid, on the
        #      VPU/XLU (row-wise multiply + lane reduction; no N=1 MXU matmul) -------
        z = jax.nn.sigmoid(jnp.sum(y2 * wse_ref[...], axis=1, keepdims=True)
                           + bse_ref[...])
        o_ref[...] = (y2 * z).astype(o_ref.dtype)

    return kernel


# --------------------------------- JAX wrapper --------------------------------- #

def unet_conv2_1_forward(x_nchw, p):
    B, Cin, H, W = x_nchw.shape
    Cout = p["b1_f"].shape[0]
    Wp = W + 2
    S = (H + 2) * Wp
    M = B * S
    lead = _round_up(Wp + 1, 8)
    n_h2 = _round_up(M + lead + Wp + 1, 8)

    # NCHW -> zero-padded NHWC (halo baked in by the wrapper; no in-kernel halo packing).
    x_pad = jnp.pad(jnp.transpose(x_nchw, (0, 2, 3, 1)),
                    ((0, 0), (1, 1), (1, 1), (0, 0)))
    # conv1 im2col: 9 taps packed along the channel axis, laid out on the padded-row
    # grid so conv1's output lands directly in conv2's padded-row layout.
    patches = jnp.concatenate(
        [x_pad[:, dy:dy + H, dx:dx + W, :] for dy in range(3) for dx in range(3)],
        axis=-1)
    cols = jnp.pad(patches, ((0, 0), (1, 1), (1, 1), (0, 0))
                   ).reshape(M, 9 * Cin).astype(jnp.bfloat16)
    # Validity mask: 1 at real pixels, 0 at halo rows/cols (keeps conv2's padding exact).
    mask = jnp.pad(jnp.ones((B, H, W, 1), jnp.float32),
                   ((0, 0), (1, 1), (1, 1), (0, 0))).reshape(M, 1)

    # BN-folded conv weights packed tap-major for the single-matmul contractions.
    w1 = p["w1_f"].reshape(9 * Cin, Cout).astype(jnp.bfloat16)
    w2 = p["w2_f"].reshape(9 * Cout, Cout).astype(jnp.bfloat16)
    b1 = p["b1_f"].reshape(1, Cout)
    b2 = p["b2_f"].reshape(1, Cout)
    # Collapse the two sSE 1x1 convs (no activation between them) exactly, in f32.
    w_se = jnp.sum(p["se_w1"] * p["se_w2_f"][:, 0][None, :], axis=1).reshape(1, Cout)
    b_se = (jnp.sum(p["se_b1"] * p["se_w2_f"][:, 0]) + p["se_b2_f"][0]).reshape(1, 1)

    kernel = _make_fused_kernel(B, H, W, Cin, Cout)

    out_flat = pl.pallas_call(
        kernel,
        out_shape=jax.ShapeDtypeStruct((M, Cout), jnp.float32),
        grid=(1,),
        in_specs=[
            pl.BlockSpec((M, 9 * Cin), lambda i: (0, 0)),
            pl.BlockSpec((M, 1), lambda i: (0, 0)),
            pl.BlockSpec((9 * Cin, Cout), lambda i: (0, 0)),
            pl.BlockSpec((1, Cout), lambda i: (0, 0)),
            pl.BlockSpec((9 * Cout, Cout), lambda i: (0, 0)),
            pl.BlockSpec((1, Cout), lambda i: (0, 0)),
            pl.BlockSpec((1, Cout), lambda i: (0, 0)),
            pl.BlockSpec((1, 1), lambda i: (0, 0)),
        ],
        out_specs=pl.BlockSpec((M, Cout), lambda i: (0, 0)),
        scratch_shapes=[pltpu.VMEM((n_h2, Cout), jnp.bfloat16)],   # conv2 padded input
        compiler_params=pltpu.CompilerParams(
            dimension_semantics=("arbitrary",)),
    )(cols, mask, w1, b1, w2, b2, w_se, b_se)

    # Drop halo rows/cols (harmless garbage there), back to NCHW.
    out = out_flat.reshape(B, H + 2, Wp, Cout)[:, 1:H + 1, 1:W + 1, :]
    return jnp.transpose(out, (0, 3, 1, 2))


# ----------------------------- deterministic params ---------------------------- #

def fold_bn(w_hwio, bias, gamma, beta, mean, var):
    scale = gamma / jnp.sqrt(var + EPS)
    return w_hwio * scale, (bias - mean) * scale + beta


def init_params(key, in_size, out_size):
    ks = jax.random.split(key, 10)
    cr = out_size // 16
    params = {}

    # conv1 / conv2 (kaiming fan_in, HWIO) + BatchNorm(out_size)
    cin = in_size
    for i, name in enumerate(["1", "2"]):
        fan_in = cin * 3 * 3
        w = jax.random.normal(ks[2 * i], (3, 3, cin, out_size), jnp.float32) * jnp.sqrt(2.0 / fan_in)
        b = 0.01 * jax.random.normal(ks[2 * i + 1], (out_size,), jnp.float32)
        gamma = 1.0 + 0.02 * jax.random.normal(ks[4 + i], (out_size,), jnp.float32)
        beta = jnp.zeros((out_size,), jnp.float32)
        mean = jnp.zeros((out_size,), jnp.float32)
        var = jnp.ones((out_size,), jnp.float32)
        wf, bf = fold_bn(w, b, gamma, beta, mean, var)
        params[f"w{name}_f"], params[f"b{name}_f"] = wf, bf
        cin = out_size

    # sSE: 1x1 conv (C -> C//16), 1x1 conv (C//16 -> 1), BatchNorm(1)
    params["se_w1"] = jax.random.normal(ks[6], (out_size, cr), jnp.float32) * jnp.sqrt(2.0 / out_size)
    params["se_b1"] = 0.01 * jax.random.normal(ks[7], (cr,), jnp.float32)
    se_w2 = jax.random.normal(ks[8], (cr, 1), jnp.float32) * jnp.sqrt(2.0 / cr)
    se_b2 = 0.01 * jax.random.normal(ks[9], (1,), jnp.float32)
    g1, bta1 = jnp.ones((1,), jnp.float32), jnp.zeros((1,), jnp.float32)
    params["se_w2_f"], params["se_b2_f"] = fold_bn(se_w2, se_b2, g1, bta1,
                                                   jnp.zeros((1,)), jnp.ones((1,)))
    return params


def reference_forward(x_nchw, p):
    """Pure-JAX reference with the same precision policy (bf16 matmul inputs,
    f32 accumulation/epilogues) but un-collapsed sSE and XLA convolutions."""
    h = jnp.transpose(x_nchw, (0, 2, 3, 1))
    for w, b in ((p["w1_f"], p["b1_f"]), (p["w2_f"], p["b2_f"])):
        h = jax.lax.conv_general_dilated(
            h.astype(jnp.bfloat16), w.astype(jnp.bfloat16), (1, 1), "SAME",
            dimension_numbers=("NHWC", "HWIO", "NHWC"),
            preferred_element_type=jnp.float32) + b
        h = jnp.maximum(h, 0.0)
    t = jnp.einsum("bhwc,cr->bhwr", h, p["se_w1"],
                   precision=jax.lax.Precision.HIGHEST) + p["se_b1"]
    z = jax.nn.sigmoid(jnp.einsum("bhwr,ro->bhwo", t, p["se_w2_f"],
                                  precision=jax.lax.Precision.HIGHEST) + p["se_b2_f"])
    return jnp.transpose(h * z, (0, 3, 1, 2))


# -------------------------------------- main ----------------------------------- #

if __name__ == "__main__":
    key = jax.random.PRNGKey(0)
    k_param, k_x = jax.random.split(key)

    B, Cin, H, W = 2, 4, 16, 16
    Cout = 32                                   # divisible by 16 for the sSE module
    params = init_params(k_param, Cin, Cout)

    x = jax.random.normal(k_x, (B, Cin, H, W), jnp.float32)   # NCHW, like PyTorch

    out = jax.block_until_ready(unet_conv2_1_forward(x, params))
    assert out.shape == (B, Cout, H, W), out.shape

    ref = jax.block_until_ready(reference_forward(x, params))
    max_err = float(jnp.max(jnp.abs(out - ref)))
    assert jnp.allclose(out, ref, rtol=2e-3, atol=2e-3), max_err

    print("KERNEL_OK")
</pallas_src>

<mosaic_0001>
module attributes {stable_mosaic.version = 11 : i64} {
  func.func @kernel(%arg0: i32, %arg1: memref<648x36xbf16, #tpu.memory_space<vmem>>, %arg2: memref<648x1xf32, #tpu.memory_space<vmem>>, %arg3: memref<36x32xbf16, #tpu.memory_space<vmem>>, %arg4: memref<1x32xf32, #tpu.memory_space<vmem>>, %arg5: memref<288x32xbf16, #tpu.memory_space<vmem>>, %arg6: memref<1x32xf32, #tpu.memory_space<vmem>>, %arg7: memref<1x32xf32, #tpu.memory_space<vmem>>, %arg8: memref<1x1xf32, #tpu.memory_space<vmem>>, %arg9: memref<648x32xf32, #tpu.memory_space<vmem>>, %arg10: memref<696x32xbf16, #tpu.memory_space<vmem>>) attributes {dimension_semantics = [#tpu.dimension_semantics<arbitrary>], iteration_bounds = array<i64: 1>, scalar_prefetch = 0 : i64, scratch_operands = 1 : i64, tpu.core_type = #tpu.core_type<tc>, window_params = [{pipeline_mode = #tpu.pipeline_mode<synchronous>, transform_indices = @transform_0, window_bounds = array<i64: 648, 36>}, {pipeline_mode = #tpu.pipeline_mode<synchronous>, transform_indices = @transform_1, window_bounds = array<i64: 648, 1>}, {pipeline_mode = #tpu.pipeline_mode<synchronous>, transform_indices = @transform_2, window_bounds = array<i64: 36, 32>}, {pipeline_mode = #tpu.pipeline_mode<synchronous>, transform_indices = @transform_3, window_bounds = array<i64: 1, 32>}, {pipeline_mode = #tpu.pipeline_mode<synchronous>, transform_indices = @transform_4, window_bounds = array<i64: 288, 32>}, {pipeline_mode = #tpu.pipeline_mode<synchronous>, transform_indices = @transform_5, window_bounds = array<i64: 1, 32>}, {pipeline_mode = #tpu.pipeline_mode<synchronous>, transform_indices = @transform_6, window_bounds = array<i64: 1, 32>}, {pipeline_mode = #tpu.pipeline_mode<synchronous>, transform_indices = @transform_7, window_bounds = array<i64: 1, 1>}, {pipeline_mode = #tpu.pipeline_mode<synchronous>, transform_indices = @transform_8, window_bounds = array<i64: 648, 32>}]} {
    %cst = arith.constant 0.000000e+00 : bf16
    %0 = vector.broadcast %cst : bf16 to vector<24x32xbf16>
    %c0 = arith.constant 0 : index
    %c0_0 = arith.constant 0 : index
    %1 = vector.load %arg10[%c0, %c0_0] : memref<696x32xbf16, #tpu.memory_space<vmem>>, vector<24x32xbf16>
    tpu.vector_store %arg10[%c0, %c0_0], %0 {strides = array<i32>} : memref<696x32xbf16, #tpu.memory_space<vmem>>, vector<24x32xbf16>,
    %cst_1 = arith.constant 0.000000e+00 : bf16
    %2 = vector.broadcast %cst_1 : bf16 to vector<24x32xbf16>
    %c672 = arith.constant 672 : index
    %c0_2 = arith.constant 0 : index
    %3 = vector.load %arg10[%c672, %c0_2] : memref<696x32xbf16, #tpu.memory_space<vmem>>, vector<24x32xbf16>
    tpu.vector_store %arg10[%c672, %c0_2], %2 {strides = array<i32>} : memref<696x32xbf16, #tpu.memory_space<vmem>>, vector<24x32xbf16>,
    %c0_3 = arith.constant 0 : index
    %c0_4 = arith.constant 0 : index
    %4 = vector.load %arg1[%c0_3, %c0_4] : memref<648x36xbf16, #tpu.memory_space<vmem>>, vector<648x36xbf16>
    %c0_5 = arith.constant 0 : index
    %c0_6 = arith.constant 0 : index
    %5 = vector.load %arg3[%c0_5, %c0_6] : memref<36x32xbf16, #tpu.memory_space<vmem>>, vector<36x32xbf16>
    %cst_7 = arith.constant dense<0.000000e+00> : vector<648x32xf32>
    %6 = tpu.matmul %4, %5, %cst_7 {dimension_numbers = #tpu.dot_dimension_numbers<[1], [0], [0], [1], [0, 0, 1, 1], [], []>} : vector<648x36xbf16>, vector<36x32xbf16>, vector<648x32xf32> -> vector<648x32xf32>
    %c0_8 = arith.constant 0 : index
    %c0_9 = arith.constant 0 : index
    %7 = vector.load %arg4[%c0_8, %c0_9] : memref<1x32xf32, #tpu.memory_space<vmem>>, vector<1x32xf32>
    %8 = vector.broadcast %7 : vector<1x32xf32> to vector<648x32xf32>
    %9 = arith.addf %6, %8 : vector<648x32xf32>
    %cst_10 = arith.constant 0.000000e+00 : f32
    %10 = vector.broadcast %cst_10 : f32 to vector<648x32xf32>
    %11 = arith.maximumf %9, %10 : vector<648x32xf32>
    %c0_11 = arith.constant 0 : index
    %c0_12 = arith.constant 0 : index
    %12 = vector.load %arg2[%c0_11, %c0_12] : memref<648x1xf32, #tpu.memory_space<vmem>>, vector<648x1xf32>
    %13 = vector.broadcast %12 : vector<648x1xf32> to vector<648x32xf32>
    %14 = arith.mulf %11, %13 : vector<648x32xf32>
    %15 = arith.truncf %14 : vector<648x32xf32> to vector<648x32xbf16>
    %c24 = arith.constant 24 : index
    %c0_13 = arith.constant 0 : index
    %16 = vector.load %arg10[%c24, %c0_13] : memref<696x32xbf16, #tpu.memory_space<vmem>>, vector<648x32xbf16>
    tpu.vector_store %arg10[%c24, %c0_13], %15 {strides = array<i32>} : memref<696x32xbf16, #tpu.memory_space<vmem>>, vector<648x32xbf16>,
    %c5 = arith.constant 5 : index
    %c0_14 = arith.constant 0 : index
    %17 = vector.load %arg10[%c5, %c0_14] : memref<696x32xbf16, #tpu.memory_space<vmem>>, vector<648x32xbf16>
    %c6 = arith.constant 6 : index
    %c0_15 = arith.constant 0 : index
    %18 = vector.load %arg10[%c6, %c0_15] : memref<696x32xbf16, #tpu.memory_space<vmem>>, vector<648x32xbf16>
    %c7 = arith.constant 7 : index
    %c0_16 = arith.constant 0 : index
    %19 = vector.load %arg10[%c7, %c0_16] : memref<696x32xbf16, #tpu.memory_space<vmem>>, vector<648x32xbf16>
    %c23 = arith.constant 23 : index
    %c0_17 = arith.constant 0 : index
    %20 = vector.load %arg10[%c23, %c0_17] : memref<696x32xbf16, #tpu.memory_space<vmem>>, vector<648x32xbf16>
    %c24_18 = arith.constant 24 : index
    %c0_19 = arith.constant 0 : index
    %21 = vector.load %arg10[%c24_18, %c0_19] : memref<696x32xbf16, #tpu.memory_space<vmem>>, vector<648x32xbf16>
    %c25 = arith.constant 25 : index
    %c0_20 = arith.constant 0 : index
    %22 = vector.load %arg10[%c25, %c0_20] : memref<696x32xbf16, #tpu.memory_space<vmem>>, vector<648x32xbf16>
    %c41 = arith.constant 41 : index
    %c0_21 = arith.constant 0 : index
    %23 = vector.load %arg10[%c41, %c0_21] : memref<696x32xbf16, #tpu.memory_space<vmem>>, vector<648x32xbf16>
    %c42 = arith.constant 42 : index
    %c0_22 = arith.constant 0 : index
    %24 = vector.load %arg10[%c42, %c0_22] : memref<696x32xbf16, #tpu.memory_space<vmem>>, vector<648x32xbf16>
    %c43 = arith.constant 43 : index
    %c0_23 = arith.constant 0 : index
    %25 = vector.load %arg10[%c43, %c0_23] : memref<696x32xbf16, #tpu.memory_space<vmem>>, vector<648x32xbf16>
    %26 = tpu.concatenate %17, %18, %19, %20, %21, %22, %23, %24, %25 in 1 : vector<648x32xbf16>, vector<648x32xbf16>, vector<648x32xbf16>, vector<648x32xbf16>, vector<648x32xbf16>, vector<648x32xbf16>, vector<648x32xbf16>, vector<648x32xbf16>, vector<648x32xbf16> -> vector<648x288xbf16>
    %c0_24 = arith.constant 0 : index
    %c0_25 = arith.constant 0 : index
    %27 = vector.load %arg5[%c0_24, %c0_25] : memref<288x32xbf16, #tpu.memory_space<vmem>>, vector<288x32xbf16>
    %cst_26 = arith.constant dense<0.000000e+00> : vector<648x32xf32>
    %28 = tpu.matmul %26, %27, %cst_26 {dimension_numbers = #tpu.dot_dimension_numbers<[1], [0], [0], [1], [0, 0, 1, 1], [], []>} : vector<648x288xbf16>, vector<288x32xbf16>, vector<648x32xf32> -> vector<648x32xf32>
    %c0_27 = arith.constant 0 : index
    %c0_28 = arith.constant 0 : index
    %29 = vector.load %arg6[%c0_27, %c0_28] : memref<1x32xf32, #tpu.memory_space<vmem>>, vector<1x32xf32>
    %30 = vector.broadcast %29 : vector<1x32xf32> to vector<648x32xf32>
    %31 = arith.addf %28, %30 : vector<648x32xf32>
    %cst_29 = arith.constant 0.000000e+00 : f32
    %32 = vector.broadcast %cst_29 : f32 to vector<648x32xf32>
    %33 = arith.maximumf %31, %32 : vector<648x32xf32>
    %c0_30 = arith.constant 0 : index
    %c0_31 = arith.constant 0 : index
    %34 = vector.load %arg7[%c0_30, %c0_31] : memref<1x32xf32, #tpu.memory_space<vmem>>, vector<1x32xf32>
    %35 = vector.broadcast %34 : vector<1x32xf32> to vector<648x32xf32>
    %36 = arith.mulf %33, %35 : vector<648x32xf32>
    %cst_32 = arith.constant dense<0.000000e+00> : vector<648xf32>
    %37 = vector.multi_reduction <add>, %36, %cst_32 [1] : vector<648x32xf32> to vector<648xf32>
    %38 = vector.shape_cast %37 : vector<648xf32> to vector<648x1xf32>
    %c0_33 = arith.constant 0 : index
    %c0_34 = arith.constant 0 : index
    %39 = vector.load %arg8[%c0_33, %c0_34] : memref<1x1xf32, #tpu.memory_space<vmem>>, vector<1x1xf32>
    %40 = vector.broadcast %39 : vector<1x1xf32> to vector<648x1xf32>
    %41 = arith.addf %38, %40 : vector<648x1xf32>
    %42 = arith.negf %41 : vector<648x1xf32>
    %43 = math.exp %42 : vector<648x1xf32>
    %cst_35 = arith.constant 1.000000e+00 : f32
    %44 = vector.broadcast %cst_35 : f32 to vector<648x1xf32>
    %45 = arith.addf %44, %43 : vector<648x1xf32>
    %46 = arith.divf %44, %45 : vector<648x1xf32>
    %47 = vector.broadcast %46 : vector<648x1xf32> to vector<648x32xf32>
    %48 = arith.mulf %33, %47 : vector<648x32xf32>
    %c0_36 = arith.constant 0 : index
    %c0_37 = arith.constant 0 : index
    %49 = vector.load %arg9[%c0_36, %c0_37] : memref<648x32xf32, #tpu.memory_space<vmem>>, vector<648x32xf32>
    tpu.vector_store %arg9[%c0_36, %c0_37], %48 {strides = array<i32>} : memref<648x32xf32, #tpu.memory_space<vmem>>, vector<648x32xf32>,
    return
  }
  func.func @transform_0(%arg0: i32) -> (i32, i32) {
    %c0_i32 = arith.constant 0 : i32
    %c0_i32_0 = arith.constant 0 : i32
    %c0_i32_1 = arith.constant 0 : i32
    return %c0_i32, %c0_i32_0 : i32, i32
  }
  func.func @transform_1(%arg0: i32) -> (i32, i32) {
    %c0_i32 = arith.constant 0 : i32
    %c0_i32_0 = arith.constant 0 : i32
    %c0_i32_1 = arith.constant 0 : i32
    return %c0_i32, %c0_i32_0 : i32, i32
  }
  func.func @transform_2(%arg0: i32) -> (i32, i32) {
    %c0_i32 = arith.constant 0 : i32
    %c0_i32_0 = arith.constant 0 : i32
    %c0_i32_1 = arith.constant 0 : i32
    return %c0_i32, %c0_i32_0 : i32, i32
  }
  func.func @transform_3(%arg0: i32) -> (i32, i32) {
    %c0_i32 = arith.constant 0 : i32
    %c0_i32_0 = arith.constant 0 : i32
    %c0_i32_1 = arith.constant 0 : i32
    return %c0_i32, %c0_i32_0 : i32, i32
  }
  func.func @transform_4(%arg0: i32) -> (i32, i32) {
    %c0_i32 = arith.constant 0 : i32
    %c0_i32_0 = arith.constant 0 : i32
    %c0_i32_1 = arith.constant 0 : i32
    return %c0_i32, %c0_i32_0 : i32, i32
  }
  func.func @transform_5(%arg0: i32) -> (i32, i32) {
    %c0_i32 = arith.constant 0 : i32
    %c0_i32_0 = arith.constant 0 : i32
    %c0_i32_1 = arith.constant 0 : i32
    return %c0_i32, %c0_i32_0 : i32, i32
  }
  func.func @transform_6(%arg0: i32) -> (i32, i32) {
    %c0_i32 = arith.constant 0 : i32
    %c0_i32_0 = arith.constant 0 : i32
    %c0_i32_1 = arith.constant 0 : i32
    return %c0_i32, %c0_i32_0 : i32, i32
  }
  func.func @transform_7(%arg0: i32) -> (i32, i32) {
    %c0_i32 = arith.constant 0 : i32
    %c0_i32_0 = arith.constant 0 : i32
    %c0_i32_1 = arith.constant 0 : i32
    return %c0_i32, %c0_i32_0 : i32, i32
  }
  func.func @transform_8(%arg0: i32) -> (i32, i32) {
    %c0_i32 = arith.constant 0 : i32
    %c0_i32_0 = arith.constant 0 : i32
    %c0_i32_1 = arith.constant 0 : i32
    return %c0_i32, %c0_i32_0 : i32, i32
  }
}

</mosaic_0001>

<llo_original>
// kernel: tpu_custom_call.1
$region0: #{tpu_custom_call.1}
  #allocation0 [shape = 'u32[]', space=smem, size = 0x4, offset = 0x4, fixed_abs, tag = 'smem constant byte address 0x4 - core index']
  #allocation1 [shape = 'u32[72,128]{1,0:T(1,128)}', space=vmem, size = 0x9000, scoped, tag = 'internal scratch']
  #allocation2 [shape = 'bf16[696,32]{1,0:T(8,128)(2,1)}', space=vmem, size = 0x2b800, scoped, tag = 'scratch operand']
  #allocation3 [shape = 'f32[1,1]{1,0:T(1,128)S(1)}', space=vmem, size = 0x200, scoped, tag = 'scoped memory for tpu_custom_call.1']
  %s0 = inlined_call_operand.vmem [shape: bf16[648,36], index: 0, kind: input, shape index: {}]
  %s1 = inlined_call_operand.vmem [shape: f32[648,1], index: 1, kind: input, shape index: {}]
  %s2 = inlined_call_operand.vmem [shape: bf16[36,32], index: 2, kind: input, shape index: {}]
  %s3 = inlined_call_operand.vmem [shape: f32[1,32], index: 3, kind: input, shape index: {}]
  %s4 = inlined_call_operand.vmem [shape: bf16[288,32], index: 4, kind: input, shape index: {}]
  %s5 = inlined_call_operand.vmem [shape: f32[1,32], index: 5, kind: input, shape index: {}]
  %s6 = inlined_call_operand.vmem [shape: f32[1,32], index: 6, kind: input, shape index: {}]
  %s7 = inlined_call_operand.<no memory space> [shape: f32[1,1], index: 7, kind: input, shape index: {}]
  %s8 = inlined_call_operand.vmem [shape: f32[648,32], index: 8, kind: output, shape index: {}]
  %s9 = sld [smem:[#allocation0]]
  $region42: #{tpu_custom_call.1} parent=0
    _
  %s11 = ssub.s32 1, %s9
  %s12 = scalar_select 0, %s11, %s9
  %v13 = vstv %s7
  %14 = vst [vmem:[#allocation3] sm:$0x1] %v13
  // Predicated region
  $region2: #{tpu_custom_call.1} parent=0 // pred_check
    _
  $region3: #{tpu_custom_call.1} parent=0 // pred_check_branch
    %16 = sbr.rel (0) target = $region5
  $region4: #{tpu_custom_call.1} parent=0 // pred_region
    _
  $region5: #{tpu_custom_call.1} parent=0 // pred_fallthru
    _
  // Predicated region
  $region6: #{tpu_custom_call.1} parent=0 // pred_check
    _
  $region7: #{tpu_custom_call.1} parent=0 // pred_check_branch
    %18 = sbr.rel (0) target = $region9
  $region8: #{tpu_custom_call.1} parent=0 // pred_region
    _
  $region9: #{tpu_custom_call.1} parent=0 // pred_fallthru
    _
  // Predicated region
  $region10: #{tpu_custom_call.1} parent=0 // pred_check
    _
  $region11: #{tpu_custom_call.1} parent=0 // pred_check_branch
    %20 = sbr.rel (0) target = $region13
  $region12: #{tpu_custom_call.1} parent=0 // pred_region
    _
  $region13: #{tpu_custom_call.1} parent=0 // pred_fallthru
    _
  // Predicated region
  $region14: #{tpu_custom_call.1} parent=0 // pred_check
    _
  $region15: #{tpu_custom_call.1} parent=0 // pred_check_branch
    %22 = sbr.rel (0) target = $region17
  $region16: #{tpu_custom_call.1} parent=0 // pred_region
    _
  $region17: #{tpu_custom_call.1} parent=0 // pred_fallthru
    _
  // Predicated region
  $region18: #{tpu_custom_call.1} parent=0 // pred_check
    _
  $region19: #{tpu_custom_call.1} parent=0 // pred_check_branch
    %24 = sbr.rel (0) target = $region21
  $region20: #{tpu_custom_call.1} parent=0 // pred_region
    _
  $region21: #{tpu_custom_call.1} parent=0 // pred_fallthru
    _
  // Predicated region
  $region22: #{tpu_custom_call.1} parent=0 // pred_check
    _
  $region23: #{tpu_custom_call.1} parent=0 // pred_check_branch
    %26 = sbr.rel (0) target = $region25
  $region24: #{tpu_custom_call.1} parent=0 // pred_region
    _
  $region25: #{tpu_custom_call.1} parent=0 // pred_fallthru
    _
  // Predicated region
  $region26: #{tpu_custom_call.1} parent=0 // pred_check
    _
  $region27: #{tpu_custom_call.1} parent=0 // pred_check_branch
    %28 = sbr.rel (0) target = $region29
  $region28: #{tpu_custom_call.1} parent=0 // pred_region
    _
  $region29: #{tpu_custom_call.1} parent=0 // pred_fallthru
    _
  // Predicated region
  $region30: #{tpu_custom_call.1} parent=0 // pred_check
    _
  $region31: #{tpu_custom_call.1} parent=0 // pred_check_branch
    %30 = sbr.rel (0) target = $region33
  $region32: #{tpu_custom_call.1} parent=0 // pred_region
    _
  $region33: #{tpu_custom_call.1} parent=0 // pred_fallthru
    _
  %vm32 = vcmask 257024
  %33 = vst.msk [vmem:[#allocation2] sm:$0xf] %vm32, 0
  %34 = vst.msk [vmem:[#allocation2 + $0x4] sm:$0xf] %vm32, 0
  %35 = vst.msk [vmem:[#allocation2 + $0x8] sm:$0xf] %vm32, 0
  %36 = vst.msk [vmem:[#allocation2 + $0x150] sm:$0xf] %vm32, 0
  %37 = vst.msk [vmem:[#allocation2 + $0x154] sm:$0xf] %vm32, 0
  %38 = vst.msk [vmem:[#allocation2 + $0x158] sm:$0xf] %vm32, 0
  %v39 = vld [vmem:[%s0] sm:$0xf]
  %v40 = vld [vmem:[%s0 + $0x4] sm:$0xf]
  %v41 = vld [vmem:[%s0 + $0x8] sm:$0xf]
  %v42 = vld [vmem:[%s0 + $0xc] sm:$0xf]
  %v43 = vld [vmem:[%s0 + $0x10] sm:$0xf]
  %v44 = vld [vmem:[%s0 + $0x14] sm:$0xf]
  %v45 = vld [vmem:[%s0 + $0x18] sm:$0xf]
  %v46 = vld [vmem:[%s0 + $0x1c] sm:$0xf]
  %v47 = vld [vmem:[%s0 + $0x20] sm:$0xf]
  %v48 = vld [vmem:[%s0 + $0x24] sm:$0xf]
  %v49 = vld [vmem:[%s0 + $0x28] sm:$0xf]
  %v50 = vld [vmem:[%s0 + $0x2c] sm:$0xf]
  %v51 = vld [vmem:[%s0 + $0x30] sm:$0xf]
  %v52 = vld [vmem:[%s0 + $0x34] sm:$0xf]
  %v53 = vld [vmem:[%s0 + $0x38] sm:$0xf]
  %v54 = vld [vmem:[%s0 + $0x3c] sm:$0xf]
  %v55 = vld [vmem:[%s0 + $0x40] sm:$0xf]
  %v56 = vld [vmem:[%s0 + $0x44] sm:$0xf]
  %v57 = vld [vmem:[%s0 + $0x48] sm:$0xf]
  %v58 = vld [vmem:[%s0 + $0x4c] sm:$0xf]
  %v59 = vld [vmem:[%s0 + $0x50] sm:$0xf]
  %v60 = vld [vmem:[%s0 + $0x54] sm:$0xf]
  %v61 = vld [vmem:[%s0 + $0x58] sm:$0xf]
  %v62 = vld [vmem:[%s0 + $0x5c] sm:$0xf]
  %v63 = vld [vmem:[%s0 + $0x60] sm:$0xf]
  %v64 = vld [vmem:[%s0 + $0x64] sm:$0xf]
  %v65 = vld [vmem:[%s0 + $0x68] sm:$0xf]
  %v66 = vld [vmem:[%s0 + $0x6c] sm:$0xf]
  %v67 = vld [vmem:[%s0 + $0x70] sm:$0xf]
  %v68 = vld [vmem:[%s0 + $0x74] sm:$0xf]
  %v69 = vld [vmem:[%s0 + $0x78] sm:$0xf]
  %v70 = vld [vmem:[%s0 + $0x7c] sm:$0xf]
  %v71 = vld [vmem:[%s0 + $0x80] sm:$0xf]
  %v72 = vld [vmem:[%s0 + $0x84] sm:$0xf]
  %v73 = vld [vmem:[%s0 + $0x88] sm:$0xf]
  %v74 = vld [vmem:[%s0 + $0x8c] sm:$0xf]
  %v75 = vld [vmem:[%s0 + $0x90] sm:$0xf]
  %v76 = vld [vmem:[%s0 + $0x94] sm:$0xf]
  %v77 = vld [vmem:[%s0 + $0x98] sm:$0xf]
  %v78 = vld [vmem:[%s0 + $0x9c] sm:$0xf]
  %v79 = vld [vmem:[%s0 + $0xa0] sm:$0xf]
  %v80 = vld [vmem:[%s0 + $0xa4] sm:$0xf]
  %v81 = vld [vmem:[%s0 + $0xa8] sm:$0xf]
  %v82 = vld [vmem:[%s0 + $0xac] sm:$0xf]
  %v83 = vld [vmem:[%s0 + $0xb0] sm:$0xf]
  %v84 = vld [vmem:[%s0 + $0xb4] sm:$0xf]
  %v85 = vld [vmem:[%s0 + $0xb8] sm:$0xf]
  %v86 = vld [vmem:[%s0 + $0xbc] sm:$0xf]
  %v87 = vld [vmem:[%s0 + $0xc0] sm:$0xf]
  %v88 = vld [vmem:[%s0 + $0xc4] sm:$0xf]
  %v89 = vld [vmem:[%s0 + $0xc8] sm:$0xf]
  %v90 = vld [vmem:[%s0 + $0xcc] sm:$0xf]
  %v91 = vld [vmem:[%s0 + $0xd0] sm:$0xf]
  %v92 = vld [vmem:[%s0 + $0xd4] sm:$0xf]
  %v93 = vld [vmem:[%s0 + $0xd8] sm:$0xf]
  %v94 = vld [vmem:[%s0 + $0xdc] sm:$0xf]
  %v95 = vld [vmem:[%s0 + $0xe0] sm:$0xf]
  %v96 = vld [vmem:[%s0 + $0xe4] sm:$0xf]
  %v97 = vld [vmem:[%s0 + $0xe8] sm:$0xf]
  %v98 = vld [vmem:[%s0 + $0xec] sm:$0xf]
  %v99 = vld [vmem:[%s0 + $0xf0] sm:$0xf]
  %v100 = vld [vmem:[%s0 + $0xf4] sm:$0xf]
  %v101 = vld [vmem:[%s0 + $0xf8] sm:$0xf]
  %v102 = vld [vmem:[%s0 + $0xfc] sm:$0xf]
  %v103 = vld [vmem:[%s0 + $0x100] sm:$0xf]
  %v104 = vld [vmem:[%s0 + $0x104] sm:$0xf]
  %v105 = vld [vmem:[%s0 + $0x108] sm:$0xf]
  %v106 = vld [vmem:[%s0 + $0x10c] sm:$0xf]
  %v107 = vld [vmem:[%s0 + $0x110] sm:$0xf]
  %v108 = vld [vmem:[%s0 + $0x114] sm:$0xf]
  %v109 = vld [vmem:[%s0 + $0x118] sm:$0xf]
  %v110 = vld [vmem:[%s0 + $0x11c] sm:$0xf]
  %v111 = vld [vmem:[%s0 + $0x120] sm:$0xf]
  %v112 = vld [vmem:[%s0 + $0x124] sm:$0xf]
  %v113 = vld [vmem:[%s0 + $0x128] sm:$0xf]
  %v114 = vld [vmem:[%s0 + $0x12c] sm:$0xf]
  %v115 = vld [vmem:[%s0 + $0x130] sm:$0xf]
  %v116 = vld [vmem:[%s0 + $0x134] sm:$0xf]
  %v117 = vld [vmem:[%s0 + $0x138] sm:$0xf]
  %v118 = vld [vmem:[%s0 + $0x13c] sm:$0xf]
  %v119 = vld [vmem:[%s0 + $0x140] sm:$0xf]
  %v120 = vld [vmem:[%s2] sm:$0xf]
  %v121 = vld [vmem:[%s2 + $0x4] sm:$0xf]
  %v122 = vld [vmem:[%s2 + $0x8] sm:$0xf]
  %v123 = vld [vmem:[%s2 + $0xc] sm:$0xf]
  %v124 = vld [vmem:[%s2 + $0x10] sm:$0x3]
  %v125 = vld [vmem:[%s3] sm:$0x1]
  %v127 = vperm.slane %v125, 0
  %v210 = vunpack.c.l.b16 %v39
  %v211 = vunpack.c.l.b16 %v40
  %v212 = vunpack.c.l.b16 %v41
  %v213 = vunpack.c.l.b16 %v42
  %v214 = vunpack.c.l.b16 %v43
  %v215 = vunpack.c.l.b16 %v44
  %v216 = vunpack.c.l.b16 %v45
  %v217 = vunpack.c.l.b16 %v46
  %v218 = vunpack.c.l.b16 %v47
  %v219 = vunpack.c.l.b16 %v48
  %v220 = vunpack.c.l.b16 %v49
  %v221 = vunpack.c.l.b16 %v50
  %v222 = vunpack.c.l.b16 %v51
  %v223 = vunpack.c.l.b16 %v52
  %v224 = vunpack.c.l.b16 %v53
  %v225 = vunpack.c.l.b16 %v54
  %v226 = vunpack.c.l.b16 %v55
  %v227 = vunpack.c.l.b16 %v56
  %v228 = vunpack.c.l.b16 %v57
  %v229 = vunpack.c.l.b16 %v58
  %v230 = vunpack.c.l.b16 %v59
  %v231 = vunpack.c.l.b16 %v60
  %v232 = vunpack.c.l.b16 %v61
  %v233 = vunpack.c.l.b16 %v62
  %v234 = vunpack.c.l.b16 %v63
  %v235 = vunpack.c.l.b16 %v64
  %v236 = vunpack.c.l.b16 %v65
  %v237 = vunpack.c.l.b16 %v66
  %v238 = vunpack.c.l.b16 %v67
  %v239 = vunpack.c.l.b16 %v68
  %v240 = vunpack.c.l.b16 %v69
  %v241 = vunpack.c.l.b16 %v70
  %v242 = vunpack.c.l.b16 %v71
  %v243 = vunpack.c.l.b16 %v72
  %v244 = vunpack.c.l.b16 %v73
  %v245 = vunpack.c.l.b16 %v74
  %v246 = vunpack.c.l.b16 %v75
  %v247 = vunpack.c.l.b16 %v76
  %v248 = vunpack.c.l.b16 %v77
  %v249 = vunpack.c.l.b16 %v78
  %v250 = vunpack.c.l.b16 %v79
  %v251 = vunpack.c.l.b16 %v80
  %v252 = vunpack.c.l.b16 %v81
  %v253 = vunpack.c.l.b16 %v82
  %v254 = vunpack.c.l.b16 %v83
  %v255 = vunpack.c.l.b16 %v84
  %v256 = vunpack.c.l.b16 %v85
  %v257 = vunpack.c.l.b16 %v86
  %v258 = vunpack.c.l.b16 %v87
  %v259 = vunpack.c.l.b16 %v88
  %v260 = vunpack.c.l.b16 %v89
  %v261 = vunpack.c.l.b16 %v90
  %v262 = vunpack.c.l.b16 %v91
  %v263 = vunpack.c.l.b16 %v92
  %v264 = vunpack.c.l.b16 %v93
  %v265 = vunpack.c.l.b16 %v94
  %v266 = vunpack.c.l.b16 %v95
  %v267 = vunpack.c.l.b16 %v96
  %v268 = vunpack.c.l.b16 %v97
  %v269 = vunpack.c.l.b16 %v98
  %v270 = vunpack.c.l.b16 %v99
  %v271 = vunpack.c.l.b16 %v100
  %v272 = vunpack.c.l.b16 %v101
  %v273 = vunpack.c.l.b16 %v102
  %v274 = vunpack.c.l.b16 %v103
  %v275 = vunpack.c.l.b16 %v104
  %v276 = vunpack.c.l.b16 %v105
  %v277 = vunpack.c.l.b16 %v106
  %v278 = vunpack.c.l.b16 %v107
  %v279 = vunpack.c.l.b16 %v108
  %v280 = vunpack.c.l.b16 %v109
  %v281 = vunpack.c.l.b16 %v110
  %v282 = vunpack.c.l.b16 %v111
  %v283 = vunpack.c.l.b16 %v112
  %v284 = vunpack.c.l.b16 %v113
  %v285 = vunpack.c.l.b16 %v114
  %v286 = vunpack.c.l.b16 %v115
  %v287 = vunpack.c.l.b16 %v116
  %v288 = vunpack.c.l.b16 %v117
  %v289 = vunpack.c.l.b16 %v118
  %v290 = vunpack.c.l.b16 %v119
  %v291 = vpack.c.b16 %v211, %v210
  %v292 = vpack.c.b16 %v213, %v212
  %v293 = vpack.c.b16 %v215, %v214
  %v294 = vpack.c.b16 %v217, %v216
  %v295 = vpack.c.b16 %v219, %v218
  %v296 = vpack.c.b16 %v221, %v220
  %v297 = vpack.c.b16 %v223, %v222
  %v298 = vpack.c.b16 %v225, %v224
  %v299 = vpack.c.b16 %v227, %v226
  %v300 = vpack.c.b16 %v229, %v228
  %v301 = vpack.c.b16 %v231, %v230
  %v302 = vpack.c.b16 %v233, %v232
  %v303 = vpack.c.b16 %v235, %v234
  %v304 = vpack.c.b16 %v237, %v236
  %v305 = vpack.c.b16 %v239, %v238
  %v306 = vpack.c.b16 %v241, %v240
  %v307 = vpack.c.b16 %v243, %v242
  %v308 = vpack.c.b16 %v245, %v244
  %v309 = vpack.c.b16 %v247, %v246
  %v310 = vpack.c.b16 %v249, %v248
  %v311 = vpack.c.b16 %v251, %v250
  %v312 = vpack.c.b16 %v253, %v252
  %v313 = vpack.c.b16 %v255, %v254
  %v314 = vpack.c.b16 %v257, %v256
  %v315 = vpack.c.b16 %v259, %v258
  %v316 = vpack.c.b16 %v261, %v260
  %v317 = vpack.c.b16 %v263, %v262
  %v318 = vpack.c.b16 %v265, %v264
  %v319 = vpack.c.b16 %v267, %v266
  %v320 = vpack.c.b16 %v269, %v268
  %v321 = vpack.c.b16 %v271, %v270
  %v322 = vpack.c.b16 %v273, %v272
  %v323 = vpack.c.b16 %v275, %v274
  %v324 = vpack.c.b16 %v277, %v276
  %v325 = vpack.c.b16 %v279, %v278
  %v326 = vpack.c.b16 %v281, %v280
  %v327 = vpack.c.b16 %v283, %v282
  %v328 = vpack.c.b16 %v285, %v284
  %v329 = vpack.c.b16 %v287, %v286
  %v330 = vpack.c.b16 %v289, %v288
  %v331 = vpack.c.b16 %v290, %v290
  %v337 = vunpack.c.l.b16 %v120
  %v338 = vunpack.c.l.b16 %v121
  %v339 = vunpack.c.l.b16 %v122
  %v340 = vunpack.c.l.b16 %v123
  %v341 = vunpack.c.l.b16 %v124
  %v342 = vpack.c.b16 %v338, %v337
  %v343 = vpack.c.b16 %v340, %v339
  %v344 = vpack.c.b16 %v341, %v341
  %vm347 = vcmask 293888
  %v349 = vsel %vm347, %v291, 0
  %v352 = vsel %vm347, %v292, 0
  %v355 = vsel %vm347, %v293, 0
  %v358 = vsel %vm347, %v294, 0
  %v361 = vsel %vm347, %v295, 0
  %v364 = vsel %vm347, %v296, 0
  %v367 = vsel %vm347, %v297, 0
  %v370 = vsel %vm347, %v298, 0
  %v373 = vsel %vm347, %v299, 0
  %v376 = vsel %vm347, %v300, 0
  %v379 = vsel %vm347, %v301, 0
  %v382 = vsel %vm347, %v302, 0
  %v385 = vsel %vm347, %v303, 0
  %v388 = vsel %vm347, %v304, 0
  %v391 = vsel %vm347, %v305, 0
  %v394 = vsel %vm347, %v306, 0
  %v397 = vsel %vm347, %v307, 0
  %v400 = vsel %vm347, %v308, 0
  %v403 = vsel %vm347, %v309, 0
  %v406 = vsel %vm347, %v310, 0
  %v409 = vsel %vm347, %v311, 0
  %v412 = vsel %vm347, %v312, 0
  %v415 = vsel %vm347, %v313, 0
  %v418 = vsel %vm347, %v314, 0
  %v421 = vsel %vm347, %v315, 0
  %v424 = vsel %vm347, %v316, 0
  %v427 = vsel %vm347, %v317, 0
  %v430 = vsel %vm347, %v318, 0
  %v433 = vsel %vm347, %v319, 0
  %v436 = vsel %vm347, %v320, 0
  %v439 = vsel %vm347, %v321, 0
  %v442 = vsel %vm347, %v322, 0
  %v445 = vsel %vm347, %v323, 0
  %v448 = vsel %vm347, %v324, 0
  %v451 = vsel %vm347, %v325, 0
  %v454 = vsel %vm347, %v326, 0
  %v457 = vsel %vm347, %v327, 0
  %v460 = vsel %vm347, %v328, 0
  %v463 = vsel %vm347, %v329, 0
  %v466 = vsel %vm347, %v330, 0
  %v469 = vsel %vm347, %v331, 0
  %vm471 = vcmask 1041408
  %v473 = vsel %vm471, %v344, 0
  %475 = vmatpush.bf16.msra.mxu0 0
  %476 = vmatpush.bf16.msra.mxu0 0
  %477 = vmatpush.bf16.msra.mxu0 0
  %478 = vmatpush.bf16.msra.mxu0 0
  %479 = vmatpush.bf16.msra.mxu0 0
  %480 = vmatpush.bf16.msra.mxu0 %v473
  %481 = vmatpush.bf16.msra.mxu0 %v343
  %482 = vmatpush.bf16.msra.mxu0 %v342
  %483 = vmatmul.bf16.gmra.mxu0 %v349
  %v484 = vpop.f32.mrf.mxu0
  %v485 = vadd.f32 %v127, %v484
  %v486 = vpop.f32.mrf.mxu0
  %v487 = vadd.f32 %v127, %v486
  %488 = vmatmul.bf16.gmra.mxu0 %v352
  %v489 = vpop.f32.mrf.mxu0
  %v490 = vadd.f32 %v127, %v489
  %v491 = vpop.f32.mrf.mxu0
  %v492 = vadd.f32 %v127, %v491
  %493 = vmatmul.bf16.gmra.mxu0 %v355
  %v494 = vpop.f32.mrf.mxu0
  %v495 = vadd.f32 %v127, %v494
  %v496 = vpop.f32.mrf.mxu0
  %v497 = vadd.f32 %v127, %v496
  %498 = vmatmul.bf16.gmra.mxu0 %v358
  %v499 = vpop.f32.mrf.mxu0
  %v500 = vadd.f32 %v127, %v499
  %v501 = vpop.f32.mrf.mxu0
  %v502 = vadd.f32 %v127, %v501
  %503 = vmatmul.bf16.gmra.mxu0 %v361
  %v504 = vpop.f32.mrf.mxu0
  %v505 = vadd.f32 %v127, %v504
  %v506 = vpop.f32.mrf.mxu0
  %v507 = vadd.f32 %v127, %v506
  %508 = vmatmul.bf16.gmra.mxu0 %v364
  %v509 = vpop.f32.mrf.mxu0
  %v510 = vadd.f32 %v127, %v509
  %v511 = vpop.f32.mrf.mxu0
  %v512 = vadd.f32 %v127, %v511
  %513 = vmatmul.bf16.gmra.mxu0 %v367
  %v514 = vpop.f32.mrf.mxu0
  %v515 = vadd.f32 %v127, %v514
  %v516 = vpop.f32.mrf.mxu0
  %v517 = vadd.f32 %v127, %v516
  %518 = vmatmul.bf16.gmra.mxu0 %v370
  %v519 = vpop.f32.mrf.mxu0
  %v520 = vadd.f32 %v127, %v519
  %v521 = vpop.f32.mrf.mxu0
  %v522 = vadd.f32 %v127, %v521
  %523 = vmatmul.bf16.gmra.mxu0 %v373
  %v524 = vpop.f32.mrf.mxu0
  %v525 = vadd.f32 %v127, %v524
  %v526 = vpop.f32.mrf.mxu0
  %v527 = vadd.f32 %v127, %v526
  %528 = vmatmul.bf16.gmra.mxu0 %v376
  %v529 = vpop.f32.mrf.mxu0
  %v530 = vadd.f32 %v127, %v529
  %v531 = vpop.f32.mrf.mxu0
  %v532 = vadd.f32 %v127, %v531
  %533 = vmatmul.bf16.gmra.mxu0 %v379
  %v534 = vpop.f32.mrf.mxu0
  %v535 = vadd.f32 %v127, %v534
  %v536 = vpop.f32.mrf.mxu0
  %v537 = vadd.f32 %v127, %v536
  %538 = vmatmul.bf16.gmra.mxu0 %v382
  %v539 = vpop.f32.mrf.mxu0
  %v540 = vadd.f32 %v127, %v539
  %v541 = vpop.f32.mrf.mxu0
  %v542 = vadd.f32 %v127, %v541
  %543 = vmatmul.bf16.gmra.mxu0 %v385
  %v544 = vpop.f32.mrf.mxu0
  %v545 = vadd.f32 %v127, %v544
  %v546 = vpop.f32.mrf.mxu0
  %v547 = vadd.f32 %v127, %v546
  %548 = vmatmul.bf16.gmra.mxu0 %v388
  %v549 = vpop.f32.mrf.mxu0
  %v550 = vadd.f32 %v127, %v549
  %v551 = vpop.f32.mrf.mxu0
  %v552 = vadd.f32 %v127, %v551
  %553 = vmatmul.bf16.gmra.mxu0 %v391
  %v554 = vpop.f32.mrf.mxu0
  %v555 = vadd.f32 %v127, %v554
  %v556 = vpop.f32.mrf.mxu0
  %v557 = vadd.f32 %v127, %v556
  %558 = vmatmul.bf16.gmra.mxu0 %v394
  %v559 = vpop.f32.mrf.mxu0
  %v560 = vadd.f32 %v127, %v559
  %v561 = vpop.f32.mrf.mxu0
  %v562 = vadd.f32 %v127, %v561
  %563 = vmatmul.bf16.gmra.mxu0 %v397
  %v564 = vpop.f32.mrf.mxu0
  %v565 = vadd.f32 %v127, %v564
  %v566 = vpop.f32.mrf.mxu0
  %v567 = vadd.f32 %v127, %v566
  %568 = vmatmul.bf16.gmra.mxu0 %v400
  %v569 = vpop.f32.mrf.mxu0
  %v570 = vadd.f32 %v127, %v569
  %v571 = vpop.f32.mrf.mxu0
  %v572 = vadd.f32 %v127, %v571
  %573 = vmatmul.bf16.gmra.mxu0 %v403
  %v574 = vpop.f32.mrf.mxu0
  %v575 = vadd.f32 %v127, %v574
  %v576 = vpop.f32.mrf.mxu0
  %v577 = vadd.f32 %v127, %v576
  %578 = vmatmul.bf16.gmra.mxu0 %v406
  %v579 = vpop.f32.mrf.mxu0
  %v580 = vadd.f32 %v127, %v579
  %v581 = vpop.f32.mrf.mxu0
  %v582 = vadd.f32 %v127, %v581
  %583 = vmatmul.bf16.gmra.mxu0 %v409
  %v584 = vpop.f32.mrf.mxu0
  %v585 = vadd.f32 %v127, %v584
  %v586 = vpop.f32.mrf.mxu0
  %v587 = vadd.f32 %v127, %v586
  %588 = vmatmul.bf16.gmra.mxu0 %v412
  %v589 = vpop.f32.mrf.mxu0
  %v590 = vadd.f32 %v127, %v589
  %v591 = vpop.f32.mrf.mxu0
  %v592 = vadd.f32 %v127, %v591
  %593 = vmatmul.bf16.gmra.mxu0 %v415
  %v594 = vpop.f32.mrf.mxu0
  %v595 = vadd.f32 %v127, %v594
  %v596 = vpop.f32.mrf.mxu0
  %v597 = vadd.f32 %v127, %v596
  %598 = vmatmul.bf16.gmra.mxu0 %v418
  %v599 = vpop.f32.mrf.mxu0
  %v600 = vadd.f32 %v127, %v599
  %v601 = vpop.f32.mrf.mxu0
  %v602 = vadd.f32 %v127, %v601
  %603 = vmatmul.bf16.gmra.mxu0 %v421
  %v604 = vpop.f32.mrf.mxu0
  %v605 = vadd.f32 %v127, %v604
  %v606 = vpop.f32.mrf.mxu0
  %v607 = vadd.f32 %v127, %v606
  %608 = vmatmul.bf16.gmra.mxu0 %v424
  %v609 = vpop.f32.mrf.mxu0
  %v610 = vadd.f32 %v127, %v609
  %v611 = vpop.f32.mrf.mxu0
  %v612 = vadd.f32 %v127, %v611
  %613 = vmatmul.bf16.gmra.mxu0 %v427
  %v614 = vpop.f32.mrf.mxu0
  %v615 = vadd.f32 %v127, %v614
  %v616 = vpop.f32.mrf.mxu0
  %v617 = vadd.f32 %v127, %v616
  %618 = vmatmul.bf16.gmra.mxu0 %v430
  %v619 = vpop.f32.mrf.mxu0
  %v620 = vadd.f32 %v127, %v619
  %v621 = vpop.f32.mrf.mxu0
  %v622 = vadd.f32 %v127, %v621
  %623 = vmatmul.bf16.gmra.mxu0 %v433
  %v624 = vpop.f32.mrf.mxu0
  %v625 = vadd.f32 %v127, %v624
  %v626 = vpop.f32.mrf.mxu0
  %v627 = vadd.f32 %v127, %v626
  %628 = vmatmul.bf16.gmra.mxu0 %v436
  %v629 = vpop.f32.mrf.mxu0
  %v630 = vadd.f32 %v127, %v629
  %v631 = vpop.f32.mrf.mxu0
  %v632 = vadd.f32 %v127, %v631
  %633 = vmatmul.bf16.gmra.mxu0 %v439
  %v634 = vpop.f32.mrf.mxu0
  %v635 = vadd.f32 %v127, %v634
  %v636 = vpop.f32.mrf.mxu0
  %v637 = vadd.f32 %v127, %v636
  %638 = vmatmul.bf16.gmra.mxu0 %v442
  %v639 = vpop.f32.mrf.mxu0
  %v640 = vadd.f32 %v127, %v639
  %v641 = vpop.f32.mrf.mxu0
  %v642 = vadd.f32 %v127, %v641
  %643 = vmatmul.bf16.gmra.mxu0 %v445
  %v644 = vpop.f32.mrf.mxu0
  %v645 = vadd.f32 %v127, %v644
  %v646 = vpop.f32.mrf.mxu0
  %v647 = vadd.f32 %v127, %v646
  %648 = vmatmul.bf16.gmra.mxu0 %v448
  %v649 = vpop.f32.mrf.mxu0
  %v650 = vadd.f32 %v127, %v649
  %v651 = vpop.f32.mrf.mxu0
  %v652 = vadd.f32 %v127, %v651
  %653 = vmatmul.bf16.gmra.mxu0 %v451
  %v654 = vpop.f32.mrf.mxu0
  %v655 = vadd.f32 %v127, %v654
  %v656 = vpop.f32.mrf.mxu0
  %v657 = vadd.f32 %v127, %v656
  %658 = vmatmul.bf16.gmra.mxu0 %v454
  %v659 = vpop.f32.mrf.mxu0
  %v660 = vadd.f32 %v127, %v659
  %v661 = vpop.f32.mrf.mxu0
  %v662 = vadd.f32 %v127, %v661
  %663 = vmatmul.bf16.gmra.mxu0 %v457
  %v664 = vpop.f32.mrf.mxu0
  %v665 = vadd.f32 %v127, %v664
  %v666 = vpop.f32.mrf.mxu0
  %v667 = vadd.f32 %v127, %v666
  %668 = vmatmul.bf16.gmra.mxu0 %v460
  %v669 = vpop.f32.mrf.mxu0
  %v670 = vadd.f32 %v127, %v669
  %v671 = vpop.f32.mrf.mxu0
  %v672 = vadd.f32 %v127, %v671
  %673 = vmatmul.bf16.gmra.mxu0 %v463
  %v674 = vpop.f32.mrf.mxu0
  %v675 = vadd.f32 %v127, %v674
  %v676 = vpop.f32.mrf.mxu0
  %v677 = vadd.f32 %v127, %v676
  %678 = vmatmul.bf16.gmra.mxu0 %v466
  %v679 = vpop.f32.mrf.mxu0
  %v680 = vadd.f32 %v127, %v679
  %v681 = vpop.f32.mrf.mxu0
  %v682 = vadd.f32 %v127, %v681
  %683 = vmatmul.bf16.gmra.mxu0 %v469
  %v684 = vpop.f32.mrf.mxu0
  %v685 = vadd.f32 %v127, %v684
  %v686 = vpop.f32.mrf.mxu0
  %687 = vdwg.mxu0
  %v688 = vmax.f32 %v485, 0.0
  %v689 = vmax.f32 %v487, 0.0
  %v690 = vmax.f32 %v490, 0.0
  %v691 = vmax.f32 %v492, 0.0
  %v692 = vmax.f32 %v495, 0.0
  %v693 = vmax.f32 %v497, 0.0
  %v694 = vmax.f32 %v500, 0.0
  %v695 = vmax.f32 %v502, 0.0
  %v696 = vmax.f32 %v505, 0.0
  %v697 = vmax.f32 %v507, 0.0
  %v698 = vmax.f32 %v510, 0.0
  %v699 = vmax.f32 %v512, 0.0
  %v700 = vmax.f32 %v515, 0.0
  %v701 = vmax.f32 %v517, 0.0
  %v702 = vmax.f32 %v520, 0.0
  %v703 = vmax.f32 %v522, 0.0
  %v704 = vmax.f32 %v525, 0.0
  %v705 = vmax.f32 %v527, 0.0
  %v706 = vmax.f32 %v530, 0.0
  %v707 = vmax.f32 %v532, 0.0
  %v708 = vmax.f32 %v535, 0.0
  %v709 = vmax.f32 %v537, 0.0
  %v710 = vmax.f32 %v540, 0.0
  %v711 = vmax.f32 %v542, 0.0
  %v712 = vmax.f32 %v545, 0.0
  %v713 = vmax.f32 %v547, 0.0
  %v714 = vmax.f32 %v550, 0.0
  %v715 = vmax.f32 %v552, 0.0
  %v716 = vmax.f32 %v555, 0.0
  %v717 = vmax.f32 %v557, 0.0
  %v718 = vmax.f32 %v560, 0.0
  %v719 = vmax.f32 %v562, 0.0
  %v720 = vmax.f32 %v565, 0.0
  %v721 = vmax.f32 %v567, 0.0
  %v722 = vmax.f32 %v570, 0.0
  %v723 = vmax.f32 %v572, 0.0
  %v724 = vmax.f32 %v575, 0.0
  %v725 = vmax.f32 %v577, 0.0
  %v726 = vmax.f32 %v580, 0.0
  %v727 = vmax.f32 %v582, 0.0
  %v728 = vmax.f32 %v585, 0.0
  %v729 = vmax.f32 %v587, 0.0
  %v730 = vmax.f32 %v590, 0.0
  %v731 = vmax.f32 %v592, 0.0
  %v732 = vmax.f32 %v595, 0.0
  %v733 = vmax.f32 %v597, 0.0
  %v734 = vmax.f32 %v600, 0.0
  %v735 = vmax.f32 %v602, 0.0
  %v736 = vmax.f32 %v605, 0.0
  %v737 = vmax.f32 %v607, 0.0
  %v738 = vmax.f32 %v610, 0.0
  %v739 = vmax.f32 %v612, 0.0
  %v740 = vmax.f32 %v615, 0.0
  %v741 = vmax.f32 %v617, 0.0
  %v742 = vmax.f32 %v620, 0.0
  %v743 = vmax.f32 %v622, 0.0
  %v744 = vmax.f32 %v625, 0.0
  %v745 = vmax.f32 %v627, 0.0
  %v746 = vmax.f32 %v630, 0.0
  %v747 = vmax.f32 %v632, 0.0
  %v748 = vmax.f32 %v635, 0.0
  %v749 = vmax.f32 %v637, 0.0
  %v750 = vmax.f32 %v640, 0.0
  %v751 = vmax.f32 %v642, 0.0
  %v752 = vmax.f32 %v645, 0.0
  %v753 = vmax.f32 %v647, 0.0
  %v754 = vmax.f32 %v650, 0.0
  %v755 = vmax.f32 %v652, 0.0
  %v756 = vmax.f32 %v655, 0.0
  %v757 = vmax.f32 %v657, 0.0
  %v758 = vmax.f32 %v660, 0.0
  %v759 = vmax.f32 %v662, 0.0
  %v760 = vmax.f32 %v665, 0.0
  %v761 = vmax.f32 %v667, 0.0
  %v762 = vmax.f32 %v670, 0.0
  %v763 = vmax.f32 %v672, 0.0
  %v764 = vmax.f32 %v675, 0.0
  %v765 = vmax.f32 %v677, 0.0
  %v766 = vmax.f32 %v680, 0.0
  %v767 = vmax.f32 %v682, 0.0
  %v768 = vmax.f32 %v685, 0.0
  %v769 = vld [vmem:[%s1] sm:$0xff]
  %v770 = vld [vmem:[%s1 + $0x8] sm:$0xff]
  %v771 = vld [vmem:[%s1 + $0x10] sm:$0xff]
  %v772 = vld [vmem:[%s1 + $0x18] sm:$0xff]
  %v773 = vld [vmem:[%s1 + $0x20] sm:$0xff]
  %v774 = vld [vmem:[%s1 + $0x28] sm:$0xff]
  %v775 = vld [vmem:[%s1 + $0x30] sm:$0xff]
  %v776 = vld [vmem:[%s1 + $0x38] sm:$0xff]
  %v777 = vld [vmem:[%s1 + $0x40] sm:$0xff]
  %v778 = vld [vmem:[%s1 + $0x48] sm:$0xff]
  %v779 = vld [vmem:[%s1 + $0x50] sm:$0xff]
  %v780 = vld [vmem:[%s1 + $0x58] sm:$0xff]
  %v781 = vld [vmem:[%s1 + $0x60] sm:$0xff]
  %v782 = vld [vmem:[%s1 + $0x68] sm:$0xff]
  %v783 = vld [vmem:[%s1 + $0x70] sm:$0xff]
  %v784 = vld [vmem:[%s1 + $0x78] sm:$0xff]
  %v785 = vld [vmem:[%s1 + $0x80] sm:$0xff]
  %v786 = vld [vmem:[%s1 + $0x88] sm:$0xff]
  %v787 = vld [vmem:[%s1 + $0x90] sm:$0xff]
  %v788 = vld [vmem:[%s1 + $0x98] sm:$0xff]
  %v789 = vld [vmem:[%s1 + $0xa0] sm:$0xff]
  %v790 = vld [vmem:[%s1 + $0xa8] sm:$0xff]
  %v791 = vld [vmem:[%s1 + $0xb0] sm:$0xff]
  %v792 = vld [vmem:[%s1 + $0xb8] sm:$0xff]
  %v793 = vld [vmem:[%s1 + $0xc0] sm:$0xff]
  %v794 = vld [vmem:[%s1 + $0xc8] sm:$0xff]
  %v795 = vld [vmem:[%s1 + $0xd0] sm:$0xff]
  %v796 = vld [vmem:[%s1 + $0xd8] sm:$0xff]
  %v797 = vld [vmem:[%s1 + $0xe0] sm:$0xff]
  %v798 = vld [vmem:[%s1 + $0xe8] sm:$0xff]
  %v799 = vld [vmem:[%s1 + $0xf0] sm:$0xff]
  %v800 = vld [vmem:[%s1 + $0xf8] sm:$0xff]
  %v801 = vld [vmem:[%s1 + $0x100] sm:$0xff]
  %v802 = vld [vmem:[%s1 + $0x108] sm:$0xff]
  %v803 = vld [vmem:[%s1 + $0x110] sm:$0xff]
  %v804 = vld [vmem:[%s1 + $0x118] sm:$0xff]
  %v805 = vld [vmem:[%s1 + $0x120] sm:$0xff]
  %v806 = vld [vmem:[%s1 + $0x128] sm:$0xff]
  %v807 = vld [vmem:[%s1 + $0x130] sm:$0xff]
  %v808 = vld [vmem:[%s1 + $0x138] sm:$0xff]
  %v809 = vld [vmem:[%s1 + $0x140] sm:$0xff]
  %v810 = vld [vmem:[%s1 + $0x148] sm:$0xff]
  %v811 = vld [vmem:[%s1 + $0x150] sm:$0xff]
  %v812 = vld [vmem:[%s1 + $0x158] sm:$0xff]
  %v813 = vld [vmem:[%s1 + $0x160] sm:$0xff]
  %v814 = vld [vmem:[%s1 + $0x168] sm:$0xff]
  %v815 = vld [vmem:[%s1 + $0x170] sm:$0xff]
  %v816 = vld [vmem:[%s1 + $0x178] sm:$0xff]
  %v817 = vld [vmem:[%s1 + $0x180] sm:$0xff]
  %v818 = vld [vmem:[%s1 + $0x188] sm:$0xff]
  %v819 = vld [vmem:[%s1 + $0x190] sm:$0xff]
  %v820 = vld [vmem:[%s1 + $0x198] sm:$0xff]
  %v821 = vld [vmem:[%s1 + $0x1a0] sm:$0xff]
  %v822 = vld [vmem:[%s1 + $0x1a8] sm:$0xff]
  %v823 = vld [vmem:[%s1 + $0x1b0] sm:$0xff]
  %v824 = vld [vmem:[%s1 + $0x1b8] sm:$0xff]
  %v825 = vld [vmem:[%s1 + $0x1c0] sm:$0xff]
  %v826 = vld [vmem:[%s1 + $0x1c8] sm:$0xff]
  %v827 = vld [vmem:[%s1 + $0x1d0] sm:$0xff]
  %v828 = vld [vmem:[%s1 + $0x1d8] sm:$0xff]
  %v829 = vld [vmem:[%s1 + $0x1e0] sm:$0xff]
  %v830 = vld [vmem:[%s1 + $0x1e8] sm:$0xff]
  %v831 = vld [vmem:[%s1 + $0x1f0] sm:$0xff]
  %v832 = vld [vmem:[%s1 + $0x1f8] sm:$0xff]
  %v833 = vld [vmem:[%s1 + $0x200] sm:$0xff]
  %v834 = vld [vmem:[%s1 + $0x208] sm:$0xff]
  %v835 = vld [vmem:[%s1 + $0x210] sm:$0xff]
  %v836 = vld [vmem:[%s1 + $0x218] sm:$0xff]
  %v837 = vld [vmem:[%s1 + $0x220] sm:$0xff]
  %v838 = vld [vmem:[%s1 + $0x228] sm:$0xff]
  %v839 = vld [vmem:[%s1 + $0x230] sm:$0xff]
  %v840 = vld [vmem:[%s1 + $0x238] sm:$0xff]
  %v841 = vld [vmem:[%s1 + $0x240] sm:$0xff]
  %v842 = vld [vmem:[%s1 + $0x248] sm:$0xff]
  %v843 = vld [vmem:[%s1 + $0x250] sm:$0xff]
  %v844 = vld [vmem:[%s1 + $0x258] sm:$0xff]
  %v845 = vld [vmem:[%s1 + $0x260] sm:$0xff]
  %v846 = vld [vmem:[%s1 + $0x268] sm:$0xff]
  %v847 = vld [vmem:[%s1 + $0x270] sm:$0xff]
  %v848 = vld [vmem:[%s1 + $0x278] sm:$0xff]
  %v849 = vld [vmem:[%s1 + $0x280] sm:$0xff]
  %851 = vset.pattern.permute.xlu0 0
  %852 = vperm.xlu0 %851, %v769
  %v853 = vpop.permute.xlu0 %852
  %856 = vset.pattern.permute.xlu0 0
  %857 = vperm.xlu0 %856, %v770
  %v858 = vpop.permute.xlu0 %857
  %861 = vset.pattern.permute.xlu0 0
  %862 = vperm.xlu0 %861, %v771
  %v863 = vpop.permute.xlu0 %862
  %866 = vset.pattern.permute.xlu0 0
  %867 = vperm.xlu0 %866, %v772
  %v868 = vpop.permute.xlu0 %867
  %871 = vset.pattern.permute.xlu0 0
  %872 = vperm.xlu0 %871, %v773
  %v873 = vpop.permute.xlu0 %872
  %876 = vset.pattern.permute.xlu0 0
  %877 = vperm.xlu0 %876, %v774
  %v878 = vpop.permute.xlu0 %877
  %881 = vset.pattern.permute.xlu0 0
  %882 = vperm.xlu0 %881, %v775
  %v883 = vpop.permute.xlu0 %882
  %886 = vset.pattern.permute.xlu0 0
  %887 = vperm.xlu0 %886, %v776
  %v888 = vpop.permute.xlu0 %887
  %891 = vset.pattern.permute.xlu0 0
  %892 = vperm.xlu0 %891, %v777
  %v893 = vpop.permute.xlu0 %892
  %896 = vset.pattern.permute.xlu0 0
  %897 = vperm.xlu0 %896, %v778
  %v898 = vpop.permute.xlu0 %897
  %901 = vset.pattern.permute.xlu0 0
  %902 = vperm.xlu0 %901, %v779
  %v903 = vpop.permute.xlu0 %902
  %906 = vset.pattern.permute.xlu0 0
  %907 = vperm.xlu0 %906, %v780
  %v908 = vpop.permute.xlu0 %907
  %911 = vset.pattern.permute.xlu0 0
  %912 = vperm.xlu0 %911, %v781
  %v913 = vpop.permute.xlu0 %912
  %916 = vset.pattern.permute.xlu0 0
  %917 = vperm.xlu0 %916, %v782
  %v918 = vpop.permute.xlu0 %917
  %921 = vset.pattern.permute.xlu0 0
  %922 = vperm.xlu0 %921, %v783
  %v923 = vpop.permute.xlu0 %922
  %926 = vset.pattern.permute.xlu0 0
  %927 = vperm.xlu0 %926, %v784
  %v928 = vpop.permute.xlu0 %927
  %931 = vset.pattern.permute.xlu0 0
  %932 = vperm.xlu0 %931, %v785
  %v933 = vpop.permute.xlu0 %932
  %936 = vset.pattern.permute.xlu0 0
  %937 = vperm.xlu0 %936, %v786
  %v938 = vpop.permute.xlu0 %937
  %941 = vset.pattern.permute.xlu0 0
  %942 = vperm.xlu0 %941, %v787
  %v943 = vpop.permute.xlu0 %942
  %946 = vset.pattern.permute.xlu0 0
  %947 = vperm.xlu0 %946, %v788
  %v948 = vpop.permute.xlu0 %947
  %951 = vset.pattern.permute.xlu0 0
  %952 = vperm.xlu0 %951, %v789
  %v953 = vpop.permute.xlu0 %952
  %956 = vset.pattern.permute.xlu0 0
  %957 = vperm.xlu0 %956, %v790
  %v958 = vpop.permute.xlu0 %957
  %961 = vset.pattern.permute.xlu0 0
  %962 = vperm.xlu0 %961, %v791
  %v963 = vpop.permute.xlu0 %962
  %966 = vset.pattern.permute.xlu0 0
  %967 = vperm.xlu0 %966, %v792
  %v968 = vpop.permute.xlu0 %967
  %971 = vset.pattern.permute.xlu0 0
  %972 = vperm.xlu0 %971, %v793
  %v973 = vpop.permute.xlu0 %972
  %976 = vset.pattern.permute.xlu0 0
  %977 = vperm.xlu0 %976, %v794
  %v978 = vpop.permute.xlu0 %977
  %981 = vset.pattern.permute.xlu0 0
  %982 = vperm.xlu0 %981, %v795
  %v983 = vpop.permute.xlu0 %982
  %986 = vset.pattern.permute.xlu0 0
  %987 = vperm.xlu0 %986, %v796
  %v988 = vpop.permute.xlu0 %987
  %991 = vset.pattern.permute.xlu0 0
  %992 = vperm.xlu0 %991, %v797
  %v993 = vpop.permute.xlu0 %992
  %996 = vset.pattern.permute.xlu0 0
  %997 = vperm.xlu0 %996, %v798
  %v998 = vpop.permute.xlu0 %997
  %1001 = vset.pattern.permute.xlu0 0
  %1002 = vperm.xlu0 %1001, %v799
  %v1003 = vpop.permute.xlu0 %1002
  %1006 = vset.pattern.permute.xlu0 0
  %1007 = vperm.xlu0 %1006, %v800
  %v1008 = vpop.permute.xlu0 %1007
  %1011 = vset.pattern.permute.xlu0 0
  %1012 = vperm.xlu0 %1011, %v801
  %v1013 = vpop.permute.xlu0 %1012
  %1016 = vset.pattern.permute.xlu0 0
  %1017 = vperm.xlu0 %1016, %v802
  %v1018 = vpop.permute.xlu0 %1017
  %1021 = vset.pattern.permute.xlu0 0
  %1022 = vperm.xlu0 %1021, %v803
  %v1023 = vpop.permute.xlu0 %1022
  %1026 = vset.pattern.permute.xlu0 0
  %1027 = vperm.xlu0 %1026, %v804
  %v1028 = vpop.permute.xlu0 %1027
  %1031 = vset.pattern.permute.xlu0 0
  %1032 = vperm.xlu0 %1031, %v805
  %v1033 = vpop.permute.xlu0 %1032
  %1036 = vset.pattern.permute.xlu0 0
  %1037 = vperm.xlu0 %1036, %v806
  %v1038 = vpop.permute.xlu0 %1037
  %1041 = vset.pattern.permute.xlu0 0
  %1042 = vperm.xlu0 %1041, %v807
  %v1043 = vpop.permute.xlu0 %1042
  %1046 = vset.pattern.permute.xlu0 0
  %1047 = vperm.xlu0 %1046, %v808
  %v1048 = vpop.permute.xlu0 %1047
  %1051 = vset.pattern.permute.xlu0 0
  %1052 = vperm.xlu0 %1051, %v809
  %v1053 = vpop.permute.xlu0 %1052
  %1056 = vset.pattern.permute.xlu0 0
  %1057 = vperm.xlu0 %1056, %v810
  %v1058 = vpop.permute.xlu0 %1057
  %1061 = vset.pattern.permute.xlu0 0
  %1062 = vperm.xlu0 %1061, %v811
  %v1063 = vpop.permute.xlu0 %1062
  %1066 = vset.pattern.permute.xlu0 0
  %1067 = vperm.xlu0 %1066, %v812
  %v1068 = vpop.permute.xlu0 %1067
  %1071 = vset.pattern.permute.xlu0 0
  %1072 = vperm.xlu0 %1071, %v813
  %v1073 = vpop.permute.xlu0 %1072
  %1076 = vset.pattern.permute.xlu0 0
  %1077 = vperm.xlu0 %1076, %v814
  %v1078 = vpop.permute.xlu0 %1077
  %1081 = vset.pattern.permute.xlu0 0
  %1082 = vperm.xlu0 %1081, %v815
  %v1083 = vpop.permute.xlu0 %1082
  %1086 = vset.pattern.permute.xlu0 0
  %1087 = vperm.xlu0 %1086, %v816
  %v1088 = vpop.permute.xlu0 %1087
  %1091 = vset.pattern.permute.xlu0 0
  %1092 = vperm.xlu0 %1091, %v817
  %v1093 = vpop.permute.xlu0 %1092
  %1096 = vset.pattern.permute.xlu0 0
  %1097 = vperm.xlu0 %1096, %v818
  %v1098 = vpop.permute.xlu0 %1097
  %1101 = vset.pattern.permute.xlu0 0
  %1102 = vperm.xlu0 %1101, %v819
  %v1103 = vpop.permute.xlu0 %1102
  %1106 = vset.pattern.permute.xlu0 0
  %1107 = vperm.xlu0 %1106, %v820
  %v1108 = vpop.permute.xlu0 %1107
  %1111 = vset.pattern.permute.xlu0 0
  %1112 = vperm.xlu0 %1111, %v821
  %v1113 = vpop.permute.xlu0 %1112
  %1116 = vset.pattern.permute.xlu0 0
  %1117 = vperm.xlu0 %1116, %v822
  %v1118 = vpop.permute.xlu0 %1117
  %1121 = vset.pattern.permute.xlu0 0
  %1122 = vperm.xlu0 %1121, %v823
  %v1123 = vpop.permute.xlu0 %1122
  %1126 = vset.pattern.permute.xlu0 0
  %1127 = vperm.xlu0 %1126, %v824
  %v1128 = vpop.permute.xlu0 %1127
  %1131 = vset.pattern.permute.xlu0 0
  %1132 = vperm.xlu0 %1131, %v825
  %v1133 = vpop.permute.xlu0 %1132
  %1136 = vset.pattern.permute.xlu0 0
  %1137 = vperm.xlu0 %1136, %v826
  %v1138 = vpop.permute.xlu0 %1137
  %1141 = vset.pattern.permute.xlu0 0
  %1142 = vperm.xlu0 %1141, %v827
  %v1143 = vpop.permute.xlu0 %1142
  %1146 = vset.pattern.permute.xlu0 0
  %1147 = vperm.xlu0 %1146, %v828
  %v1148 = vpop.permute.xlu0 %1147
  %1151 = vset.pattern.permute.xlu0 0
  %1152 = vperm.xlu0 %1151, %v829
  %v1153 = vpop.permute.xlu0 %1152
  %1156 = vset.pattern.permute.xlu0 0
  %1157 = vperm.xlu0 %1156, %v830
  %v1158 = vpop.permute.xlu0 %1157
  %1161 = vset.pattern.permute.xlu0 0
  %1162 = vperm.xlu0 %1161, %v831
  %v1163 = vpop.permute.xlu0 %1162
  %1166 = vset.pattern.permute.xlu0 0
  %1167 = vperm.xlu0 %1166, %v832
  %v1168 = vpop.permute.xlu0 %1167
  %1171 = vset.pattern.permute.xlu0 0
  %1172 = vperm.xlu0 %1171, %v833
  %v1173 = vpop.permute.xlu0 %1172
  %1176 = vset.pattern.permute.xlu0 0
  %1177 = vperm.xlu0 %1176, %v834
  %v1178 = vpop.permute.xlu0 %1177
  %1181 = vset.pattern.permute.xlu0 0
  %1182 = vperm.xlu0 %1181, %v835
  %v1183 = vpop.permute.xlu0 %1182
  %1186 = vset.pattern.permute.xlu0 0
  %1187 = vperm.xlu0 %1186, %v836
  %v1188 = vpop.permute.xlu0 %1187
  %1191 = vset.pattern.permute.xlu0 0
  %1192 = vperm.xlu0 %1191, %v837
  %v1193 = vpop.permute.xlu0 %1192
  %1196 = vset.pattern.permute.xlu0 0
  %1197 = vperm.xlu0 %1196, %v838
  %v1198 = vpop.permute.xlu0 %1197
  %1201 = vset.pattern.permute.xlu0 0
  %1202 = vperm.xlu0 %1201, %v839
  %v1203 = vpop.permute.xlu0 %1202
  %1206 = vset.pattern.permute.xlu0 0
  %1207 = vperm.xlu0 %1206, %v840
  %v1208 = vpop.permute.xlu0 %1207
  %1211 = vset.pattern.permute.xlu0 0
  %1212 = vperm.xlu0 %1211, %v841
  %v1213 = vpop.permute.xlu0 %1212
  %1216 = vset.pattern.permute.xlu0 0
  %1217 = vperm.xlu0 %1216, %v842
  %v1218 = vpop.permute.xlu0 %1217
  %1221 = vset.pattern.permute.xlu0 0
  %1222 = vperm.xlu0 %1221, %v843
  %v1223 = vpop.permute.xlu0 %1222
  %1226 = vset.pattern.permute.xlu0 0
  %1227 = vperm.xlu0 %1226, %v844
  %v1228 = vpop.permute.xlu0 %1227
  %1231 = vset.pattern.permute.xlu0 0
  %1232 = vperm.xlu0 %1231, %v845
  %v1233 = vpop.permute.xlu0 %1232
  %1236 = vset.pattern.permute.xlu0 0
  %1237 = vperm.xlu0 %1236, %v846
  %v1238 = vpop.permute.xlu0 %1237
  %1241 = vset.pattern.permute.xlu0 0
  %1242 = vperm.xlu0 %1241, %v847
  %v1243 = vpop.permute.xlu0 %1242
  %1246 = vset.pattern.permute.xlu0 0
  %1247 = vperm.xlu0 %1246, %v848
  %v1248 = vpop.permute.xlu0 %1247
  %1251 = vset.pattern.permute.xlu0 0
  %1252 = vperm.xlu0 %1251, %v849
  %v1253 = vpop.permute.xlu0 %1252
  %v1255 = vmul.f32 %v688, %v853
  %v1256 = vmul.f32 %v689, %v858
  %v1257 = vmul.f32 %v690, %v863
  %v1258 = vmul.f32 %v691, %v868
  %v1259 = vmul.f32 %v692, %v873
  %v1260 = vmul.f32 %v693, %v878
  %v1261 = vmul.f32 %v694, %v883
  %v1262 = vmul.f32 %v695, %v888
  %v1263 = vmul.f32 %v696, %v893
  %v1264 = vmul.f32 %v697, %v898
  %v1265 = vmul.f32 %v698, %v903
  %v1266 = vmul.f32 %v699, %v908
  %v1267 = vmul.f32 %v700, %v913
  %v1268 = vmul.f32 %v701, %v918
  %v1269 = vmul.f32 %v702, %v923
  %v1270 = vmul.f32 %v703, %v928
  %v1271 = vmul.f32 %v704, %v933
  %v1272 = vmul.f32 %v705, %v938
  %v1273 = vmul.f32 %v706, %v943
  %v1274 = vmul.f32 %v707, %v948
  %v1275 = vmul.f32 %v708, %v953
  %v1276 = vmul.f32 %v709, %v958
  %v1277 = vmul.f32 %v710, %v963
  %v1278 = vmul.f32 %v711, %v968
  %v1279 = vmul.f32 %v712, %v973
  %v1280 = vmul.f32 %v713, %v978
  %v1281 = vmul.f32 %v714, %v983
  %v1282 = vmul.f32 %v715, %v988
  %v1283 = vmul.f32 %v716, %v993
  %v1284 = vmul.f32 %v717, %v998
  %v1285 = vmul.f32 %v718, %v1003
  %v1286 = vmul.f32 %v719, %v1008
  %v1287 = vmul.f32 %v720, %v1013
  %v1288 = vmul.f32 %v721, %v1018
  %v1289 = vmul.f32 %v722, %v1023
  %v1290 = vmul.f32 %v723, %v1028
  %v1291 = vmul.f32 %v724, %v1033
  %v1292 = vmul.f32 %v725, %v1038
  %v1293 = vmul.f32 %v726, %v1043
  %v1294 = vmul.f32 %v727, %v1048
  %v1295 = vmul.f32 %v728, %v1053
  %v1296 = vmul.f32 %v729, %v1058
  %v1297 = vmul.f32 %v730, %v1063
  %v1298 = vmul.f32 %v731, %v1068
  %v1299 = vmul.f32 %v732, %v1073
  %v1300 = vmul.f32 %v733, %v1078
  %v1301 = vmul.f32 %v734, %v1083
  %v1302 = vmul.f32 %v735, %v1088
  %v1303 = vmul.f32 %v736, %v1093
  %v1304 = vmul.f32 %v737, %v1098
  %v1305 = vmul.f32 %v738, %v1103
  %v1306 = vmul.f32 %v739, %v1108
  %v1307 = vmul.f32 %v740, %v1113
  %v1308 = vmul.f32 %v741, %v1118
  %v1309 = vmul.f32 %v742, %v1123
  %v1310 = vmul.f32 %v743, %v1128
  %v1311 = vmul.f32 %v744, %v1133
  %v1312 = vmul.f32 %v745, %v1138
  %v1313 = vmul.f32 %v746, %v1143
  %v1314 = vmul.f32 %v747, %v1148
  %v1315 = vmul.f32 %v748, %v1153
  %v1316 = vmul.f32 %v749, %v1158
  %v1317 = vmul.f32 %v750, %v1163
  %v1318 = vmul.f32 %v751, %v1168
  %v1319 = vmul.f32 %v752, %v1173
  %v1320 = vmul.f32 %v753, %v1178
  %v1321 = vmul.f32 %v754, %v1183
  %v1322 = vmul.f32 %v755, %v1188
  %v1323 = vmul.f32 %v756, %v1193
  %v1324 = vmul.f32 %v757, %v1198
  %v1325 = vmul.f32 %v758, %v1203
  %v1326 = vmul.f32 %v759, %v1208
  %v1327 = vmul.f32 %v760, %v1213
  %v1328 = vmul.f32 %v761, %v1218
  %v1329 = vmul.f32 %v762, %v1223
  %v1330 = vmul.f32 %v763, %v1228
  %v1331 = vmul.f32 %v764, %v1233
  %v1332 = vmul.f32 %v765, %v1238
  %v1333 = vmul.f32 %v766, %v1243
  %v1334 = vmul.f32 %v767, %v1248
  %v1335 = vmul.f32 %v768, %v1253
  %v1336 = vpack.c.bf16 %v1255, %v1255
  %v1337 = vpack.c.bf16 %v1256, %v1256
  %v1338 = vpack.c.bf16 %v1257, %v1257
  %v1339 = vpack.c.bf16 %v1258, %v1258
  %v1340 = vpack.c.bf16 %v1259, %v1259
  %v1341 = vpack.c.bf16 %v1260, %v1260
  %v1342 = vpack.c.bf16 %v1261, %v1261
  %v1343 = vpack.c.bf16 %v1262, %v1262
  %v1344 = vpack.c.bf16 %v1263, %v1263
  %v1345 = vpack.c.bf16 %v1264, %v1264
  %v1346 = vpack.c.bf16 %v1265, %v1265
  %v1347 = vpack.c.bf16 %v1266, %v1266
  %v1348 = vpack.c.bf16 %v1267, %v1267
  %v1349 = vpack.c.bf16 %v1268, %v1268
  %v1350 = vpack.c.bf16 %v1269, %v1269
  %v1351 = vpack.c.bf16 %v1270, %v1270
  %v1352 = vpack.c.bf16 %v1271, %v1271
  %v1353 = vpack.c.bf16 %v1272, %v1272
  %v1354 = vpack.c.bf16 %v1273, %v1273
  %v1355 = vpack.c.bf16 %v1274, %v1274
  %v1356 = vpack.c.bf16 %v1275, %v1275
  %v1357 = vpack.c.bf16 %v1276, %v1276
  %v1358 = vpack.c.bf16 %v1277, %v1277
  %v1359 = vpack.c.bf16 %v1278, %v1278
  %v1360 = vpack.c.bf16 %v1279, %v1279
  %v1361 = vpack.c.bf16 %v1280, %v1280
  %v1362 = vpack.c.bf16 %v1281, %v1281
  %v1363 = vpack.c.bf16 %v1282, %v1282
  %v1364 = vpack.c.bf16 %v1283, %v1283
  %v1365 = vpack.c.bf16 %v1284, %v1284
  %v1366 = vpack.c.bf16 %v1285, %v1285
  %v1367 = vpack.c.bf16 %v1286, %v1286
  %v1368 = vpack.c.bf16 %v1287, %v1287
  %v1369 = vpack.c.bf16 %v1288, %v1288
  %v1370 = vpack.c.bf16 %v1289, %v1289
  %v1371 = vpack.c.bf16 %v1290, %v1290
  %v1372 = vpack.c.bf16 %v1291, %v1291
  %v1373 = vpack.c.bf16 %v1292, %v1292
  %v1374 = vpack.c.bf16 %v1293, %v1293
  %v1375 = vpack.c.bf16 %v1294, %v1294
  %v1376 = vpack.c.bf16 %v1295, %v1295
  %v1377 = vpack.c.bf16 %v1296, %v1296
  %v1378 = vpack.c.bf16 %v1297, %v1297
  %v1379 = vpack.c.bf16 %v1298, %v1298
  %v1380 = vpack.c.bf16 %v1299, %v1299
  %v1381 = vpack.c.bf16 %v1300, %v1300
  %v1382 = vpack.c.bf16 %v1301, %v1301
  %v1383 = vpack.c.bf16 %v1302, %v1302
  %v1384 = vpack.c.bf16 %v1303, %v1303
  %v1385 = vpack.c.bf16 %v1304, %v1304
  %v1386 = vpack.c.bf16 %v1305, %v1305
  %v1387 = vpack.c.bf16 %v1306, %v1306
  %v1388 = vpack.c.bf16 %v1307, %v1307
  %v1389 = vpack.c.bf16 %v1308, %v1308
  %v1390 = vpack.c.bf16 %v1309, %v1309
  %v1391 = vpack.c.bf16 %v1310, %v1310
  %v1392 = vpack.c.bf16 %v1311, %v1311
  %v1393 = vpack.c.bf16 %v1312, %v1312
  %v1394 = vpack.c.bf16 %v1313, %v1313
  %v1395 = vpack.c.bf16 %v1314, %v1314
  %v1396 = vpack.c.bf16 %v1315, %v1315
  %v1397 = vpack.c.bf16 %v1316, %v1316
  %v1398 = vpack.c.bf16 %v1317, %v1317
  %v1399 = vpack.c.bf16 %v1318, %v1318
  %v1400 = vpack.c.bf16 %v1319, %v1319
  %v1401 = vpack.c.bf16 %v1320, %v1320
  %v1402 = vpack.c.bf16 %v1321, %v1321
  %v1403 = vpack.c.bf16 %v1322, %v1322
  %v1404 = vpack.c.bf16 %v1323, %v1323
  %v1405 = vpack.c.bf16 %v1324, %v1324
  %v1406 = vpack.c.bf16 %v1325, %v1325
  %v1407 = vpack.c.bf16 %v1326, %v1326
  %v1408 = vpack.c.bf16 %v1327, %v1327
  %v1409 = vpack.c.bf16 %v1328, %v1328
  %v1410 = vpack.c.bf16 %v1329, %v1329
  %v1411 = vpack.c.bf16 %v1330, %v1330
  %v1412 = vpack.c.bf16 %v1331, %v1331
  %v1413 = vpack.c.bf16 %v1332, %v1332
  %v1414 = vpack.c.bf16 %v1333, %v1333
  %v1415 = vpack.c.bf16 %v1334, %v1334
  %v1416 = vpack.c.bf16 %v1335, %v1335
  %1417 = vst.msk [vmem:[#allocation2 + $0xc] sm:$0xf] %vm32, %v1336
  %1418 = vst.msk [vmem:[#allocation2 + $0x10] sm:$0xf] %vm32, %v1337
  %1419 = vst.msk [vmem:[#allocation2 + $0x14] sm:$0xf] %vm32, %v1338
  %1420 = vst.msk [vmem:[#allocation2 + $0x18] sm:$0xf] %vm32, %v1339
  %1421 = vst.msk [vmem:[#allocation2 + $0x1c] sm:$0xf] %vm32, %v1340
  %1422 = vst.msk [vmem:[#allocation2 + $0x20] sm:$0xf] %vm32, %v1341
  %1423 = vst.msk [vmem:[#allocation2 + $0x24] sm:$0xf] %vm32, %v1342
  %1424 = vst.msk [vmem:[#allocation2 + $0x28] sm:$0xf] %vm32, %v1343
  %1425 = vst.msk [vmem:[#allocation2 + $0x2c] sm:$0xf] %vm32, %v1344
  %1426 = vst.msk [vmem:[#allocation2 + $0x30] sm:$0xf] %vm32, %v1345
  %1427 = vst.msk [vmem:[#allocation2 + $0x34] sm:$0xf] %vm32, %v1346
  %1428 = vst.msk [vmem:[#allocation2 + $0x38] sm:$0xf] %vm32, %v1347
  %1429 = vst.msk [vmem:[#allocation2 + $0x3c] sm:$0xf] %vm32, %v1348
  %1430 = vst.msk [vmem:[#allocation2 + $0x40] sm:$0xf] %vm32, %v1349
  %1431 = vst.msk [vmem:[#allocation2 + $0x44] sm:$0xf] %vm32, %v1350
  %1432 = vst.msk [vmem:[#allocation2 + $0x48] sm:$0xf] %vm32, %v1351
  %1433 = vst.msk [vmem:[#allocation2 + $0x4c] sm:$0xf] %vm32, %v1352
  %1434 = vst.msk [vmem:[#allocation2 + $0x50] sm:$0xf] %vm32, %v1353
  %1435 = vst.msk [vmem:[#allocation2 + $0x54] sm:$0xf] %vm32, %v1354
  %1436 = vst.msk [vmem:[#allocation2 + $0x58] sm:$0xf] %vm32, %v1355
  %1437 = vst.msk [vmem:[#allocation2 + $0x5c] sm:$0xf] %vm32, %v1356
  %1438 = vst.msk [vmem:[#allocation2 + $0x60] sm:$0xf] %vm32, %v1357
  %1439 = vst.msk [vmem:[#allocation2 + $0x64] sm:$0xf] %vm32, %v1358
  %1440 = vst.msk [vmem:[#allocation2 + $0x68] sm:$0xf] %vm32, %v1359
  %1441 = vst.msk [vmem:[#allocation2 + $0x6c] sm:$0xf] %vm32, %v1360
  %1442 = vst.msk [vmem:[#allocation2 + $0x70] sm:$0xf] %vm32, %v1361
  %1443 = vst.msk [vmem:[#allocation2 + $0x74] sm:$0xf] %vm32, %v1362
  %1444 = vst.msk [vmem:[#allocation2 + $0x78] sm:$0xf] %vm32, %v1363
  %1445 = vst.msk [vmem:[#allocation2 + $0x7c] sm:$0xf] %vm32, %v1364
  %1446 = vst.msk [vmem:[#allocation2 + $0x80] sm:$0xf] %vm32, %v1365
  %1447 = vst.msk [vmem:[#allocation2 + $0x84] sm:$0xf] %vm32, %v1366
  %1448 = vst.msk [vmem:[#allocation2 + $0x88] sm:$0xf] %vm32, %v1367
  %1449 = vst.msk [vmem:[#allocation2 + $0x8c] sm:$0xf] %vm32, %v1368
  %1450 = vst.msk [vmem:[#allocation2 + $0x90] sm:$0xf] %vm32, %v1369
  %1451 = vst.msk [vmem:[#allocation2 + $0x94] sm:$0xf] %vm32, %v1370
  %1452 = vst.msk [vmem:[#allocation2 + $0x98] sm:$0xf] %vm32, %v1371
  %1453 = vst.msk [vmem:[#allocation2 + $0x9c] sm:$0xf] %vm32, %v1372
  %1454 = vst.msk [vmem:[#allocation2 + $0xa0] sm:$0xf] %vm32, %v1373
  %1455 = vst.msk [vmem:[#allocation2 + $0xa4] sm:$0xf] %vm32, %v1374
  %1456 = vst.msk [vmem:[#allocation2 + $0xa8] sm:$0xf] %vm32, %v1375
  %1457 = vst.msk [vmem:[#allocation2 + $0xac] sm:$0xf] %vm32, %v1376
  %1458 = vst.msk [vmem:[#allocation2 + $0xb0] sm:$0xf] %vm32, %v1377
  %1459 = vst.msk [vmem:[#allocation2 + $0xb4] sm:$0xf] %vm32, %v1378
  %1460 = vst.msk [vmem:[#allocation2 + $0xb8] sm:$0xf] %vm32, %v1379
  %1461 = vst.msk [vmem:[#allocation2 + $0xbc] sm:$0xf] %vm32, %v1380
  %1462 = vst.msk [vmem:[#allocation2 + $0xc0] sm:$0xf] %vm32, %v1381
  %1463 = vst.msk [vmem:[#allocation2 + $0xc4] sm:$0xf] %vm32, %v1382
  %1464 = vst.msk [vmem:[#allocation2 + $0xc8] sm:$0xf] %vm32, %v1383
  %1465 = vst.msk [vmem:[#allocation2 + $0xcc] sm:$0xf] %vm32, %v1384
  %1466 = vst.msk [vmem:[#allocation2 + $0xd0] sm:$0xf] %vm32, %v1385
  %1467 = vst.msk [vmem:[#allocation2 + $0xd4] sm:$0xf] %vm32, %v1386
  %1468 = vst.msk [vmem:[#allocation2 + $0xd8] sm:$0xf] %vm32, %v1387
  %1469 = vst.msk [vmem:[#allocation2 + $0xdc] sm:$0xf] %vm32, %v1388
  %1470 = vst.msk [vmem:[#allocation2 + $0xe0] sm:$0xf] %vm32, %v1389
  %1471 = vst.msk [vmem:[#allocation2 + $0xe4] sm:$0xf] %vm32, %v1390
  %1472 = vst.msk [vmem:[#allocation2 + $0xe8] sm:$0xf] %vm32, %v1391
  %1473 = vst.msk [vmem:[#allocation2 + $0xec] sm:$0xf] %vm32, %v1392
  %1474 = vst.msk [vmem:[#allocation2 + $0xf0] sm:$0xf] %vm32, %v1393
  %1475 = vst.msk [vmem:[#allocation2 + $0xf4] sm:$0xf] %vm32, %v1394
  %1476 = vst.msk [vmem:[#allocation2 + $0xf8] sm:$0xf] %vm32, %v1395
  %1477 = vst.msk [vmem:[#allocation2 + $0xfc] sm:$0xf] %vm32, %v1396
  %1478 = vst.msk [vmem:[#allocation2 + $0x100] sm:$0xf] %vm32, %v1397
  %1479 = vst.msk [vmem:[#allocation2 + $0x104] sm:$0xf] %vm32, %v1398
  %1480 = vst.msk [vmem:[#allocation2 + $0x108] sm:$0xf] %vm32, %v1399
  %1481 = vst.msk [vmem:[#allocation2 + $0x10c] sm:$0xf] %vm32, %v1400
  %1482 = vst.msk [vmem:[#allocation2 + $0x110] sm:$0xf] %vm32, %v1401
  %1483 = vst.msk [vmem:[#allocation2 + $0x114] sm:$0xf] %vm32, %v1402
  %1484 = vst.msk [vmem:[#allocation2 + $0x118] sm:$0xf] %vm32, %v1403
  %1485 = vst.msk [vmem:[#allocation2 + $0x11c] sm:$0xf] %vm32, %v1404
  %1486 = vst.msk [vmem:[#allocation2 + $0x120] sm:$0xf] %vm32, %v1405
  %1487 = vst.msk [vmem:[#allocation2 + $0x124] sm:$0xf] %vm32, %v1406
  %1488 = vst.msk [vmem:[#allocation2 + $0x128] sm:$0xf] %vm32, %v1407
  %1489 = vst.msk [vmem:[#allocation2 + $0x12c] sm:$0xf] %vm32, %v1408
  %1490 = vst.msk [vmem:[#allocation2 + $0x130] sm:$0xf] %vm32, %v1409
  %1491 = vst.msk [vmem:[#allocation2 + $0x134] sm:$0xf] %vm32, %v1410
  %1492 = vst.msk [vmem:[#allocation2 + $0x138] sm:$0xf] %vm32, %v1411
  %1493 = vst.msk [vmem:[#allocation2 + $0x13c] sm:$0xf] %vm32, %v1412
  %1494 = vst.msk [vmem:[#allocation2 + $0x140] sm:$0xf] %vm32, %v1413
  %1495 = vst.msk [vmem:[#allocation2 + $0x144] sm:$0xf] %vm32, %v1414
  %1496 = vst.msk [vmem:[#allocation2 + $0x148] sm:$0xf] %vm32, %v1415
  %1497 = vst.msk [vmem:[#allocation2 + $0x14c] sm:$0xf] %vm32, %v1416
  %v1498 = vld [vmem:[#allocation2] sm:$0xc]
  %v1499 = vld [vmem:[#allocation2 + $0x4] sm:$0xf]
  %v1500 = vld [vmem:[#allocation2 + $0x8] sm:$0xf]
  %v1501 = vld [vmem:[#allocation2 + $0xc] sm:$0xf]
  %v1502 = vld [vmem:[#allocation2 + $0x10] sm:$0xf]
  %v1503 = vld [vmem:[#allocation2 + $0x14] sm:$0xf]
  %v1504 = vld [vmem:[#allocation2 + $0x18] sm:$0xf]
  %v1505 = vld [vmem:[#allocation2 + $0x1c] sm:$0xf]
  %v1506 = vld [vmem:[#allocation2 + $0x20] sm:$0xf]
  %v1507 = vld [vmem:[#allocation2 + $0x24] sm:$0xf]
  %v1508 = vld [vmem:[#allocation2 + $0x28] sm:$0xf]
  %v1509 = vld [vmem:[#allocation2 + $0x2c] sm:$0xf]
  %v1510 = vld [vmem:[#allocation2 + $0x30] sm:$0xf]
  %v1511 = vld [vmem:[#allocation2 + $0x34] sm:$0xf]
  %v1512 = vld [vmem:[#allocation2 + $0x38] sm:$0xf]
  %v1513 = vld [vmem:[#allocation2 + $0x3c] sm:$0xf]
  %v1514 = vld [vmem:[#allocation2 + $0x40] sm:$0xf]
  %v1515 = vld [vmem:[#allocation2 + $0x44] sm:$0xf]
  %v1516 = vld [vmem:[#allocation2 + $0x48] sm:$0xf]
  %v1517 = vld [vmem:[#allocation2 + $0x4c] sm:$0xf]
  %v1518 = vld [vmem:[#allocation2 + $0x50] sm:$0xf]
  %v1519 = vld [vmem:[#allocation2 + $0x54] sm:$0xf]
  %v1520 = vld [vmem:[#allocation2 + $0x58] sm:$0xf]
  %v1521 = vld [vmem:[#allocation2 + $0x5c] sm:$0xf]
  %v1522 = vld [vmem:[#allocation2 + $0x60] sm:$0xf]
  %v1523 = vld [vmem:[#allocation2 + $0x64] sm:$0xf]
  %v1524 = vld [vmem:[#allocation2 + $0x68] sm:$0xf]
  %v1525 = vld [vmem:[#allocation2 + $0x6c] sm:$0xf]
  %v1526 = vld [vmem:[#allocation2 + $0x70] sm:$0xf]
  %v1527 = vld [vmem:[#allocation2 + $0x74] sm:$0xf]
  %v1528 = vld [vmem:[#allocation2 + $0x78] sm:$0xf]
  %v1529 = vld [vmem:[#allocation2 + $0x7c] sm:$0xf]
  %v1530 = vld [vmem:[#allocation2 + $0x80] sm:$0xf]
  %v1531 = vld [vmem:[#allocation2 + $0x84] sm:$0xf]
  %v1532 = vld [vmem:[#allocation2 + $0x88] sm:$0xf]
  %v1533 = vld [vmem:[#allocation2 + $0x8c] sm:$0xf]
  %v1534 = vld [vmem:[#allocation2 + $0x90] sm:$0xf]
  %v1535 = vld [vmem:[#allocation2 + $0x94] sm:$0xf]
  %v1536 = vld [vmem:[#allocation2 + $0x98] sm:$0xf]
  %v1537 = vld [vmem:[#allocation2 + $0x9c] sm:$0xf]
  %v1538 = vld [vmem:[#allocation2 + $0xa0] sm:$0xf]
  %v1539 = vld [vmem:[#allocation2 + $0xa4] sm:$0xf]
  %v1540 = vld [vmem:[#allocation2 + $0xa8] sm:$0xf]
  %v1541 = vld [vmem:[#allocation2 + $0xac] sm:$0xf]
  %v1542 = vld [vmem:[#allocation2 + $0xb0] sm:$0xf]
  %v1543 = vld [vmem:[#allocation2 + $0xb4] sm:$0xf]
  %v1544 = vld [vmem:[#allocation2 + $0xb8] sm:$0xf]
  %v1545 = vld [vmem:[#allocation2 + $0xbc] sm:$0xf]
  %v1546 = vld [vmem:[#allocation2 + $0xc0] sm:$0xf]
  %v1547 = vld [vmem:[#allocation2 + $0xc4] sm:$0xf]
  %v1548 = vld [vmem:[#allocation2 + $0xc8] sm:$0xf]
  %v1549 = vld [vmem:[#allocation2 + $0xcc] sm:$0xf]
  %v1550 = vld [vmem:[#allocation2 + $0xd0] sm:$0xf]
  %v1551 = vld [vmem:[#allocation2 + $0xd4] sm:$0xf]
  %v1552 = vld [vmem:[#allocation2 + $0xd8] sm:$0xf]
  %v1553 = vld [vmem:[#allocation2 + $0xdc] sm:$0xf]
  %v1554 = vld [vmem:[#allocation2 + $0xe0] sm:$0xf]
  %v1555 = vld [vmem:[#allocation2 + $0xe4] sm:$0xf]
  %v1556 = vld [vmem:[#allocation2 + $0xe8] sm:$0xf]
  %v1557 = vld [vmem:[#allocation2 + $0xec] sm:$0xf]
  %v1558 = vld [vmem:[#allocation2 + $0xf0] sm:$0xf]
  %v1559 = vld [vmem:[#allocation2 + $0xf4] sm:$0xf]
  %v1560 = vld [vmem:[#allocation2 + $0xf8] sm:$0xf]
  %v1561 = vld [vmem:[#allocation2 + $0xfc] sm:$0xf]
  %v1562 = vld [vmem:[#allocation2 + $0x100] sm:$0xf]
  %v1563 = vld [vmem:[#allocation2 + $0x104] sm:$0xf]
  %v1564 = vld [vmem:[#allocation2 + $0x108] sm:$0xf]
  %v1565 = vld [vmem:[#allocation2 + $0x10c] sm:$0xf]
  %v1566 = vld [vmem:[#allocation2 + $0x110] sm:$0xf]
  %v1567 = vld [vmem:[#allocation2 + $0x114] sm:$0xf]
  %v1568 = vld [vmem:[#allocation2 + $0x118] sm:$0xf]
  %v1569 = vld [vmem:[#allocation2 + $0x11c] sm:$0xf]
  %v1570 = vld [vmem:[#allocation2 + $0x120] sm:$0xf]
  %v1571 = vld [vmem:[#allocation2 + $0x124] sm:$0xf]
  %v1572 = vld [vmem:[#allocation2 + $0x128] sm:$0xf]
  %v1573 = vld [vmem:[#allocation2 + $0x12c] sm:$0xf]
  %v1574 = vld [vmem:[#allocation2 + $0x130] sm:$0xf]
  %v1575 = vld [vmem:[#allocation2 + $0x134] sm:$0xf]
  %v1576 = vld [vmem:[#allocation2 + $0x138] sm:$0xf]
  %v1577 = vld [vmem:[#allocation2 + $0x13c] sm:$0xf]
  %v1578 = vld [vmem:[#allocation2 + $0x140] sm:$0xf]
  %v1579 = vld [vmem:[#allocation2 + $0x144] sm:$0x7]
  %v1580 = vld [vmem:[#allocation2] sm:$0x8]
  %v1581 = vld [vmem:[#allocation2 + $0x144] sm:$0xf]
  %v1582 = vld [vmem:[#allocation2 + $0x8] sm:$0x8]
  %v1583 = vld [vmem:[#allocation2 + $0x148] sm:$0xf]
  %v1584 = vld [vmem:[#allocation2 + $0x14c] sm:$0xf]
  %v1585 = vld [vmem:[#allocation2 + $0x150] sm:$0x1]
  %v1586 = vld [vmem:[#allocation2 + $0x150] sm:$0xf]
  %v1587 = vld [vmem:[#allocation2 + $0x154] sm:$0xf]
  %v1588 = vld [vmem:[#allocation2 + $0x158] sm:$0x1]
  %v1589 = vld [vmem:[#allocation2 + $0x14] sm:$0xe]
  %v1590 = vld [vmem:[#allocation2 + $0x158] sm:$0x3]
  %v1673 = vunpack.c.l.b16 %v1498
  %v1674 = vunpack.c.l.b16 %v1499
  %v1675 = vunpack.c.l.b16 %v1500
  %v1676 = vunpack.c.l.b16 %v1501
  %v1677 = vunpack.c.l.b16 %v1502
  %v1678 = vunpack.c.l.b16 %v1503
  %v1679 = vunpack.c.l.b16 %v1504
  %v1680 = vunpack.c.l.b16 %v1505
  %v1681 = vunpack.c.l.b16 %v1506
  %v1682 = vunpack.c.l.b16 %v1507
  %v1683 = vunpack.c.l.b16 %v1508
  %v1684 = vunpack.c.l.b16 %v1509
  %v1685 = vunpack.c.l.b16 %v1510
  %v1686 = vunpack.c.l.b16 %v1511
  %v1687 = vunpack.c.l.b16 %v1512
  %v1688 = vunpack.c.l.b16 %v1513
  %v1689 = vunpack.c.l.b16 %v1514
  %v1690 = vunpack.c.l.b16 %v1515
  %v1691 = vunpack.c.l.b16 %v1516
  %v1692 = vunpack.c.l.b16 %v1517
  %v1693 = vunpack.c.l.b16 %v1518
  %v1694 = vunpack.c.l.b16 %v1519
  %v1695 = vunpack.c.l.b16 %v1520
  %v1696 = vunpack.c.l.b16 %v1521
  %v1697 = vunpack.c.l.b16 %v1522
  %v1698 = vunpack.c.l.b16 %v1523
  %v1699 = vunpack.c.l.b16 %v1524
  %v1700 = vunpack.c.l.b16 %v1525
  %v1701 = vunpack.c.l.b16 %v1526
  %v1702 = vunpack.c.l.b16 %v1527
  %v1703 = vunpack.c.l.b16 %v1528
  %v1704 = vunpack.c.l.b16 %v1529
  %v1705 = vunpack.c.l.b16 %v1530
  %v1706 = vunpack.c.l.b16 %v1531
  %v1707 = vunpack.c.l.b16 %v1532
  %v1708 = vunpack.c.l.b16 %v1533
  %v1709 = vunpack.c.l.b16 %v1534
  %v1710 = vunpack.c.l.b16 %v1535
  %v1711 = vunpack.c.l.b16 %v1536
  %v1712 = vunpack.c.l.b16 %v1537
  %v1713 = vunpack.c.l.b16 %v1538
  %v1714 = vunpack.c.l.b16 %v1539
  %v1715 = vunpack.c.l.b16 %v1540
  %v1716 = vunpack.c.l.b16 %v1541
  %v1717 = vunpack.c.l.b16 %v1542
  %v1718 = vunpack.c.l.b16 %v1543
  %v1719 = vunpack.c.l.b16 %v1544
  %v1720 = vunpack.c.l.b16 %v1545
  %v1721 = vunpack.c.l.b16 %v1546
  %v1722 = vunpack.c.l.b16 %v1547
  %v1723 = vunpack.c.l.b16 %v1548
  %v1724 = vunpack.c.l.b16 %v1549
  %v1725 = vunpack.c.l.b16 %v1550
  %v1726 = vunpack.c.l.b16 %v1551
  %v1727 = vunpack.c.l.b16 %v1552
  %v1728 = vunpack.c.l.b16 %v1553
  %v1729 = vunpack.c.l.b16 %v1554
  %v1730 = vunpack.c.l.b16 %v1555
  %v1731 = vunpack.c.l.b16 %v1556
  %v1732 = vunpack.c.l.b16 %v1557
  %v1733 = vunpack.c.l.b16 %v1558
  %v1734 = vunpack.c.l.b16 %v1559
  %v1735 = vunpack.c.l.b16 %v1560
  %v1736 = vunpack.c.l.b16 %v1561
  %v1737 = vunpack.c.l.b16 %v1562
  %v1738 = vunpack.c.l.b16 %v1563
  %v1739 = vunpack.c.l.b16 %v1564
  %v1740 = vunpack.c.l.b16 %v1565
  %v1741 = vunpack.c.l.b16 %v1566
  %v1742 = vunpack.c.l.b16 %v1567
  %v1743 = vunpack.c.l.b16 %v1568
  %v1744 = vunpack.c.l.b16 %v1569
  %v1745 = vunpack.c.l.b16 %v1570
  %v1746 = vunpack.c.l.b16 %v1571
  %v1747 = vunpack.c.l.b16 %v1572
  %v1748 = vunpack.c.l.b16 %v1573
  %v1749 = vunpack.c.l.b16 %v1574
  %v1750 = vunpack.c.l.b16 %v1575
  %v1751 = vunpack.c.l.b16 %v1576
  %v1752 = vunpack.c.l.b16 %v1577
  %v1753 = vunpack.c.l.b16 %v1578
  %v1754 = vunpack.c.l.b16 %v1579
  %v1755 = vpack.c.b16 %v1674, %v1673
  %v1756 = vpack.c.b16 %v1676, %v1675
  %v1757 = vpack.c.b16 %v1678, %v1677
  %v1758 = vpack.c.b16 %v1680, %v1679
  %v1759 = vpack.c.b16 %v1682, %v1681
  %v1760 = vpack.c.b16 %v1684, %v1683
  %v1761 = vpack.c.b16 %v1686, %v1685
  %v1762 = vpack.c.b16 %v1688, %v1687
  %v1763 = vpack.c.b16 %v1690, %v1689
  %v1764 = vpack.c.b16 %v1692, %v1691
  %v1765 = vpack.c.b16 %v1694, %v1693
  %v1766 = vpack.c.b16 %v1696, %v1695
  %v1767 = vpack.c.b16 %v1698, %v1697
  %v1768 = vpack.c.b16 %v1700, %v1699
  %v1769 = vpack.c.b16 %v1702, %v1701
  %v1770 = vpack.c.b16 %v1704, %v1703
  %v1771 = vpack.c.b16 %v1706, %v1705
  %v1772 = vpack.c.b16 %v1708, %v1707
  %v1773 = vpack.c.b16 %v1710, %v1709
  %v1774 = vpack.c.b16 %v1712, %v1711
  %v1775 = vpack.c.b16 %v1714, %v1713
  %v1776 = vpack.c.b16 %v1716, %v1715
  %v1777 = vpack.c.b16 %v1718, %v1717
  %v1778 = vpack.c.b16 %v1720, %v1719
  %v1779 = vpack.c.b16 %v1722, %v1721
  %v1780 = vpack.c.b16 %v1724, %v1723
  %v1781 = vpack.c.b16 %v1726, %v1725
  %v1782 = vpack.c.b16 %v1728, %v1727
  %v1783 = vpack.c.b16 %v1730, %v1729
  %v1784 = vpack.c.b16 %v1732, %v1731
  %v1785 = vpack.c.b16 %v1734, %v1733
  %v1786 = vpack.c.b16 %v1736, %v1735
  %v1787 = vpack.c.b16 %v1738, %v1737
  %v1788 = vpack.c.b16 %v1740, %v1739
  %v1789 = vpack.c.b16 %v1742, %v1741
  %v1790 = vpack.c.b16 %v1744, %v1743
  %v1791 = vpack.c.b16 %v1746, %v1745
  %v1792 = vpack.c.b16 %v1748, %v1747
  %v1793 = vpack.c.b16 %v1750, %v1749
  %v1794 = vpack.c.b16 %v1752, %v1751
  %v1795 = vpack.c.b16 %v1754, %v1753
  %v1797 = vunpack.c.l.b16 %v1580
  %v1798 = vpack.c.b16 %v1674, %v1797
  %vm1799 = vsmask.f32 7424
  %v1801 = vshrl.u32 %v1798, 16
  %v1803 = vshll.u32 %v1798, 16
  %v1805 = vrot.slane %v1803, 1
  %v1806 = vor.u32 %v1801, %v1805
  %v1808 = vshll.u32 %v1756, 16
  %v1810 = vrot.slane %v1808, 1
  %v1811 = vsel %vm1799, %v1806, %v1810
  %v1812 = vshrl.u32 %v1756, 16
  %v1814 = vor.u32 %v1812, %v1810
  %v1816 = vshll.u32 %v1757, 16
  %v1818 = vrot.slane %v1816, 1
  %v1819 = vsel %vm1799, %v1814, %v1818
  %v1820 = vshrl.u32 %v1757, 16
  %v1822 = vor.u32 %v1820, %v1818
  %v1824 = vshll.u32 %v1758, 16
  %v1826 = vrot.slane %v1824, 1
  %v1827 = vsel %vm1799, %v1822, %v1826
  %v1828 = vshrl.u32 %v1758, 16
  %v1830 = vor.u32 %v1828, %v1826
  %v1832 = vshll.u32 %v1759, 16
  %v1834 = vrot.slane %v1832, 1
  %v1835 = vsel %vm1799, %v1830, %v1834
  %v1836 = vshrl.u32 %v1759, 16
  %v1838 = vor.u32 %v1836, %v1834
  %v1840 = vshll.u32 %v1760, 16
  %v1842 = vrot.slane %v1840, 1
  %v1843 = vsel %vm1799, %v1838, %v1842
  %v1844 = vshrl.u32 %v1760, 16
  %v1846 = vor.u32 %v1844, %v1842
  %v1848 = vshll.u32 %v1761, 16
  %v1850 = vrot.slane %v1848, 1
  %v1851 = vsel %vm1799, %v1846, %v1850
  %v1852 = vshrl.u32 %v1761, 16
  %v1854 = vor.u32 %v1852, %v1850
  %v1856 = vshll.u32 %v1762, 16
  %v1858 = vrot.slane %v1856, 1
  %v1859 = vsel %vm1799, %v1854, %v1858
  %v1860 = vshrl.u32 %v1762, 16
  %v1862 = vor.u32 %v1860, %v1858
  %v1864 = vshll.u32 %v1763, 16
  %v1866 = vrot.slane %v1864, 1
  %v1867 = vsel %vm1799, %v1862, %v1866
  %v1868 = vshrl.u32 %v1763, 16
  %v1870 = vor.u32 %v1868, %v1866
  %v1872 = vshll.u32 %v1764, 16
  %v1874 = vrot.slane %v1872, 1
  %v1875 = vsel %vm1799, %v1870, %v1874
  %v1876 = vshrl.u32 %v1764, 16
  %v1878 = vor.u32 %v1876, %v1874
  %v1880 = vshll.u32 %v1765, 16
  %v1882 = vrot.slane %v1880, 1
  %v1883 = vsel %vm1799, %v1878, %v1882
  %v1884 = vshrl.u32 %v1765, 16
  %v1886 = vor.u32 %v1884, %v1882
  %v1888 = vshll.u32 %v1766, 16
  %v1890 = vrot.slane %v1888, 1
  %v1891 = vsel %vm1799, %v1886, %v1890
  %v1892 = vshrl.u32 %v1766, 16
  %v1894 = vor.u32 %v1892, %v1890
  %v1896 = vshll.u32 %v1767, 16
  %v1898 = vrot.slane %v1896, 1
  %v1899 = vsel %vm1799, %v1894, %v1898
  %v1900 = vshrl.u32 %v1767, 16
  %v1902 = vor.u32 %v1900, %v1898
  %v1904 = vshll.u32 %v1768, 16
  %v1906 = vrot.slane %v1904, 1
  %v1907 = vsel %vm1799, %v1902, %v1906
  %v1908 = vshrl.u32 %v1768, 16
  %v1910 = vor.u32 %v1908, %v1906
  %v1912 = vshll.u32 %v1769, 16
  %v1914 = vrot.slane %v1912, 1
  %v1915 = vsel %vm1799, %v1910, %v1914
  %v1916 = vshrl.u32 %v1769, 16
  %v1918 = vor.u32 %v1916, %v1914
  %v1920 = vshll.u32 %v1770, 16
  %v1922 = vrot.slane %v1920, 1
  %v1923 = vsel %vm1799, %v1918, %v1922
  %v1924 = vshrl.u32 %v1770, 16
  %v1926 = vor.u32 %v1924, %v1922
  %v1928 = vshll.u32 %v1771, 16
  %v1930 = vrot.slane %v1928, 1
  %v1931 = vsel %vm1799, %v1926, %v1930
  %v1932 = vshrl.u32 %v1771, 16
  %v1934 = vor.u32 %v1932, %v1930
  %v1936 = vshll.u32 %v1772, 16
  %v1938 = vrot.slane %v1936, 1
  %v1939 = vsel %vm1799, %v1934, %v1938
  %v1940 = vshrl.u32 %v1772, 16
  %v1942 = vor.u32 %v1940, %v1938
  %v1944 = vshll.u32 %v1773, 16
  %v1946 = vrot.slane %v1944, 1
  %v1947 = vsel %vm1799, %v1942, %v1946
  %v1948 = vshrl.u32 %v1773, 16
  %v1950 = vor.u32 %v1948, %v1946
  %v1952 = vshll.u32 %v1774, 16
  %v1954 = vrot.slane %v1952, 1
  %v1955 = vsel %vm1799, %v1950, %v1954
  %v1956 = vshrl.u32 %v1774, 16
  %v1958 = vor.u32 %v1956, %v1954
  %v1960 = vshll.u32 %v1775, 16
  %v1962 = vrot.slane %v1960, 1
  %v1963 = vsel %vm1799, %v1958, %v1962
  %v1964 = vshrl.u32 %v1775, 16
  %v1966 = vor.u32 %v1964, %v1962
  %v1968 = vshll.u32 %v1776, 16
  %v1970 = vrot.slane %v1968, 1
  %v1971 = vsel %vm1799, %v1966, %v1970
  %v1972 = vshrl.u32 %v1776, 16
  %v1974 = vor.u32 %v1972, %v1970
  %v1976 = vshll.u32 %v1777, 16
  %v1978 = vrot.slane %v1976, 1
  %v1979 = vsel %vm1799, %v1974, %v1978
  %v1980 = vshrl.u32 %v1777, 16
  %v1982 = vor.u32 %v1980, %v1978
  %v1984 = vshll.u32 %v1778, 16
  %v1986 = vrot.slane %v1984, 1
  %v1987 = vsel %vm1799, %v1982, %v1986
  %v1988 = vshrl.u32 %v1778, 16
  %v1990 = vor.u32 %v1988, %v1986
  %v1992 = vshll.u32 %v1779, 16
  %v1994 = vrot.slane %v1992, 1
  %v1995 = vsel %vm1799, %v1990, %v1994
  %v1996 = vshrl.u32 %v1779, 16
  %v1998 = vor.u32 %v1996, %v1994
  %v2000 = vshll.u32 %v1780, 16
  %v2002 = vrot.slane %v2000, 1
  %v2003 = vsel %vm1799, %v1998, %v2002
  %v2004 = vshrl.u32 %v1780, 16
  %v2006 = vor.u32 %v2004, %v2002
  %v2008 = vshll.u32 %v1781, 16
  %v2010 = vrot.slane %v2008, 1
  %v2011 = vsel %vm1799, %v2006, %v2010
  %v2012 = vshrl.u32 %v1781, 16
  %v2014 = vor.u32 %v2012, %v2010
  %v2016 = vshll.u32 %v1782, 16
  %v2018 = vrot.slane %v2016, 1
  %v2019 = vsel %vm1799, %v2014, %v2018
  %v2020 = vshrl.u32 %v1782, 16
  %v2022 = vor.u32 %v2020, %v2018
  %v2024 = vshll.u32 %v1783, 16
  %v2026 = vrot.slane %v2024, 1
  %v2027 = vsel %vm1799, %v2022, %v2026
  %v2028 = vshrl.u32 %v1783, 16
  %v2030 = vor.u32 %v2028, %v2026
  %v2032 = vshll.u32 %v1784, 16
  %v2034 = vrot.slane %v2032, 1
  %v2035 = vsel %vm1799, %v2030, %v2034
  %v2036 = vshrl.u32 %v1784, 16
  %v2038 = vor.u32 %v2036, %v2034
  %v2040 = vshll.u32 %v1785, 16
  %v2042 = vrot.slane %v2040, 1
  %v2043 = vsel %vm1799, %v2038, %v2042
  %v2044 = vshrl.u32 %v1785, 16
  %v2046 = vor.u32 %v2044, %v2042
  %v2048 = vshll.u32 %v1786, 16
  %v2050 = vrot.slane %v2048, 1
  %v2051 = vsel %vm1799, %v2046, %v2050
  %v2052 = vshrl.u32 %v1786, 16
  %v2054 = vor.u32 %v2052, %v2050
  %v2056 = vshll.u32 %v1787, 16
  %v2058 = vrot.slane %v2056, 1
  %v2059 = vsel %vm1799, %v2054, %v2058
  %v2060 = vshrl.u32 %v1787, 16
  %v2062 = vor.u32 %v2060, %v2058
  %v2064 = vshll.u32 %v1788, 16
  %v2066 = vrot.slane %v2064, 1
  %v2067 = vsel %vm1799, %v2062, %v2066
  %v2068 = vshrl.u32 %v1788, 16
  %v2070 = vor.u32 %v2068, %v2066
  %v2072 = vshll.u32 %v1789, 16
  %v2074 = vrot.slane %v2072, 1
  %v2075 = vsel %vm1799, %v2070, %v2074
  %v2076 = vshrl.u32 %v1789, 16
  %v2078 = vor.u32 %v2076, %v2074
  %v2080 = vshll.u32 %v1790, 16
  %v2082 = vrot.slane %v2080, 1
  %v2083 = vsel %vm1799, %v2078, %v2082
  %v2084 = vshrl.u32 %v1790, 16
  %v2086 = vor.u32 %v2084, %v2082
  %v2088 = vshll.u32 %v1791, 16
  %v2090 = vrot.slane %v2088, 1
  %v2091 = vsel %vm1799, %v2086, %v2090
  %v2092 = vshrl.u32 %v1791, 16
  %v2094 = vor.u32 %v2092, %v2090
  %v2096 = vshll.u32 %v1792, 16
  %v2098 = vrot.slane %v2096, 1
  %v2099 = vsel %vm1799, %v2094, %v2098
  %v2100 = vshrl.u32 %v1792, 16
  %v2102 = vor.u32 %v2100, %v2098
  %v2104 = vshll.u32 %v1793, 16
  %v2106 = vrot.slane %v2104, 1
  %v2107 = vsel %vm1799, %v2102, %v2106
  %v2108 = vshrl.u32 %v1793, 16
  %v2110 = vor.u32 %v2108, %v2106
  %v2112 = vshll.u32 %v1794, 16
  %v2114 = vrot.slane %v2112, 1
  %v2115 = vsel %vm1799, %v2110, %v2114
  %v2116 = vshrl.u32 %v1794, 16
  %v2118 = vor.u32 %v2116, %v2114
  %v2120 = vshll.u32 %v1795, 16
  %v2122 = vrot.slane %v2120, 1
  %v2123 = vsel %vm1799, %v2118, %v2122
  %v2124 = vshrl.u32 %v1795, 16
  %v2126 = vor.u32 %v2124, %v2122
  %2127 = vrot.lane.b32.xlu0 %v1811, 32
  %v2128 = vpop.permute.xlu0 %2127
  %2129 = vrot.lane.b32.xlu0 %v1819, 32
  %v2130 = vpop.permute.xlu0 %2129
  %2131 = vrot.lane.b32.xlu0 %v1827, 32
  %v2132 = vpop.permute.xlu0 %2131
  %2133 = vrot.lane.b32.xlu0 %v1835, 32
  %v2134 = vpop.permute.xlu0 %2133
  %2135 = vrot.lane.b32.xlu0 %v1843, 32
  %v2136 = vpop.permute.xlu0 %2135
  %2137 = vrot.lane.b32.xlu0 %v1851, 32
  %v2138 = vpop.permute.xlu0 %2137
  %2139 = vrot.lane.b32.xlu0 %v1859, 32
  %v2140 = vpop.permute.xlu0 %2139
  %2141 = vrot.lane.b32.xlu0 %v1867, 32
  %v2142 = vpop.permute.xlu0 %2141
  %2143 = vrot.lane.b32.xlu0 %v1875, 32
  %v2144 = vpop.permute.xlu0 %2143
  %2145 = vrot.lane.b32.xlu0 %v1883, 32
  %v2146 = vpop.permute.xlu0 %2145
  %2147 = vrot.lane.b32.xlu0 %v1891, 32
  %v2148 = vpop.permute.xlu0 %2147
  %2149 = vrot.lane.b32.xlu0 %v1899, 32
  %v2150 = vpop.permute.xlu0 %2149
  %2151 = vrot.lane.b32.xlu0 %v1907, 32
  %v2152 = vpop.permute.xlu0 %2151
  %2153 = vrot.lane.b32.xlu0 %v1915, 32
  %v2154 = vpop.permute.xlu0 %2153
  %2155 = vrot.lane.b32.xlu0 %v1923, 32
  %v2156 = vpop.permute.xlu0 %2155
  %2157 = vrot.lane.b32.xlu0 %v1931, 32
  %v2158 = vpop.permute.xlu0 %2157
  %2159 = vrot.lane.b32.xlu0 %v1939, 32
  %v2160 = vpop.permute.xlu0 %2159
  %2161 = vrot.lane.b32.xlu0 %v1947, 32
  %v2162 = vpop.permute.xlu0 %2161
  %2163 = vrot.lane.b32.xlu0 %v1955, 32
  %v2164 = vpop.permute.xlu0 %2163
  %2165 = vrot.lane.b32.xlu0 %v1963, 32
  %v2166 = vpop.permute.xlu0 %2165
  %2167 = vrot.lane.b32.xlu0 %v1971, 32
  %v2168 = vpop.permute.xlu0 %2167
  %2169 = vrot.lane.b32.xlu0 %v1979, 32
  %v2170 = vpop.permute.xlu0 %2169
  %2171 = vrot.lane.b32.xlu0 %v1987, 32
  %v2172 = vpop.permute.xlu0 %2171
  %2173 = vrot.lane.b32.xlu0 %v1995, 32
  %v2174 = vpop.permute.xlu0 %2173
  %2175 = vrot.lane.b32.xlu0 %v2003, 32
  %v2176 = vpop.permute.xlu0 %2175
  %2177 = vrot.lane.b32.xlu0 %v2011, 32
  %v2178 = vpop.permute.xlu0 %2177
  %2179 = vrot.lane.b32.xlu0 %v2019, 32
  %v2180 = vpop.permute.xlu0 %2179
  %2181 = vrot.lane.b32.xlu0 %v2027, 32
  %v2182 = vpop.permute.xlu0 %2181
  %2183 = vrot.lane.b32.xlu0 %v2035, 32
  %v2184 = vpop.permute.xlu0 %2183
  %2185 = vrot.lane.b32.xlu0 %v2043, 32
  %v2186 = vpop.permute.xlu0 %2185
  %2187 = vrot.lane.b32.xlu0 %v2051, 32
  %v2188 = vpop.permute.xlu0 %2187
  %2189 = vrot.lane.b32.xlu0 %v2059, 32
  %v2190 = vpop.permute.xlu0 %2189
  %2191 = vrot.lane.b32.xlu0 %v2067, 32
  %v2192 = vpop.permute.xlu0 %2191
  %2193 = vrot.lane.b32.xlu0 %v2075, 32
  %v2194 = vpop.permute.xlu0 %2193
  %2195 = vrot.lane.b32.xlu0 %v2083, 32
  %v2196 = vpop.permute.xlu0 %2195
  %2197 = vrot.lane.b32.xlu0 %v2091, 32
  %v2198 = vpop.permute.xlu0 %2197
  %2199 = vrot.lane.b32.xlu0 %v2099, 32
  %v2200 = vpop.permute.xlu0 %2199
  %2201 = vrot.lane.b32.xlu0 %v2107, 32
  %v2202 = vpop.permute.xlu0 %2201
  %2203 = vrot.lane.b32.xlu0 %v2115, 32
  %v2204 = vpop.permute.xlu0 %2203
  %2205 = vrot.lane.b32.xlu0 %v2123, 32
  %v2206 = vpop.permute.xlu0 %2205
  %2207 = vrot.lane.b32.xlu0 %v2126, 32
  %v2208 = vpop.permute.xlu0 %2207
  %v2210 = vunpack.c.l.b16 %v1581
  %v2211 = vpack.c.b16 %v2210, %v1753
  %vm2212 = vcmask 1046528
  %v2213 = vrot.slane %v1798, 1
  %v2214 = vrot.slane %v1756, 1
  %v2215 = vsel %vm2212, %v2213, %v2214
  %v2216 = vrot.slane %v1757, 1
  %v2217 = vsel %vm2212, %v2214, %v2216
  %v2218 = vrot.slane %v1758, 1
  %v2219 = vsel %vm2212, %v2216, %v2218
  %v2220 = vrot.slane %v1759, 1
  %v2221 = vsel %vm2212, %v2218, %v2220
  %v2222 = vrot.slane %v1760, 1
  %v2223 = vsel %vm2212, %v2220, %v2222
  %v2224 = vrot.slane %v1761, 1
  %v2225 = vsel %vm2212, %v2222, %v2224
  %v2226 = vrot.slane %v1762, 1
  %v2227 = vsel %vm2212, %v2224, %v2226
  %v2228 = vrot.slane %v1763, 1
  %v2229 = vsel %vm2212, %v2226, %v2228
  %v2230 = vrot.slane %v1764, 1
  %v2231 = vsel %vm2212, %v2228, %v2230
  %v2232 = vrot.slane %v1765, 1
  %v2233 = vsel %vm2212, %v2230, %v2232
  %v2234 = vrot.slane %v1766, 1
  %v2235 = vsel %vm2212, %v2232, %v2234
  %v2236 = vrot.slane %v1767, 1
  %v2237 = vsel %vm2212, %v2234, %v2236
  %v2238 = vrot.slane %v1768, 1
  %v2239 = vsel %vm2212, %v2236, %v2238
  %v2240 = vrot.slane %v1769, 1
  %v2241 = vsel %vm2212, %v2238, %v2240
  %v2242 = vrot.slane %v1770, 1
  %v2243 = vsel %vm2212, %v2240, %v2242
  %v2244 = vrot.slane %v1771, 1
  %v2245 = vsel %vm2212, %v2242, %v2244
  %v2246 = vrot.slane %v1772, 1
  %v2247 = vsel %vm2212, %v2244, %v2246
  %v2248 = vrot.slane %v1773, 1
  %v2249 = vsel %vm2212, %v2246, %v2248
  %v2250 = vrot.slane %v1774, 1
  %v2251 = vsel %vm2212, %v2248, %v2250
  %v2252 = vrot.slane %v1775, 1
  %v2253 = vsel %vm2212, %v2250, %v2252
  %v2254 = vrot.slane %v1776, 1
  %v2255 = vsel %vm2212, %v2252, %v2254
  %v2256 = vrot.slane %v1777, 1
  %v2257 = vsel %vm2212, %v2254, %v2256
  %v2258 = vrot.slane %v1778, 1
  %v2259 = vsel %vm2212, %v2256, %v2258
  %v2260 = vrot.slane %v1779, 1
  %v2261 = vsel %vm2212, %v2258, %v2260
  %v2262 = vrot.slane %v1780, 1
  %v2263 = vsel %vm2212, %v2260, %v2262
  %v2264 = vrot.slane %v1781, 1
  %v2265 = vsel %vm2212, %v2262, %v2264
  %v2266 = vrot.slane %v1782, 1
  %v2267 = vsel %vm2212, %v2264, %v2266
  %v2268 = vrot.slane %v1783, 1
  %v2269 = vsel %vm2212, %v2266, %v2268
  %v2270 = vrot.slane %v1784, 1
  %v2271 = vsel %vm2212, %v2268, %v2270
  %v2272 = vrot.slane %v1785, 1
  %v2273 = vsel %vm2212, %v2270, %v2272
  %v2274 = vrot.slane %v1786, 1
  %v2275 = vsel %vm2212, %v2272, %v2274
  %v2276 = vrot.slane %v1787, 1
  %v2277 = vsel %vm2212, %v2274, %v2276
  %v2278 = vrot.slane %v1788, 1
  %v2279 = vsel %vm2212, %v2276, %v2278
  %v2280 = vrot.slane %v1789, 1
  %v2281 = vsel %vm2212, %v2278, %v2280
  %v2282 = vrot.slane %v1790, 1
  %v2283 = vsel %vm2212, %v2280, %v2282
  %v2284 = vrot.slane %v1791, 1
  %v2285 = vsel %vm2212, %v2282, %v2284
  %v2286 = vrot.slane %v1792, 1
  %v2287 = vsel %vm2212, %v2284, %v2286
  %v2288 = vrot.slane %v1793, 1
  %v2289 = vsel %vm2212, %v2286, %v2288
  %v2290 = vrot.slane %v1794, 1
  %v2291 = vsel %vm2212, %v2288, %v2290
  %v2292 = vrot.slane %v2211, 1
  %v2293 = vsel %vm2212, %v2290, %v2292
  %2294 = vrot.lane.b32.xlu0 %v2215, 64
  %v2295 = vpop.permute.xlu0 %2294
  %2296 = vrot.lane.b32.xlu0 %v2217, 64
  %v2297 = vpop.permute.xlu0 %2296
  %2298 = vrot.lane.b32.xlu0 %v2219, 64
  %v2299 = vpop.permute.xlu0 %2298
  %2300 = vrot.lane.b32.xlu0 %v2221, 64
  %v2301 = vpop.permute.xlu0 %2300
  %2302 = vrot.lane.b32.xlu0 %v2223, 64
  %v2303 = vpop.permute.xlu0 %2302
  %2304 = vrot.lane.b32.xlu0 %v2225, 64
  %v2305 = vpop.permute.xlu0 %2304
  %2306 = vrot.lane.b32.xlu0 %v2227, 64
  %v2307 = vpop.permute.xlu0 %2306
  %2308 = vrot.lane.b32.xlu0 %v2229, 64
  %v2309 = vpop.permute.xlu0 %2308
  %2310 = vrot.lane.b32.xlu0 %v2231, 64
  %v2311 = vpop.permute.xlu0 %2310
  %2312 = vrot.lane.b32.xlu0 %v2233, 64
  %v2313 = vpop.permute.xlu0 %2312
  %2314 = vrot.lane.b32.xlu0 %v2235, 64
  %v2315 = vpop.permute.xlu0 %2314
  %2316 = vrot.lane.b32.xlu0 %v2237, 64
  %v2317 = vpop.permute.xlu0 %2316
  %2318 = vrot.lane.b32.xlu0 %v2239, 64
  %v2319 = vpop.permute.xlu0 %2318
  %2320 = vrot.lane.b32.xlu0 %v2241, 64
  %v2321 = vpop.permute.xlu0 %2320
  %2322 = vrot.lane.b32.xlu0 %v2243, 64
  %v2323 = vpop.permute.xlu0 %2322
  %2324 = vrot.lane.b32.xlu0 %v2245, 64
  %v2325 = vpop.permute.xlu0 %2324
  %2326 = vrot.lane.b32.xlu0 %v2247, 64
  %v2327 = vpop.permute.xlu0 %2326
  %2328 = vrot.lane.b32.xlu0 %v2249, 64
  %v2329 = vpop.permute.xlu0 %2328
  %2330 = vrot.lane.b32.xlu0 %v2251, 64
  %v2331 = vpop.permute.xlu0 %2330
  %2332 = vrot.lane.b32.xlu0 %v2253, 64
  %v2333 = vpop.permute.xlu0 %2332
  %2334 = vrot.lane.b32.xlu0 %v2255, 64
  %v2335 = vpop.permute.xlu0 %2334
  %2336 = vrot.lane.b32.xlu0 %v2257, 64
  %v2337 = vpop.permute.xlu0 %2336
  %2338 = vrot.lane.b32.xlu0 %v2259, 64
  %v2339 = vpop.permute.xlu0 %2338
  %2340 = vrot.lane.b32.xlu0 %v2261, 64
  %v2341 = vpop.permute.xlu0 %2340
  %2342 = vrot.lane.b32.xlu0 %v2263, 64
  %v2343 = vpop.permute.xlu0 %2342
  %2344 = vrot.lane.b32.xlu0 %v2265, 64
  %v2345 = vpop.permute.xlu0 %2344
  %2346 = vrot.lane.b32.xlu0 %v2267, 64
  %v2347 = vpop.permute.xlu0 %2346
  %2348 = vrot.lane.b32.xlu0 %v2269, 64
  %v2349 = vpop.permute.xlu0 %2348
  %2350 = vrot.lane.b32.xlu0 %v2271, 64
  %v2351 = vpop.permute.xlu0 %2350
  %2352 = vrot.lane.b32.xlu0 %v2273, 64
  %v2353 = vpop.permute.xlu0 %2352
  %2354 = vrot.lane.b32.xlu0 %v2275, 64
  %v2355 = vpop.permute.xlu0 %2354
  %2356 = vrot.lane.b32.xlu0 %v2277, 64
  %v2357 = vpop.permute.xlu0 %2356
  %2358 = vrot.lane.b32.xlu0 %v2279, 64
  %v2359 = vpop.permute.xlu0 %2358
  %2360 = vrot.lane.b32.xlu0 %v2281, 64
  %v2361 = vpop.permute.xlu0 %2360
  %2362 = vrot.lane.b32.xlu0 %v2283, 64
  %v2363 = vpop.permute.xlu0 %2362
  %2364 = vrot.lane.b32.xlu0 %v2285, 64
  %v2365 = vpop.permute.xlu0 %2364
  %2366 = vrot.lane.b32.xlu0 %v2287, 64
  %v2367 = vpop.permute.xlu0 %2366
  %2368 = vrot.lane.b32.xlu0 %v2289, 64
  %v2369 = vpop.permute.xlu0 %2368
  %2370 = vrot.lane.b32.xlu0 %v2291, 64
  %v2371 = vpop.permute.xlu0 %2370
  %2372 = vrot.lane.b32.xlu0 %v2293, 64
  %v2373 = vpop.permute.xlu0 %2372
  %2374 = vrot.lane.b32.xlu0 %v2292, 64
  %v2375 = vpop.permute.xlu0 %2374
  %v2379 = vunpack.c.l.b16 %v1582
  %v2380 = vunpack.c.l.b16 %v1583
  %v2381 = vunpack.c.l.b16 %v1584
  %v2382 = vpack.c.b16 %v1676, %v2379
  %v2383 = vpack.c.b16 %v2381, %v2380
  %v2384 = vrot.slane %v2382, 1
  %v2385 = vsel %vm2212, %v2384, %v2216
  %v2386 = vrot.slane %v2383, 1
  %v2387 = vsel %vm2212, %v2292, %v2386
  %2388 = vrot.lane.b32.xlu0 %v2385, 96
  %v2389 = vpop.permute.xlu0 %2388
  %2390 = vrot.lane.b32.xlu0 %v2219, 96
  %v2391 = vpop.permute.xlu0 %2390
  %2392 = vrot.lane.b32.xlu0 %v2221, 96
  %v2393 = vpop.permute.xlu0 %2392
  %2394 = vrot.lane.b32.xlu0 %v2223, 96
  %v2395 = vpop.permute.xlu0 %2394
  %2396 = vrot.lane.b32.xlu0 %v2225, 96
  %v2397 = vpop.permute.xlu0 %2396
  %2398 = vrot.lane.b32.xlu0 %v2227, 96
  %v2399 = vpop.permute.xlu0 %2398
  %2400 = vrot.lane.b32.xlu0 %v2229, 96
  %v2401 = vpop.permute.xlu0 %2400
  %2402 = vrot.lane.b32.xlu0 %v2231, 96
  %v2403 = vpop.permute.xlu0 %2402
  %2404 = vrot.lane.b32.xlu0 %v2233, 96
  %v2405 = vpop.permute.xlu0 %2404
  %2406 = vrot.lane.b32.xlu0 %v2235, 96
  %v2407 = vpop.permute.xlu0 %2406
  %2408 = vrot.lane.b32.xlu0 %v2237, 96
  %v2409 = vpop.permute.xlu0 %2408
  %2410 = vrot.lane.b32.xlu0 %v2239, 96
  %v2411 = vpop.permute.xlu0 %2410
  %2412 = vrot.lane.b32.xlu0 %v2241, 96
  %v2413 = vpop.permute.xlu0 %2412
  %2414 = vrot.lane.b32.xlu0 %v2243, 96
  %v2415 = vpop.permute.xlu0 %2414
  %2416 = vrot.lane.b32.xlu0 %v2245, 96
  %v2417 = vpop.permute.xlu0 %2416
  %2418 = vrot.lane.b32.xlu0 %v2247, 96
  %v2419 = vpop.permute.xlu0 %2418
  %2420 = vrot.lane.b32.xlu0 %v2249, 96
  %v2421 = vpop.permute.xlu0 %2420
  %2422 = vrot.lane.b32.xlu0 %v2251, 96
  %v2423 = vpop.permute.xlu0 %2422
  %2424 = vrot.lane.b32.xlu0 %v2253, 96
  %v2425 = vpop.permute.xlu0 %2424
  %2426 = vrot.lane.b32.xlu0 %v2255, 96
  %v2427 = vpop.permute.xlu0 %2426
  %2428 = vrot.lane.b32.xlu0 %v2257, 96
  %v2429 = vpop.permute.xlu0 %2428
  %2430 = vrot.lane.b32.xlu0 %v2259, 96
  %v2431 = vpop.permute.xlu0 %2430
  %2432 = vrot.lane.b32.xlu0 %v2261, 96
  %v2433 = vpop.permute.xlu0 %2432
  %2434 = vrot.lane.b32.xlu0 %v2263, 96
  %v2435 = vpop.permute.xlu0 %2434
  %2436 = vrot.lane.b32.xlu0 %v2265, 96
  %v2437 = vpop.permute.xlu0 %2436
  %2438 = vrot.lane.b32.xlu0 %v2267, 96
  %v2439 = vpop.permute.xlu0 %2438
  %2440 = vrot.lane.b32.xlu0 %v2269, 96
  %v2441 = vpop.permute.xlu0 %2440
  %2442 = vrot.lane.b32.xlu0 %v2271, 96
  %v2443 = vpop.permute.xlu0 %2442
  %2444 = vrot.lane.b32.xlu0 %v2273, 96
  %v2445 = vpop.permute.xlu0 %2444
  %2446 = vrot.lane.b32.xlu0 %v2275, 96
  %v2447 = vpop.permute.xlu0 %2446
  %2448 = vrot.lane.b32.xlu0 %v2277, 96
  %v2449 = vpop.permute.xlu0 %2448
  %2450 = vrot.lane.b32.xlu0 %v2279, 96
  %v2451 = vpop.permute.xlu0 %2450
  %2452 = vrot.lane.b32.xlu0 %v2281, 96
  %v2453 = vpop.permute.xlu0 %2452
  %2454 = vrot.lane.b32.xlu0 %v2283, 96
  %v2455 = vpop.permute.xlu0 %2454
  %2456 = vrot.lane.b32.xlu0 %v2285, 96
  %v2457 = vpop.permute.xlu0 %2456
  %2458 = vrot.lane.b32.xlu0 %v2287, 96
  %v2459 = vpop.permute.xlu0 %2458
  %2460 = vrot.lane.b32.xlu0 %v2289, 96
  %v2461 = vpop.permute.xlu0 %2460
  %2462 = vrot.lane.b32.xlu0 %v2291, 96
  %v2463 = vpop.permute.xlu0 %2462
  %2464 = vrot.lane.b32.xlu0 %v2293, 96
  %v2465 = vpop.permute.xlu0 %2464
  %2466 = vrot.lane.b32.xlu0 %v2387, 96
  %v2467 = vpop.permute.xlu0 %2466
  %2468 = vrot.lane.b32.xlu0 %v2386, 96
  %v2469 = vpop.permute.xlu0 %2468
  %v2470 = vpack.c.b16 %v1677, %v1676
  %v2471 = vpack.c.b16 %v1679, %v1678
  %v2472 = vpack.c.b16 %v1681, %v1680
  %v2473 = vpack.c.b16 %v1683, %v1682
  %v2474 = vpack.c.b16 %v1685, %v1684
  %v2475 = vpack.c.b16 %v1687, %v1686
  %v2476 = vpack.c.b16 %v1689, %v1688
  %v2477 = vpack.c.b16 %v1691, %v1690
  %v2478 = vpack.c.b16 %v1693, %v1692
  %v2479 = vpack.c.b16 %v1695, %v1694
  %v2480 = vpack.c.b16 %v1697, %v1696
  %v2481 = vpack.c.b16 %v1699, %v1698
  %v2482 = vpack.c.b16 %v1701, %v1700
  %v2483 = vpack.c.b16 %v1703, %v1702
  %v2484 = vpack.c.b16 %v1705, %v1704
  %v2485 = vpack.c.b16 %v1707, %v1706
  %v2486 = vpack.c.b16 %v1709, %v1708
  %v2487 = vpack.c.b16 %v1711, %v1710
  %v2488 = vpack.c.b16 %v1713, %v1712
  %v2489 = vpack.c.b16 %v1715, %v1714
  %v2490 = vpack.c.b16 %v1717, %v1716
  %v2491 = vpack.c.b16 %v1719, %v1718
  %v2492 = vpack.c.b16 %v1721, %v1720
  %v2493 = vpack.c.b16 %v1723, %v1722
  %v2494 = vpack.c.b16 %v1725, %v1724
  %v2495 = vpack.c.b16 %v1727, %v1726
  %v2496 = vpack.c.b16 %v1729, %v1728
  %v2497 = vpack.c.b16 %v1731, %v1730
  %v2498 = vpack.c.b16 %v1733, %v1732
  %v2499 = vpack.c.b16 %v1735, %v1734
  %v2500 = vpack.c.b16 %v1737, %v1736
  %v2501 = vpack.c.b16 %v1739, %v1738
  %v2502 = vpack.c.b16 %v1741, %v1740
  %v2503 = vpack.c.b16 %v1743, %v1742
  %v2504 = vpack.c.b16 %v1745, %v1744
  %v2505 = vpack.c.b16 %v1747, %v1746
  %v2506 = vpack.c.b16 %v1749, %v1748
  %v2507 = vpack.c.b16 %v1751, %v1750
  %v2508 = vpack.c.b16 %v1753, %v1752
  %v2509 = vpack.c.b16 %v2380, %v2210
  %v2510 = vpack.c.b16 %v2381, %v2381
  %vm2511 = vsmask.f32 2304
  %v2513 = vshrl.u32 %v2470, 16
  %v2515 = vrot.slane %v2513, 5
  %v2516 = vshll.u32 %v2470, 16
  %v2518 = vrot.slane %v2516, 6
  %v2519 = vor.u32 %v2515, %v2518
  %v2521 = vshrl.u32 %v2471, 16
  %v2523 = vrot.slane %v2521, 5
  %v2524 = vshll.u32 %v2471, 16
  %v2526 = vrot.slane %v2524, 6
  %v2527 = vor.u32 %v2523, %v2526
  %v2528 = vsel %vm2511, %v2519, %v2527
  %v2530 = vshrl.u32 %v2472, 16
  %v2532 = vrot.slane %v2530, 5
  %v2533 = vshll.u32 %v2472, 16
  %v2535 = vrot.slane %v2533, 6
  %v2536 = vor.u32 %v2532, %v2535
  %v2537 = vsel %vm2511, %v2527, %v2536
  %v2539 = vshrl.u32 %v2473, 16
  %v2541 = vrot.slane %v2539, 5
  %v2542 = vshll.u32 %v2473, 16
  %v2544 = vrot.slane %v2542, 6
  %v2545 = vor.u32 %v2541, %v2544
  %v2546 = vsel %vm2511, %v2536, %v2545
  %v2548 = vshrl.u32 %v2474, 16
  %v2550 = vrot.slane %v2548, 5
  %v2551 = vshll.u32 %v2474, 16
  %v2553 = vrot.slane %v2551, 6
  %v2554 = vor.u32 %v2550, %v2553
  %v2555 = vsel %vm2511, %v2545, %v2554
  %v2557 = vshrl.u32 %v2475, 16
  %v2559 = vrot.slane %v2557, 5
  %v2560 = vshll.u32 %v2475, 16
  %v2562 = vrot.slane %v2560, 6
  %v2563 = vor.u32 %v2559, %v2562
  %v2564 = vsel %vm2511, %v2554, %v2563
  %v2566 = vshrl.u32 %v2476, 16
  %v2568 = vrot.slane %v2566, 5
  %v2569 = vshll.u32 %v2476, 16
  %v2571 = vrot.slane %v2569, 6
  %v2572 = vor.u32 %v2568, %v2571
  %v2573 = vsel %vm2511, %v2563, %v2572
  %v2575 = vshrl.u32 %v2477, 16
  %v2577 = vrot.slane %v2575, 5
  %v2578 = vshll.u32 %v2477, 16
  %v2580 = vrot.slane %v2578, 6
  %v2581 = vor.u32 %v2577, %v2580
  %v2582 = vsel %vm2511, %v2572, %v2581
  %v2584 = vshrl.u32 %v2478, 16
  %v2586 = vrot.slane %v2584, 5
  %v2587 = vshll.u32 %v2478, 16
  %v2589 = vrot.slane %v2587, 6
  %v2590 = vor.u32 %v2586, %v2589
  %v2591 = vsel %vm2511, %v2581, %v2590
  %v2593 = vshrl.u32 %v2479, 16
  %v2595 = vrot.slane %v2593, 5
  %v2596 = vshll.u32 %v2479, 16
  %v2598 = vrot.slane %v2596, 6
  %v2599 = vor.u32 %v2595, %v2598
  %v2600 = vsel %vm2511, %v2590, %v2599
  %v2602 = vshrl.u32 %v2480, 16
  %v2604 = vrot.slane %v2602, 5
  %v2605 = vshll.u32 %v2480, 16
  %v2607 = vrot.slane %v2605, 6
  %v2608 = vor.u32 %v2604, %v2607
  %v2609 = vsel %vm2511, %v2599, %v2608
  %v2611 = vshrl.u32 %v2481, 16
  %v2613 = vrot.slane %v2611, 5
  %v2614 = vshll.u32 %v2481, 16
  %v2616 = vrot.slane %v2614, 6
  %v2617 = vor.u32 %v2613, %v2616
  %v2618 = vsel %vm2511, %v2608, %v2617
  %v2620 = vshrl.u32 %v2482, 16
  %v2622 = vrot.slane %v2620, 5
  %v2623 = vshll.u32 %v2482, 16
  %v2625 = vrot.slane %v2623, 6
  %v2626 = vor.u32 %v2622, %v2625
  %v2627 = vsel %vm2511, %v2617, %v2626
  %v2629 = vshrl.u32 %v2483, 16
  %v2631 = vrot.slane %v2629, 5
  %v2632 = vshll.u32 %v2483, 16
  %v2634 = vrot.slane %v2632, 6
  %v2635 = vor.u32 %v2631, %v2634
  %v2636 = vsel %vm2511, %v2626, %v2635
  %v2638 = vshrl.u32 %v2484, 16
  %v2640 = vrot.slane %v2638, 5
  %v2641 = vshll.u32 %v2484, 16
  %v2643 = vrot.slane %v2641, 6
  %v2644 = vor.u32 %v2640, %v2643
  %v2645 = vsel %vm2511, %v2635, %v2644
  %v2647 = vshrl.u32 %v2485, 16
  %v2649 = vrot.slane %v2647, 5
  %v2650 = vshll.u32 %v2485, 16
  %v2652 = vrot.slane %v2650, 6
  %v2653 = vor.u32 %v2649, %v2652
  %v2654 = vsel %vm2511, %v2644, %v2653
  %v2656 = vshrl.u32 %v2486, 16
  %v2658 = vrot.slane %v2656, 5
  %v2659 = vshll.u32 %v2486, 16
  %v2661 = vrot.slane %v2659, 6
  %v2662 = vor.u32 %v2658, %v2661
  %v2663 = vsel %vm2511, %v2653, %v2662
  %v2665 = vshrl.u32 %v2487, 16
  %v2667 = vrot.slane %v2665, 5
  %v2668 = vshll.u32 %v2487, 16
  %v2670 = vrot.slane %v2668, 6
  %v2671 = vor.u32 %v2667, %v2670
  %v2672 = vsel %vm2511, %v2662, %v2671
  %v2674 = vshrl.u32 %v2488, 16
  %v2676 = vrot.slane %v2674, 5
  %v2677 = vshll.u32 %v2488, 16
  %v2679 = vrot.slane %v2677, 6
  %v2680 = vor.u32 %v2676, %v2679
  %v2681 = vsel %vm2511, %v2671, %v2680
  %v2683 = vshrl.u32 %v2489, 16
  %v2685 = vrot.slane %v2683, 5
  %v2686 = vshll.u32 %v2489, 16
  %v2688 = vrot.slane %v2686, 6
  %v2689 = vor.u32 %v2685, %v2688
  %v2690 = vsel %vm2511, %v2680, %v2689
  %v2692 = vshrl.u32 %v2490, 16
  %v2694 = vrot.slane %v2692, 5
  %v2695 = vshll.u32 %v2490, 16
  %v2697 = vrot.slane %v2695, 6
  %v2698 = vor.u32 %v2694, %v2697
  %v2699 = vsel %vm2511, %v2689, %v2698
  %v2701 = vshrl.u32 %v2491, 16
  %v2703 = vrot.slane %v2701, 5
  %v2704 = vshll.u32 %v2491, 16
  %v2706 = vrot.slane %v2704, 6
  %v2707 = vor.u32 %v2703, %v2706
  %v2708 = vsel %vm2511, %v2698, %v2707
  %v2710 = vshrl.u32 %v2492, 16
  %v2712 = vrot.slane %v2710, 5
  %v2713 = vshll.u32 %v2492, 16
  %v2715 = vrot.slane %v2713, 6
  %v2716 = vor.u32 %v2712, %v2715
  %v2717 = vsel %vm2511, %v2707, %v2716
  %v2719 = vshrl.u32 %v2493, 16
  %v2721 = vrot.slane %v2719, 5
  %v2722 = vshll.u32 %v2493, 16
  %v2724 = vrot.slane %v2722, 6
  %v2725 = vor.u32 %v2721, %v2724
  %v2726 = vsel %vm2511, %v2716, %v2725
  %v2728 = vshrl.u32 %v2494, 16
  %v2730 = vrot.slane %v2728, 5
  %v2731 = vshll.u32 %v2494, 16
  %v2733 = vrot.slane %v2731, 6
  %v2734 = vor.u32 %v2730, %v2733
  %v2735 = vsel %vm2511, %v2725, %v2734
  %v2737 = vshrl.u32 %v2495, 16
  %v2739 = vrot.slane %v2737, 5
  %v2740 = vshll.u32 %v2495, 16
  %v2742 = vrot.slane %v2740, 6
  %v2743 = vor.u32 %v2739, %v2742
  %v2744 = vsel %vm2511, %v2734, %v2743
  %v2746 = vshrl.u32 %v2496, 16
  %v2748 = vrot.slane %v2746, 5
  %v2749 = vshll.u32 %v2496, 16
  %v2751 = vrot.slane %v2749, 6
  %v2752 = vor.u32 %v2748, %v2751
  %v2753 = vsel %vm2511, %v2743, %v2752
  %v2755 = vshrl.u32 %v2497, 16
  %v2757 = vrot.slane %v2755, 5
  %v2758 = vshll.u32 %v2497, 16
  %v2760 = vrot.slane %v2758, 6
  %v2761 = vor.u32 %v2757, %v2760
  %v2762 = vsel %vm2511, %v2752, %v2761
  %v2764 = vshrl.u32 %v2498, 16
  %v2766 = vrot.slane %v2764, 5
  %v2767 = vshll.u32 %v2498, 16
  %v2769 = vrot.slane %v2767, 6
  %v2770 = vor.u32 %v2766, %v2769
  %v2771 = vsel %vm2511, %v2761, %v2770
  %v2773 = vshrl.u32 %v2499, 16
  %v2775 = vrot.slane %v2773, 5
  %v2776 = vshll.u32 %v2499, 16
  %v2778 = vrot.slane %v2776, 6
  %v2779 = vor.u32 %v2775, %v2778
  %v2780 = vsel %vm2511, %v2770, %v2779
  %v2782 = vshrl.u32 %v2500, 16
  %v2784 = vrot.slane %v2782, 5
  %v2785 = vshll.u32 %v2500, 16
  %v2787 = vrot.slane %v2785, 6
  %v2788 = vor.u32 %v2784, %v2787
  %v2789 = vsel %vm2511, %v2779, %v2788
  %v2791 = vshrl.u32 %v2501, 16
  %v2793 = vrot.slane %v2791, 5
  %v2794 = vshll.u32 %v2501, 16
  %v2796 = vrot.slane %v2794, 6
  %v2797 = vor.u32 %v2793, %v2796
  %v2798 = vsel %vm2511, %v2788, %v2797
  %v2800 = vshrl.u32 %v2502, 16
  %v2802 = vrot.slane %v2800, 5
  %v2803 = vshll.u32 %v2502, 16
  %v2805 = vrot.slane %v2803, 6
  %v2806 = vor.u32 %v2802, %v2805
  %v2807 = vsel %vm2511, %v2797, %v2806
  %v2809 = vshrl.u32 %v2503, 16
  %v2811 = vrot.slane %v2809, 5
  %v2812 = vshll.u32 %v2503, 16
  %v2814 = vrot.slane %v2812, 6
  %v2815 = vor.u32 %v2811, %v2814
  %v2816 = vsel %vm2511, %v2806, %v2815
  %v2818 = vshrl.u32 %v2504, 16
  %v2820 = vrot.slane %v2818, 5
  %v2821 = vshll.u32 %v2504, 16
  %v2823 = vrot.slane %v2821, 6
  %v2824 = vor.u32 %v2820, %v2823
  %v2825 = vsel %vm2511, %v2815, %v2824
  %v2827 = vshrl.u32 %v2505, 16
  %v2829 = vrot.slane %v2827, 5
  %v2830 = vshll.u32 %v2505, 16
  %v2832 = vrot.slane %v2830, 6
  %v2833 = vor.u32 %v2829, %v2832
  %v2834 = vsel %vm2511, %v2824, %v2833
  %v2836 = vshrl.u32 %v2506, 16
  %v2838 = vrot.slane %v2836, 5
  %v2839 = vshll.u32 %v2506, 16
  %v2841 = vrot.slane %v2839, 6
  %v2842 = vor.u32 %v2838, %v2841
  %v2843 = vsel %vm2511, %v2833, %v2842
  %v2845 = vshrl.u32 %v2507, 16
  %v2847 = vrot.slane %v2845, 5
  %v2848 = vshll.u32 %v2507, 16
  %v2850 = vrot.slane %v2848, 6
  %v2851 = vor.u32 %v2847, %v2850
  %v2852 = vsel %vm2511, %v2842, %v2851
  %v2854 = vshrl.u32 %v2508, 16
  %v2856 = vrot.slane %v2854, 5
  %v2857 = vshll.u32 %v2508, 16
  %v2859 = vrot.slane %v2857, 6
  %v2860 = vor.u32 %v2856, %v2859
  %v2861 = vsel %vm2511, %v2851, %v2860
  %v2863 = vshrl.u32 %v2509, 16
  %v2865 = vrot.slane %v2863, 5
  %v2866 = vshll.u32 %v2509, 16
  %v2868 = vrot.slane %v2866, 6
  %v2869 = vor.u32 %v2865, %v2868
  %v2870 = vsel %vm2511, %v2860, %v2869
  %v2872 = vshrl.u32 %v2510, 16
  %v2874 = vrot.slane %v2872, 5
  %v2875 = vshll.u32 %v2510, 16
  %v2877 = vrot.slane %v2875, 6
  %v2878 = vor.u32 %v2874, %v2877
  %v2879 = vsel %vm2511, %v2869, %v2878
  %v2881 = vunpack.c.l.b16 %v1585
  %v2882 = vpack.c.b16 %v2881, %v2381
  %vm2883 = vcmask 1041408
  %v2884 = vrot.slane %v2470, 6
  %v2885 = vrot.slane %v2471, 6
  %v2886 = vsel %vm2883, %v2884, %v2885
  %v2887 = vrot.slane %v2472, 6
  %v2888 = vsel %vm2883, %v2885, %v2887
  %v2889 = vrot.slane %v2473, 6
  %v2890 = vsel %vm2883, %v2887, %v2889
  %v2891 = vrot.slane %v2474, 6
  %v2892 = vsel %vm2883, %v2889, %v2891
  %v2893 = vrot.slane %v2475, 6
  %v2894 = vsel %vm2883, %v2891, %v2893
  %v2895 = vrot.slane %v2476, 6
  %v2896 = vsel %vm2883, %v2893, %v2895
  %v2897 = vrot.slane %v2477, 6
  %v2898 = vsel %vm2883, %v2895, %v2897
  %v2899 = vrot.slane %v2478, 6
  %v2900 = vsel %vm2883, %v2897, %v2899
  %v2901 = vrot.slane %v2479, 6
  %v2902 = vsel %vm2883, %v2899, %v2901
  %v2903 = vrot.slane %v2480, 6
  %v2904 = vsel %vm2883, %v2901, %v2903
  %v2905 = vrot.slane %v2481, 6
  %v2906 = vsel %vm2883, %v2903, %v2905
  %v2907 = vrot.slane %v2482, 6
  %v2908 = vsel %vm2883, %v2905, %v2907
  %v2909 = vrot.slane %v2483, 6
  %v2910 = vsel %vm2883, %v2907, %v2909
  %v2911 = vrot.slane %v2484, 6
  %v2912 = vsel %vm2883, %v2909, %v2911
  %v2913 = vrot.slane %v2485, 6
  %v2914 = vsel %vm2883, %v2911, %v2913
  %v2915 = vrot.slane %v2486, 6
  %v2916 = vsel %vm2883, %v2913, %v2915
  %v2917 = vrot.slane %v2487, 6
  %v2918 = vsel %vm2883, %v2915, %v2917
  %v2919 = vrot.slane %v2488, 6
  %v2920 = vsel %vm2883, %v2917, %v2919
  %v2921 = vrot.slane %v2489, 6
  %v2922 = vsel %vm2883, %v2919, %v2921
  %v2923 = vrot.slane %v2490, 6
  %v2924 = vsel %vm2883, %v2921, %v2923
  %v2925 = vrot.slane %v2491, 6
  %v2926 = vsel %vm2883, %v2923, %v2925
  %v2927 = vrot.slane %v2492, 6
  %v2928 = vsel %vm2883, %v2925, %v2927
  %v2929 = vrot.slane %v2493, 6
  %v2930 = vsel %vm2883, %v2927, %v2929
  %v2931 = vrot.slane %v2494, 6
  %v2932 = vsel %vm2883, %v2929, %v2931
  %v2933 = vrot.slane %v2495, 6
  %v2934 = vsel %vm2883, %v2931, %v2933
  %v2935 = vrot.slane %v2496, 6
  %v2936 = vsel %vm2883, %v2933, %v2935
  %v2937 = vrot.slane %v2497, 6
  %v2938 = vsel %vm2883, %v2935, %v2937
  %v2939 = vrot.slane %v2498, 6
  %v2940 = vsel %vm2883, %v2937, %v2939
  %v2941 = vrot.slane %v2499, 6
  %v2942 = vsel %vm2883, %v2939, %v2941
  %v2943 = vrot.slane %v2500, 6
  %v2944 = vsel %vm2883, %v2941, %v2943
  %v2945 = vrot.slane %v2501, 6
  %v2946 = vsel %vm2883, %v2943, %v2945
  %v2947 = vrot.slane %v2502, 6
  %v2948 = vsel %vm2883, %v2945, %v2947
  %v2949 = vrot.slane %v2503, 6
  %v2950 = vsel %vm2883, %v2947, %v2949
  %v2951 = vrot.slane %v2504, 6
  %v2952 = vsel %vm2883, %v2949, %v2951
  %v2953 = vrot.slane %v2505, 6
  %v2954 = vsel %vm2883, %v2951, %v2953
  %v2955 = vrot.slane %v2506, 6
  %v2956 = vsel %vm2883, %v2953, %v2955
  %v2957 = vrot.slane %v2507, 6
  %v2958 = vsel %vm2883, %v2955, %v2957
  %v2959 = vrot.slane %v2508, 6
  %v2960 = vsel %vm2883, %v2957, %v2959
  %v2961 = vrot.slane %v2509, 6
  %v2962 = vsel %vm2883, %v2959, %v2961
  %v2963 = vrot.slane %v2882, 6
  %v2964 = vsel %vm2883, %v2961, %v2963
  %2965 = vrot.lane.b32.xlu0 %v2884, 32
  %v2966 = vpop.permute.xlu0 %2965
  %2967 = vrot.lane.b32.xlu0 %v2886, 32
  %v2968 = vpop.permute.xlu0 %2967
  %2969 = vrot.lane.b32.xlu0 %v2888, 32
  %v2970 = vpop.permute.xlu0 %2969
  %2971 = vrot.lane.b32.xlu0 %v2890, 32
  %v2972 = vpop.permute.xlu0 %2971
  %2973 = vrot.lane.b32.xlu0 %v2892, 32
  %v2974 = vpop.permute.xlu0 %2973
  %2975 = vrot.lane.b32.xlu0 %v2894, 32
  %v2976 = vpop.permute.xlu0 %2975
  %2977 = vrot.lane.b32.xlu0 %v2896, 32
  %v2978 = vpop.permute.xlu0 %2977
  %2979 = vrot.lane.b32.xlu0 %v2898, 32
  %v2980 = vpop.permute.xlu0 %2979
  %2981 = vrot.lane.b32.xlu0 %v2900, 32
  %v2982 = vpop.permute.xlu0 %2981
  %2983 = vrot.lane.b32.xlu0 %v2902, 32
  %v2984 = vpop.permute.xlu0 %2983
  %2985 = vrot.lane.b32.xlu0 %v2904, 32
  %v2986 = vpop.permute.xlu0 %2985
  %2987 = vrot.lane.b32.xlu0 %v2906, 32
  %v2988 = vpop.permute.xlu0 %2987
  %2989 = vrot.lane.b32.xlu0 %v2908, 32
  %v2990 = vpop.permute.xlu0 %2989
  %2991 = vrot.lane.b32.xlu0 %v2910, 32
  %v2992 = vpop.permute.xlu0 %2991
  %2993 = vrot.lane.b32.xlu0 %v2912, 32
  %v2994 = vpop.permute.xlu0 %2993
  %2995 = vrot.lane.b32.xlu0 %v2914, 32
  %v2996 = vpop.permute.xlu0 %2995
  %2997 = vrot.lane.b32.xlu0 %v2916, 32
  %v2998 = vpop.permute.xlu0 %2997
  %2999 = vrot.lane.b32.xlu0 %v2918, 32
  %v3000 = vpop.permute.xlu0 %2999
  %3001 = vrot.lane.b32.xlu0 %v2920, 32
  %v3002 = vpop.permute.xlu0 %3001
  %3003 = vrot.lane.b32.xlu0 %v2922, 32
  %v3004 = vpop.permute.xlu0 %3003
  %3005 = vrot.lane.b32.xlu0 %v2924, 32
  %v3006 = vpop.permute.xlu0 %3005
  %3007 = vrot.lane.b32.xlu0 %v2926, 32
  %v3008 = vpop.permute.xlu0 %3007
  %3009 = vrot.lane.b32.xlu0 %v2928, 32
  %v3010 = vpop.permute.xlu0 %3009
  %3011 = vrot.lane.b32.xlu0 %v2930, 32
  %v3012 = vpop.permute.xlu0 %3011
  %3013 = vrot.lane.b32.xlu0 %v2932, 32
  %v3014 = vpop.permute.xlu0 %3013
  %3015 = vrot.lane.b32.xlu0 %v2934, 32
  %v3016 = vpop.permute.xlu0 %3015
  %3017 = vrot.lane.b32.xlu0 %v2936, 32
  %v3018 = vpop.permute.xlu0 %3017
  %3019 = vrot.lane.b32.xlu0 %v2938, 32
  %v3020 = vpop.permute.xlu0 %3019
  %3021 = vrot.lane.b32.xlu0 %v2940, 32
  %v3022 = vpop.permute.xlu0 %3021
  %3023 = vrot.lane.b32.xlu0 %v2942, 32
  %v3024 = vpop.permute.xlu0 %3023
  %3025 = vrot.lane.b32.xlu0 %v2944, 32
  %v3026 = vpop.permute.xlu0 %3025
  %3027 = vrot.lane.b32.xlu0 %v2946, 32
  %v3028 = vpop.permute.xlu0 %3027
  %3029 = vrot.lane.b32.xlu0 %v2948, 32
  %v3030 = vpop.permute.xlu0 %3029
  %3031 = vrot.lane.b32.xlu0 %v2950, 32
  %v3032 = vpop.permute.xlu0 %3031
  %3033 = vrot.lane.b32.xlu0 %v2952, 32
  %v3034 = vpop.permute.xlu0 %3033
  %3035 = vrot.lane.b32.xlu0 %v2954, 32
  %v3036 = vpop.permute.xlu0 %3035
  %3037 = vrot.lane.b32.xlu0 %v2956, 32
  %v3038 = vpop.permute.xlu0 %3037
  %3039 = vrot.lane.b32.xlu0 %v2958, 32
  %v3040 = vpop.permute.xlu0 %3039
  %3041 = vrot.lane.b32.xlu0 %v2960, 32
  %v3042 = vpop.permute.xlu0 %3041
  %3043 = vrot.lane.b32.xlu0 %v2962, 32
  %v3044 = vpop.permute.xlu0 %3043
  %3045 = vrot.lane.b32.xlu0 %v2964, 32
  %v3046 = vpop.permute.xlu0 %3045
  %v3050 = vunpack.c.l.b16 %v1586
  %v3051 = vunpack.c.l.b16 %v1587
  %v3052 = vunpack.c.l.b16 %v1588
  %v3053 = vpack.c.b16 %v3050, %v2381
  %v3054 = vpack.c.b16 %v3052, %v3051
  %v3055 = vrot.slane %v3053, 6
  %v3056 = vsel %vm2883, %v2961, %v3055
  %v3057 = vrot.slane %v3054, 6
  %v3058 = vsel %vm2883, %v3055, %v3057
  %3059 = vrot.lane.b32.xlu0 %v2885, 64
  %v3060 = vpop.permute.xlu0 %3059
  %3061 = vrot.lane.b32.xlu0 %v2888, 64
  %v3062 = vpop.permute.xlu0 %3061
  %3063 = vrot.lane.b32.xlu0 %v2890, 64
  %v3064 = vpop.permute.xlu0 %3063
  %3065 = vrot.lane.b32.xlu0 %v2892, 64
  %v3066 = vpop.permute.xlu0 %3065
  %3067 = vrot.lane.b32.xlu0 %v2894, 64
  %v3068 = vpop.permute.xlu0 %3067
  %3069 = vrot.lane.b32.xlu0 %v2896, 64
  %v3070 = vpop.permute.xlu0 %3069
  %3071 = vrot.lane.b32.xlu0 %v2898, 64
  %v3072 = vpop.permute.xlu0 %3071
  %3073 = vrot.lane.b32.xlu0 %v2900, 64
  %v3074 = vpop.permute.xlu0 %3073
  %3075 = vrot.lane.b32.xlu0 %v2902, 64
  %v3076 = vpop.permute.xlu0 %3075
  %3077 = vrot.lane.b32.xlu0 %v2904, 64
  %v3078 = vpop.permute.xlu0 %3077
  %3079 = vrot.lane.b32.xlu0 %v2906, 64
  %v3080 = vpop.permute.xlu0 %3079
  %3081 = vrot.lane.b32.xlu0 %v2908, 64
  %v3082 = vpop.permute.xlu0 %3081
  %3083 = vrot.lane.b32.xlu0 %v2910, 64
  %v3084 = vpop.permute.xlu0 %3083
  %3085 = vrot.lane.b32.xlu0 %v2912, 64
  %v3086 = vpop.permute.xlu0 %3085
  %3087 = vrot.lane.b32.xlu0 %v2914, 64
  %v3088 = vpop.permute.xlu0 %3087
  %3089 = vrot.lane.b32.xlu0 %v2916, 64
  %v3090 = vpop.permute.xlu0 %3089
  %3091 = vrot.lane.b32.xlu0 %v2918, 64
  %v3092 = vpop.permute.xlu0 %3091
  %3093 = vrot.lane.b32.xlu0 %v2920, 64
  %v3094 = vpop.permute.xlu0 %3093
  %3095 = vrot.lane.b32.xlu0 %v2922, 64
  %v3096 = vpop.permute.xlu0 %3095
  %3097 = vrot.lane.b32.xlu0 %v2924, 64
  %v3098 = vpop.permute.xlu0 %3097
  %3099 = vrot.lane.b32.xlu0 %v2926, 64
  %v3100 = vpop.permute.xlu0 %3099
  %3101 = vrot.lane.b32.xlu0 %v2928, 64
  %v3102 = vpop.permute.xlu0 %3101
  %3103 = vrot.lane.b32.xlu0 %v2930, 64
  %v3104 = vpop.permute.xlu0 %3103
  %3105 = vrot.lane.b32.xlu0 %v2932, 64
  %v3106 = vpop.permute.xlu0 %3105
  %3107 = vrot.lane.b32.xlu0 %v2934, 64
  %v3108 = vpop.permute.xlu0 %3107
  %3109 = vrot.lane.b32.xlu0 %v2936, 64
  %v3110 = vpop.permute.xlu0 %3109
  %3111 = vrot.lane.b32.xlu0 %v2938, 64
  %v3112 = vpop.permute.xlu0 %3111
  %3113 = vrot.lane.b32.xlu0 %v2940, 64
  %v3114 = vpop.permute.xlu0 %3113
  %3115 = vrot.lane.b32.xlu0 %v2942, 64
  %v3116 = vpop.permute.xlu0 %3115
  %3117 = vrot.lane.b32.xlu0 %v2944, 64
  %v3118 = vpop.permute.xlu0 %3117
  %3119 = vrot.lane.b32.xlu0 %v2946, 64
  %v3120 = vpop.permute.xlu0 %3119
  %3121 = vrot.lane.b32.xlu0 %v2948, 64
  %v3122 = vpop.permute.xlu0 %3121
  %3123 = vrot.lane.b32.xlu0 %v2950, 64
  %v3124 = vpop.permute.xlu0 %3123
  %3125 = vrot.lane.b32.xlu0 %v2952, 64
  %v3126 = vpop.permute.xlu0 %3125
  %3127 = vrot.lane.b32.xlu0 %v2954, 64
  %v3128 = vpop.permute.xlu0 %3127
  %3129 = vrot.lane.b32.xlu0 %v2956, 64
  %v3130 = vpop.permute.xlu0 %3129
  %3131 = vrot.lane.b32.xlu0 %v2958, 64
  %v3132 = vpop.permute.xlu0 %3131
  %3133 = vrot.lane.b32.xlu0 %v2960, 64
  %v3134 = vpop.permute.xlu0 %3133
  %3135 = vrot.lane.b32.xlu0 %v2962, 64
  %v3136 = vpop.permute.xlu0 %3135
  %3137 = vrot.lane.b32.xlu0 %v3056, 64
  %v3138 = vpop.permute.xlu0 %3137
  %3139 = vrot.lane.b32.xlu0 %v3058, 64
  %v3140 = vpop.permute.xlu0 %3139
  %v3142 = vunpack.c.l.b16 %v1589
  %v3143 = vpack.c.b16 %v1679, %v3142
  %vm3144 = vsmask.f32 1280
  %v3146 = vshrl.u32 %v3143, 16
  %v3148 = vrot.slane %v3146, 6
  %v3149 = vshll.u32 %v3143, 16
  %v3151 = vrot.slane %v3149, 7
  %v3152 = vor.u32 %v3148, %v3151
  %v3153 = vrot.slane %v2530, 6
  %v3154 = vrot.slane %v2533, 7
  %v3155 = vor.u32 %v3153, %v3154
  %v3156 = vsel %vm3144, %v3152, %v3155
  %v3157 = vrot.slane %v2539, 6
  %v3158 = vrot.slane %v2542, 7
  %v3159 = vor.u32 %v3157, %v3158
  %v3160 = vsel %vm3144, %v3155, %v3159
  %v3161 = vrot.slane %v2548, 6
  %v3162 = vrot.slane %v2551, 7
  %v3163 = vor.u32 %v3161, %v3162
  %v3164 = vsel %vm3144, %v3159, %v3163
  %v3165 = vrot.slane %v2557, 6
  %v3166 = vrot.slane %v2560, 7
  %v3167 = vor.u32 %v3165, %v3166
  %v3168 = vsel %vm3144, %v3163, %v3167
  %v3169 = vrot.slane %v2566, 6
  %v3170 = vrot.slane %v2569, 7
  %v3171 = vor.u32 %v3169, %v3170
  %v3172 = vsel %vm3144, %v3167, %v3171
  %v3173 = vrot.slane %v2575, 6
  %v3174 = vrot.slane %v2578, 7
  %v3175 = vor.u32 %v3173, %v3174
  %v3176 = vsel %vm3144, %v3171, %v3175
  %v3177 = vrot.slane %v2584, 6
  %v3178 = vrot.slane %v2587, 7
  %v3179 = vor.u32 %v3177, %v3178
  %v3180 = vsel %vm3144, %v3175, %v3179
  %v3181 = vrot.slane %v2593, 6
  %v3182 = vrot.slane %v2596, 7
  %v3183 = vor.u32 %v3181, %v3182
  %v3184 = vsel %vm3144, %v3179, %v3183
  %v3185 = vrot.slane %v2602, 6
  %v3186 = vrot.slane %v2605, 7
  %v3187 = vor.u32 %v3185, %v3186
  %v3188 = vsel %vm3144, %v3183, %v3187
  %v3189 = vrot.slane %v2611, 6
  %v3190 = vrot.slane %v2614, 7
  %v3191 = vor.u32 %v3189, %v3190
  %v3192 = vsel %vm3144, %v3187, %v3191
  %v3193 = vrot.slane %v2620, 6
  %v3194 = vrot.slane %v2623, 7
  %v3195 = vor.u32 %v3193, %v3194
  %v3196 = vsel %vm3144, %v3191, %v3195
  %v3197 = vrot.slane %v2629, 6
  %v3198 = vrot.slane %v2632, 7
  %v3199 = vor.u32 %v3197, %v3198
  %v3200 = vsel %vm3144, %v3195, %v3199
  %v3201 = vrot.slane %v2638, 6
  %v3202 = vrot.slane %v2641, 7
  %v3203 = vor.u32 %v3201, %v3202
  %v3204 = vsel %vm3144, %v3199, %v3203
  %v3205 = vrot.slane %v2647, 6
  %v3206 = vrot.slane %v2650, 7
  %v3207 = vor.u32 %v3205, %v3206
  %v3208 = vsel %vm3144, %v3203, %v3207
  %v3209 = vrot.slane %v2656, 6
  %v3210 = vrot.slane %v2659, 7
  %v3211 = vor.u32 %v3209, %v3210
  %v3212 = vsel %vm3144, %v3207, %v3211
  %v3213 = vrot.slane %v2665, 6
  %v3214 = vrot.slane %v2668, 7
  %v3215 = vor.u32 %v3213, %v3214
  %v3216 = vsel %vm3144, %v3211, %v3215
  %v3217 = vrot.slane %v2674, 6
  %v3218 = vrot.slane %v2677, 7
  %v3219 = vor.u32 %v3217, %v3218
  %v3220 = vsel %vm3144, %v3215, %v3219
  %v3221 = vrot.slane %v2683, 6
  %v3222 = vrot.slane %v2686, 7
  %v3223 = vor.u32 %v3221, %v3222
  %v3224 = vsel %vm3144, %v3219, %v3223
  %v3225 = vrot.slane %v2692, 6
  %v3226 = vrot.slane %v2695, 7
  %v3227 = vor.u32 %v3225, %v3226
  %v3228 = vsel %vm3144, %v3223, %v3227
  %v3229 = vrot.slane %v2701, 6
  %v3230 = vrot.slane %v2704, 7
  %v3231 = vor.u32 %v3229, %v3230
  %v3232 = vsel %vm3144, %v3227, %v3231
  %v3233 = vrot.slane %v2710, 6
  %v3234 = vrot.slane %v2713, 7
  %v3235 = vor.u32 %v3233, %v3234
  %v3236 = vsel %vm3144, %v3231, %v3235
  %v3237 = vrot.slane %v2719, 6
  %v3238 = vrot.slane %v2722, 7
  %v3239 = vor.u32 %v3237, %v3238
  %v3240 = vsel %vm3144, %v3235, %v3239
  %v3241 = vrot.slane %v2728, 6
  %v3242 = vrot.slane %v2731, 7
  %v3243 = vor.u32 %v3241, %v3242
  %v3244 = vsel %vm3144, %v3239, %v3243
  %v3245 = vrot.slane %v2737, 6
  %v3246 = vrot.slane %v2740, 7
  %v3247 = vor.u32 %v3245, %v3246
  %v3248 = vsel %vm3144, %v3243, %v3247
  %v3249 = vrot.slane %v2746, 6
  %v3250 = vrot.slane %v2749, 7
  %v3251 = vor.u32 %v3249, %v3250
  %v3252 = vsel %vm3144, %v3247, %v3251
  %v3253 = vrot.slane %v2755, 6
  %v3254 = vrot.slane %v2758, 7
  %v3255 = vor.u32 %v3253, %v3254
  %v3256 = vsel %vm3144, %v3251, %v3255
  %v3257 = vrot.slane %v2764, 6
  %v3258 = vrot.slane %v2767, 7
  %v3259 = vor.u32 %v3257, %v3258
  %v3260 = vsel %vm3144, %v3255, %v3259
  %v3261 = vrot.slane %v2773, 6
  %v3262 = vrot.slane %v2776, 7
  %v3263 = vor.u32 %v3261, %v3262
  %v3264 = vsel %vm3144, %v3259, %v3263
  %v3265 = vrot.slane %v2782, 6
  %v3266 = vrot.slane %v2785, 7
  %v3267 = vor.u32 %v3265, %v3266
  %v3268 = vsel %vm3144, %v3263, %v3267
  %v3269 = vrot.slane %v2791, 6
  %v3270 = vrot.slane %v2794, 7
  %v3271 = vor.u32 %v3269, %v3270
  %v3272 = vsel %vm3144, %v3267, %v3271
  %v3273 = vrot.slane %v2800, 6
  %v3274 = vrot.slane %v2803, 7
  %v3275 = vor.u32 %v3273, %v3274
  %v3276 = vsel %vm3144, %v3271, %v3275
  %v3277 = vrot.slane %v2809, 6
  %v3278 = vrot.slane %v2812, 7
  %v3279 = vor.u32 %v3277, %v3278
  %v3280 = vsel %vm3144, %v3275, %v3279
  %v3281 = vrot.slane %v2818, 6
  %v3282 = vrot.slane %v2821, 7
  %v3283 = vor.u32 %v3281, %v3282
  %v3284 = vsel %vm3144, %v3279, %v3283
  %v3285 = vrot.slane %v2827, 6
  %v3286 = vrot.slane %v2830, 7
  %v3287 = vor.u32 %v3285, %v3286
  %v3288 = vsel %vm3144, %v3283, %v3287
  %v3289 = vrot.slane %v2836, 6
  %v3290 = vrot.slane %v2839, 7
  %v3291 = vor.u32 %v3289, %v3290
  %v3292 = vsel %vm3144, %v3287, %v3291
  %v3293 = vrot.slane %v2845, 6
  %v3294 = vrot.slane %v2848, 7
  %v3295 = vor.u32 %v3293, %v3294
  %v3296 = vsel %vm3144, %v3291, %v3295
  %v3297 = vrot.slane %v2854, 6
  %v3298 = vrot.slane %v2857, 7
  %v3299 = vor.u32 %v3297, %v3298
  %v3300 = vsel %vm3144, %v3295, %v3299
  %v3301 = vrot.slane %v2863, 6
  %v3302 = vrot.slane %v2866, 7
  %v3303 = vor.u32 %v3301, %v3302
  %v3304 = vsel %vm3144, %v3299, %v3303
  %v3306 = vshrl.u32 %v3053, 16
  %v3308 = vrot.slane %v3306, 6
  %v3309 = vshll.u32 %v3053, 16
  %v3311 = vrot.slane %v3309, 7
  %v3312 = vor.u32 %v3308, %v3311
  %v3313 = vsel %vm3144, %v3303, %v3312
  %v3315 = vshrl.u32 %v3054, 16
  %v3317 = vrot.slane %v3315, 6
  %v3318 = vshll.u32 %v3054, 16
  %v3320 = vrot.slane %v3318, 7
  %v3321 = vor.u32 %v3317, %v3320
  %v3322 = vsel %vm3144, %v3312, %v3321
  %3323 = vrot.lane.b32.xlu0 %v3152, 96
  %v3324 = vpop.permute.xlu0 %3323
  %3325 = vrot.lane.b32.xlu0 %v3156, 96
  %v3326 = vpop.permute.xlu0 %3325
  %3327 = vrot.lane.b32.xlu0 %v3160, 96
  %v3328 = vpop.permute.xlu0 %3327
  %3329 = vrot.lane.b32.xlu0 %v3164, 96
  %v3330 = vpop.permute.xlu0 %3329
  %3331 = vrot.lane.b32.xlu0 %v3168, 96
  %v3332 = vpop.permute.xlu0 %3331
  %3333 = vrot.lane.b32.xlu0 %v3172, 96
  %v3334 = vpop.permute.xlu0 %3333
  %3335 = vrot.lane.b32.xlu0 %v3176, 96
  %v3336 = vpop.permute.xlu0 %3335
  %3337 = vrot.lane.b32.xlu0 %v3180, 96
  %v3338 = vpop.permute.xlu0 %3337
  %3339 = vrot.lane.b32.xlu0 %v3184, 96
  %v3340 = vpop.permute.xlu0 %3339
  %3341 = vrot.lane.b32.xlu0 %v3188, 96
  %v3342 = vpop.permute.xlu0 %3341
  %3343 = vrot.lane.b32.xlu0 %v3192, 96
  %v3344 = vpop.permute.xlu0 %3343
  %3345 = vrot.lane.b32.xlu0 %v3196, 96
  %v3346 = vpop.permute.xlu0 %3345
  %3347 = vrot.lane.b32.xlu0 %v3200, 96
  %v3348 = vpop.permute.xlu0 %3347
  %3349 = vrot.lane.b32.xlu0 %v3204, 96
  %v3350 = vpop.permute.xlu0 %3349
  %3351 = vrot.lane.b32.xlu0 %v3208, 96
  %v3352 = vpop.permute.xlu0 %3351
  %3353 = vrot.lane.b32.xlu0 %v3212, 96
  %v3354 = vpop.permute.xlu0 %3353
  %3355 = vrot.lane.b32.xlu0 %v3216, 96
  %v3356 = vpop.permute.xlu0 %3355
  %3357 = vrot.lane.b32.xlu0 %v3220, 96
  %v3358 = vpop.permute.xlu0 %3357
  %3359 = vrot.lane.b32.xlu0 %v3224, 96
  %v3360 = vpop.permute.xlu0 %3359
  %3361 = vrot.lane.b32.xlu0 %v3228, 96
  %v3362 = vpop.permute.xlu0 %3361
  %3363 = vrot.lane.b32.xlu0 %v3232, 96
  %v3364 = vpop.permute.xlu0 %3363
  %3365 = vrot.lane.b32.xlu0 %v3236, 96
  %v3366 = vpop.permute.xlu0 %3365
  %3367 = vrot.lane.b32.xlu0 %v3240, 96
  %v3368 = vpop.permute.xlu0 %3367
  %3369 = vrot.lane.b32.xlu0 %v3244, 96
  %v3370 = vpop.permute.xlu0 %3369
  %3371 = vrot.lane.b32.xlu0 %v3248, 96
  %v3372 = vpop.permute.xlu0 %3371
  %3373 = vrot.lane.b32.xlu0 %v3252, 96
  %v3374 = vpop.permute.xlu0 %3373
  %3375 = vrot.lane.b32.xlu0 %v3256, 96
  %v3376 = vpop.permute.xlu0 %3375
  %3377 = vrot.lane.b32.xlu0 %v3260, 96
  %v3378 = vpop.permute.xlu0 %3377
  %3379 = vrot.lane.b32.xlu0 %v3264, 96
  %v3380 = vpop.permute.xlu0 %3379
  %3381 = vrot.lane.b32.xlu0 %v3268, 96
  %v3382 = vpop.permute.xlu0 %3381
  %3383 = vrot.lane.b32.xlu0 %v3272, 96
  %v3384 = vpop.permute.xlu0 %3383
  %3385 = vrot.lane.b32.xlu0 %v3276, 96
  %v3386 = vpop.permute.xlu0 %3385
  %3387 = vrot.lane.b32.xlu0 %v3280, 96
  %v3388 = vpop.permute.xlu0 %3387
  %3389 = vrot.lane.b32.xlu0 %v3284, 96
  %v3390 = vpop.permute.xlu0 %3389
  %3391 = vrot.lane.b32.xlu0 %v3288, 96
  %v3392 = vpop.permute.xlu0 %3391
  %3393 = vrot.lane.b32.xlu0 %v3292, 96
  %v3394 = vpop.permute.xlu0 %3393
  %3395 = vrot.lane.b32.xlu0 %v3296, 96
  %v3396 = vpop.permute.xlu0 %3395
  %3397 = vrot.lane.b32.xlu0 %v3300, 96
  %v3398 = vpop.permute.xlu0 %3397
  %3399 = vrot.lane.b32.xlu0 %v3304, 96
  %v3400 = vpop.permute.xlu0 %3399
  %3401 = vrot.lane.b32.xlu0 %v3313, 96
  %v3402 = vpop.permute.xlu0 %3401
  %3403 = vrot.lane.b32.xlu0 %v3322, 96
  %v3404 = vpop.permute.xlu0 %3403
  %v3406 = vunpack.c.l.b16 %v1590
  %v3407 = vpack.c.b16 %v3406, %v3051
  %vm3408 = vcmask 1040384
  %v3409 = vrot.slane %v3143, 7
  %v3410 = vrot.slane %v2472, 7
  %v3411 = vsel %vm3408, %v3409, %v3410
  %v3412 = vrot.slane %v2473, 7
  %v3413 = vsel %vm3408, %v3410, %v3412
  %v3414 = vrot.slane %v2474, 7
  %v3415 = vsel %vm3408, %v3412, %v3414
  %v3416 = vrot.slane %v2475, 7
  %v3417 = vsel %vm3408, %v3414, %v3416
  %v3418 = vrot.slane %v2476, 7
  %v3419 = vsel %vm3408, %v3416, %v3418
  %v3420 = vrot.slane %v2477, 7
  %v3421 = vsel %vm3408, %v3418, %v3420
  %v3422 = vrot.slane %v2478, 7
  %v3423 = vsel %vm3408, %v3420, %v3422
  %v3424 = vrot.slane %v2479, 7
  %v3425 = vsel %vm3408, %v3422, %v3424
  %v3426 = vrot.slane %v2480, 7
  %v3427 = vsel %vm3408, %v3424, %v3426
  %v3428 = vrot.slane %v2481, 7
  %v3429 = vsel %vm3408, %v3426, %v3428
  %v3430 = vrot.slane %v2482, 7
  %v3431 = vsel %vm3408, %v3428, %v3430
  %v3432 = vrot.slane %v2483, 7
  %v3433 = vsel %vm3408, %v3430, %v3432
  %v3434 = vrot.slane %v2484, 7
  %v3435 = vsel %vm3408, %v3432, %v3434
  %v3436 = vrot.slane %v2485, 7
  %v3437 = vsel %vm3408, %v3434, %v3436
  %v3438 = vrot.slane %v2486, 7
  %v3439 = vsel %vm3408, %v3436, %v3438
  %v3440 = vrot.slane %v2487, 7
  %v3441 = vsel %vm3408, %v3438, %v3440
  %v3442 = vrot.slane %v2488, 7
  %v3443 = vsel %vm3408, %v3440, %v3442
  %v3444 = vrot.slane %v2489, 7
  %v3445 = vsel %vm3408, %v3442, %v3444
  %v3446 = vrot.slane %v2490, 7
  %v3447 = vsel %vm3408, %v3444, %v3446
  %v3448 = vrot.slane %v2491, 7
  %v3449 = vsel %vm3408, %v3446, %v3448
  %v3450 = vrot.slane %v2492, 7
  %v3451 = vsel %vm3408, %v3448, %v3450
  %v3452 = vrot.slane %v2493, 7
  %v3453 = vsel %vm3408, %v3450, %v3452
  %v3454 = vrot.slane %v2494, 7
  %v3455 = vsel %vm3408, %v3452, %v3454
  %v3456 = vrot.slane %v2495, 7
  %v3457 = vsel %vm3408, %v3454, %v3456
  %v3458 = vrot.slane %v2496, 7
  %v3459 = vsel %vm3408, %v3456, %v3458
  %v3460 = vrot.slane %v2497, 7
  %v3461 = vsel %vm3408, %v3458, %v3460
  %v3462 = vrot.slane %v2498, 7
  %v3463 = vsel %vm3408, %v3460, %v3462
  %v3464 = vrot.slane %v2499, 7
  %v3465 = vsel %vm3408, %v3462, %v3464
  %v3466 = vrot.slane %v2500, 7
  %v3467 = vsel %vm3408, %v3464, %v3466
  %v3468 = vrot.slane %v2501, 7
  %v3469 = vsel %vm3408, %v3466, %v3468
  %v3470 = vrot.slane %v2502, 7
  %v3471 = vsel %vm3408, %v3468, %v3470
  %v3472 = vrot.slane %v2503, 7
  %v3473 = vsel %vm3408, %v3470, %v3472
  %v3474 = vrot.slane %v2504, 7
  %v3475 = vsel %vm3408, %v3472, %v3474
  %v3476 = vrot.slane %v2505, 7
  %v3477 = vsel %vm3408, %v3474, %v3476
  %v3478 = vrot.slane %v2506, 7
  %v3479 = vsel %vm3408, %v3476, %v3478
  %v3480 = vrot.slane %v2507, 7
  %v3481 = vsel %vm3408, %v3478, %v3480
  %v3482 = vrot.slane %v2508, 7
  %v3483 = vsel %vm3408, %v3480, %v3482
  %v3484 = vrot.slane %v2509, 7
  %v3485 = vsel %vm3408, %v3482, %v3484
  %v3486 = vrot.slane %v3053, 7
  %v3487 = vsel %vm3408, %v3484, %v3486
  %v3488 = vrot.slane %v3407, 7
  %v3489 = vsel %vm3408, %v3486, %v3488
  %vm3490 = vcmask 261120
  %v3493 = vsel %vm3490, %v1755, %v2128
  %v3495 = vsel %vm3490, %v1756, %v2130
  %v3497 = vsel %vm3490, %v1757, %v2132
  %v3499 = vsel %vm3490, %v1758, %v2134
  %v3501 = vsel %vm3490, %v1759, %v2136
  %v3503 = vsel %vm3490, %v1760, %v2138
  %v3505 = vsel %vm3490, %v1761, %v2140
  %v3507 = vsel %vm3490, %v1762, %v2142
  %v3509 = vsel %vm3490, %v1763, %v2144
  %v3511 = vsel %vm3490, %v1764, %v2146
  %v3513 = vsel %vm3490, %v1765, %v2148
  %v3515 = vsel %vm3490, %v1766, %v2150
  %v3517 = vsel %vm3490, %v1767, %v2152
  %v3519 = vsel %vm3490, %v1768, %v2154
  %v3521 = vsel %vm3490, %v1769, %v2156
  %v3523 = vsel %vm3490, %v1770, %v2158
  %v3525 = vsel %vm3490, %v1771, %v2160
  %v3527 = vsel %vm3490, %v1772, %v2162
  %v3529 = vsel %vm3490, %v1773, %v2164
  %v3531 = vsel %vm3490, %v1774, %v2166
  %v3533 = vsel %vm3490, %v1775, %v2168
  %v3535 = vsel %vm3490, %v1776, %v2170
  %v3537 = vsel %vm3490, %v1777, %v2172
  %v3539 = vsel %vm3490, %v1778, %v2174
  %v3541 = vsel %vm3490, %v1779, %v2176
  %v3543 = vsel %vm3490, %v1780, %v2178
  %v3545 = vsel %vm3490, %v1781, %v2180
  %v3547 = vsel %vm3490, %v1782, %v2182
  %v3549 = vsel %vm3490, %v1783, %v2184
  %v3551 = vsel %vm3490, %v1784, %v2186
  %v3553 = vsel %vm3490, %v1785, %v2188
  %v3555 = vsel %vm3490, %v1786, %v2190
  %v3557 = vsel %vm3490, %v1787, %v2192
  %v3559 = vsel %vm3490, %v1788, %v2194
  %v3561 = vsel %vm3490, %v1789, %v2196
  %v3563 = vsel %vm3490, %v1790, %v2198
  %v3565 = vsel %vm3490, %v1791, %v2200
  %v3567 = vsel %vm3490, %v1792, %v2202
  %v3569 = vsel %vm3490, %v1793, %v2204
  %v3571 = vsel %vm3490, %v1794, %v2206
  %v3573 = vsel %vm3490, %v1795, %v2208
  %vm3574 = vcmask 523264
  %v3576 = vsel %vm3574, %v3493, %v2295
  %v3578 = vsel %vm3574, %v3495, %v2297
  %v3580 = vsel %vm3574, %v3497, %v2299
  %v3582 = vsel %vm3574, %v3499, %v2301
  %v3584 = vsel %vm3574, %v3501, %v2303
  %v3586 = vsel %vm3574, %v3503, %v2305
  %v3588 = vsel %vm3574, %v3505, %v2307
  %v3590 = vsel %vm3574, %v3507, %v2309
  %v3592 = vsel %vm3574, %v3509, %v2311
  %v3594 = vsel %vm3574, %v3511, %v2313
  %v3596 = vsel %vm3574, %v3513, %v2315
  %v3598 = vsel %vm3574, %v3515, %v2317
  %v3600 = vsel %vm3574, %v3517, %v2319
  %v3602 = vsel %vm3574, %v3519, %v2321
  %v3604 = vsel %vm3574, %v3521, %v2323
  %v3606 = vsel %vm3574, %v3523, %v2325
  %v3608 = vsel %vm3574, %v3525, %v2327
  %v3610 = vsel %vm3574, %v3527, %v2329
  %v3612 = vsel %vm3574, %v3529, %v2331
  %v3614 = vsel %vm3574, %v3531, %v2333
  %v3616 = vsel %vm3574, %v3533, %v2335
  %v3618 = vsel %vm3574, %v3535, %v2337
  %v3620 = vsel %vm3574, %v3537, %v2339
  %v3622 = vsel %vm3574, %v3539, %v2341
  %v3624 = vsel %vm3574, %v3541, %v2343
  %v3626 = vsel %vm3574, %v3543, %v2345
  %v3628 = vsel %vm3574, %v3545, %v2347
  %v3630 = vsel %vm3574, %v3547, %v2349
  %v3632 = vsel %vm3574, %v3549, %v2351
  %v3634 = vsel %vm3574, %v3551, %v2353
  %v3636 = vsel %vm3574, %v3553, %v2355
  %v3638 = vsel %vm3574, %v3555, %v2357
  %v3640 = vsel %vm3574, %v3557, %v2359
  %v3642 = vsel %vm3574, %v3559, %v2361
  %v3644 = vsel %vm3574, %v3561, %v2363
  %v3646 = vsel %vm3574, %v3563, %v2365
  %v3648 = vsel %vm3574, %v3565, %v2367
  %v3650 = vsel %vm3574, %v3567, %v2369
  %v3652 = vsel %vm3574, %v3569, %v2371
  %v3654 = vsel %vm3574, %v3571, %v2373
  %v3656 = vsel %vm3574, %v3573, %v2375
  %vm3657 = vcmask 785408
  %v3659 = vsel %vm3657, %v3576, %v2389
  %v3661 = vsel %vm3657, %v3578, %v2391
  %v3663 = vsel %vm3657, %v3580, %v2393
  %v3665 = vsel %vm3657, %v3582, %v2395
  %v3667 = vsel %vm3657, %v3584, %v2397
  %v3669 = vsel %vm3657, %v3586, %v2399
  %v3671 = vsel %vm3657, %v3588, %v2401
  %v3673 = vsel %vm3657, %v3590, %v2403
  %v3675 = vsel %vm3657, %v3592, %v2405
  %v3677 = vsel %vm3657, %v3594, %v2407
  %v3679 = vsel %vm3657, %v3596, %v2409
  %v3681 = vsel %vm3657, %v3598, %v2411
  %v3683 = vsel %vm3657, %v3600, %v2413
  %v3685 = vsel %vm3657, %v3602, %v2415
  %v3687 = vsel %vm3657, %v3604, %v2417
  %v3689 = vsel %vm3657, %v3606, %v2419
  %v3691 = vsel %vm3657, %v3608, %v2421
  %v3693 = vsel %vm3657, %v3610, %v2423
  %v3695 = vsel %vm3657, %v3612, %v2425
  %v3697 = vsel %vm3657, %v3614, %v2427
  %v3699 = vsel %vm3657, %v3616, %v2429
  %v3701 = vsel %vm3657, %v3618, %v2431
  %v3703 = vsel %vm3657, %v3620, %v2433
  %v3705 = vsel %vm3657, %v3622, %v2435
  %v3707 = vsel %vm3657, %v3624, %v2437
  %v3709 = vsel %vm3657, %v3626, %v2439
  %v3711 = vsel %vm3657, %v3628, %v2441
  %v3713 = vsel %vm3657, %v3630, %v2443
  %v3715 = vsel %vm3657, %v3632, %v2445
  %v3717 = vsel %vm3657, %v3634, %v2447
  %v3719 = vsel %vm3657, %v3636, %v2449
  %v3721 = vsel %vm3657, %v3638, %v2451
  %v3723 = vsel %vm3657, %v3640, %v2453
  %v3725 = vsel %vm3657, %v3642, %v2455
  %v3727 = vsel %vm3657, %v3644, %v2457
  %v3729 = vsel %vm3657, %v3646, %v2459
  %v3731 = vsel %vm3657, %v3648, %v2461
  %v3733 = vsel %vm3657, %v3650, %v2463
  %v3735 = vsel %vm3657, %v3652, %v2465
  %v3737 = vsel %vm3657, %v3654, %v2467
  %v3739 = vsel %vm3657, %v3656, %v2469
  %v3742 = vsel %vm3490, %v2519, %v2966
  %v3745 = vsel %vm3490, %v2528, %v2968
  %v3748 = vsel %vm3490, %v2537, %v2970
  %v3751 = vsel %vm3490, %v2546, %v2972
  %v3754 = vsel %vm3490, %v2555, %v2974
  %v3757 = vsel %vm3490, %v2564, %v2976
  %v3760 = vsel %vm3490, %v2573, %v2978
  %v3763 = vsel %vm3490, %v2582, %v2980
  %v3766 = vsel %vm3490, %v2591, %v2982
  %v3769 = vsel %vm3490, %v2600, %v2984
  %v3772 = vsel %vm3490, %v2609, %v2986
  %v3775 = vsel %vm3490, %v2618, %v2988
  %v3778 = vsel %vm3490, %v2627, %v2990
  %v3781 = vsel %vm3490, %v2636, %v2992
  %v3784 = vsel %vm3490, %v2645, %v2994
  %v3787 = vsel %vm3490, %v2654, %v2996
  %v3790 = vsel %vm3490, %v2663, %v2998
  %v3793 = vsel %vm3490, %v2672, %v3000
  %v3796 = vsel %vm3490, %v2681, %v3002
  %v3799 = vsel %vm3490, %v2690, %v3004
  %v3802 = vsel %vm3490, %v2699, %v3006
  %v3805 = vsel %vm3490, %v2708, %v3008
  %v3808 = vsel %vm3490, %v2717, %v3010
  %v3811 = vsel %vm3490, %v2726, %v3012
  %v3814 = vsel %vm3490, %v2735, %v3014
  %v3817 = vsel %vm3490, %v2744, %v3016
  %v3820 = vsel %vm3490, %v2753, %v3018
  %v3823 = vsel %vm3490, %v2762, %v3020
  %v3826 = vsel %vm3490, %v2771, %v3022
  %v3829 = vsel %vm3490, %v2780, %v3024
  %v3832 = vsel %vm3490, %v2789, %v3026
  %v3835 = vsel %vm3490, %v2798, %v3028
  %v3838 = vsel %vm3490, %v2807, %v3030
  %v3841 = vsel %vm3490, %v2816, %v3032
  %v3844 = vsel %vm3490, %v2825, %v3034
  %v3847 = vsel %vm3490, %v2834, %v3036
  %v3850 = vsel %vm3490, %v2843, %v3038
  %v3853 = vsel %vm3490, %v2852, %v3040
  %v3856 = vsel %vm3490, %v2861, %v3042
  %v3859 = vsel %vm3490, %v2870, %v3044
  %v3862 = vsel %vm3490, %v2879, %v3046
  %v3864 = vsel %vm3574, %v3742, %v3060
  %v3866 = vsel %vm3574, %v3745, %v3062
  %v3868 = vsel %vm3574, %v3748, %v3064
  %v3870 = vsel %vm3574, %v3751, %v3066
  %v3872 = vsel %vm3574, %v3754, %v3068
  %v3874 = vsel %vm3574, %v3757, %v3070
  %v3876 = vsel %vm3574, %v3760, %v3072
  %v3878 = vsel %vm3574, %v3763, %v3074
  %v3880 = vsel %vm3574, %v3766, %v3076
  %v3882 = vsel %vm3574, %v3769, %v3078
  %v3884 = vsel %vm3574, %v3772, %v3080
  %v3886 = vsel %vm3574, %v3775, %v3082
  %v3888 = vsel %vm3574, %v3778, %v3084
  %v3890 = vsel %vm3574, %v3781, %v3086
  %v3892 = vsel %vm3574, %v3784, %v3088
  %v3894 = vsel %vm3574, %v3787, %v3090
  %v3896 = vsel %vm3574, %v3790, %v3092
  %v3898 = vsel %vm3574, %v3793, %v3094
  %v3900 = vsel %vm3574, %v3796, %v3096
  %v3902 = vsel %vm3574, %v3799, %v3098
  %v3904 = vsel %vm3574, %v3802, %v3100
  %v3906 = vsel %vm3574, %v3805, %v3102
  %v3908 = vsel %vm3574, %v3808, %v3104
  %v3910 = vsel %vm3574, %v3811, %v3106
  %v3912 = vsel %vm3574, %v3814, %v3108
  %v3914 = vsel %vm3574, %v3817, %v3110
  %v3916 = vsel %vm3574, %v3820, %v3112
  %v3918 = vsel %vm3574, %v3823, %v3114
  %v3920 = vsel %vm3574, %v3826, %v3116
  %v3922 = vsel %vm3574, %v3829, %v3118
  %v3924 = vsel %vm3574, %v3832, %v3120
  %v3926 = vsel %vm3574, %v3835, %v3122
  %v3928 = vsel %vm3574, %v3838, %v3124
  %v3930 = vsel %vm3574, %v3841, %v3126
  %v3932 = vsel %vm3574, %v3844, %v3128
  %v3934 = vsel %vm3574, %v3847, %v3130
  %v3936 = vsel %vm3574, %v3850, %v3132
  %v3938 = vsel %vm3574, %v3853, %v3134
  %v3940 = vsel %vm3574, %v3856, %v3136
  %v3942 = vsel %vm3574, %v3859, %v3138
  %v3944 = vsel %vm3574, %v3862, %v3140
  %v3946 = vsel %vm3657, %v3864, %v3324
  %v3948 = vsel %vm3657, %v3866, %v3326
  %v3950 = vsel %vm3657, %v3868, %v3328
  %v3952 = vsel %vm3657, %v3870, %v3330
  %v3954 = vsel %vm3657, %v3872, %v3332
  %v3956 = vsel %vm3657, %v3874, %v3334
  %v3958 = vsel %vm3657, %v3876, %v3336
  %v3960 = vsel %vm3657, %v3878, %v3338
  %v3962 = vsel %vm3657, %v3880, %v3340
  %v3964 = vsel %vm3657, %v3882, %v3342
  %v3966 = vsel %vm3657, %v3884, %v3344
  %v3968 = vsel %vm3657, %v3886, %v3346
  %v3970 = vsel %vm3657, %v3888, %v3348
  %v3972 = vsel %vm3657, %v3890, %v3350
  %v3974 = vsel %vm3657, %v3892, %v3352
  %v3976 = vsel %vm3657, %v3894, %v3354
  %v3978 = vsel %vm3657, %v3896, %v3356
  %v3980 = vsel %vm3657, %v3898, %v3358
  %v3982 = vsel %vm3657, %v3900, %v3360
  %v3984 = vsel %vm3657, %v3902, %v3362
  %v3986 = vsel %vm3657, %v3904, %v3364
  %v3988 = vsel %vm3657, %v3906, %v3366
  %v3990 = vsel %vm3657, %v3908, %v3368
  %v3992 = vsel %vm3657, %v3910, %v3370
  %v3994 = vsel %vm3657, %v3912, %v3372
  %v3996 = vsel %vm3657, %v3914, %v3374
  %v3998 = vsel %vm3657, %v3916, %v3376
  %v4000 = vsel %vm3657, %v3918, %v3378
  %v4002 = vsel %vm3657, %v3920, %v3380
  %v4004 = vsel %vm3657, %v3922, %v3382
  %v4006 = vsel %vm3657, %v3924, %v3384
  %v4008 = vsel %vm3657, %v3926, %v3386
  %v4010 = vsel %vm3657, %v3928, %v3388
  %v4012 = vsel %vm3657, %v3930, %v3390
  %v4014 = vsel %vm3657, %v3932, %v3392
  %v4016 = vsel %vm3657, %v3934, %v3394
  %v4018 = vsel %vm3657, %v3936, %v3396
  %v4020 = vsel %vm3657, %v3938, %v3398
  %v4022 = vsel %vm3657, %v3940, %v3400
  %v4024 = vsel %vm3657, %v3942, %v3402
  %v4026 = vsel %vm3657, %v3944, %v3404
  %v4027 = vld [vmem:[%s4] sm:$0xf]
  %v4028 = vld [vmem:[%s4 + $0x4] sm:$0xf]
  %v4029 = vld [vmem:[%s4 + $0x8] sm:$0xf]
  %v4030 = vld [vmem:[%s4 + $0xc] sm:$0xf]
  %v4031 = vld [vmem:[%s4 + $0x10] sm:$0xf]
  %v4032 = vld [vmem:[%s4 + $0x14] sm:$0xf]
  %v4033 = vld [vmem:[%s4 + $0x18] sm:$0xf]
  %v4034 = vld [vmem:[%s4 + $0x1c] sm:$0xf]
  %v4035 = vld [vmem:[%s4 + $0x20] sm:$0xf]
  %v4036 = vld [vmem:[%s4 + $0x24] sm:$0xf]
  %v4037 = vld [vmem:[%s4 + $0x28] sm:$0xf]
  %v4038 = vld [vmem:[%s4 + $0x2c] sm:$0xf]
  %v4039 = vld [vmem:[%s4 + $0x30] sm:$0xf]
  %v4040 = vld [vmem:[%s4 + $0x34] sm:$0xf]
  %v4041 = vld [vmem:[%s4 + $0x38] sm:$0xf]
  %v4042 = vld [vmem:[%s4 + $0x3c] sm:$0xf]
  %v4043 = vld [vmem:[%s4 + $0x40] sm:$0xf]
  %v4044 = vld [vmem:[%s4 + $0x44] sm:$0xf]
  %v4045 = vld [vmem:[%s4 + $0x48] sm:$0xf]
  %v4046 = vld [vmem:[%s4 + $0x4c] sm:$0xf]
  %v4047 = vld [vmem:[%s4 + $0x50] sm:$0xf]
  %v4048 = vld [vmem:[%s4 + $0x54] sm:$0xf]
  %v4049 = vld [vmem:[%s4 + $0x58] sm:$0xf]
  %v4050 = vld [vmem:[%s4 + $0x5c] sm:$0xf]
  %v4051 = vld [vmem:[%s4 + $0x60] sm:$0xf]
  %v4052 = vld [vmem:[%s4 + $0x64] sm:$0xf]
  %v4053 = vld [vmem:[%s4 + $0x68] sm:$0xf]
  %v4054 = vld [vmem:[%s4 + $0x6c] sm:$0xf]
  %v4055 = vld [vmem:[%s4 + $0x70] sm:$0xf]
  %v4056 = vld [vmem:[%s4 + $0x74] sm:$0xf]
  %v4057 = vld [vmem:[%s4 + $0x78] sm:$0xf]
  %v4058 = vld [vmem:[%s4 + $0x7c] sm:$0xf]
  %v4059 = vld [vmem:[%s4 + $0x80] sm:$0xf]
  %v4060 = vld [vmem:[%s4 + $0x84] sm:$0xf]
  %v4061 = vld [vmem:[%s4 + $0x88] sm:$0xf]
  %v4062 = vld [vmem:[%s4 + $0x8c] sm:$0xf]
  %v4063 = vld [vmem:[%s5] sm:$0x1]
  %v4065 = vperm.slane %v4063, 0
  %vm4067 = vsmask.f32 5376
  %v4068 = vshrl.u32 %v3659, 16
  %v4070 = vrot.slane %v4068, 2
  %v4071 = vshll.u32 %v3659, 16
  %v4073 = vrot.slane %v4071, 3
  %v4074 = vor.u32 %v4070, %v4073
  %v4075 = vshrl.u32 %v3661, 16
  %v4077 = vrot.slane %v4075, 2
  %v4078 = vshll.u32 %v3661, 16
  %v4080 = vrot.slane %v4078, 3
  %v4081 = vor.u32 %v4077, %v4080
  %v4082 = vsel %vm4067, %v4074, %v4081
  %v4083 = vshrl.u32 %v3946, 16
  %v4085 = vrot.slane %v4083, 2
  %v4086 = vshll.u32 %v3946, 16
  %v4088 = vrot.slane %v4086, 3
  %v4089 = vor.u32 %v4085, %v4088
  %v4090 = vshrl.u32 %v3948, 16
  %v4092 = vrot.slane %v4090, 2
  %v4093 = vshll.u32 %v3948, 16
  %v4095 = vrot.slane %v4093, 3
  %v4096 = vor.u32 %v4092, %v4095
  %v4097 = vsel %vm4067, %v4089, %v4096
  %v4099 = vshrl.u32 %v3409, 16
  %v4101 = vrot.slane %v4099, 2
  %v4102 = vshll.u32 %v3409, 16
  %v4104 = vrot.slane %v4102, 3
  %v4105 = vor.u32 %v4101, %v4104
  %v4107 = vshrl.u32 %v3411, 16
  %v4109 = vrot.slane %v4107, 2
  %v4110 = vshll.u32 %v3411, 16
  %v4112 = vrot.slane %v4110, 3
  %v4113 = vor.u32 %v4109, %v4112
  %v4114 = vsel %vm4067, %v4105, %v4113
  %v4115 = vshrl.u32 %v3663, 16
  %v4117 = vrot.slane %v4115, 2
  %v4118 = vshll.u32 %v3663, 16
  %v4120 = vrot.slane %v4118, 3
  %v4121 = vor.u32 %v4117, %v4120
  %v4122 = vsel %vm4067, %v4081, %v4121
  %v4123 = vshrl.u32 %v3950, 16
  %v4125 = vrot.slane %v4123, 2
  %v4126 = vshll.u32 %v3950, 16
  %v4128 = vrot.slane %v4126, 3
  %v4129 = vor.u32 %v4125, %v4128
  %v4130 = vsel %vm4067, %v4096, %v4129
  %v4132 = vshrl.u32 %v3413, 16
  %v4134 = vrot.slane %v4132, 2
  %v4135 = vshll.u32 %v3413, 16
  %v4137 = vrot.slane %v4135, 3
  %v4138 = vor.u32 %v4134, %v4137
  %v4139 = vsel %vm4067, %v4113, %v4138
  %v4140 = vshrl.u32 %v3665, 16
  %v4142 = vrot.slane %v4140, 2
  %v4143 = vshll.u32 %v3665, 16
  %v4145 = vrot.slane %v4143, 3
  %v4146 = vor.u32 %v4142, %v4145
  %v4147 = vsel %vm4067, %v4121, %v4146
  %v4148 = vshrl.u32 %v3952, 16
  %v4150 = vrot.slane %v4148, 2
  %v4151 = vshll.u32 %v3952, 16
  %v4153 = vrot.slane %v4151, 3
  %v4154 = vor.u32 %v4150, %v4153
  %v4155 = vsel %vm4067, %v4129, %v4154
  %v4157 = vshrl.u32 %v3415, 16
  %v4159 = vrot.slane %v4157, 2
  %v4160 = vshll.u32 %v3415, 16
  %v4162 = vrot.slane %v4160, 3
  %v4163 = vor.u32 %v4159, %v4162
  %v4164 = vsel %vm4067, %v4138, %v4163
  %v4165 = vshrl.u32 %v3667, 16
  %v4167 = vrot.slane %v4165, 2
  %v4168 = vshll.u32 %v3667, 16
  %v4170 = vrot.slane %v4168, 3
  %v4171 = vor.u32 %v4167, %v4170
  %v4172 = vsel %vm4067, %v4146, %v4171
  %v4173 = vshrl.u32 %v3954, 16
  %v4175 = vrot.slane %v4173, 2
  %v4176 = vshll.u32 %v3954, 16
  %v4178 = vrot.slane %v4176, 3
  %v4179 = vor.u32 %v4175, %v4178
  %v4180 = vsel %vm4067, %v4154, %v4179
  %v4182 = vshrl.u32 %v3417, 16
  %v4184 = vrot.slane %v4182, 2
  %v4185 = vshll.u32 %v3417, 16
  %v4187 = vrot.slane %v4185, 3
  %v4188 = vor.u32 %v4184, %v4187
  %v4189 = vsel %vm4067, %v4163, %v4188
  %v4190 = vshrl.u32 %v3669, 16
  %v4192 = vrot.slane %v4190, 2
  %v4193 = vshll.u32 %v3669, 16
  %v4195 = vrot.slane %v4193, 3
  %v4196 = vor.u32 %v4192, %v4195
  %v4197 = vsel %vm4067, %v4171, %v4196
  %v4198 = vshrl.u32 %v3956, 16
  %v4200 = vrot.slane %v4198, 2
  %v4201 = vshll.u32 %v3956, 16
  %v4203 = vrot.slane %v4201, 3
  %v4204 = vor.u32 %v4200, %v4203
  %v4205 = vsel %vm4067, %v4179, %v4204
  %v4207 = vshrl.u32 %v3419, 16
  %v4209 = vrot.slane %v4207, 2
  %v4210 = vshll.u32 %v3419, 16
  %v4212 = vrot.slane %v4210, 3
  %v4213 = vor.u32 %v4209, %v4212
  %v4214 = vsel %vm4067, %v4188, %v4213
  %v4215 = vshrl.u32 %v3671, 16
  %v4217 = vrot.slane %v4215, 2
  %v4218 = vshll.u32 %v3671, 16
  %v4220 = vrot.slane %v4218, 3
  %v4221 = vor.u32 %v4217, %v4220
  %v4222 = vsel %vm4067, %v4196, %v4221
  %v4223 = vshrl.u32 %v3958, 16
  %v4225 = vrot.slane %v4223, 2
  %v4226 = vshll.u32 %v3958, 16
  %v4228 = vrot.slane %v4226, 3
  %v4229 = vor.u32 %v4225, %v4228
  %v4230 = vsel %vm4067, %v4204, %v4229
  %v4232 = vshrl.u32 %v3421, 16
  %v4234 = vrot.slane %v4232, 2
  %v4235 = vshll.u32 %v3421, 16
  %v4237 = vrot.slane %v4235, 3
  %v4238 = vor.u32 %v4234, %v4237
  %v4239 = vsel %vm4067, %v4213, %v4238
  %v4240 = vshrl.u32 %v3673, 16
  %v4242 = vrot.slane %v4240, 2
  %v4243 = vshll.u32 %v3673, 16
  %v4245 = vrot.slane %v4243, 3
  %v4246 = vor.u32 %v4242, %v4245
  %v4247 = vsel %vm4067, %v4221, %v4246
  %v4248 = vshrl.u32 %v3960, 16
  %v4250 = vrot.slane %v4248, 2
  %v4251 = vshll.u32 %v3960, 16
  %v4253 = vrot.slane %v4251, 3
  %v4254 = vor.u32 %v4250, %v4253
  %v4255 = vsel %vm4067, %v4229, %v4254
  %v4257 = vshrl.u32 %v3423, 16
  %v4259 = vrot.slane %v4257, 2
  %v4260 = vshll.u32 %v3423, 16
  %v4262 = vrot.slane %v4260, 3
  %v4263 = vor.u32 %v4259, %v4262
  %v4264 = vsel %vm4067, %v4238, %v4263
  %v4265 = vshrl.u32 %v3675, 16
  %v4267 = vrot.slane %v4265, 2
  %v4268 = vshll.u32 %v3675, 16
  %v4270 = vrot.slane %v4268, 3
  %v4271 = vor.u32 %v4267, %v4270
  %v4272 = vsel %vm4067, %v4246, %v4271
  %v4273 = vshrl.u32 %v3962, 16
  %v4275 = vrot.slane %v4273, 2
  %v4276 = vshll.u32 %v3962, 16
  %v4278 = vrot.slane %v4276, 3
  %v4279 = vor.u32 %v4275, %v4278
  %v4280 = vsel %vm4067, %v4254, %v4279
  %v4282 = vshrl.u32 %v3425, 16
  %v4284 = vrot.slane %v4282, 2
  %v4285 = vshll.u32 %v3425, 16
  %v4287 = vrot.slane %v4285, 3
  %v4288 = vor.u32 %v4284, %v4287
  %v4289 = vsel %vm4067, %v4263, %v4288
  %v4290 = vshrl.u32 %v3677, 16
  %v4292 = vrot.slane %v4290, 2
  %v4293 = vshll.u32 %v3677, 16
  %v4295 = vrot.slane %v4293, 3
  %v4296 = vor.u32 %v4292, %v4295
  %v4297 = vsel %vm4067, %v4271, %v4296
  %v4298 = vshrl.u32 %v3964, 16
  %v4300 = vrot.slane %v4298, 2
  %v4301 = vshll.u32 %v3964, 16
  %v4303 = vrot.slane %v4301, 3
  %v4304 = vor.u32 %v4300, %v4303
  %v4305 = vsel %vm4067, %v4279, %v4304
  %v4307 = vshrl.u32 %v3427, 16
  %v4309 = vrot.slane %v4307, 2
  %v4310 = vshll.u32 %v3427, 16
  %v4312 = vrot.slane %v4310, 3
  %v4313 = vor.u32 %v4309, %v4312
  %v4314 = vsel %vm4067, %v4288, %v4313
  %v4315 = vshrl.u32 %v3679, 16
  %v4317 = vrot.slane %v4315, 2
  %v4318 = vshll.u32 %v3679, 16
  %v4320 = vrot.slane %v4318, 3
  %v4321 = vor.u32 %v4317, %v4320
  %v4322 = vsel %vm4067, %v4296, %v4321
  %v4323 = vshrl.u32 %v3966, 16
  %v4325 = vrot.slane %v4323, 2
  %v4326 = vshll.u32 %v3966, 16
  %v4328 = vrot.slane %v4326, 3
  %v4329 = vor.u32 %v4325, %v4328
  %v4330 = vsel %vm4067, %v4304, %v4329
  %v4332 = vshrl.u32 %v3429, 16
  %v4334 = vrot.slane %v4332, 2
  %v4335 = vshll.u32 %v3429, 16
  %v4337 = vrot.slane %v4335, 3
  %v4338 = vor.u32 %v4334, %v4337
  %v4339 = vsel %vm4067, %v4313, %v4338
  %v4340 = vshrl.u32 %v3681, 16
  %v4342 = vrot.slane %v4340, 2
  %v4343 = vshll.u32 %v3681, 16
  %v4345 = vrot.slane %v4343, 3
  %v4346 = vor.u32 %v4342, %v4345
  %v4347 = vsel %vm4067, %v4321, %v4346
  %v4348 = vshrl.u32 %v3968, 16
  %v4350 = vrot.slane %v4348, 2
  %v4351 = vshll.u32 %v3968, 16
  %v4353 = vrot.slane %v4351, 3
  %v4354 = vor.u32 %v4350, %v4353
  %v4355 = vsel %vm4067, %v4329, %v4354
  %v4357 = vshrl.u32 %v3431, 16
  %v4359 = vrot.slane %v4357, 2
  %v4360 = vshll.u32 %v3431, 16
  %v4362 = vrot.slane %v4360, 3
  %v4363 = vor.u32 %v4359, %v4362
  %v4364 = vsel %vm4067, %v4338, %v4363
  %v4365 = vshrl.u32 %v3683, 16
  %v4367 = vrot.slane %v4365, 2
  %v4368 = vshll.u32 %v3683, 16
  %v4370 = vrot.slane %v4368, 3
  %v4371 = vor.u32 %v4367, %v4370
  %v4372 = vsel %vm4067, %v4346, %v4371
  %v4373 = vshrl.u32 %v3970, 16
  %v4375 = vrot.slane %v4373, 2
  %v4376 = vshll.u32 %v3970, 16
  %v4378 = vrot.slane %v4376, 3
  %v4379 = vor.u32 %v4375, %v4378
  %v4380 = vsel %vm4067, %v4354, %v4379
  %v4382 = vshrl.u32 %v3433, 16
  %v4384 = vrot.slane %v4382, 2
  %v4385 = vshll.u32 %v3433, 16
  %v4387 = vrot.slane %v4385, 3
  %v4388 = vor.u32 %v4384, %v4387
  %v4389 = vsel %vm4067, %v4363, %v4388
  %v4390 = vshrl.u32 %v3685, 16
  %v4392 = vrot.slane %v4390, 2
  %v4393 = vshll.u32 %v3685, 16
  %v4395 = vrot.slane %v4393, 3
  %v4396 = vor.u32 %v4392, %v4395
  %v4397 = vsel %vm4067, %v4371, %v4396
  %v4398 = vshrl.u32 %v3972, 16
  %v4400 = vrot.slane %v4398, 2
  %v4401 = vshll.u32 %v3972, 16
  %v4403 = vrot.slane %v4401, 3
  %v4404 = vor.u32 %v4400, %v4403
  %v4405 = vsel %vm4067, %v4379, %v4404
  %v4407 = vshrl.u32 %v3435, 16
  %v4409 = vrot.slane %v4407, 2
  %v4410 = vshll.u32 %v3435, 16
  %v4412 = vrot.slane %v4410, 3
  %v4413 = vor.u32 %v4409, %v4412
  %v4414 = vsel %vm4067, %v4388, %v4413
  %v4415 = vshrl.u32 %v3687, 16
  %v4417 = vrot.slane %v4415, 2
  %v4418 = vshll.u32 %v3687, 16
  %v4420 = vrot.slane %v4418, 3
  %v4421 = vor.u32 %v4417, %v4420
  %v4422 = vsel %vm4067, %v4396, %v4421
  %v4423 = vshrl.u32 %v3974, 16
  %v4425 = vrot.slane %v4423, 2
  %v4426 = vshll.u32 %v3974, 16
  %v4428 = vrot.slane %v4426, 3
  %v4429 = vor.u32 %v4425, %v4428
  %v4430 = vsel %vm4067, %v4404, %v4429
  %v4432 = vshrl.u32 %v3437, 16
  %v4434 = vrot.slane %v4432, 2
  %v4435 = vshll.u32 %v3437, 16
  %v4437 = vrot.slane %v4435, 3
  %v4438 = vor.u32 %v4434, %v4437
  %v4439 = vsel %vm4067, %v4413, %v4438
  %v4440 = vshrl.u32 %v3689, 16
  %v4442 = vrot.slane %v4440, 2
  %v4443 = vshll.u32 %v3689, 16
  %v4445 = vrot.slane %v4443, 3
  %v4446 = vor.u32 %v4442, %v4445
  %v4447 = vsel %vm4067, %v4421, %v4446
  %v4448 = vshrl.u32 %v3976, 16
  %v4450 = vrot.slane %v4448, 2
  %v4451 = vshll.u32 %v3976, 16
  %v4453 = vrot.slane %v4451, 3
  %v4454 = vor.u32 %v4450, %v4453
  %v4455 = vsel %vm4067, %v4429, %v4454
  %v4457 = vshrl.u32 %v3439, 16
  %v4459 = vrot.slane %v4457, 2
  %v4460 = vshll.u32 %v3439, 16
  %v4462 = vrot.slane %v4460, 3
  %v4463 = vor.u32 %v4459, %v4462
  %v4464 = vsel %vm4067, %v4438, %v4463
  %v4465 = vshrl.u32 %v3691, 16
  %v4467 = vrot.slane %v4465, 2
  %v4468 = vshll.u32 %v3691, 16
  %v4470 = vrot.slane %v4468, 3
  %v4471 = vor.u32 %v4467, %v4470
  %v4472 = vsel %vm4067, %v4446, %v4471
  %v4473 = vshrl.u32 %v3978, 16
  %v4475 = vrot.slane %v4473, 2
  %v4476 = vshll.u32 %v3978, 16
  %v4478 = vrot.slane %v4476, 3
  %v4479 = vor.u32 %v4475, %v4478
  %v4480 = vsel %vm4067, %v4454, %v4479
  %v4482 = vshrl.u32 %v3441, 16
  %v4484 = vrot.slane %v4482, 2
  %v4485 = vshll.u32 %v3441, 16
  %v4487 = vrot.slane %v4485, 3
  %v4488 = vor.u32 %v4484, %v4487
  %v4489 = vsel %vm4067, %v4463, %v4488
  %v4490 = vshrl.u32 %v3693, 16
  %v4492 = vrot.slane %v4490, 2
  %v4493 = vshll.u32 %v3693, 16
  %v4495 = vrot.slane %v4493, 3
  %v4496 = vor.u32 %v4492, %v4495
  %v4497 = vsel %vm4067, %v4471, %v4496
  %v4498 = vshrl.u32 %v3980, 16
  %v4500 = vrot.slane %v4498, 2
  %v4501 = vshll.u32 %v3980, 16
  %v4503 = vrot.slane %v4501, 3
  %v4504 = vor.u32 %v4500, %v4503
  %v4505 = vsel %vm4067, %v4479, %v4504
  %v4507 = vshrl.u32 %v3443, 16
  %v4509 = vrot.slane %v4507, 2
  %v4510 = vshll.u32 %v3443, 16
  %v4512 = vrot.slane %v4510, 3
  %v4513 = vor.u32 %v4509, %v4512
  %v4514 = vsel %vm4067, %v4488, %v4513
  %v4515 = vshrl.u32 %v3695, 16
  %v4517 = vrot.slane %v4515, 2
  %v4518 = vshll.u32 %v3695, 16
  %v4520 = vrot.slane %v4518, 3
  %v4521 = vor.u32 %v4517, %v4520
  %v4522 = vsel %vm4067, %v4496, %v4521
  %v4523 = vshrl.u32 %v3982, 16
  %v4525 = vrot.slane %v4523, 2
  %v4526 = vshll.u32 %v3982, 16
  %v4528 = vrot.slane %v4526, 3
  %v4529 = vor.u32 %v4525, %v4528
  %v4530 = vsel %vm4067, %v4504, %v4529
  %v4532 = vshrl.u32 %v3445, 16
  %v4534 = vrot.slane %v4532, 2
  %v4535 = vshll.u32 %v3445, 16
  %v4537 = vrot.slane %v4535, 3
  %v4538 = vor.u32 %v4534, %v4537
  %v4539 = vsel %vm4067, %v4513, %v4538
  %v4540 = vshrl.u32 %v3697, 16
  %v4542 = vrot.slane %v4540, 2
  %v4543 = vshll.u32 %v3697, 16
  %v4545 = vrot.slane %v4543, 3
  %v4546 = vor.u32 %v4542, %v4545
  %v4547 = vsel %vm4067, %v4521, %v4546
  %v4548 = vshrl.u32 %v3984, 16
  %v4550 = vrot.slane %v4548, 2
  %v4551 = vshll.u32 %v3984, 16
  %v4553 = vrot.slane %v4551, 3
  %v4554 = vor.u32 %v4550, %v4553
  %v4555 = vsel %vm4067, %v4529, %v4554
  %v4557 = vshrl.u32 %v3447, 16
  %v4559 = vrot.slane %v4557, 2
  %v4560 = vshll.u32 %v3447, 16
  %v4562 = vrot.slane %v4560, 3
  %v4563 = vor.u32 %v4559, %v4562
  %v4564 = vsel %vm4067, %v4538, %v4563
  %v4565 = vshrl.u32 %v3699, 16
  %v4567 = vrot.slane %v4565, 2
  %v4568 = vshll.u32 %v3699, 16
  %v4570 = vrot.slane %v4568, 3
  %v4571 = vor.u32 %v4567, %v4570
  %v4572 = vsel %vm4067, %v4546, %v4571
  %v4573 = vshrl.u32 %v3986, 16
  %v4575 = vrot.slane %v4573, 2
  %v4576 = vshll.u32 %v3986, 16
  %v4578 = vrot.slane %v4576, 3
  %v4579 = vor.u32 %v4575, %v4578
  %v4580 = vsel %vm4067, %v4554, %v4579
  %v4582 = vshrl.u32 %v3449, 16
  %v4584 = vrot.slane %v4582, 2
  %v4585 = vshll.u32 %v3449, 16
  %v4587 = vrot.slane %v4585, 3
  %v4588 = vor.u32 %v4584, %v4587
  %v4589 = vsel %vm4067, %v4563, %v4588
  %v4590 = vshrl.u32 %v3701, 16
  %v4592 = vrot.slane %v4590, 2
  %v4593 = vshll.u32 %v3701, 16
  %v4595 = vrot.slane %v4593, 3
  %v4596 = vor.u32 %v4592, %v4595
  %v4597 = vsel %vm4067, %v4571, %v4596
  %v4598 = vshrl.u32 %v3988, 16
  %v4600 = vrot.slane %v4598, 2
  %v4601 = vshll.u32 %v3988, 16
  %v4603 = vrot.slane %v4601, 3
  %v4604 = vor.u32 %v4600, %v4603
  %v4605 = vsel %vm4067, %v4579, %v4604
  %v4607 = vshrl.u32 %v3451, 16
  %v4609 = vrot.slane %v4607, 2
  %v4610 = vshll.u32 %v3451, 16
  %v4612 = vrot.slane %v4610, 3
  %v4613 = vor.u32 %v4609, %v4612
  %v4614 = vsel %vm4067, %v4588, %v4613
  %v4615 = vshrl.u32 %v3703, 16
  %v4617 = vrot.slane %v4615, 2
  %v4618 = vshll.u32 %v3703, 16
  %v4620 = vrot.slane %v4618, 3
  %v4621 = vor.u32 %v4617, %v4620
  %v4622 = vsel %vm4067, %v4596, %v4621
  %v4623 = vshrl.u32 %v3990, 16
  %v4625 = vrot.slane %v4623, 2
  %v4626 = vshll.u32 %v3990, 16
  %v4628 = vrot.slane %v4626, 3
  %v4629 = vor.u32 %v4625, %v4628
  %v4630 = vsel %vm4067, %v4604, %v4629
  %v4632 = vshrl.u32 %v3453, 16
  %v4634 = vrot.slane %v4632, 2
  %v4635 = vshll.u32 %v3453, 16
  %v4637 = vrot.slane %v4635, 3
  %v4638 = vor.u32 %v4634, %v4637
  %v4639 = vsel %vm4067, %v4613, %v4638
  %v4640 = vshrl.u32 %v3705, 16
  %v4642 = vrot.slane %v4640, 2
  %v4643 = vshll.u32 %v3705, 16
  %v4645 = vrot.slane %v4643, 3
  %v4646 = vor.u32 %v4642, %v4645
  %v4647 = vsel %vm4067, %v4621, %v4646
  %v4648 = vshrl.u32 %v3992, 16
  %v4650 = vrot.slane %v4648, 2
  %v4651 = vshll.u32 %v3992, 16
  %v4653 = vrot.slane %v4651, 3
  %v4654 = vor.u32 %v4650, %v4653
  %v4655 = vsel %vm4067, %v4629, %v4654
  %v4657 = vshrl.u32 %v3455, 16
  %v4659 = vrot.slane %v4657, 2
  %v4660 = vshll.u32 %v3455, 16
  %v4662 = vrot.slane %v4660, 3
  %v4663 = vor.u32 %v4659, %v4662
  %v4664 = vsel %vm4067, %v4638, %v4663
  %v4665 = vshrl.u32 %v3707, 16
  %v4667 = vrot.slane %v4665, 2
  %v4668 = vshll.u32 %v3707, 16
  %v4670 = vrot.slane %v4668, 3
  %v4671 = vor.u32 %v4667, %v4670
  %v4672 = vsel %vm4067, %v4646, %v4671
  %v4673 = vshrl.u32 %v3994, 16
  %v4675 = vrot.slane %v4673, 2
  %v4676 = vshll.u32 %v3994, 16
  %v4678 = vrot.slane %v4676, 3
  %v4679 = vor.u32 %v4675, %v4678
  %v4680 = vsel %vm4067, %v4654, %v4679
  %v4682 = vshrl.u32 %v3457, 16
  %v4684 = vrot.slane %v4682, 2
  %v4685 = vshll.u32 %v3457, 16
  %v4687 = vrot.slane %v4685, 3
  %v4688 = vor.u32 %v4684, %v4687
  %v4689 = vsel %vm4067, %v4663, %v4688
  %v4690 = vshrl.u32 %v3709, 16
  %v4692 = vrot.slane %v4690, 2
  %v4693 = vshll.u32 %v3709, 16
  %v4695 = vrot.slane %v4693, 3
  %v4696 = vor.u32 %v4692, %v4695
  %v4697 = vsel %vm4067, %v4671, %v4696
  %v4698 = vshrl.u32 %v3996, 16
  %v4700 = vrot.slane %v4698, 2
  %v4701 = vshll.u32 %v3996, 16
  %v4703 = vrot.slane %v4701, 3
  %v4704 = vor.u32 %v4700, %v4703
  %v4705 = vsel %vm4067, %v4679, %v4704
  %v4707 = vshrl.u32 %v3459, 16
  %v4709 = vrot.slane %v4707, 2
  %v4710 = vshll.u32 %v3459, 16
  %v4712 = vrot.slane %v4710, 3
  %v4713 = vor.u32 %v4709, %v4712
  %v4714 = vsel %vm4067, %v4688, %v4713
  %v4715 = vshrl.u32 %v3711, 16
  %v4717 = vrot.slane %v4715, 2
  %v4718 = vshll.u32 %v3711, 16
  %v4720 = vrot.slane %v4718, 3
  %v4721 = vor.u32 %v4717, %v4720
  %v4722 = vsel %vm4067, %v4696, %v4721
  %v4723 = vshrl.u32 %v3998, 16
  %v4725 = vrot.slane %v4723, 2
  %v4726 = vshll.u32 %v3998, 16
  %v4728 = vrot.slane %v4726, 3
  %v4729 = vor.u32 %v4725, %v4728
  %v4730 = vsel %vm4067, %v4704, %v4729
  %v4732 = vshrl.u32 %v3461, 16
  %v4734 = vrot.slane %v4732, 2
  %v4735 = vshll.u32 %v3461, 16
  %v4737 = vrot.slane %v4735, 3
  %v4738 = vor.u32 %v4734, %v4737
  %v4739 = vsel %vm4067, %v4713, %v4738
  %v4740 = vshrl.u32 %v3713, 16
  %v4742 = vrot.slane %v4740, 2
  %v4743 = vshll.u32 %v3713, 16
  %v4745 = vrot.slane %v4743, 3
  %v4746 = vor.u32 %v4742, %v4745
  %v4747 = vsel %vm4067, %v4721, %v4746
  %v4748 = vshrl.u32 %v4000, 16
  %v4750 = vrot.slane %v4748, 2
  %v4751 = vshll.u32 %v4000, 16
  %v4753 = vrot.slane %v4751, 3
  %v4754 = vor.u32 %v4750, %v4753
  %v4755 = vsel %vm4067, %v4729, %v4754
  %v4757 = vshrl.u32 %v3463, 16
  %v4759 = vrot.slane %v4757, 2
  %v4760 = vshll.u32 %v3463, 16
  %v4762 = vrot.slane %v4760, 3
  %v4763 = vor.u32 %v4759, %v4762
  %v4764 = vsel %vm4067, %v4738, %v4763
  %v4765 = vshrl.u32 %v3715, 16
  %v4767 = vrot.slane %v4765, 2
  %v4768 = vshll.u32 %v3715, 16
  %v4770 = vrot.slane %v4768, 3
  %v4771 = vor.u32 %v4767, %v4770
  %v4772 = vsel %vm4067, %v4746, %v4771
  %v4773 = vshrl.u32 %v4002, 16
  %v4775 = vrot.slane %v4773, 2
  %v4776 = vshll.u32 %v4002, 16
  %v4778 = vrot.slane %v4776, 3
  %v4779 = vor.u32 %v4775, %v4778
  %v4780 = vsel %vm4067, %v4754, %v4779
  %v4782 = vshrl.u32 %v3465, 16
  %v4784 = vrot.slane %v4782, 2
  %v4785 = vshll.u32 %v3465, 16
  %v4787 = vrot.slane %v4785, 3
  %v4788 = vor.u32 %v4784, %v4787
  %v4789 = vsel %vm4067, %v4763, %v4788
  %v4790 = vshrl.u32 %v3717, 16
  %v4792 = vrot.slane %v4790, 2
  %v4793 = vshll.u32 %v3717, 16
  %v4795 = vrot.slane %v4793, 3
  %v4796 = vor.u32 %v4792, %v4795
  %v4797 = vsel %vm4067, %v4771, %v4796
  %v4798 = vshrl.u32 %v4004, 16
  %v4800 = vrot.slane %v4798, 2
  %v4801 = vshll.u32 %v4004, 16
  %v4803 = vrot.slane %v4801, 3
  %v4804 = vor.u32 %v4800, %v4803
  %v4805 = vsel %vm4067, %v4779, %v4804
  %v4807 = vshrl.u32 %v3467, 16
  %v4809 = vrot.slane %v4807, 2
  %v4810 = vshll.u32 %v3467, 16
  %v4812 = vrot.slane %v4810, 3
  %v4813 = vor.u32 %v4809, %v4812
  %v4814 = vsel %vm4067, %v4788, %v4813
  %v4815 = vshrl.u32 %v3719, 16
  %v4817 = vrot.slane %v4815, 2
  %v4818 = vshll.u32 %v3719, 16
  %v4820 = vrot.slane %v4818, 3
  %v4821 = vor.u32 %v4817, %v4820
  %v4822 = vsel %vm4067, %v4796, %v4821
  %v4823 = vshrl.u32 %v4006, 16
  %v4825 = vrot.slane %v4823, 2
  %v4826 = vshll.u32 %v4006, 16
  %v4828 = vrot.slane %v4826, 3
  %v4829 = vor.u32 %v4825, %v4828
  %v4830 = vsel %vm4067, %v4804, %v4829
  %v4832 = vshrl.u32 %v3469, 16
  %v4834 = vrot.slane %v4832, 2
  %v4835 = vshll.u32 %v3469, 16
  %v4837 = vrot.slane %v4835, 3
  %v4838 = vor.u32 %v4834, %v4837
  %v4839 = vsel %vm4067, %v4813, %v4838
  %v4840 = vshrl.u32 %v3721, 16
  %v4842 = vrot.slane %v4840, 2
  %v4843 = vshll.u32 %v3721, 16
  %v4845 = vrot.slane %v4843, 3
  %v4846 = vor.u32 %v4842, %v4845
  %v4847 = vsel %vm4067, %v4821, %v4846
  %v4848 = vshrl.u32 %v4008, 16
  %v4850 = vrot.slane %v4848, 2
  %v4851 = vshll.u32 %v4008, 16
  %v4853 = vrot.slane %v4851, 3
  %v4854 = vor.u32 %v4850, %v4853
  %v4855 = vsel %vm4067, %v4829, %v4854
  %v4857 = vshrl.u32 %v3471, 16
  %v4859 = vrot.slane %v4857, 2
  %v4860 = vshll.u32 %v3471, 16
  %v4862 = vrot.slane %v4860, 3
  %v4863 = vor.u32 %v4859, %v4862
  %v4864 = vsel %vm4067, %v4838, %v4863
  %v4865 = vshrl.u32 %v3723, 16
  %v4867 = vrot.slane %v4865, 2
  %v4868 = vshll.u32 %v3723, 16
  %v4870 = vrot.slane %v4868, 3
  %v4871 = vor.u32 %v4867, %v4870
  %v4872 = vsel %vm4067, %v4846, %v4871
  %v4873 = vshrl.u32 %v4010, 16
  %v4875 = vrot.slane %v4873, 2
  %v4876 = vshll.u32 %v4010, 16
  %v4878 = vrot.slane %v4876, 3
  %v4879 = vor.u32 %v4875, %v4878
  %v4880 = vsel %vm4067, %v4854, %v4879
  %v4882 = vshrl.u32 %v3473, 16
  %v4884 = vrot.slane %v4882, 2
  %v4885 = vshll.u32 %v3473, 16
  %v4887 = vrot.slane %v4885, 3
  %v4888 = vor.u32 %v4884, %v4887
  %v4889 = vsel %vm4067, %v4863, %v4888
  %v4890 = vshrl.u32 %v3725, 16
  %v4892 = vrot.slane %v4890, 2
  %v4893 = vshll.u32 %v3725, 16
  %v4895 = vrot.slane %v4893, 3
  %v4896 = vor.u32 %v4892, %v4895
  %v4897 = vsel %vm4067, %v4871, %v4896
  %v4898 = vshrl.u32 %v4012, 16
  %v4900 = vrot.slane %v4898, 2
  %v4901 = vshll.u32 %v4012, 16
  %v4903 = vrot.slane %v4901, 3
  %v4904 = vor.u32 %v4900, %v4903
  %v4905 = vsel %vm4067, %v4879, %v4904
  %v4907 = vshrl.u32 %v3475, 16
  %v4909 = vrot.slane %v4907, 2
  %v4910 = vshll.u32 %v3475, 16
  %v4912 = vrot.slane %v4910, 3
  %v4913 = vor.u32 %v4909, %v4912
  %v4914 = vsel %vm4067, %v4888, %v4913
  %v4915 = vshrl.u32 %v3727, 16
  %v4917 = vrot.slane %v4915, 2
  %v4918 = vshll.u32 %v3727, 16
  %v4920 = vrot.slane %v4918, 3
  %v4921 = vor.u32 %v4917, %v4920
  %v4922 = vsel %vm4067, %v4896, %v4921
  %v4923 = vshrl.u32 %v4014, 16
  %v4925 = vrot.slane %v4923, 2
  %v4926 = vshll.u32 %v4014, 16
  %v4928 = vrot.slane %v4926, 3
  %v4929 = vor.u32 %v4925, %v4928
  %v4930 = vsel %vm4067, %v4904, %v4929
  %v4932 = vshrl.u32 %v3477, 16
  %v4934 = vrot.slane %v4932, 2
  %v4935 = vshll.u32 %v3477, 16
  %v4937 = vrot.slane %v4935, 3
  %v4938 = vor.u32 %v4934, %v4937
  %v4939 = vsel %vm4067, %v4913, %v4938
  %v4940 = vshrl.u32 %v3729, 16
  %v4942 = vrot.slane %v4940, 2
  %v4943 = vshll.u32 %v3729, 16
  %v4945 = vrot.slane %v4943, 3
  %v4946 = vor.u32 %v4942, %v4945
  %v4947 = vsel %vm4067, %v4921, %v4946
  %v4948 = vshrl.u32 %v4016, 16
  %v4950 = vrot.slane %v4948, 2
  %v4951 = vshll.u32 %v4016, 16
  %v4953 = vrot.slane %v4951, 3
  %v4954 = vor.u32 %v4950, %v4953
  %v4955 = vsel %vm4067, %v4929, %v4954
  %v4957 = vshrl.u32 %v3479, 16
  %v4959 = vrot.slane %v4957, 2
  %v4960 = vshll.u32 %v3479, 16
  %v4962 = vrot.slane %v4960, 3
  %v4963 = vor.u32 %v4959, %v4962
  %v4964 = vsel %vm4067, %v4938, %v4963
  %v4965 = vshrl.u32 %v3731, 16
  %v4967 = vrot.slane %v4965, 2
  %v4968 = vshll.u32 %v3731, 16
  %v4970 = vrot.slane %v4968, 3
  %v4971 = vor.u32 %v4967, %v4970
  %v4972 = vsel %vm4067, %v4946, %v4971
  %v4973 = vshrl.u32 %v4018, 16
  %v4975 = vrot.slane %v4973, 2
  %v4976 = vshll.u32 %v4018, 16
  %v4978 = vrot.slane %v4976, 3
  %v4979 = vor.u32 %v4975, %v4978
  %v4980 = vsel %vm4067, %v4954, %v4979
  %v4982 = vshrl.u32 %v3481, 16
  %v4984 = vrot.slane %v4982, 2
  %v4985 = vshll.u32 %v3481, 16
  %v4987 = vrot.slane %v4985, 3
  %v4988 = vor.u32 %v4984, %v4987
  %v4989 = vsel %vm4067, %v4963, %v4988
  %v4990 = vshrl.u32 %v3733, 16
  %v4992 = vrot.slane %v4990, 2
  %v4993 = vshll.u32 %v3733, 16
  %v4995 = vrot.slane %v4993, 3
  %v4996 = vor.u32 %v4992, %v4995
  %v4997 = vsel %vm4067, %v4971, %v4996
  %v4998 = vshrl.u32 %v4020, 16
  %v5000 = vrot.slane %v4998, 2
  %v5001 = vshll.u32 %v4020, 16
  %v5003 = vrot.slane %v5001, 3
  %v5004 = vor.u32 %v5000, %v5003
  %v5005 = vsel %vm4067, %v4979, %v5004
  %v5007 = vshrl.u32 %v3483, 16
  %v5009 = vrot.slane %v5007, 2
  %v5010 = vshll.u32 %v3483, 16
  %v5012 = vrot.slane %v5010, 3
  %v5013 = vor.u32 %v5009, %v5012
  %v5014 = vsel %vm4067, %v4988, %v5013
  %v5015 = vshrl.u32 %v3735, 16
  %v5017 = vrot.slane %v5015, 2
  %v5018 = vshll.u32 %v3735, 16
  %v5020 = vrot.slane %v5018, 3
  %v5021 = vor.u32 %v5017, %v5020
  %v5022 = vsel %vm4067, %v4996, %v5021
  %v5023 = vshrl.u32 %v4022, 16
  %v5025 = vrot.slane %v5023, 2
  %v5026 = vshll.u32 %v4022, 16
  %v5028 = vrot.slane %v5026, 3
  %v5029 = vor.u32 %v5025, %v5028
  %v5030 = vsel %vm4067, %v5004, %v5029
  %v5032 = vshrl.u32 %v3485, 16
  %v5034 = vrot.slane %v5032, 2
  %v5035 = vshll.u32 %v3485, 16
  %v5037 = vrot.slane %v5035, 3
  %v5038 = vor.u32 %v5034, %v5037
  %v5039 = vsel %vm4067, %v5013, %v5038
  %v5040 = vshrl.u32 %v3737, 16
  %v5042 = vrot.slane %v5040, 2
  %v5043 = vshll.u32 %v3737, 16
  %v5045 = vrot.slane %v5043, 3
  %v5046 = vor.u32 %v5042, %v5045
  %v5047 = vsel %vm4067, %v5021, %v5046
  %v5048 = vshrl.u32 %v4024, 16
  %v5050 = vrot.slane %v5048, 2
  %v5051 = vshll.u32 %v4024, 16
  %v5053 = vrot.slane %v5051, 3
  %v5054 = vor.u32 %v5050, %v5053
  %v5055 = vsel %vm4067, %v5029, %v5054
  %v5057 = vshrl.u32 %v3487, 16
  %v5059 = vrot.slane %v5057, 2
  %v5060 = vshll.u32 %v3487, 16
  %v5062 = vrot.slane %v5060, 3
  %v5063 = vor.u32 %v5059, %v5062
  %v5064 = vsel %vm4067, %v5038, %v5063
  %v5065 = vshrl.u32 %v3739, 16
  %v5067 = vrot.slane %v5065, 2
  %v5068 = vshll.u32 %v3739, 16
  %v5070 = vrot.slane %v5068, 3
  %v5071 = vor.u32 %v5067, %v5070
  %v5072 = vsel %vm4067, %v5046, %v5071
  %v5073 = vshrl.u32 %v4026, 16
  %v5075 = vrot.slane %v5073, 2
  %v5076 = vshll.u32 %v4026, 16
  %v5078 = vrot.slane %v5076, 3
  %v5079 = vor.u32 %v5075, %v5078
  %v5080 = vsel %vm4067, %v5054, %v5079
  %v5082 = vshrl.u32 %v3489, 16
  %v5084 = vrot.slane %v5082, 2
  %v5085 = vshll.u32 %v3489, 16
  %v5087 = vrot.slane %v5085, 3
  %v5088 = vor.u32 %v5084, %v5087
  %v5089 = vsel %vm4067, %v5063, %v5088
  %v5208 = vunpack.c.l.b16 %v4027
  %v5209 = vunpack.c.l.b16 %v4028
  %v5210 = vunpack.c.l.b16 %v4029
  %v5211 = vunpack.c.l.b16 %v4030
  %v5212 = vunpack.c.l.b16 %v4031
  %v5213 = vunpack.c.l.b16 %v4032
  %v5214 = vunpack.c.l.b16 %v4033
  %v5215 = vunpack.c.l.b16 %v4034
  %v5216 = vunpack.c.l.b16 %v4035
  %v5217 = vunpack.c.l.b16 %v4036
  %v5218 = vunpack.c.l.b16 %v4037
  %v5219 = vunpack.c.l.b16 %v4038
  %v5220 = vunpack.c.l.b16 %v4039
  %v5221 = vunpack.c.l.b16 %v4040
  %v5222 = vunpack.c.l.b16 %v4041
  %v5223 = vunpack.c.l.b16 %v4042
  %v5224 = vunpack.c.l.b16 %v4043
  %v5225 = vunpack.c.l.b16 %v4044
  %v5226 = vunpack.c.l.b16 %v4045
  %v5227 = vunpack.c.l.b16 %v4046
  %v5228 = vunpack.c.l.b16 %v4047
  %v5229 = vunpack.c.l.b16 %v4048
  %v5230 = vunpack.c.l.b16 %v4049
  %v5231 = vunpack.c.l.b16 %v4050
  %v5232 = vunpack.c.l.b16 %v4051
  %v5233 = vunpack.c.l.b16 %v4052
  %v5234 = vunpack.c.l.b16 %v4053
  %v5235 = vunpack.c.l.b16 %v4054
  %v5236 = vunpack.c.l.b16 %v4055
  %v5237 = vunpack.c.l.b16 %v4056
  %v5238 = vunpack.c.l.b16 %v4057
  %v5239 = vunpack.c.l.b16 %v4058
  %v5240 = vunpack.c.l.b16 %v4059
  %v5241 = vunpack.c.l.b16 %v4060
  %v5242 = vunpack.c.l.b16 %v4061
  %v5243 = vunpack.c.l.b16 %v4062
  %v5244 = vpack.c.b16 %v5209, %v5208
  %v5245 = vpack.c.b16 %v5211, %v5210
  %v5246 = vpack.c.b16 %v5213, %v5212
  %v5247 = vpack.c.b16 %v5215, %v5214
  %v5248 = vpack.c.b16 %v5217, %v5216
  %v5249 = vpack.c.b16 %v5219, %v5218
  %v5250 = vpack.c.b16 %v5221, %v5220
  %v5251 = vpack.c.b16 %v5223, %v5222
  %v5252 = vpack.c.b16 %v5225, %v5224
  %v5253 = vpack.c.b16 %v5227, %v5226
  %v5254 = vpack.c.b16 %v5229, %v5228
  %v5255 = vpack.c.b16 %v5231, %v5230
  %v5256 = vpack.c.b16 %v5233, %v5232
  %v5257 = vpack.c.b16 %v5235, %v5234
  %v5258 = vpack.c.b16 %v5237, %v5236
  %v5259 = vpack.c.b16 %v5239, %v5238
  %v5260 = vpack.c.b16 %v5241, %v5240
  %v5261 = vpack.c.b16 %v5243, %v5242
  %v5281 = vsel %vm3490, %v4114, 0
  %v5284 = vsel %vm3490, %v4139, 0
  %v5287 = vsel %vm3490, %v4164, 0
  %v5290 = vsel %vm3490, %v4189, 0
  %v5293 = vsel %vm3490, %v4214, 0
  %v5296 = vsel %vm3490, %v4239, 0
  %v5299 = vsel %vm3490, %v4264, 0
  %v5302 = vsel %vm3490, %v4289, 0
  %v5305 = vsel %vm3490, %v4314, 0
  %v5308 = vsel %vm3490, %v4339, 0
  %v5311 = vsel %vm3490, %v4364, 0
  %v5314 = vsel %vm3490, %v4389, 0
  %v5317 = vsel %vm3490, %v4414, 0
  %v5320 = vsel %vm3490, %v4439, 0
  %v5323 = vsel %vm3490, %v4464, 0
  %v5326 = vsel %vm3490, %v4489, 0
  %v5329 = vsel %vm3490, %v4514, 0
  %v5332 = vsel %vm3490, %v4539, 0
  %v5335 = vsel %vm3490, %v4564, 0
  %v5338 = vsel %vm3490, %v4589, 0
  %v5341 = vsel %vm3490, %v4614, 0
  %v5344 = vsel %vm3490, %v4639, 0
  %v5347 = vsel %vm3490, %v4664, 0
  %v5350 = vsel %vm3490, %v4689, 0
  %v5353 = vsel %vm3490, %v4714, 0
  %v5356 = vsel %vm3490, %v4739, 0
  %v5359 = vsel %vm3490, %v4764, 0
  %v5362 = vsel %vm3490, %v4789, 0
  %v5365 = vsel %vm3490, %v4814, 0
  %v5368 = vsel %vm3490, %v4839, 0
  %v5371 = vsel %vm3490, %v4864, 0
  %v5374 = vsel %vm3490, %v4889, 0
  %v5377 = vsel %vm3490, %v4914, 0
  %v5380 = vsel %vm3490, %v4939, 0
  %v5383 = vsel %vm3490, %v4964, 0
  %v5386 = vsel %vm3490, %v4989, 0
  %v5389 = vsel %vm3490, %v5014, 0
  %v5392 = vsel %vm3490, %v5039, 0
  %v5395 = vsel %vm3490, %v5064, 0
  %v5398 = vsel %vm3490, %v5089, 0
  %v5401 = vsel %vm3490, %v5088, 0
  %5403 = vmatpush.bf16.msra.mxu0 %v5251
  %5404 = vmatpush.bf16.msra.mxu0 %v5250
  %5405 = vmatpush.bf16.msra.mxu0 %v5249
  %5406 = vmatpush.bf16.msra.mxu0 %v5248
  %5407 = vmatpush.bf16.msra.mxu0 %v5247
  %5408 = vmatpush.bf16.msra.mxu0 %v5246
  %5409 = vmatpush.bf16.msra.mxu0 %v5245
  %5410 = vmatpush.bf16.msra.mxu0 %v5244
  %5411 = vmatmul.bf16.gmra.mxu0 %v4082
  %v5412 = vpop.f32.mrf.mxu0
  %v5413 = vadd.f32 %v4065, %v5412
  %v5414 = vpop.f32.mrf.mxu0
  %v5415 = vadd.f32 %v4065, %v5414
  %5416 = vmatmul.bf16.gmra.mxu0 %v4122
  %v5417 = vpop.f32.mrf.mxu0
  %v5418 = vadd.f32 %v4065, %v5417
  %v5419 = vpop.f32.mrf.mxu0
  %v5420 = vadd.f32 %v4065, %v5419
  %5421 = vmatmul.bf16.gmra.mxu0 %v4147
  %v5422 = vpop.f32.mrf.mxu0
  %v5423 = vadd.f32 %v4065, %v5422
  %v5424 = vpop.f32.mrf.mxu0
  %v5425 = vadd.f32 %v4065, %v5424
  %5426 = vmatmul.bf16.gmra.mxu0 %v4172
  %v5427 = vpop.f32.mrf.mxu0
  %v5428 = vadd.f32 %v4065, %v5427
  %v5429 = vpop.f32.mrf.mxu0
  %v5430 = vadd.f32 %v4065, %v5429
  %5431 = vmatmul.bf16.gmra.mxu0 %v4197
  %v5432 = vpop.f32.mrf.mxu0
  %v5433 = vadd.f32 %v4065, %v5432
  %v5434 = vpop.f32.mrf.mxu0
  %v5435 = vadd.f32 %v4065, %v5434
  %5436 = vmatmul.bf16.gmra.mxu0 %v4222
  %v5437 = vpop.f32.mrf.mxu0
  %v5438 = vadd.f32 %v4065, %v5437
  %v5439 = vpop.f32.mrf.mxu0
  %v5440 = vadd.f32 %v4065, %v5439
  %5441 = vmatmul.bf16.gmra.mxu0 %v4247
  %v5442 = vpop.f32.mrf.mxu0
  %v5443 = vadd.f32 %v4065, %v5442
  %v5444 = vpop.f32.mrf.mxu0
  %v5445 = vadd.f32 %v4065, %v5444
  %5446 = vmatmul.bf16.gmra.mxu0 %v4272
  %v5447 = vpop.f32.mrf.mxu0
  %v5448 = vadd.f32 %v4065, %v5447
  %v5449 = vpop.f32.mrf.mxu0
  %v5450 = vadd.f32 %v4065, %v5449
  %5451 = vmatmul.bf16.gmra.mxu0 %v4297
  %v5452 = vpop.f32.mrf.mxu0
  %v5453 = vadd.f32 %v4065, %v5452
  %v5454 = vpop.f32.mrf.mxu0
  %v5455 = vadd.f32 %v4065, %v5454
  %5456 = vmatmul.bf16.gmra.mxu0 %v4322
  %v5457 = vpop.f32.mrf.mxu0
  %v5458 = vadd.f32 %v4065, %v5457
  %v5459 = vpop.f32.mrf.mxu0
  %v5460 = vadd.f32 %v4065, %v5459
  %5461 = vmatmul.bf16.gmra.mxu0 %v4347
  %v5462 = vpop.f32.mrf.mxu0
  %v5463 = vadd.f32 %v4065, %v5462
  %v5464 = vpop.f32.mrf.mxu0
  %v5465 = vadd.f32 %v4065, %v5464
  %5466 = vmatmul.bf16.gmra.mxu0 %v4372
  %v5467 = vpop.f32.mrf.mxu0
  %v5468 = vadd.f32 %v4065, %v5467
  %v5469 = vpop.f32.mrf.mxu0
  %v5470 = vadd.f32 %v4065, %v5469
  %5471 = vmatmul.bf16.gmra.mxu0 %v4397
  %v5472 = vpop.f32.mrf.mxu0
  %v5473 = vadd.f32 %v4065, %v5472
  %v5474 = vpop.f32.mrf.mxu0
  %v5475 = vadd.f32 %v4065, %v5474
  %5476 = vmatmul.bf16.gmra.mxu0 %v4422
  %v5477 = vpop.f32.mrf.mxu0
  %v5478 = vadd.f32 %v4065, %v5477
  %v5479 = vpop.f32.mrf.mxu0
  %v5480 = vadd.f32 %v4065, %v5479
  %5481 = vmatmul.bf16.gmra.mxu0 %v4447
  %v5482 = vpop.f32.mrf.mxu0
  %v5483 = vadd.f32 %v4065, %v5482
  %v5484 = vpop.f32.mrf.mxu0
  %v5485 = vadd.f32 %v4065, %v5484
  %5486 = vmatmul.bf16.gmra.mxu0 %v4472
  %v5487 = vpop.f32.mrf.mxu0
  %v5488 = vadd.f32 %v4065, %v5487
  %v5489 = vpop.f32.mrf.mxu0
  %v5490 = vadd.f32 %v4065, %v5489
  %5491 = vmatmul.bf16.gmra.mxu0 %v4497
  %v5492 = vpop.f32.mrf.mxu0
  %v5493 = vadd.f32 %v4065, %v5492
  %v5494 = vpop.f32.mrf.mxu0
  %v5495 = vadd.f32 %v4065, %v5494
  %5496 = vmatmul.bf16.gmra.mxu0 %v4522
  %v5497 = vpop.f32.mrf.mxu0
  %v5498 = vadd.f32 %v4065, %v5497
  %v5499 = vpop.f32.mrf.mxu0
  %v5500 = vadd.f32 %v4065, %v5499
  %5501 = vmatmul.bf16.gmra.mxu0 %v4547
  %v5502 = vpop.f32.mrf.mxu0
  %v5503 = vadd.f32 %v4065, %v5502
  %v5504 = vpop.f32.mrf.mxu0
  %v5505 = vadd.f32 %v4065, %v5504
  %5506 = vmatmul.bf16.gmra.mxu0 %v4572
  %v5507 = vpop.f32.mrf.mxu0
  %v5508 = vadd.f32 %v4065, %v5507
  %v5509 = vpop.f32.mrf.mxu0
  %v5510 = vadd.f32 %v4065, %v5509
  %5511 = vmatmul.bf16.gmra.mxu0 %v4597
  %v5512 = vpop.f32.mrf.mxu0
  %v5513 = vadd.f32 %v4065, %v5512
  %v5514 = vpop.f32.mrf.mxu0
  %v5515 = vadd.f32 %v4065, %v5514
  %5516 = vmatmul.bf16.gmra.mxu0 %v4622
  %v5517 = vpop.f32.mrf.mxu0
  %v5518 = vadd.f32 %v4065, %v5517
  %v5519 = vpop.f32.mrf.mxu0
  %v5520 = vadd.f32 %v4065, %v5519
  %5521 = vmatmul.bf16.gmra.mxu0 %v4647
  %v5522 = vpop.f32.mrf.mxu0
  %v5523 = vadd.f32 %v4065, %v5522
  %v5524 = vpop.f32.mrf.mxu0
  %v5525 = vadd.f32 %v4065, %v5524
  %5526 = vmatmul.bf16.gmra.mxu0 %v4672
  %v5527 = vpop.f32.mrf.mxu0
  %v5528 = vadd.f32 %v4065, %v5527
  %v5529 = vpop.f32.mrf.mxu0
  %v5530 = vadd.f32 %v4065, %v5529
  %5531 = vmatmul.bf16.gmra.mxu0 %v4697
  %v5532 = vpop.f32.mrf.mxu0
  %v5533 = vadd.f32 %v4065, %v5532
  %v5534 = vpop.f32.mrf.mxu0
  %v5535 = vadd.f32 %v4065, %v5534
  %5536 = vmatmul.bf16.gmra.mxu0 %v4722
  %v5537 = vpop.f32.mrf.mxu0
  %v5538 = vadd.f32 %v4065, %v5537
  %v5539 = vpop.f32.mrf.mxu0
  %v5540 = vadd.f32 %v4065, %v5539
  %5541 = vmatmul.bf16.gmra.mxu0 %v4747
  %v5542 = vpop.f32.mrf.mxu0
  %v5543 = vadd.f32 %v4065, %v5542
  %v5544 = vpop.f32.mrf.mxu0
  %v5545 = vadd.f32 %v4065, %v5544
  %5546 = vmatmul.bf16.gmra.mxu0 %v4772
  %v5547 = vpop.f32.mrf.mxu0
  %v5548 = vadd.f32 %v4065, %v5547
  %v5549 = vpop.f32.mrf.mxu0
  %v5550 = vadd.f32 %v4065, %v5549
  %5551 = vmatmul.bf16.gmra.mxu0 %v4797
  %v5552 = vpop.f32.mrf.mxu0
  %v5553 = vadd.f32 %v4065, %v5552
  %v5554 = vpop.f32.mrf.mxu0
  %v5555 = vadd.f32 %v4065, %v5554
  %5556 = vmatmul.bf16.gmra.mxu0 %v4822
  %v5557 = vpop.f32.mrf.mxu0
  %v5558 = vadd.f32 %v4065, %v5557
  %v5559 = vpop.f32.mrf.mxu0
  %v5560 = vadd.f32 %v4065, %v5559
  %5561 = vmatmul.bf16.gmra.mxu0 %v4847
  %v5562 = vpop.f32.mrf.mxu0
  %v5563 = vadd.f32 %v4065, %v5562
  %v5564 = vpop.f32.mrf.mxu0
  %v5565 = vadd.f32 %v4065, %v5564
  %5566 = vmatmul.bf16.gmra.mxu0 %v4872
  %v5567 = vpop.f32.mrf.mxu0
  %v5568 = vadd.f32 %v4065, %v5567
  %v5569 = vpop.f32.mrf.mxu0
  %v5570 = vadd.f32 %v4065, %v5569
  %5571 = vmatmul.bf16.gmra.mxu0 %v4897
  %v5572 = vpop.f32.mrf.mxu0
  %v5573 = vadd.f32 %v4065, %v5572
  %v5574 = vpop.f32.mrf.mxu0
  %v5575 = vadd.f32 %v4065, %v5574
  %5576 = vmatmul.bf16.gmra.mxu0 %v4922
  %v5577 = vpop.f32.mrf.mxu0
  %v5578 = vadd.f32 %v4065, %v5577
  %v5579 = vpop.f32.mrf.mxu0
  %v5580 = vadd.f32 %v4065, %v5579
  %5581 = vmatmul.bf16.gmra.mxu0 %v4947
  %v5582 = vpop.f32.mrf.mxu0
  %v5583 = vadd.f32 %v4065, %v5582
  %v5584 = vpop.f32.mrf.mxu0
  %v5585 = vadd.f32 %v4065, %v5584
  %5586 = vmatmul.bf16.gmra.mxu0 %v4972
  %v5587 = vpop.f32.mrf.mxu0
  %v5588 = vadd.f32 %v4065, %v5587
  %v5589 = vpop.f32.mrf.mxu0
  %v5590 = vadd.f32 %v4065, %v5589
  %5591 = vmatmul.bf16.gmra.mxu0 %v4997
  %v5592 = vpop.f32.mrf.mxu0
  %v5593 = vadd.f32 %v4065, %v5592
  %v5594 = vpop.f32.mrf.mxu0
  %v5595 = vadd.f32 %v4065, %v5594
  %5596 = vmatmul.bf16.gmra.mxu0 %v5022
  %v5597 = vpop.f32.mrf.mxu0
  %v5598 = vadd.f32 %v4065, %v5597
  %v5599 = vpop.f32.mrf.mxu0
  %v5600 = vadd.f32 %v4065, %v5599
  %5601 = vmatmul.bf16.gmra.mxu0 %v5047
  %v5602 = vpop.f32.mrf.mxu0
  %v5603 = vadd.f32 %v4065, %v5602
  %v5604 = vpop.f32.mrf.mxu0
  %v5605 = vadd.f32 %v4065, %v5604
  %5606 = vmatmul.bf16.gmra.mxu0 %v5072
  %v5607 = vpop.f32.mrf.mxu0
  %v5608 = vadd.f32 %v4065, %v5607
  %v5609 = vpop.f32.mrf.mxu0
  %v5610 = vadd.f32 %v4065, %v5609
  %5611 = vmatmul.bf16.gmra.mxu0 %v5071
  %v5612 = vpop.f32.mrf.mxu0
  %v5613 = vadd.f32 %v4065, %v5612
  %v5614 = vpop.f32.mrf.mxu0
  %5615 = vdwg.mxu0
  %5616 = vmatpush.bf16.msra.mxu0 %v5259
  %5617 = vmatpush.bf16.msra.mxu0 %v5258
  %5618 = vmatpush.bf16.msra.mxu0 %v5257
  %5619 = vmatpush.bf16.msra.mxu0 %v5256
  %5620 = vmatpush.bf16.msra.mxu0 %v5255
  %5621 = vmatpush.bf16.msra.mxu0 %v5254
  %5622 = vmatpush.bf16.msra.mxu0 %v5253
  %5623 = vmatpush.bf16.msra.mxu0 %v5252
  %5624 = vmatmul.bf16.gmra.mxu0 %v4097
  %v5625 = vpop.f32.mrf.mxu0
  %v5626 = vadd.f32 %v5413, %v5625
  %v5627 = vpop.f32.mrf.mxu0
  %v5628 = vadd.f32 %v5415, %v5627
  %5629 = vmatmul.bf16.gmra.mxu0 %v4130
  %v5630 = vpop.f32.mrf.mxu0
  %v5631 = vadd.f32 %v5418, %v5630
  %v5632 = vpop.f32.mrf.mxu0
  %v5633 = vadd.f32 %v5420, %v5632
  %5634 = vmatmul.bf16.gmra.mxu0 %v4155
  %v5635 = vpop.f32.mrf.mxu0
  %v5636 = vadd.f32 %v5423, %v5635
  %v5637 = vpop.f32.mrf.mxu0
  %v5638 = vadd.f32 %v5425, %v5637
  %5639 = vmatmul.bf16.gmra.mxu0 %v4180
  %v5640 = vpop.f32.mrf.mxu0
  %v5641 = vadd.f32 %v5428, %v5640
  %v5642 = vpop.f32.mrf.mxu0
  %v5643 = vadd.f32 %v5430, %v5642
  %5644 = vmatmul.bf16.gmra.mxu0 %v4205
  %v5645 = vpop.f32.mrf.mxu0
  %v5646 = vadd.f32 %v5433, %v5645
  %v5647 = vpop.f32.mrf.mxu0
  %v5648 = vadd.f32 %v5435, %v5647
  %5649 = vmatmul.bf16.gmra.mxu0 %v4230
  %v5650 = vpop.f32.mrf.mxu0
  %v5651 = vadd.f32 %v5438, %v5650
  %v5652 = vpop.f32.mrf.mxu0
  %v5653 = vadd.f32 %v5440, %v5652
  %5654 = vmatmul.bf16.gmra.mxu0 %v4255
  %v5655 = vpop.f32.mrf.mxu0
  %v5656 = vadd.f32 %v5443, %v5655
  %v5657 = vpop.f32.mrf.mxu0
  %v5658 = vadd.f32 %v5445, %v5657
  %5659 = vmatmul.bf16.gmra.mxu0 %v4280
  %v5660 = vpop.f32.mrf.mxu0
  %v5661 = vadd.f32 %v5448, %v5660
  %v5662 = vpop.f32.mrf.mxu0
  %v5663 = vadd.f32 %v5450, %v5662
  %5664 = vmatmul.bf16.gmra.mxu0 %v4305
  %v5665 = vpop.f32.mrf.mxu0
  %v5666 = vadd.f32 %v5453, %v5665
  %v5667 = vpop.f32.mrf.mxu0
  %v5668 = vadd.f32 %v5455, %v5667
  %5669 = vmatmul.bf16.gmra.mxu0 %v4330
  %v5670 = vpop.f32.mrf.mxu0
  %v5671 = vadd.f32 %v5458, %v5670
  %v5672 = vpop.f32.mrf.mxu0
  %v5673 = vadd.f32 %v5460, %v5672
  %5674 = vmatmul.bf16.gmra.mxu0 %v4355
  %v5675 = vpop.f32.mrf.mxu0
  %v5676 = vadd.f32 %v5463, %v5675
  %v5677 = vpop.f32.mrf.mxu0
  %v5678 = vadd.f32 %v5465, %v5677
  %5679 = vmatmul.bf16.gmra.mxu0 %v4380
  %v5680 = vpop.f32.mrf.mxu0
  %v5681 = vadd.f32 %v5468, %v5680
  %v5682 = vpop.f32.mrf.mxu0
  %v5683 = vadd.f32 %v5470, %v5682
  %5684 = vmatmul.bf16.gmra.mxu0 %v4405
  %v5685 = vpop.f32.mrf.mxu0
  %v5686 = vadd.f32 %v5473, %v5685
  %v5687 = vpop.f32.mrf.mxu0
  %v5688 = vadd.f32 %v5475, %v5687
  %5689 = vmatmul.bf16.gmra.mxu0 %v4430
  %v5690 = vpop.f32.mrf.mxu0
  %v5691 = vadd.f32 %v5478, %v5690
  %v5692 = vpop.f32.mrf.mxu0
  %v5693 = vadd.f32 %v5480, %v5692
  %5694 = vmatmul.bf16.gmra.mxu0 %v4455
  %v5695 = vpop.f32.mrf.mxu0
  %v5696 = vadd.f32 %v5483, %v5695
  %v5697 = vpop.f32.mrf.mxu0
  %v5698 = vadd.f32 %v5485, %v5697
  %5699 = vmatmul.bf16.gmra.mxu0 %v4480
  %v5700 = vpop.f32.mrf.mxu0
  %v5701 = vadd.f32 %v5488, %v5700
  %v5702 = vpop.f32.mrf.mxu0
  %v5703 = vadd.f32 %v5490, %v5702
  %5704 = vmatmul.bf16.gmra.mxu0 %v4505
  %v5705 = vpop.f32.mrf.mxu0
  %v5706 = vadd.f32 %v5493, %v5705
  %v5707 = vpop.f32.mrf.mxu0
  %v5708 = vadd.f32 %v5495, %v5707
  %5709 = vmatmul.bf16.gmra.mxu0 %v4530
  %v5710 = vpop.f32.mrf.mxu0
  %v5711 = vadd.f32 %v5498, %v5710
  %v5712 = vpop.f32.mrf.mxu0
  %v5713 = vadd.f32 %v5500, %v5712
  %5714 = vmatmul.bf16.gmra.mxu0 %v4555
  %v5715 = vpop.f32.mrf.mxu0
  %v5716 = vadd.f32 %v5503, %v5715
  %v5717 = vpop.f32.mrf.mxu0
  %v5718 = vadd.f32 %v5505, %v5717
  %5719 = vmatmul.bf16.gmra.mxu0 %v4580
  %v5720 = vpop.f32.mrf.mxu0
  %v5721 = vadd.f32 %v5508, %v5720
  %v5722 = vpop.f32.mrf.mxu0
  %v5723 = vadd.f32 %v5510, %v5722
  %5724 = vmatmul.bf16.gmra.mxu0 %v4605
  %v5725 = vpop.f32.mrf.mxu0
  %v5726 = vadd.f32 %v5513, %v5725
  %v5727 = vpop.f32.mrf.mxu0
  %v5728 = vadd.f32 %v5515, %v5727
  %5729 = vmatmul.bf16.gmra.mxu0 %v4630
  %v5730 = vpop.f32.mrf.mxu0
  %v5731 = vadd.f32 %v5518, %v5730
  %v5732 = vpop.f32.mrf.mxu0
  %v5733 = vadd.f32 %v5520, %v5732
  %5734 = vmatmul.bf16.gmra.mxu0 %v4655
  %v5735 = vpop.f32.mrf.mxu0
  %v5736 = vadd.f32 %v5523, %v5735
  %v5737 = vpop.f32.mrf.mxu0
  %v5738 = vadd.f32 %v5525, %v5737
  %5739 = vmatmul.bf16.gmra.mxu0 %v4680
  %v5740 = vpop.f32.mrf.mxu0
  %v5741 = vadd.f32 %v5528, %v5740
  %v5742 = vpop.f32.mrf.mxu0
  %v5743 = vadd.f32 %v5530, %v5742
  %5744 = vmatmul.bf16.gmra.mxu0 %v4705
  %v5745 = vpop.f32.mrf.mxu0
  %v5746 = vadd.f32 %v5533, %v5745
  %v5747 = vpop.f32.mrf.mxu0
  %v5748 = vadd.f32 %v5535, %v5747
  %5749 = vmatmul.bf16.gmra.mxu0 %v4730
  %v5750 = vpop.f32.mrf.mxu0
  %v5751 = vadd.f32 %v5538, %v5750
  %v5752 = vpop.f32.mrf.mxu0
  %v5753 = vadd.f32 %v5540, %v5752
  %5754 = vmatmul.bf16.gmra.mxu0 %v4755
  %v5755 = vpop.f32.mrf.mxu0
  %v5756 = vadd.f32 %v5543, %v5755
  %v5757 = vpop.f32.mrf.mxu0
  %v5758 = vadd.f32 %v5545, %v5757
  %5759 = vmatmul.bf16.gmra.mxu0 %v4780
  %v5760 = vpop.f32.mrf.mxu0
  %v5761 = vadd.f32 %v5548, %v5760
  %v5762 = vpop.f32.mrf.mxu0
  %v5763 = vadd.f32 %v5550, %v5762
  %5764 = vmatmul.bf16.gmra.mxu0 %v4805
  %v5765 = vpop.f32.mrf.mxu0
  %v5766 = vadd.f32 %v5553, %v5765
  %v5767 = vpop.f32.mrf.mxu0
  %v5768 = vadd.f32 %v5555, %v5767
  %5769 = vmatmul.bf16.gmra.mxu0 %v4830
  %v5770 = vpop.f32.mrf.mxu0
  %v5771 = vadd.f32 %v5558, %v5770
  %v5772 = vpop.f32.mrf.mxu0
  %v5773 = vadd.f32 %v5560, %v5772
  %5774 = vmatmul.bf16.gmra.mxu0 %v4855
  %v5775 = vpop.f32.mrf.mxu0
  %v5776 = vadd.f32 %v5563, %v5775
  %v5777 = vpop.f32.mrf.mxu0
  %v5778 = vadd.f32 %v5565, %v5777
  %5779 = vmatmul.bf16.gmra.mxu0 %v4880
  %v5780 = vpop.f32.mrf.mxu0
  %v5781 = vadd.f32 %v5568, %v5780
  %v5782 = vpop.f32.mrf.mxu0
  %v5783 = vadd.f32 %v5570, %v5782
  %5784 = vmatmul.bf16.gmra.mxu0 %v4905
  %v5785 = vpop.f32.mrf.mxu0
  %v5786 = vadd.f32 %v5573, %v5785
  %v5787 = vpop.f32.mrf.mxu0
  %v5788 = vadd.f32 %v5575, %v5787
  %5789 = vmatmul.bf16.gmra.mxu0 %v4930
  %v5790 = vpop.f32.mrf.mxu0
  %v5791 = vadd.f32 %v5578, %v5790
  %v5792 = vpop.f32.mrf.mxu0
  %v5793 = vadd.f32 %v5580, %v5792
  %5794 = vmatmul.bf16.gmra.mxu0 %v4955
  %v5795 = vpop.f32.mrf.mxu0
  %v5796 = vadd.f32 %v5583, %v5795
  %v5797 = vpop.f32.mrf.mxu0
  %v5798 = vadd.f32 %v5585, %v5797
  %5799 = vmatmul.bf16.gmra.mxu0 %v4980
  %v5800 = vpop.f32.mrf.mxu0
  %v5801 = vadd.f32 %v5588, %v5800
  %v5802 = vpop.f32.mrf.mxu0
  %v5803 = vadd.f32 %v5590, %v5802
  %5804 = vmatmul.bf16.gmra.mxu0 %v5005
  %v5805 = vpop.f32.mrf.mxu0
  %v5806 = vadd.f32 %v5593, %v5805
  %v5807 = vpop.f32.mrf.mxu0
  %v5808 = vadd.f32 %v5595, %v5807
  %5809 = vmatmul.bf16.gmra.mxu0 %v5030
  %v5810 = vpop.f32.mrf.mxu0
  %v5811 = vadd.f32 %v5598, %v5810
  %v5812 = vpop.f32.mrf.mxu0
  %v5813 = vadd.f32 %v5600, %v5812
  %5814 = vmatmul.bf16.gmra.mxu0 %v5055
  %v5815 = vpop.f32.mrf.mxu0
  %v5816 = vadd.f32 %v5603, %v5815
  %v5817 = vpop.f32.mrf.mxu0
  %v5818 = vadd.f32 %v5605, %v5817
  %5819 = vmatmul.bf16.gmra.mxu0 %v5080
  %v5820 = vpop.f32.mrf.mxu0
  %v5821 = vadd.f32 %v5608, %v5820
  %v5822 = vpop.f32.mrf.mxu0
  %v5823 = vadd.f32 %v5610, %v5822
  %5824 = vmatmul.bf16.gmra.mxu0 %v5079
  %v5825 = vpop.f32.mrf.mxu0
  %v5826 = vadd.f32 %v5613, %v5825
  %v5827 = vpop.f32.mrf.mxu0
  %5828 = vdwg.mxu0
  %5829 = vmatpush.bf16.msra.mxu0 0
  %5830 = vmatpush.bf16.msra.mxu0 0
  %5831 = vmatpush.bf16.msra.mxu0 0
  %5832 = vmatpush.bf16.msra.mxu0 0
  %5833 = vmatpush.bf16.msra.mxu0 0
  %5834 = vmatpush.bf16.msra.mxu0 0
  %5835 = vmatpush.bf16.msra.mxu0 %v5261
  %5836 = vmatpush.bf16.msra.mxu0 %v5260
  %5837 = vmatmul.bf16.gmra.mxu0 %v5281
  %v5838 = vpop.f32.mrf.mxu0
  %v5839 = vadd.f32 %v5626, %v5838
  %v5840 = vpop.f32.mrf.mxu0
  %v5841 = vadd.f32 %v5628, %v5840
  %5842 = vmatmul.bf16.gmra.mxu0 %v5284
  %v5843 = vpop.f32.mrf.mxu0
  %v5844 = vadd.f32 %v5631, %v5843
  %v5845 = vpop.f32.mrf.mxu0
  %v5846 = vadd.f32 %v5633, %v5845
  %5847 = vmatmul.bf16.gmra.mxu0 %v5287
  %v5848 = vpop.f32.mrf.mxu0
  %v5849 = vadd.f32 %v5636, %v5848
  %v5850 = vpop.f32.mrf.mxu0
  %v5851 = vadd.f32 %v5638, %v5850
  %5852 = vmatmul.bf16.gmra.mxu0 %v5290
  %v5853 = vpop.f32.mrf.mxu0
  %v5854 = vadd.f32 %v5641, %v5853
  %v5855 = vpop.f32.mrf.mxu0
  %v5856 = vadd.f32 %v5643, %v5855
  %5857 = vmatmul.bf16.gmra.mxu0 %v5293
  %v5858 = vpop.f32.mrf.mxu0
  %v5859 = vadd.f32 %v5646, %v5858
  %v5860 = vpop.f32.mrf.mxu0
  %v5861 = vadd.f32 %v5648, %v5860
  %5862 = vmatmul.bf16.gmra.mxu0 %v5296
  %v5863 = vpop.f32.mrf.mxu0
  %v5864 = vadd.f32 %v5651, %v5863
  %v5865 = vpop.f32.mrf.mxu0
  %v5866 = vadd.f32 %v5653, %v5865
  %5867 = vmatmul.bf16.gmra.mxu0 %v5299
  %v5868 = vpop.f32.mrf.mxu0
  %v5869 = vadd.f32 %v5656, %v5868
  %v5870 = vpop.f32.mrf.mxu0
  %v5871 = vadd.f32 %v5658, %v5870
  %5872 = vmatmul.bf16.gmra.mxu0 %v5302
  %v5873 = vpop.f32.mrf.mxu0
  %v5874 = vadd.f32 %v5661, %v5873
  %v5875 = vpop.f32.mrf.mxu0
  %v5876 = vadd.f32 %v5663, %v5875
  %5877 = vmatmul.bf16.gmra.mxu0 %v5305
  %v5878 = vpop.f32.mrf.mxu0
  %v5879 = vadd.f32 %v5666, %v5878
  %v5880 = vpop.f32.mrf.mxu0
  %v5881 = vadd.f32 %v5668, %v5880
  %5882 = vmatmul.bf16.gmra.mxu0 %v5308
  %v5883 = vpop.f32.mrf.mxu0
  %v5884 = vadd.f32 %v5671, %v5883
  %v5885 = vpop.f32.mrf.mxu0
  %v5886 = vadd.f32 %v5673, %v5885
  %5887 = vmatmul.bf16.gmra.mxu0 %v5311
  %v5888 = vpop.f32.mrf.mxu0
  %v5889 = vadd.f32 %v5676, %v5888
  %v5890 = vpop.f32.mrf.mxu0
  %v5891 = vadd.f32 %v5678, %v5890
  %5892 = vmatmul.bf16.gmra.mxu0 %v5314
  %v5893 = vpop.f32.mrf.mxu0
  %v5894 = vadd.f32 %v5681, %v5893
  %v5895 = vpop.f32.mrf.mxu0
  %v5896 = vadd.f32 %v5683, %v5895
  %5897 = vmatmul.bf16.gmra.mxu0 %v5317
  %v5898 = vpop.f32.mrf.mxu0
  %v5899 = vadd.f32 %v5686, %v5898
  %v5900 = vpop.f32.mrf.mxu0
  %v5901 = vadd.f32 %v5688, %v5900
  %5902 = vmatmul.bf16.gmra.mxu0 %v5320
  %v5903 = vpop.f32.mrf.mxu0
  %v5904 = vadd.f32 %v5691, %v5903
  %v5905 = vpop.f32.mrf.mxu0
  %v5906 = vadd.f32 %v5693, %v5905
  %5907 = vmatmul.bf16.gmra.mxu0 %v5323
  %v5908 = vpop.f32.mrf.mxu0
  %v5909 = vadd.f32 %v5696, %v5908
  %v5910 = vpop.f32.mrf.mxu0
  %v5911 = vadd.f32 %v5698, %v5910
  %5912 = vmatmul.bf16.gmra.mxu0 %v5326
  %v5913 = vpop.f32.mrf.mxu0
  %v5914 = vadd.f32 %v5701, %v5913
  %v5915 = vpop.f32.mrf.mxu0
  %v5916 = vadd.f32 %v5703, %v5915
  %5917 = vmatmul.bf16.gmra.mxu0 %v5329
  %v5918 = vpop.f32.mrf.mxu0
  %v5919 = vadd.f32 %v5706, %v5918
  %v5920 = vpop.f32.mrf.mxu0
  %v5921 = vadd.f32 %v5708, %v5920
  %5922 = vmatmul.bf16.gmra.mxu0 %v5332
  %v5923 = vpop.f32.mrf.mxu0
  %v5924 = vadd.f32 %v5711, %v5923
  %v5925 = vpop.f32.mrf.mxu0
  %v5926 = vadd.f32 %v5713, %v5925
  %5927 = vmatmul.bf16.gmra.mxu0 %v5335
  %v5928 = vpop.f32.mrf.mxu0
  %v5929 = vadd.f32 %v5716, %v5928
  %v5930 = vpop.f32.mrf.mxu0
  %v5931 = vadd.f32 %v5718, %v5930
  %5932 = vmatmul.bf16.gmra.mxu0 %v5338
  %v5933 = vpop.f32.mrf.mxu0
  %v5934 = vadd.f32 %v5721, %v5933
  %v5935 = vpop.f32.mrf.mxu0
  %v5936 = vadd.f32 %v5723, %v5935
  %5937 = vmatmul.bf16.gmra.mxu0 %v5341
  %v5938 = vpop.f32.mrf.mxu0
  %v5939 = vadd.f32 %v5726, %v5938
  %v5940 = vpop.f32.mrf.mxu0
  %v5941 = vadd.f32 %v5728, %v5940
  %5942 = vmatmul.bf16.gmra.mxu0 %v5344
  %v5943 = vpop.f32.mrf.mxu0
  %v5944 = vadd.f32 %v5731, %v5943
  %v5945 = vpop.f32.mrf.mxu0
  %v5946 = vadd.f32 %v5733, %v5945
  %5947 = vmatmul.bf16.gmra.mxu0 %v5347
  %v5948 = vpop.f32.mrf.mxu0
  %v5949 = vadd.f32 %v5736, %v5948
  %v5950 = vpop.f32.mrf.mxu0
  %v5951 = vadd.f32 %v5738, %v5950
  %5952 = vmatmul.bf16.gmra.mxu0 %v5350
  %v5953 = vpop.f32.mrf.mxu0
  %v5954 = vadd.f32 %v5741, %v5953
  %v5955 = vpop.f32.mrf.mxu0
  %v5956 = vadd.f32 %v5743, %v5955
  %5957 = vmatmul.bf16.gmra.mxu0 %v5353
  %v5958 = vpop.f32.mrf.mxu0
  %v5959 = vadd.f32 %v5746, %v5958
  %v5960 = vpop.f32.mrf.mxu0
  %v5961 = vadd.f32 %v5748, %v5960
  %5962 = vmatmul.bf16.gmra.mxu0 %v5356
  %v5963 = vpop.f32.mrf.mxu0
  %v5964 = vadd.f32 %v5751, %v5963
  %v5965 = vpop.f32.mrf.mxu0
  %v5966 = vadd.f32 %v5753, %v5965
  %5967 = vmatmul.bf16.gmra.mxu0 %v5359
  %v5968 = vpop.f32.mrf.mxu0
  %v5969 = vadd.f32 %v5756, %v5968
  %v5970 = vpop.f32.mrf.mxu0
  %v5971 = vadd.f32 %v5758, %v5970
  %5972 = vmatmul.bf16.gmra.mxu0 %v5362
  %v5973 = vpop.f32.mrf.mxu0
  %v5974 = vadd.f32 %v5761, %v5973
  %v5975 = vpop.f32.mrf.mxu0
  %v5976 = vadd.f32 %v5763, %v5975
  %5977 = vmatmul.bf16.gmra.mxu0 %v5365
  %v5978 = vpop.f32.mrf.mxu0
  %v5979 = vadd.f32 %v5766, %v5978
  %v5980 = vpop.f32.mrf.mxu0
  %v5981 = vadd.f32 %v5768, %v5980
  %5982 = vmatmul.bf16.gmra.mxu0 %v5368
  %v5983 = vpop.f32.mrf.mxu0
  %v5984 = vadd.f32 %v5771, %v5983
  %v5985 = vpop.f32.mrf.mxu0
  %v5986 = vadd.f32 %v5773, %v5985
  %5987 = vmatmul.bf16.gmra.mxu0 %v5371
  %v5988 = vpop.f32.mrf.mxu0
  %v5989 = vadd.f32 %v5776, %v5988
  %v5990 = vpop.f32.mrf.mxu0
  %v5991 = vadd.f32 %v5778, %v5990
  %5992 = vmatmul.bf16.gmra.mxu0 %v5374
  %v5993 = vpop.f32.mrf.mxu0
  %v5994 = vadd.f32 %v5781, %v5993
  %v5995 = vpop.f32.mrf.mxu0
  %v5996 = vadd.f32 %v5783, %v5995
  %5997 = vmatmul.bf16.gmra.mxu0 %v5377
  %v5998 = vpop.f32.mrf.mxu0
  %v5999 = vadd.f32 %v5786, %v5998
  %v6000 = vpop.f32.mrf.mxu0
  %v6001 = vadd.f32 %v5788, %v6000
  %6002 = vmatmul.bf16.gmra.mxu0 %v5380
  %v6003 = vpop.f32.mrf.mxu0
  %v6004 = vadd.f32 %v5791, %v6003
  %v6005 = vpop.f32.mrf.mxu0
  %v6006 = vadd.f32 %v5793, %v6005
  %6007 = vmatmul.bf16.gmra.mxu0 %v5383
  %v6008 = vpop.f32.mrf.mxu0
  %v6009 = vadd.f32 %v5796, %v6008
  %v6010 = vpop.f32.mrf.mxu0
  %v6011 = vadd.f32 %v5798, %v6010
  %6012 = vmatmul.bf16.gmra.mxu0 %v5386
  %v6013 = vpop.f32.mrf.mxu0
  %v6014 = vadd.f32 %v5801, %v6013
  %v6015 = vpop.f32.mrf.mxu0
  %v6016 = vadd.f32 %v5803, %v6015
  %6017 = vmatmul.bf16.gmra.mxu0 %v5389
  %v6018 = vpop.f32.mrf.mxu0
  %v6019 = vadd.f32 %v5806, %v6018
  %v6020 = vpop.f32.mrf.mxu0
  %v6021 = vadd.f32 %v5808, %v6020
  %6022 = vmatmul.bf16.gmra.mxu0 %v5392
  %v6023 = vpop.f32.mrf.mxu0
  %v6024 = vadd.f32 %v5811, %v6023
  %v6025 = vpop.f32.mrf.mxu0
  %v6026 = vadd.f32 %v5813, %v6025
  %6027 = vmatmul.bf16.gmra.mxu0 %v5395
  %v6028 = vpop.f32.mrf.mxu0
  %v6029 = vadd.f32 %v5816, %v6028
  %v6030 = vpop.f32.mrf.mxu0
  %v6031 = vadd.f32 %v5818, %v6030
  %6032 = vmatmul.bf16.gmra.mxu0 %v5398
  %v6033 = vpop.f32.mrf.mxu0
  %v6034 = vadd.f32 %v5821, %v6033
  %v6035 = vpop.f32.mrf.mxu0
  %v6036 = vadd.f32 %v5823, %v6035
  %6037 = vmatmul.bf16.gmra.mxu0 %v5401
  %v6038 = vpop.f32.mrf.mxu0
  %v6039 = vadd.f32 %v5826, %v6038
  %v6040 = vpop.f32.mrf.mxu0
  %6041 = vdwg.mxu0
  %v6042 = vmax.f32 %v5839, 0.0
  %v6043 = vmax.f32 %v5841, 0.0
  %v6044 = vmax.f32 %v5844, 0.0
  %v6045 = vmax.f32 %v5846, 0.0
  %v6046 = vmax.f32 %v5849, 0.0
  %v6047 = vmax.f32 %v5851, 0.0
  %v6048 = vmax.f32 %v5854, 0.0
  %v6049 = vmax.f32 %v5856, 0.0
  %v6050 = vmax.f32 %v5859, 0.0
  %v6051 = vmax.f32 %v5861, 0.0
  %v6052 = vmax.f32 %v5864, 0.0
  %v6053 = vmax.f32 %v5866, 0.0
  %v6054 = vmax.f32 %v5869, 0.0
  %v6055 = vmax.f32 %v5871, 0.0
  %v6056 = vmax.f32 %v5874, 0.0
  %v6057 = vmax.f32 %v5876, 0.0
  %v6058 = vmax.f32 %v5879, 0.0
  %v6059 = vmax.f32 %v5881, 0.0
  %v6060 = vmax.f32 %v5884, 0.0
  %v6061 = vmax.f32 %v5886, 0.0
  %v6062 = vmax.f32 %v5889, 0.0
  %v6063 = vmax.f32 %v5891, 0.0
  %v6064 = vmax.f32 %v5894, 0.0
  %v6065 = vmax.f32 %v5896, 0.0
  %v6066 = vmax.f32 %v5899, 0.0
  %v6067 = vmax.f32 %v5901, 0.0
  %v6068 = vmax.f32 %v5904, 0.0
  %v6069 = vmax.f32 %v5906, 0.0
  %v6070 = vmax.f32 %v5909, 0.0
  %v6071 = vmax.f32 %v5911, 0.0
  %v6072 = vmax.f32 %v5914, 0.0
  %v6073 = vmax.f32 %v5916, 0.0
  %v6074 = vmax.f32 %v5919, 0.0
  %v6075 = vmax.f32 %v5921, 0.0
  %v6076 = vmax.f32 %v5924, 0.0
  %v6077 = vmax.f32 %v5926, 0.0
  %v6078 = vmax.f32 %v5929, 0.0
  %v6079 = vmax.f32 %v5931, 0.0
  %v6080 = vmax.f32 %v5934, 0.0
  %v6081 = vmax.f32 %v5936, 0.0
  %v6082 = vmax.f32 %v5939, 0.0
  %v6083 = vmax.f32 %v5941, 0.0
  %v6084 = vmax.f32 %v5944, 0.0
  %v6085 = vmax.f32 %v5946, 0.0
  %v6086 = vmax.f32 %v5949, 0.0
  %v6087 = vmax.f32 %v5951, 0.0
  %v6088 = vmax.f32 %v5954, 0.0
  %v6089 = vmax.f32 %v5956, 0.0
  %v6090 = vmax.f32 %v5959, 0.0
  %v6091 = vmax.f32 %v5961, 0.0
  %v6092 = vmax.f32 %v5964, 0.0
  %v6093 = vmax.f32 %v5966, 0.0
  %v6094 = vmax.f32 %v5969, 0.0
  %v6095 = vmax.f32 %v5971, 0.0
  %v6096 = vmax.f32 %v5974, 0.0
  %v6097 = vmax.f32 %v5976, 0.0
  %v6098 = vmax.f32 %v5979, 0.0
  %v6099 = vmax.f32 %v5981, 0.0
  %v6100 = vmax.f32 %v5984, 0.0
  %v6101 = vmax.f32 %v5986, 0.0
  %v6102 = vmax.f32 %v5989, 0.0
  %v6103 = vmax.f32 %v5991, 0.0
  %v6104 = vmax.f32 %v5994, 0.0
  %v6105 = vmax.f32 %v5996, 0.0
  %v6106 = vmax.f32 %v5999, 0.0
  %v6107 = vmax.f32 %v6001, 0.0
  %v6108 = vmax.f32 %v6004, 0.0
  %v6109 = vmax.f32 %v6006, 0.0
  %v6110 = vmax.f32 %v6009, 0.0
  %v6111 = vmax.f32 %v6011, 0.0
  %v6112 = vmax.f32 %v6014, 0.0
  %v6113 = vmax.f32 %v6016, 0.0
  %v6114 = vmax.f32 %v6019, 0.0
  %v6115 = vmax.f32 %v6021, 0.0
  %v6116 = vmax.f32 %v6024, 0.0
  %v6117 = vmax.f32 %v6026, 0.0
  %v6118 = vmax.f32 %v6029, 0.0
  %v6119 = vmax.f32 %v6031, 0.0
  %v6120 = vmax.f32 %v6034, 0.0
  %v6121 = vmax.f32 %v6036, 0.0
  %v6122 = vmax.f32 %v6039, 0.0
  %v6123 = vld [vmem:[%s6] sm:$0x1]
  %v6125 = vperm.slane %v6123, 0
  %v6127 = vmul.f32 %v6042, %v6125
  %v6128 = vmul.f32 %v6043, %v6125
  %v6129 = vmul.f32 %v6044, %v6125
  %v6130 = vmul.f32 %v6045, %v6125
  %v6131 = vmul.f32 %v6046, %v6125
  %v6132 = vmul.f32 %v6047, %v6125
  %v6133 = vmul.f32 %v6048, %v6125
  %v6134 = vmul.f32 %v6049, %v6125
  %v6135 = vmul.f32 %v6050, %v6125
  %v6136 = vmul.f32 %v6051, %v6125
  %v6137 = vmul.f32 %v6052, %v6125
  %v6138 = vmul.f32 %v6053, %v6125
  %v6139 = vmul.f32 %v6054, %v6125
  %v6140 = vmul.f32 %v6055, %v6125
  %v6141 = vmul.f32 %v6056, %v6125
  %v6142 = vmul.f32 %v6057, %v6125
  %v6143 = vmul.f32 %v6058, %v6125
  %v6144 = vmul.f32 %v6059, %v6125
  %v6145 = vmul.f32 %v6060, %v6125
  %v6146 = vmul.f32 %v6061, %v6125
  %v6147 = vmul.f32 %v6062, %v6125
  %v6148 = vmul.f32 %v6063, %v6125
  %v6149 = vmul.f32 %v6064, %v6125
  %v6150 = vmul.f32 %v6065, %v6125
  %v6151 = vmul.f32 %v6066, %v6125
  %v6152 = vmul.f32 %v6067, %v6125
  %v6153 = vmul.f32 %v6068, %v6125
  %v6154 = vmul.f32 %v6069, %v6125
  %v6155 = vmul.f32 %v6070, %v6125
  %v6156 = vmul.f32 %v6071, %v6125
  %v6157 = vmul.f32 %v6072, %v6125
  %v6158 = vmul.f32 %v6073, %v6125
  %v6159 = vmul.f32 %v6074, %v6125
  %v6160 = vmul.f32 %v6075, %v6125
  %v6161 = vmul.f32 %v6076, %v6125
  %v6162 = vmul.f32 %v6077, %v6125
  %v6163 = vmul.f32 %v6078, %v6125
  %v6164 = vmul.f32 %v6079, %v6125
  %v6165 = vmul.f32 %v6080, %v6125
  %v6166 = vmul.f32 %v6081, %v6125
  %v6167 = vmul.f32 %v6082, %v6125
  %v6168 = vmul.f32 %v6083, %v6125
  %v6169 = vmul.f32 %v6084, %v6125
  %v6170 = vmul.f32 %v6085, %v6125
  %v6171 = vmul.f32 %v6086, %v6125
  %v6172 = vmul.f32 %v6087, %v6125
  %v6173 = vmul.f32 %v6088, %v6125
  %v6174 = vmul.f32 %v6089, %v6125
  %v6175 = vmul.f32 %v6090, %v6125
  %v6176 = vmul.f32 %v6091, %v6125
  %v6177 = vmul.f32 %v6092, %v6125
  %v6178 = vmul.f32 %v6093, %v6125
  %v6179 = vmul.f32 %v6094, %v6125
  %v6180 = vmul.f32 %v6095, %v6125
  %v6181 = vmul.f32 %v6096, %v6125
  %v6182 = vmul.f32 %v6097, %v6125
  %v6183 = vmul.f32 %v6098, %v6125
  %v6184 = vmul.f32 %v6099, %v6125
  %v6185 = vmul.f32 %v6100, %v6125
  %v6186 = vmul.f32 %v6101, %v6125
  %v6187 = vmul.f32 %v6102, %v6125
  %v6188 = vmul.f32 %v6103, %v6125
  %v6189 = vmul.f32 %v6104, %v6125
  %v6190 = vmul.f32 %v6105, %v6125
  %v6191 = vmul.f32 %v6106, %v6125
  %v6192 = vmul.f32 %v6107, %v6125
  %v6193 = vmul.f32 %v6108, %v6125
  %v6194 = vmul.f32 %v6109, %v6125
  %v6195 = vmul.f32 %v6110, %v6125
  %v6196 = vmul.f32 %v6111, %v6125
  %v6197 = vmul.f32 %v6112, %v6125
  %v6198 = vmul.f32 %v6113, %v6125
  %v6199 = vmul.f32 %v6114, %v6125
  %v6200 = vmul.f32 %v6115, %v6125
  %v6201 = vmul.f32 %v6116, %v6125
  %v6202 = vmul.f32 %v6117, %v6125
  %v6203 = vmul.f32 %v6118, %v6125
  %v6204 = vmul.f32 %v6119, %v6125
  %v6205 = vmul.f32 %v6120, %v6125
  %v6206 = vmul.f32 %v6121, %v6125
  %v6207 = vmul.f32 %v6122, %v6125
  %v6208 = vsel %vm3490, %v6127, 0.0
  %6209 = vadd.xlane.f32.xlu0 %v6208
  %v6210 = vpop.xlane.xlu0 %6209
  %v6211 = vsel %vm3490, %v6128, 0.0
  %6212 = vadd.xlane.f32.xlu0 %v6211
  %v6213 = vpop.xlane.xlu0 %6212
  %v6214 = vsel %vm3490, %v6129, 0.0
  %6215 = vadd.xlane.f32.xlu0 %v6214
  %v6216 = vpop.xlane.xlu0 %6215
  %v6217 = vsel %vm3490, %v6130, 0.0
  %6218 = vadd.xlane.f32.xlu0 %v6217
  %v6219 = vpop.xlane.xlu0 %6218
  %v6220 = vsel %vm3490, %v6131, 0.0
  %6221 = vadd.xlane.f32.xlu0 %v6220
  %v6222 = vpop.xlane.xlu0 %6221
  %v6223 = vsel %vm3490, %v6132, 0.0
  %6224 = vadd.xlane.f32.xlu0 %v6223
  %v6225 = vpop.xlane.xlu0 %6224
  %v6226 = vsel %vm3490, %v6133, 0.0
  %6227 = vadd.xlane.f32.xlu0 %v6226
  %v6228 = vpop.xlane.xlu0 %6227
  %v6229 = vsel %vm3490, %v6134, 0.0
  %6230 = vadd.xlane.f32.xlu0 %v6229
  %v6231 = vpop.xlane.xlu0 %6230
  %v6232 = vsel %vm3490, %v6135, 0.0
  %6233 = vadd.xlane.f32.xlu0 %v6232
  %v6234 = vpop.xlane.xlu0 %6233
  %v6235 = vsel %vm3490, %v6136, 0.0
  %6236 = vadd.xlane.f32.xlu0 %v6235
  %v6237 = vpop.xlane.xlu0 %6236
  %v6238 = vsel %vm3490, %v6137, 0.0
  %6239 = vadd.xlane.f32.xlu0 %v6238
  %v6240 = vpop.xlane.xlu0 %6239
  %v6241 = vsel %vm3490, %v6138, 0.0
  %6242 = vadd.xlane.f32.xlu0 %v6241
  %v6243 = vpop.xlane.xlu0 %6242
  %v6244 = vsel %vm3490, %v6139, 0.0
  %6245 = vadd.xlane.f32.xlu0 %v6244
  %v6246 = vpop.xlane.xlu0 %6245
  %v6247 = vsel %vm3490, %v6140, 0.0
  %6248 = vadd.xlane.f32.xlu0 %v6247
  %v6249 = vpop.xlane.xlu0 %6248
  %v6250 = vsel %vm3490, %v6141, 0.0
  %6251 = vadd.xlane.f32.xlu0 %v6250
  %v6252 = vpop.xlane.xlu0 %6251
  %v6253 = vsel %vm3490, %v6142, 0.0
  %6254 = vadd.xlane.f32.xlu0 %v6253
  %v6255 = vpop.xlane.xlu0 %6254
  %v6256 = vsel %vm3490, %v6143, 0.0
  %6257 = vadd.xlane.f32.xlu0 %v6256
  %v6258 = vpop.xlane.xlu0 %6257
  %v6259 = vsel %vm3490, %v6144, 0.0
  %6260 = vadd.xlane.f32.xlu0 %v6259
  %v6261 = vpop.xlane.xlu0 %6260
  %v6262 = vsel %vm3490, %v6145, 0.0
  %6263 = vadd.xlane.f32.xlu0 %v6262
  %v6264 = vpop.xlane.xlu0 %6263
  %v6265 = vsel %vm3490, %v6146, 0.0
  %6266 = vadd.xlane.f32.xlu0 %v6265
  %v6267 = vpop.xlane.xlu0 %6266
  %v6268 = vsel %vm3490, %v6147, 0.0
  %6269 = vadd.xlane.f32.xlu0 %v6268
  %v6270 = vpop.xlane.xlu0 %6269
  %v6271 = vsel %vm3490, %v6148, 0.0
  %6272 = vadd.xlane.f32.xlu0 %v6271
  %v6273 = vpop.xlane.xlu0 %6272
  %v6274 = vsel %vm3490, %v6149, 0.0
  %6275 = vadd.xlane.f32.xlu0 %v6274
  %v6276 = vpop.xlane.xlu0 %6275
  %v6277 = vsel %vm3490, %v6150, 0.0
  %6278 = vadd.xlane.f32.xlu0 %v6277
  %v6279 = vpop.xlane.xlu0 %6278
  %v6280 = vsel %vm3490, %v6151, 0.0
  %6281 = vadd.xlane.f32.xlu0 %v6280
  %v6282 = vpop.xlane.xlu0 %6281
  %v6283 = vsel %vm3490, %v6152, 0.0
  %6284 = vadd.xlane.f32.xlu0 %v6283
  %v6285 = vpop.xlane.xlu0 %6284
  %v6286 = vsel %vm3490, %v6153, 0.0
  %6287 = vadd.xlane.f32.xlu0 %v6286
  %v6288 = vpop.xlane.xlu0 %6287
  %v6289 = vsel %vm3490, %v6154, 0.0
  %6290 = vadd.xlane.f32.xlu0 %v6289
  %v6291 = vpop.xlane.xlu0 %6290
  %v6292 = vsel %vm3490, %v6155, 0.0
  %6293 = vadd.xlane.f32.xlu0 %v6292
  %v6294 = vpop.xlane.xlu0 %6293
  %v6295 = vsel %vm3490, %v6156, 0.0
  %6296 = vadd.xlane.f32.xlu0 %v6295
  %v6297 = vpop.xlane.xlu0 %6296
  %v6298 = vsel %vm3490, %v6157, 0.0
  %6299 = vadd.xlane.f32.xlu0 %v6298
  %v6300 = vpop.xlane.xlu0 %6299
  %v6301 = vsel %vm3490, %v6158, 0.0
  %6302 = vadd.xlane.f32.xlu0 %v6301
  %v6303 = vpop.xlane.xlu0 %6302
  %v6304 = vsel %vm3490, %v6159, 0.0
  %6305 = vadd.xlane.f32.xlu0 %v6304
  %v6306 = vpop.xlane.xlu0 %6305
  %v6307 = vsel %vm3490, %v6160, 0.0
  %6308 = vadd.xlane.f32.xlu0 %v6307
  %v6309 = vpop.xlane.xlu0 %6308
  %v6310 = vsel %vm3490, %v6161, 0.0
  %6311 = vadd.xlane.f32.xlu0 %v6310
  %v6312 = vpop.xlane.xlu0 %6311
  %v6313 = vsel %vm3490, %v6162, 0.0
  %6314 = vadd.xlane.f32.xlu0 %v6313
  %v6315 = vpop.xlane.xlu0 %6314
  %v6316 = vsel %vm3490, %v6163, 0.0
  %6317 = vadd.xlane.f32.xlu0 %v6316
  %v6318 = vpop.xlane.xlu0 %6317
  %v6319 = vsel %vm3490, %v6164, 0.0
  %6320 = vadd.xlane.f32.xlu0 %v6319
  %v6321 = vpop.xlane.xlu0 %6320
  %v6322 = vsel %vm3490, %v6165, 0.0
  %6323 = vadd.xlane.f32.xlu0 %v6322
  %v6324 = vpop.xlane.xlu0 %6323
  %v6325 = vsel %vm3490, %v6166, 0.0
  %6326 = vadd.xlane.f32.xlu0 %v6325
  %v6327 = vpop.xlane.xlu0 %6326
  %v6328 = vsel %vm3490, %v6167, 0.0
  %6329 = vadd.xlane.f32.xlu0 %v6328
  %v6330 = vpop.xlane.xlu0 %6329
  %v6331 = vsel %vm3490, %v6168, 0.0
  %6332 = vadd.xlane.f32.xlu0 %v6331
  %v6333 = vpop.xlane.xlu0 %6332
  %v6334 = vsel %vm3490, %v6169, 0.0
  %6335 = vadd.xlane.f32.xlu0 %v6334
  %v6336 = vpop.xlane.xlu0 %6335
  %v6337 = vsel %vm3490, %v6170, 0.0
  %6338 = vadd.xlane.f32.xlu0 %v6337
  %v6339 = vpop.xlane.xlu0 %6338
  %v6340 = vsel %vm3490, %v6171, 0.0
  %6341 = vadd.xlane.f32.xlu0 %v6340
  %v6342 = vpop.xlane.xlu0 %6341
  %v6343 = vsel %vm3490, %v6172, 0.0
  %6344 = vadd.xlane.f32.xlu0 %v6343
  %v6345 = vpop.xlane.xlu0 %6344
  %v6346 = vsel %vm3490, %v6173, 0.0
  %6347 = vadd.xlane.f32.xlu0 %v6346
  %v6348 = vpop.xlane.xlu0 %6347
  %v6349 = vsel %vm3490, %v6174, 0.0
  %6350 = vadd.xlane.f32.xlu0 %v6349
  %v6351 = vpop.xlane.xlu0 %6350
  %v6352 = vsel %vm3490, %v6175, 0.0
  %6353 = vadd.xlane.f32.xlu0 %v6352
  %v6354 = vpop.xlane.xlu0 %6353
  %v6355 = vsel %vm3490, %v6176, 0.0
  %6356 = vadd.xlane.f32.xlu0 %v6355
  %v6357 = vpop.xlane.xlu0 %6356
  %v6358 = vsel %vm3490, %v6177, 0.0
  %6359 = vadd.xlane.f32.xlu0 %v6358
  %v6360 = vpop.xlane.xlu0 %6359
  %v6361 = vsel %vm3490, %v6178, 0.0
  %6362 = vadd.xlane.f32.xlu0 %v6361
  %v6363 = vpop.xlane.xlu0 %6362
  %v6364 = vsel %vm3490, %v6179, 0.0
  %6365 = vadd.xlane.f32.xlu0 %v6364
  %v6366 = vpop.xlane.xlu0 %6365
  %v6367 = vsel %vm3490, %v6180, 0.0
  %6368 = vadd.xlane.f32.xlu0 %v6367
  %v6369 = vpop.xlane.xlu0 %6368
  %v6370 = vsel %vm3490, %v6181, 0.0
  %6371 = vadd.xlane.f32.xlu0 %v6370
  %v6372 = vpop.xlane.xlu0 %6371
  %v6373 = vsel %vm3490, %v6182, 0.0
  %6374 = vadd.xlane.f32.xlu0 %v6373
  %v6375 = vpop.xlane.xlu0 %6374
  %v6376 = vsel %vm3490, %v6183, 0.0
  %6377 = vadd.xlane.f32.xlu0 %v6376
  %v6378 = vpop.xlane.xlu0 %6377
  %v6379 = vsel %vm3490, %v6184, 0.0
  %6380 = vadd.xlane.f32.xlu0 %v6379
  %v6381 = vpop.xlane.xlu0 %6380
  %v6382 = vsel %vm3490, %v6185, 0.0
  %6383 = vadd.xlane.f32.xlu0 %v6382
  %v6384 = vpop.xlane.xlu0 %6383
  %v6385 = vsel %vm3490, %v6186, 0.0
  %6386 = vadd.xlane.f32.xlu0 %v6385
  %v6387 = vpop.xlane.xlu0 %6386
  %v6388 = vsel %vm3490, %v6187, 0.0
  %6389 = vadd.xlane.f32.xlu0 %v6388
  %v6390 = vpop.xlane.xlu0 %6389
  %v6391 = vsel %vm3490, %v6188, 0.0
  %6392 = vadd.xlane.f32.xlu0 %v6391
  %v6393 = vpop.xlane.xlu0 %6392
  %v6394 = vsel %vm3490, %v6189, 0.0
  %6395 = vadd.xlane.f32.xlu0 %v6394
  %v6396 = vpop.xlane.xlu0 %6395
  %v6397 = vsel %vm3490, %v6190, 0.0
  %6398 = vadd.xlane.f32.xlu0 %v6397
  %v6399 = vpop.xlane.xlu0 %6398
  %v6400 = vsel %vm3490, %v6191, 0.0
  %6401 = vadd.xlane.f32.xlu0 %v6400
  %v6402 = vpop.xlane.xlu0 %6401
  %v6403 = vsel %vm3490, %v6192, 0.0
  %6404 = vadd.xlane.f32.xlu0 %v6403
  %v6405 = vpop.xlane.xlu0 %6404
  %v6406 = vsel %vm3490, %v6193, 0.0
  %6407 = vadd.xlane.f32.xlu0 %v6406
  %v6408 = vpop.xlane.xlu0 %6407
  %v6409 = vsel %vm3490, %v6194, 0.0
  %6410 = vadd.xlane.f32.xlu0 %v6409
  %v6411 = vpop.xlane.xlu0 %6410
  %v6412 = vsel %vm3490, %v6195, 0.0
  %6413 = vadd.xlane.f32.xlu0 %v6412
  %v6414 = vpop.xlane.xlu0 %6413
  %v6415 = vsel %vm3490, %v6196, 0.0
  %6416 = vadd.xlane.f32.xlu0 %v6415
  %v6417 = vpop.xlane.xlu0 %6416
  %v6418 = vsel %vm3490, %v6197, 0.0
  %6419 = vadd.xlane.f32.xlu0 %v6418
  %v6420 = vpop.xlane.xlu0 %6419
  %v6421 = vsel %vm3490, %v6198, 0.0
  %6422 = vadd.xlane.f32.xlu0 %v6421
  %v6423 = vpop.xlane.xlu0 %6422
  %v6424 = vsel %vm3490, %v6199, 0.0
  %6425 = vadd.xlane.f32.xlu0 %v6424
  %v6426 = vpop.xlane.xlu0 %6425
  %v6427 = vsel %vm3490, %v6200, 0.0
  %6428 = vadd.xlane.f32.xlu0 %v6427
  %v6429 = vpop.xlane.xlu0 %6428
  %v6430 = vsel %vm3490, %v6201, 0.0
  %6431 = vadd.xlane.f32.xlu0 %v6430
  %v6432 = vpop.xlane.xlu0 %6431
  %v6433 = vsel %vm3490, %v6202, 0.0
  %6434 = vadd.xlane.f32.xlu0 %v6433
  %v6435 = vpop.xlane.xlu0 %6434
  %v6436 = vsel %vm3490, %v6203, 0.0
  %6437 = vadd.xlane.f32.xlu0 %v6436
  %v6438 = vpop.xlane.xlu0 %6437
  %v6439 = vsel %vm3490, %v6204, 0.0
  %6440 = vadd.xlane.f32.xlu0 %v6439
  %v6441 = vpop.xlane.xlu0 %6440
  %v6442 = vsel %vm3490, %v6205, 0.0
  %6443 = vadd.xlane.f32.xlu0 %v6442
  %v6444 = vpop.xlane.xlu0 %6443
  %v6445 = vsel %vm3490, %v6206, 0.0
  %6446 = vadd.xlane.f32.xlu0 %v6445
  %v6447 = vpop.xlane.xlu0 %6446
  %v6448 = vsel %vm3490, %v6207, 0.0
  %6449 = vadd.xlane.f32.xlu0 %v6448
  %v6450 = vpop.xlane.xlu0 %6449
  %v6451 = vld [vmem:[#allocation3] sm:$0x1]
  %v6453 = vperm.slane %v6451, 0
  %v6455 = vadd.f32 %v6210, %v6453
  %v6456 = vadd.f32 %v6213, %v6453
  %v6457 = vadd.f32 %v6216, %v6453
  %v6458 = vadd.f32 %v6219, %v6453
  %v6459 = vadd.f32 %v6222, %v6453
  %v6460 = vadd.f32 %v6225, %v6453
  %v6461 = vadd.f32 %v6228, %v6453
  %v6462 = vadd.f32 %v6231, %v6453
  %v6463 = vadd.f32 %v6234, %v6453
  %v6464 = vadd.f32 %v6237, %v6453
  %v6465 = vadd.f32 %v6240, %v6453
  %v6466 = vadd.f32 %v6243, %v6453
  %v6467 = vadd.f32 %v6246, %v6453
  %v6468 = vadd.f32 %v6249, %v6453
  %v6469 = vadd.f32 %v6252, %v6453
  %v6470 = vadd.f32 %v6255, %v6453
  %v6471 = vadd.f32 %v6258, %v6453
  %v6472 = vadd.f32 %v6261, %v6453
  %v6473 = vadd.f32 %v6264, %v6453
  %v6474 = vadd.f32 %v6267, %v6453
  %v6475 = vadd.f32 %v6270, %v6453
  %v6476 = vadd.f32 %v6273, %v6453
  %v6477 = vadd.f32 %v6276, %v6453
  %v6478 = vadd.f32 %v6279, %v6453
  %v6479 = vadd.f32 %v6282, %v6453
  %v6480 = vadd.f32 %v6285, %v6453
  %v6481 = vadd.f32 %v6288, %v6453
  %v6482 = vadd.f32 %v6291, %v6453
  %v6483 = vadd.f32 %v6294, %v6453
  %v6484 = vadd.f32 %v6297, %v6453
  %v6485 = vadd.f32 %v6300, %v6453
  %v6486 = vadd.f32 %v6303, %v6453
  %v6487 = vadd.f32 %v6306, %v6453
  %v6488 = vadd.f32 %v6309, %v6453
  %v6489 = vadd.f32 %v6312, %v6453
  %v6490 = vadd.f32 %v6315, %v6453
  %v6491 = vadd.f32 %v6318, %v6453
  %v6492 = vadd.f32 %v6321, %v6453
  %v6493 = vadd.f32 %v6324, %v6453
  %v6494 = vadd.f32 %v6327, %v6453
  %v6495 = vadd.f32 %v6330, %v6453
  %v6496 = vadd.f32 %v6333, %v6453
  %v6497 = vadd.f32 %v6336, %v6453
  %v6498 = vadd.f32 %v6339, %v6453
  %v6499 = vadd.f32 %v6342, %v6453
  %v6500 = vadd.f32 %v6345, %v6453
  %v6501 = vadd.f32 %v6348, %v6453
  %v6502 = vadd.f32 %v6351, %v6453
  %v6503 = vadd.f32 %v6354, %v6453
  %v6504 = vadd.f32 %v6357, %v6453
  %v6505 = vadd.f32 %v6360, %v6453
  %v6506 = vadd.f32 %v6363, %v6453
  %v6507 = vadd.f32 %v6366, %v6453
  %v6508 = vadd.f32 %v6369, %v6453
  %v6509 = vadd.f32 %v6372, %v6453
  %v6510 = vadd.f32 %v6375, %v6453
  %v6511 = vadd.f32 %v6378, %v6453
  %v6512 = vadd.f32 %v6381, %v6453
  %v6513 = vadd.f32 %v6384, %v6453
  %v6514 = vadd.f32 %v6387, %v6453
  %v6515 = vadd.f32 %v6390, %v6453
  %v6516 = vadd.f32 %v6393, %v6453
  %v6517 = vadd.f32 %v6396, %v6453
  %v6518 = vadd.f32 %v6399, %v6453
  %v6519 = vadd.f32 %v6402, %v6453
  %v6520 = vadd.f32 %v6405, %v6453
  %v6521 = vadd.f32 %v6408, %v6453
  %v6522 = vadd.f32 %v6411, %v6453
  %v6523 = vadd.f32 %v6414, %v6453
  %v6524 = vadd.f32 %v6417, %v6453
  %v6525 = vadd.f32 %v6420, %v6453
  %v6526 = vadd.f32 %v6423, %v6453
  %v6527 = vadd.f32 %v6426, %v6453
  %v6528 = vadd.f32 %v6429, %v6453
  %v6529 = vadd.f32 %v6432, %v6453
  %v6530 = vadd.f32 %v6435, %v6453
  %v6531 = vadd.f32 %v6438, %v6453
  %v6532 = vadd.f32 %v6441, %v6453
  %v6533 = vadd.f32 %v6444, %v6453
  %v6534 = vadd.f32 %v6447, %v6453
  %v6535 = vadd.f32 %v6450, %v6453
  %v6536 = vxor.u32 %v6455, 2147483648
  %v6537 = vxor.u32 %v6456, 2147483648
  %v6538 = vxor.u32 %v6457, 2147483648
  %v6539 = vxor.u32 %v6458, 2147483648
  %v6540 = vxor.u32 %v6459, 2147483648
  %v6541 = vxor.u32 %v6460, 2147483648
  %v6542 = vxor.u32 %v6461, 2147483648
  %v6543 = vxor.u32 %v6462, 2147483648
  %v6544 = vxor.u32 %v6463, 2147483648
  %v6545 = vxor.u32 %v6464, 2147483648
  %v6546 = vxor.u32 %v6465, 2147483648
  %v6547 = vxor.u32 %v6466, 2147483648
  %v6548 = vxor.u32 %v6467, 2147483648
  %v6549 = vxor.u32 %v6468, 2147483648
  %v6550 = vxor.u32 %v6469, 2147483648
  %v6551 = vxor.u32 %v6470, 2147483648
  %v6552 = vxor.u32 %v6471, 2147483648
  %v6553 = vxor.u32 %v6472, 2147483648
  %v6554 = vxor.u32 %v6473, 2147483648
  %v6555 = vxor.u32 %v6474, 2147483648
  %v6556 = vxor.u32 %v6475, 2147483648
  %v6557 = vxor.u32 %v6476, 2147483648
  %v6558 = vxor.u32 %v6477, 2147483648
  %v6559 = vxor.u32 %v6478, 2147483648
  %v6560 = vxor.u32 %v6479, 2147483648
  %v6561 = vxor.u32 %v6480, 2147483648
  %v6562 = vxor.u32 %v6481, 2147483648
  %v6563 = vxor.u32 %v6482, 2147483648
  %v6564 = vxor.u32 %v6483, 2147483648
  %v6565 = vxor.u32 %v6484, 2147483648
  %v6566 = vxor.u32 %v6485, 2147483648
  %v6567 = vxor.u32 %v6486, 2147483648
  %v6568 = vxor.u32 %v6487, 2147483648
  %v6569 = vxor.u32 %v6488, 2147483648
  %v6570 = vxor.u32 %v6489, 2147483648
  %v6571 = vxor.u32 %v6490, 2147483648
  %v6572 = vxor.u32 %v6491, 2147483648
  %v6573 = vxor.u32 %v6492, 2147483648
  %v6574 = vxor.u32 %v6493, 2147483648
  %v6575 = vxor.u32 %v6494, 2147483648
  %v6576 = vxor.u32 %v6495, 2147483648
  %v6577 = vxor.u32 %v6496, 2147483648
  %v6578 = vxor.u32 %v6497, 2147483648
  %v6579 = vxor.u32 %v6498, 2147483648
  %v6580 = vxor.u32 %v6499, 2147483648
  %v6581 = vxor.u32 %v6500, 2147483648
  %v6582 = vxor.u32 %v6501, 2147483648
  %v6583 = vxor.u32 %v6502, 2147483648
  %v6584 = vxor.u32 %v6503, 2147483648
  %v6585 = vxor.u32 %v6504, 2147483648
  %v6586 = vxor.u32 %v6505, 2147483648
  %v6587 = vxor.u32 %v6506, 2147483648
  %v6588 = vxor.u32 %v6507, 2147483648
  %v6589 = vxor.u32 %v6508, 2147483648
  %v6590 = vxor.u32 %v6509, 2147483648
  %v6591 = vxor.u32 %v6510, 2147483648
  %v6592 = vxor.u32 %v6511, 2147483648
  %v6593 = vxor.u32 %v6512, 2147483648
  %v6594 = vxor.u32 %v6513, 2147483648
  %v6595 = vxor.u32 %v6514, 2147483648
  %v6596 = vxor.u32 %v6515, 2147483648
  %v6597 = vxor.u32 %v6516, 2147483648
  %v6598 = vxor.u32 %v6517, 2147483648
  %v6599 = vxor.u32 %v6518, 2147483648
  %v6600 = vxor.u32 %v6519, 2147483648
  %v6601 = vxor.u32 %v6520, 2147483648
  %v6602 = vxor.u32 %v6521, 2147483648
  %v6603 = vxor.u32 %v6522, 2147483648
  %v6604 = vxor.u32 %v6523, 2147483648
  %v6605 = vxor.u32 %v6524, 2147483648
  %v6606 = vxor.u32 %v6525, 2147483648
  %v6607 = vxor.u32 %v6526, 2147483648
  %v6608 = vxor.u32 %v6527, 2147483648
  %v6609 = vxor.u32 %v6528, 2147483648
  %v6610 = vxor.u32 %v6529, 2147483648
  %v6611 = vxor.u32 %v6530, 2147483648
  %v6612 = vxor.u32 %v6531, 2147483648
  %v6613 = vxor.u32 %v6532, 2147483648
  %v6614 = vxor.u32 %v6533, 2147483648
  %v6615 = vxor.u32 %v6534, 2147483648
  %v6616 = vxor.u32 %v6535, 2147483648
  %v6617 = vmul.f32 %v6536, 1.442695
  %v6618 = vpow.pop %v6617
  %v6619 = vmul.f32 %v6537, 1.442695
  %v6620 = vpow.pop %v6619
  %v6621 = vmul.f32 %v6538, 1.442695
  %v6622 = vpow.pop %v6621
  %v6623 = vmul.f32 %v6539, 1.442695
  %v6624 = vpow.pop %v6623
  %v6625 = vmul.f32 %v6540, 1.442695
  %v6626 = vpow.pop %v6625
  %v6627 = vmul.f32 %v6541, 1.442695
  %v6628 = vpow.pop %v6627
  %v6629 = vmul.f32 %v6542, 1.442695
  %v6630 = vpow.pop %v6629
  %v6631 = vmul.f32 %v6543, 1.442695
  %v6632 = vpow.pop %v6631
  %v6633 = vmul.f32 %v6544, 1.442695
  %v6634 = vpow.pop %v6633
  %v6635 = vmul.f32 %v6545, 1.442695
  %v6636 = vpow.pop %v6635
  %v6637 = vmul.f32 %v6546, 1.442695
  %v6638 = vpow.pop %v6637
  %v6639 = vmul.f32 %v6547, 1.442695
  %v6640 = vpow.pop %v6639
  %v6641 = vmul.f32 %v6548, 1.442695
  %v6642 = vpow.pop %v6641
  %v6643 = vmul.f32 %v6549, 1.442695
  %v6644 = vpow.pop %v6643
  %v6645 = vmul.f32 %v6550, 1.442695
  %v6646 = vpow.pop %v6645
  %v6647 = vmul.f32 %v6551, 1.442695
  %v6648 = vpow.pop %v6647
  %v6649 = vmul.f32 %v6552, 1.442695
  %v6650 = vpow.pop %v6649
  %v6651 = vmul.f32 %v6553, 1.442695
  %v6652 = vpow.pop %v6651
  %v6653 = vmul.f32 %v6554, 1.442695
  %v6654 = vpow.pop %v6653
  %v6655 = vmul.f32 %v6555, 1.442695
  %v6656 = vpow.pop %v6655
  %v6657 = vmul.f32 %v6556, 1.442695
  %v6658 = vpow.pop %v6657
  %v6659 = vmul.f32 %v6557, 1.442695
  %v6660 = vpow.pop %v6659
  %v6661 = vmul.f32 %v6558, 1.442695
  %v6662 = vpow.pop %v6661
  %v6663 = vmul.f32 %v6559, 1.442695
  %v6664 = vpow.pop %v6663
  %v6665 = vmul.f32 %v6560, 1.442695
  %v6666 = vpow.pop %v6665
  %v6667 = vmul.f32 %v6561, 1.442695
  %v6668 = vpow.pop %v6667
  %v6669 = vmul.f32 %v6562, 1.442695
  %v6670 = vpow.pop %v6669
  %v6671 = vmul.f32 %v6563, 1.442695
  %v6672 = vpow.pop %v6671
  %v6673 = vmul.f32 %v6564, 1.442695
  %v6674 = vpow.pop %v6673
  %v6675 = vmul.f32 %v6565, 1.442695
  %v6676 = vpow.pop %v6675
  %v6677 = vmul.f32 %v6566, 1.442695
  %v6678 = vpow.pop %v6677
  %v6679 = vmul.f32 %v6567, 1.442695
  %v6680 = vpow.pop %v6679
  %v6681 = vmul.f32 %v6568, 1.442695
  %v6682 = vpow.pop %v6681
  %v6683 = vmul.f32 %v6569, 1.442695
  %v6684 = vpow.pop %v6683
  %v6685 = vmul.f32 %v6570, 1.442695
  %v6686 = vpow.pop %v6685
  %v6687 = vmul.f32 %v6571, 1.442695
  %v6688 = vpow.pop %v6687
  %v6689 = vmul.f32 %v6572, 1.442695
  %v6690 = vpow.pop %v6689
  %v6691 = vmul.f32 %v6573, 1.442695
  %v6692 = vpow.pop %v6691
  %v6693 = vmul.f32 %v6574, 1.442695
  %v6694 = vpow.pop %v6693
  %v6695 = vmul.f32 %v6575, 1.442695
  %v6696 = vpow.pop %v6695
  %v6697 = vmul.f32 %v6576, 1.442695
  %v6698 = vpow.pop %v6697
  %v6699 = vmul.f32 %v6577, 1.442695
  %v6700 = vpow.pop %v6699
  %v6701 = vmul.f32 %v6578, 1.442695
  %v6702 = vpow.pop %v6701
  %v6703 = vmul.f32 %v6579, 1.442695
  %v6704 = vpow.pop %v6703
  %v6705 = vmul.f32 %v6580, 1.442695
  %v6706 = vpow.pop %v6705
  %v6707 = vmul.f32 %v6581, 1.442695
  %v6708 = vpow.pop %v6707
  %v6709 = vmul.f32 %v6582, 1.442695
  %v6710 = vpow.pop %v6709
  %v6711 = vmul.f32 %v6583, 1.442695
  %v6712 = vpow.pop %v6711
  %v6713 = vmul.f32 %v6584, 1.442695
  %v6714 = vpow.pop %v6713
  %v6715 = vmul.f32 %v6585, 1.442695
  %v6716 = vpow.pop %v6715
  %v6717 = vmul.f32 %v6586, 1.442695
  %v6718 = vpow.pop %v6717
  %v6719 = vmul.f32 %v6587, 1.442695
  %v6720 = vpow.pop %v6719
  %v6721 = vmul.f32 %v6588, 1.442695
  %v6722 = vpow.pop %v6721
  %v6723 = vmul.f32 %v6589, 1.442695
  %v6724 = vpow.pop %v6723
  %v6725 = vmul.f32 %v6590, 1.442695
  %v6726 = vpow.pop %v6725
  %v6727 = vmul.f32 %v6591, 1.442695
  %v6728 = vpow.pop %v6727
  %v6729 = vmul.f32 %v6592, 1.442695
  %v6730 = vpow.pop %v6729
  %v6731 = vmul.f32 %v6593, 1.442695
  %v6732 = vpow.pop %v6731
  %v6733 = vmul.f32 %v6594, 1.442695
  %v6734 = vpow.pop %v6733
  %v6735 = vmul.f32 %v6595, 1.442695
  %v6736 = vpow.pop %v6735
  %v6737 = vmul.f32 %v6596, 1.442695
  %v6738 = vpow.pop %v6737
  %v6739 = vmul.f32 %v6597, 1.442695
  %v6740 = vpow.pop %v6739
  %v6741 = vmul.f32 %v6598, 1.442695
  %v6742 = vpow.pop %v6741
  %v6743 = vmul.f32 %v6599, 1.442695
  %v6744 = vpow.pop %v6743
  %v6745 = vmul.f32 %v6600, 1.442695
  %v6746 = vpow.pop %v6745
  %v6747 = vmul.f32 %v6601, 1.442695
  %v6748 = vpow.pop %v6747
  %v6749 = vmul.f32 %v6602, 1.442695
  %v6750 = vpow.pop %v6749
  %v6751 = vmul.f32 %v6603, 1.442695
  %v6752 = vpow.pop %v6751
  %v6753 = vmul.f32 %v6604, 1.442695
  %v6754 = vpow.pop %v6753
  %v6755 = vmul.f32 %v6605, 1.442695
  %v6756 = vpow.pop %v6755
  %v6757 = vmul.f32 %v6606, 1.442695
  %v6758 = vpow.pop %v6757
  %v6759 = vmul.f32 %v6607, 1.442695
  %v6760 = vpow.pop %v6759
  %v6761 = vmul.f32 %v6608, 1.442695
  %v6762 = vpow.pop %v6761
  %v6763 = vmul.f32 %v6609, 1.442695
  %v6764 = vpow.pop %v6763
  %v6765 = vmul.f32 %v6610, 1.442695
  %v6766 = vpow.pop %v6765
  %v6767 = vmul.f32 %v6611, 1.442695
  %v6768 = vpow.pop %v6767
  %v6769 = vmul.f32 %v6612, 1.442695
  %v6770 = vpow.pop %v6769
  %v6771 = vmul.f32 %v6613, 1.442695
  %v6772 = vpow.pop %v6771
  %v6773 = vmul.f32 %v6614, 1.442695
  %v6774 = vpow.pop %v6773
  %v6775 = vmul.f32 %v6615, 1.442695
  %v6776 = vpow.pop %v6775
  %v6777 = vmul.f32 %v6616, 1.442695
  %v6778 = vpow.pop %v6777
  %v6779 = vadd.f32 %v6618, 1.0
  %v6780 = vadd.f32 %v6620, 1.0
  %v6781 = vadd.f32 %v6622, 1.0
  %v6782 = vadd.f32 %v6624, 1.0
  %v6783 = vadd.f32 %v6626, 1.0
  %v6784 = vadd.f32 %v6628, 1.0
  %v6785 = vadd.f32 %v6630, 1.0
  %v6786 = vadd.f32 %v6632, 1.0
  %v6787 = vadd.f32 %v6634, 1.0
  %v6788 = vadd.f32 %v6636, 1.0
  %v6789 = vadd.f32 %v6638, 1.0
  %v6790 = vadd.f32 %v6640, 1.0
  %v6791 = vadd.f32 %v6642, 1.0
  %v6792 = vadd.f32 %v6644, 1.0
  %v6793 = vadd.f32 %v6646, 1.0
  %v6794 = vadd.f32 %v6648, 1.0
  %v6795 = vadd.f32 %v6650, 1.0
  %v6796 = vadd.f32 %v6652, 1.0
  %v6797 = vadd.f32 %v6654, 1.0
  %v6798 = vadd.f32 %v6656, 1.0
  %v6799 = vadd.f32 %v6658, 1.0
  %v6800 = vadd.f32 %v6660, 1.0
  %v6801 = vadd.f32 %v6662, 1.0
  %v6802 = vadd.f32 %v6664, 1.0
  %v6803 = vadd.f32 %v6666, 1.0
  %v6804 = vadd.f32 %v6668, 1.0
  %v6805 = vadd.f32 %v6670, 1.0
  %v6806 = vadd.f32 %v6672, 1.0
  %v6807 = vadd.f32 %v6674, 1.0
  %v6808 = vadd.f32 %v6676, 1.0
  %v6809 = vadd.f32 %v6678, 1.0
  %v6810 = vadd.f32 %v6680, 1.0
  %v6811 = vadd.f32 %v6682, 1.0
  %v6812 = vadd.f32 %v6684, 1.0
  %v6813 = vadd.f32 %v6686, 1.0
  %v6814 = vadd.f32 %v6688, 1.0
  %v6815 = vadd.f32 %v6690, 1.0
  %v6816 = vadd.f32 %v6692, 1.0
  %v6817 = vadd.f32 %v6694, 1.0
  %v6818 = vadd.f32 %v6696, 1.0
  %v6819 = vadd.f32 %v6698, 1.0
  %v6820 = vadd.f32 %v6700, 1.0
  %v6821 = vadd.f32 %v6702, 1.0
  %v6822 = vadd.f32 %v6704, 1.0
  %v6823 = vadd.f32 %v6706, 1.0
  %v6824 = vadd.f32 %v6708, 1.0
  %v6825 = vadd.f32 %v6710, 1.0
  %v6826 = vadd.f32 %v6712, 1.0
  %v6827 = vadd.f32 %v6714, 1.0
  %v6828 = vadd.f32 %v6716, 1.0
  %v6829 = vadd.f32 %v6718, 1.0
  %v6830 = vadd.f32 %v6720, 1.0
  %v6831 = vadd.f32 %v6722, 1.0
  %v6832 = vadd.f32 %v6724, 1.0
  %v6833 = vadd.f32 %v6726, 1.0
  %v6834 = vadd.f32 %v6728, 1.0
  %v6835 = vadd.f32 %v6730, 1.0
  %v6836 = vadd.f32 %v6732, 1.0
  %v6837 = vadd.f32 %v6734, 1.0
  %v6838 = vadd.f32 %v6736, 1.0
  %v6839 = vadd.f32 %v6738, 1.0
  %v6840 = vadd.f32 %v6740, 1.0
  %v6841 = vadd.f32 %v6742, 1.0
  %v6842 = vadd.f32 %v6744, 1.0
  %v6843 = vadd.f32 %v6746, 1.0
  %v6844 = vadd.f32 %v6748, 1.0
  %v6845 = vadd.f32 %v6750, 1.0
  %v6846 = vadd.f32 %v6752, 1.0
  %v6847 = vadd.f32 %v6754, 1.0
  %v6848 = vadd.f32 %v6756, 1.0
  %v6849 = vadd.f32 %v6758, 1.0
  %v6850 = vadd.f32 %v6760, 1.0
  %v6851 = vadd.f32 %v6762, 1.0
  %v6852 = vadd.f32 %v6764, 1.0
  %v6853 = vadd.f32 %v6766, 1.0
  %v6854 = vadd.f32 %v6768, 1.0
  %v6855 = vadd.f32 %v6770, 1.0
  %v6856 = vadd.f32 %v6772, 1.0
  %v6857 = vadd.f32 %v6774, 1.0
  %v6858 = vadd.f32 %v6776, 1.0
  %v6859 = vadd.f32 %v6778, 1.0
  %v6860 = vrcp.pop %v6779
  %v6861 = vmul.f32 %v6779, %v6860
  %v6862 = vsub.f32 1.0, %v6861
  %v6863 = vmul.f32 %v6860, %v6862
  %v6864 = vadd.f32 %v6860, %v6863
  %vm6865 = vweird.f32 %v6779
  %vm6866 = vweird.f32 %v6860
  %vm6867 = vmor %vm6865, %vm6866
  %v6868 = vsel %vm6867, %v6860, %v6864
  %v6869 = vand.u32 2147483647, %v6779
  %vm6870 = vcmp.eq.f32.partialorder %v6869, 8.507059e+37
  %v6871 = vand.u32 %v6779, 2147483648
  %v6872 = vor.u32 1.1754944e-38, %v6871
  %v6873 = vsel %vm6870, %v6872, %v6868
  %v6874 = vmul.f32 1.0, %v6873
  %v6875 = vrcp.pop %v6780
  %v6876 = vmul.f32 %v6780, %v6875
  %v6877 = vsub.f32 1.0, %v6876
  %v6878 = vmul.f32 %v6875, %v6877
  %v6879 = vadd.f32 %v6875, %v6878
  %vm6880 = vweird.f32 %v6780
  %vm6881 = vweird.f32 %v6875
  %vm6882 = vmor %vm6880, %vm6881
  %v6883 = vsel %vm6882, %v6875, %v6879
  %v6884 = vand.u32 2147483647, %v6780
  %vm6885 = vcmp.eq.f32.partialorder %v6884, 8.507059e+37
  %v6886 = vand.u32 %v6780, 2147483648
  %v6887 = vor.u32 1.1754944e-38, %v6886
  %v6888 = vsel %vm6885, %v6887, %v6883
  %v6889 = vmul.f32 1.0, %v6888
  %v6890 = vrcp.pop %v6781
  %v6891 = vmul.f32 %v6781, %v6890
  %v6892 = vsub.f32 1.0, %v6891
  %v6893 = vmul.f32 %v6890, %v6892
  %v6894 = vadd.f32 %v6890, %v6893
  %vm6895 = vweird.f32 %v6781
  %vm6896 = vweird.f32 %v6890
  %vm6897 = vmor %vm6895, %vm6896
  %v6898 = vsel %vm6897, %v6890, %v6894
  %v6899 = vand.u32 2147483647, %v6781
  %vm6900 = vcmp.eq.f32.partialorder %v6899, 8.507059e+37
  %v6901 = vand.u32 %v6781, 2147483648
  %v6902 = vor.u32 1.1754944e-38, %v6901
  %v6903 = vsel %vm6900, %v6902, %v6898
  %v6904 = vmul.f32 1.0, %v6903
  %v6905 = vrcp.pop %v6782
  %v6906 = vmul.f32 %v6782, %v6905
  %v6907 = vsub.f32 1.0, %v6906
  %v6908 = vmul.f32 %v6905, %v6907
  %v6909 = vadd.f32 %v6905, %v6908
  %vm6910 = vweird.f32 %v6782
  %vm6911 = vweird.f32 %v6905
  %vm6912 = vmor %vm6910, %vm6911
  %v6913 = vsel %vm6912, %v6905, %v6909
  %v6914 = vand.u32 2147483647, %v6782
  %vm6915 = vcmp.eq.f32.partialorder %v6914, 8.507059e+37
  %v6916 = vand.u32 %v6782, 2147483648
  %v6917 = vor.u32 1.1754944e-38, %v6916
  %v6918 = vsel %vm6915, %v6917, %v6913
  %v6919 = vmul.f32 1.0, %v6918
  %v6920 = vrcp.pop %v6783
  %v6921 = vmul.f32 %v6783, %v6920
  %v6922 = vsub.f32 1.0, %v6921
  %v6923 = vmul.f32 %v6920, %v6922
  %v6924 = vadd.f32 %v6920, %v6923
  %vm6925 = vweird.f32 %v6783
  %vm6926 = vweird.f32 %v6920
  %vm6927 = vmor %vm6925, %vm6926
  %v6928 = vsel %vm6927, %v6920, %v6924
  %v6929 = vand.u32 2147483647, %v6783
  %vm6930 = vcmp.eq.f32.partialorder %v6929, 8.507059e+37
  %v6931 = vand.u32 %v6783, 2147483648
  %v6932 = vor.u32 1.1754944e-38, %v6931
  %v6933 = vsel %vm6930, %v6932, %v6928
  %v6934 = vmul.f32 1.0, %v6933
  %v6935 = vrcp.pop %v6784
  %v6936 = vmul.f32 %v6784, %v6935
  %v6937 = vsub.f32 1.0, %v6936
  %v6938 = vmul.f32 %v6935, %v6937
  %v6939 = vadd.f32 %v6935, %v6938
  %vm6940 = vweird.f32 %v6784
  %vm6941 = vweird.f32 %v6935
  %vm6942 = vmor %vm6940, %vm6941
  %v6943 = vsel %vm6942, %v6935, %v6939
  %v6944 = vand.u32 2147483647, %v6784
  %vm6945 = vcmp.eq.f32.partialorder %v6944, 8.507059e+37
  %v6946 = vand.u32 %v6784, 2147483648
  %v6947 = vor.u32 1.1754944e-38, %v6946
  %v6948 = vsel %vm6945, %v6947, %v6943
  %v6949 = vmul.f32 1.0, %v6948
  %v6950 = vrcp.pop %v6785
  %v6951 = vmul.f32 %v6785, %v6950
  %v6952 = vsub.f32 1.0, %v6951
  %v6953 = vmul.f32 %v6950, %v6952
  %v6954 = vadd.f32 %v6950, %v6953
  %vm6955 = vweird.f32 %v6785
  %vm6956 = vweird.f32 %v6950
  %vm6957 = vmor %vm6955, %vm6956
  %v6958 = vsel %vm6957, %v6950, %v6954
  %v6959 = vand.u32 2147483647, %v6785
  %vm6960 = vcmp.eq.f32.partialorder %v6959, 8.507059e+37
  %v6961 = vand.u32 %v6785, 2147483648
  %v6962 = vor.u32 1.1754944e-38, %v6961
  %v6963 = vsel %vm6960, %v6962, %v6958
  %v6964 = vmul.f32 1.0, %v6963
  %v6965 = vrcp.pop %v6786
  %v6966 = vmul.f32 %v6786, %v6965
  %v6967 = vsub.f32 1.0, %v6966
  %v6968 = vmul.f32 %v6965, %v6967
  %v6969 = vadd.f32 %v6965, %v6968
  %vm6970 = vweird.f32 %v6786
  %vm6971 = vweird.f32 %v6965
  %vm6972 = vmor %vm6970, %vm6971
  %v6973 = vsel %vm6972, %v6965, %v6969
  %v6974 = vand.u32 2147483647, %v6786
  %vm6975 = vcmp.eq.f32.partialorder %v6974, 8.507059e+37
  %v6976 = vand.u32 %v6786, 2147483648
  %v6977 = vor.u32 1.1754944e-38, %v6976
  %v6978 = vsel %vm6975, %v6977, %v6973
  %v6979 = vmul.f32 1.0, %v6978
  %v6980 = vrcp.pop %v6787
  %v6981 = vmul.f32 %v6787, %v6980
  %v6982 = vsub.f32 1.0, %v6981
  %v6983 = vmul.f32 %v6980, %v6982
  %v6984 = vadd.f32 %v6980, %v6983
  %vm6985 = vweird.f32 %v6787
  %vm6986 = vweird.f32 %v6980
  %vm6987 = vmor %vm6985, %vm6986
  %v6988 = vsel %vm6987, %v6980, %v6984
  %v6989 = vand.u32 2147483647, %v6787
  %vm6990 = vcmp.eq.f32.partialorder %v6989, 8.507059e+37
  %v6991 = vand.u32 %v6787, 2147483648
  %v6992 = vor.u32 1.1754944e-38, %v6991
  %v6993 = vsel %vm6990, %v6992, %v6988
  %v6994 = vmul.f32 1.0, %v6993
  %v6995 = vrcp.pop %v6788
  %v6996 = vmul.f32 %v6788, %v6995
  %v6997 = vsub.f32 1.0, %v6996
  %v6998 = vmul.f32 %v6995, %v6997
  %v6999 = vadd.f32 %v6995, %v6998
  %vm7000 = vweird.f32 %v6788
  %vm7001 = vweird.f32 %v6995
  %vm7002 = vmor %vm7000, %vm7001
  %v7003 = vsel %vm7002, %v6995, %v6999
  %v7004 = vand.u32 2147483647, %v6788
  %vm7005 = vcmp.eq.f32.partialorder %v7004, 8.507059e+37
  %v7006 = vand.u32 %v6788, 2147483648
  %v7007 = vor.u32 1.1754944e-38, %v7006
  %v7008 = vsel %vm7005, %v7007, %v7003
  %v7009 = vmul.f32 1.0, %v7008
  %v7010 = vrcp.pop %v6789
  %v7011 = vmul.f32 %v6789, %v7010
  %v7012 = vsub.f32 1.0, %v7011
  %v7013 = vmul.f32 %v7010, %v7012
  %v7014 = vadd.f32 %v7010, %v7013
  %vm7015 = vweird.f32 %v6789
  %vm7016 = vweird.f32 %v7010
  %vm7017 = vmor %vm7015, %vm7016
  %v7018 = vsel %vm7017, %v7010, %v7014
  %v7019 = vand.u32 2147483647, %v6789
  %vm7020 = vcmp.eq.f32.partialorder %v7019, 8.507059e+37
  %v7021 = vand.u32 %v6789, 2147483648
  %v7022 = vor.u32 1.1754944e-38, %v7021
  %v7023 = vsel %vm7020, %v7022, %v7018
  %v7024 = vmul.f32 1.0, %v7023
  %v7025 = vrcp.pop %v6790
  %v7026 = vmul.f32 %v6790, %v7025
  %v7027 = vsub.f32 1.0, %v7026
  %v7028 = vmul.f32 %v7025, %v7027
  %v7029 = vadd.f32 %v7025, %v7028
  %vm7030 = vweird.f32 %v6790
  %vm7031 = vweird.f32 %v7025
  %vm7032 = vmor %vm7030, %vm7031
  %v7033 = vsel %vm7032, %v7025, %v7029
  %v7034 = vand.u32 2147483647, %v6790
  %vm7035 = vcmp.eq.f32.partialorder %v7034, 8.507059e+37
  %v7036 = vand.u32 %v6790, 2147483648
  %v7037 = vor.u32 1.1754944e-38, %v7036
  %v7038 = vsel %vm7035, %v7037, %v7033
  %v7039 = vmul.f32 1.0, %v7038
  %v7040 = vrcp.pop %v6791
  %v7041 = vmul.f32 %v6791, %v7040
  %v7042 = vsub.f32 1.0, %v7041
  %v7043 = vmul.f32 %v7040, %v7042
  %v7044 = vadd.f32 %v7040, %v7043
  %vm7045 = vweird.f32 %v6791
  %vm7046 = vweird.f32 %v7040
  %vm7047 = vmor %vm7045, %vm7046
  %v7048 = vsel %vm7047, %v7040, %v7044
  %v7049 = vand.u32 2147483647, %v6791
  %vm7050 = vcmp.eq.f32.partialorder %v7049, 8.507059e+37
  %v7051 = vand.u32 %v6791, 2147483648
  %v7052 = vor.u32 1.1754944e-38, %v7051
  %v7053 = vsel %vm7050, %v7052, %v7048
  %v7054 = vmul.f32 1.0, %v7053
  %v7055 = vrcp.pop %v6792
  %v7056 = vmul.f32 %v6792, %v7055
  %v7057 = vsub.f32 1.0, %v7056
  %v7058 = vmul.f32 %v7055, %v7057
  %v7059 = vadd.f32 %v7055, %v7058
  %vm7060 = vweird.f32 %v6792
  %vm7061 = vweird.f32 %v7055
  %vm7062 = vmor %vm7060, %vm7061
  %v7063 = vsel %vm7062, %v7055, %v7059
  %v7064 = vand.u32 2147483647, %v6792
  %vm7065 = vcmp.eq.f32.partialorder %v7064, 8.507059e+37
  %v7066 = vand.u32 %v6792, 2147483648
  %v7067 = vor.u32 1.1754944e-38, %v7066
  %v7068 = vsel %vm7065, %v7067, %v7063
  %v7069 = vmul.f32 1.0, %v7068
  %v7070 = vrcp.pop %v6793
  %v7071 = vmul.f32 %v6793, %v7070
  %v7072 = vsub.f32 1.0, %v7071
  %v7073 = vmul.f32 %v7070, %v7072
  %v7074 = vadd.f32 %v7070, %v7073
  %vm7075 = vweird.f32 %v6793
  %vm7076 = vweird.f32 %v7070
  %vm7077 = vmor %vm7075, %vm7076
  %v7078 = vsel %vm7077, %v7070, %v7074
  %v7079 = vand.u32 2147483647, %v6793
  %vm7080 = vcmp.eq.f32.partialorder %v7079, 8.507059e+37
  %v7081 = vand.u32 %v6793, 2147483648
  %v7082 = vor.u32 1.1754944e-38, %v7081
  %v7083 = vsel %vm7080, %v7082, %v7078
  %v7084 = vmul.f32 1.0, %v7083
  %v7085 = vrcp.pop %v6794
  %v7086 = vmul.f32 %v6794, %v7085
  %v7087 = vsub.f32 1.0, %v7086
  %v7088 = vmul.f32 %v7085, %v7087
  %v7089 = vadd.f32 %v7085, %v7088
  %vm7090 = vweird.f32 %v6794
  %vm7091 = vweird.f32 %v7085
  %vm7092 = vmor %vm7090, %vm7091
  %v7093 = vsel %vm7092, %v7085, %v7089
  %v7094 = vand.u32 2147483647, %v6794
  %vm7095 = vcmp.eq.f32.partialorder %v7094, 8.507059e+37
  %v7096 = vand.u32 %v6794, 2147483648
  %v7097 = vor.u32 1.1754944e-38, %v7096
  %v7098 = vsel %vm7095, %v7097, %v7093
  %v7099 = vmul.f32 1.0, %v7098
  %v7100 = vrcp.pop %v6795
  %v7101 = vmul.f32 %v6795, %v7100
  %v7102 = vsub.f32 1.0, %v7101
  %v7103 = vmul.f32 %v7100, %v7102
  %v7104 = vadd.f32 %v7100, %v7103
  %vm7105 = vweird.f32 %v6795
  %vm7106 = vweird.f32 %v7100
  %vm7107 = vmor %vm7105, %vm7106
  %v7108 = vsel %vm7107, %v7100, %v7104
  %v7109 = vand.u32 2147483647, %v6795
  %vm7110 = vcmp.eq.f32.partialorder %v7109, 8.507059e+37
  %v7111 = vand.u32 %v6795, 2147483648
  %v7112 = vor.u32 1.1754944e-38, %v7111
  %v7113 = vsel %vm7110, %v7112, %v7108
  %v7114 = vmul.f32 1.0, %v7113
  %v7115 = vrcp.pop %v6796
  %v7116 = vmul.f32 %v6796, %v7115
  %v7117 = vsub.f32 1.0, %v7116
  %v7118 = vmul.f32 %v7115, %v7117
  %v7119 = vadd.f32 %v7115, %v7118
  %vm7120 = vweird.f32 %v6796
  %vm7121 = vweird.f32 %v7115
  %vm7122 = vmor %vm7120, %vm7121
  %v7123 = vsel %vm7122, %v7115, %v7119
  %v7124 = vand.u32 2147483647, %v6796
  %vm7125 = vcmp.eq.f32.partialorder %v7124, 8.507059e+37
  %v7126 = vand.u32 %v6796, 2147483648
  %v7127 = vor.u32 1.1754944e-38, %v7126
  %v7128 = vsel %vm7125, %v7127, %v7123
  %v7129 = vmul.f32 1.0, %v7128
  %v7130 = vrcp.pop %v6797
  %v7131 = vmul.f32 %v6797, %v7130
  %v7132 = vsub.f32 1.0, %v7131
  %v7133 = vmul.f32 %v7130, %v7132
  %v7134 = vadd.f32 %v7130, %v7133
  %vm7135 = vweird.f32 %v6797
  %vm7136 = vweird.f32 %v7130
  %vm7137 = vmor %vm7135, %vm7136
  %v7138 = vsel %vm7137, %v7130, %v7134
  %v7139 = vand.u32 2147483647, %v6797
  %vm7140 = vcmp.eq.f32.partialorder %v7139, 8.507059e+37
  %v7141 = vand.u32 %v6797, 2147483648
  %v7142 = vor.u32 1.1754944e-38, %v7141
  %v7143 = vsel %vm7140, %v7142, %v7138
  %v7144 = vmul.f32 1.0, %v7143
  %v7145 = vrcp.pop %v6798
  %v7146 = vmul.f32 %v6798, %v7145
  %v7147 = vsub.f32 1.0, %v7146
  %v7148 = vmul.f32 %v7145, %v7147
  %v7149 = vadd.f32 %v7145, %v7148
  %vm7150 = vweird.f32 %v6798
  %vm7151 = vweird.f32 %v7145
  %vm7152 = vmor %vm7150, %vm7151
  %v7153 = vsel %vm7152, %v7145, %v7149
  %v7154 = vand.u32 2147483647, %v6798
  %vm7155 = vcmp.eq.f32.partialorder %v7154, 8.507059e+37
  %v7156 = vand.u32 %v6798, 2147483648
  %v7157 = vor.u32 1.1754944e-38, %v7156
  %v7158 = vsel %vm7155, %v7157, %v7153
  %v7159 = vmul.f32 1.0, %v7158
  %v7160 = vrcp.pop %v6799
  %v7161 = vmul.f32 %v6799, %v7160
  %v7162 = vsub.f32 1.0, %v7161
  %v7163 = vmul.f32 %v7160, %v7162
  %v7164 = vadd.f32 %v7160, %v7163
  %vm7165 = vweird.f32 %v6799
  %vm7166 = vweird.f32 %v7160
  %vm7167 = vmor %vm7165, %vm7166
  %v7168 = vsel %vm7167, %v7160, %v7164
  %v7169 = vand.u32 2147483647, %v6799
  %vm7170 = vcmp.eq.f32.partialorder %v7169, 8.507059e+37
  %v7171 = vand.u32 %v6799, 2147483648
  %v7172 = vor.u32 1.1754944e-38, %v7171
  %v7173 = vsel %vm7170, %v7172, %v7168
  %v7174 = vmul.f32 1.0, %v7173
  %v7175 = vrcp.pop %v6800
  %v7176 = vmul.f32 %v6800, %v7175
  %v7177 = vsub.f32 1.0, %v7176
  %v7178 = vmul.f32 %v7175, %v7177
  %v7179 = vadd.f32 %v7175, %v7178
  %vm7180 = vweird.f32 %v6800
  %vm7181 = vweird.f32 %v7175
  %vm7182 = vmor %vm7180, %vm7181
  %v7183 = vsel %vm7182, %v7175, %v7179
  %v7184 = vand.u32 2147483647, %v6800
  %vm7185 = vcmp.eq.f32.partialorder %v7184, 8.507059e+37
  %v7186 = vand.u32 %v6800, 2147483648
  %v7187 = vor.u32 1.1754944e-38, %v7186
  %v7188 = vsel %vm7185, %v7187, %v7183
  %v7189 = vmul.f32 1.0, %v7188
  %v7190 = vrcp.pop %v6801
  %v7191 = vmul.f32 %v6801, %v7190
  %v7192 = vsub.f32 1.0, %v7191
  %v7193 = vmul.f32 %v7190, %v7192
  %v7194 = vadd.f32 %v7190, %v7193
  %vm7195 = vweird.f32 %v6801
  %vm7196 = vweird.f32 %v7190
  %vm7197 = vmor %vm7195, %vm7196
  %v7198 = vsel %vm7197, %v7190, %v7194
  %v7199 = vand.u32 2147483647, %v6801
  %vm7200 = vcmp.eq.f32.partialorder %v7199, 8.507059e+37
  %v7201 = vand.u32 %v6801, 2147483648
  %v7202 = vor.u32 1.1754944e-38, %v7201
  %v7203 = vsel %vm7200, %v7202, %v7198
  %v7204 = vmul.f32 1.0, %v7203
  %v7205 = vrcp.pop %v6802
  %v7206 = vmul.f32 %v6802, %v7205
  %v7207 = vsub.f32 1.0, %v7206
  %v7208 = vmul.f32 %v7205, %v7207
  %v7209 = vadd.f32 %v7205, %v7208
  %vm7210 = vweird.f32 %v6802
  %vm7211 = vweird.f32 %v7205
  %vm7212 = vmor %vm7210, %vm7211
  %v7213 = vsel %vm7212, %v7205, %v7209
  %v7214 = vand.u32 2147483647, %v6802
  %vm7215 = vcmp.eq.f32.partialorder %v7214, 8.507059e+37
  %v7216 = vand.u32 %v6802, 2147483648
  %v7217 = vor.u32 1.1754944e-38, %v7216
  %v7218 = vsel %vm7215, %v7217, %v7213
  %v7219 = vmul.f32 1.0, %v7218
  %v7220 = vrcp.pop %v6803
  %v7221 = vmul.f32 %v6803, %v7220
  %v7222 = vsub.f32 1.0, %v7221
  %v7223 = vmul.f32 %v7220, %v7222
  %v7224 = vadd.f32 %v7220, %v7223
  %vm7225 = vweird.f32 %v6803
  %vm7226 = vweird.f32 %v7220
  %vm7227 = vmor %vm7225, %vm7226
  %v7228 = vsel %vm7227, %v7220, %v7224
  %v7229 = vand.u32 2147483647, %v6803
  %vm7230 = vcmp.eq.f32.partialorder %v7229, 8.507059e+37
  %v7231 = vand.u32 %v6803, 2147483648
  %v7232 = vor.u32 1.1754944e-38, %v7231
  %v7233 = vsel %vm7230, %v7232, %v7228
  %v7234 = vmul.f32 1.0, %v7233
  %v7235 = vrcp.pop %v6804
  %v7236 = vmul.f32 %v6804, %v7235
  %v7237 = vsub.f32 1.0, %v7236
  %v7238 = vmul.f32 %v7235, %v7237
  %v7239 = vadd.f32 %v7235, %v7238
  %vm7240 = vweird.f32 %v6804
  %vm7241 = vweird.f32 %v7235
  %vm7242 = vmor %vm7240, %vm7241
  %v7243 = vsel %vm7242, %v7235, %v7239
  %v7244 = vand.u32 2147483647, %v6804
  %vm7245 = vcmp.eq.f32.partialorder %v7244, 8.507059e+37
  %v7246 = vand.u32 %v6804, 2147483648
  %v7247 = vor.u32 1.1754944e-38, %v7246
  %v7248 = vsel %vm7245, %v7247, %v7243
  %v7249 = vmul.f32 1.0, %v7248
  %v7250 = vrcp.pop %v6805
  %v7251 = vmul.f32 %v6805, %v7250
  %v7252 = vsub.f32 1.0, %v7251
  %v7253 = vmul.f32 %v7250, %v7252
  %v7254 = vadd.f32 %v7250, %v7253
  %vm7255 = vweird.f32 %v6805
  %vm7256 = vweird.f32 %v7250
  %vm7257 = vmor %vm7255, %vm7256
  %v7258 = vsel %vm7257, %v7250, %v7254
  %v7259 = vand.u32 2147483647, %v6805
  %vm7260 = vcmp.eq.f32.partialorder %v7259, 8.507059e+37
  %v7261 = vand.u32 %v6805, 2147483648
  %v7262 = vor.u32 1.1754944e-38, %v7261
  %v7263 = vsel %vm7260, %v7262, %v7258
  %v7264 = vmul.f32 1.0, %v7263
  %v7265 = vrcp.pop %v6806
  %v7266 = vmul.f32 %v6806, %v7265
  %v7267 = vsub.f32 1.0, %v7266
  %v7268 = vmul.f32 %v7265, %v7267
  %v7269 = vadd.f32 %v7265, %v7268
  %vm7270 = vweird.f32 %v6806
  %vm7271 = vweird.f32 %v7265
  %vm7272 = vmor %vm7270, %vm7271
  %v7273 = vsel %vm7272, %v7265, %v7269
  %v7274 = vand.u32 2147483647, %v6806
  %vm7275 = vcmp.eq.f32.partialorder %v7274, 8.507059e+37
  %v7276 = vand.u32 %v6806, 2147483648
  %v7277 = vor.u32 1.1754944e-38, %v7276
  %v7278 = vsel %vm7275, %v7277, %v7273
  %v7279 = vmul.f32 1.0, %v7278
  %v7280 = vrcp.pop %v6807
  %v7281 = vmul.f32 %v6807, %v7280
  %v7282 = vsub.f32 1.0, %v7281
  %v7283 = vmul.f32 %v7280, %v7282
  %v7284 = vadd.f32 %v7280, %v7283
  %vm7285 = vweird.f32 %v6807
  %vm7286 = vweird.f32 %v7280
  %vm7287 = vmor %vm7285, %vm7286
  %v7288 = vsel %vm7287, %v7280, %v7284
  %v7289 = vand.u32 2147483647, %v6807
  %vm7290 = vcmp.eq.f32.partialorder %v7289, 8.507059e+37
  %v7291 = vand.u32 %v6807, 2147483648
  %v7292 = vor.u32 1.1754944e-38, %v7291
  %v7293 = vsel %vm7290, %v7292, %v7288
  %v7294 = vmul.f32 1.0, %v7293
  %v7295 = vrcp.pop %v6808
  %v7296 = vmul.f32 %v6808, %v7295
  %v7297 = vsub.f32 1.0, %v7296
  %v7298 = vmul.f32 %v7295, %v7297
  %v7299 = vadd.f32 %v7295, %v7298
  %vm7300 = vweird.f32 %v6808
  %vm7301 = vweird.f32 %v7295
  %vm7302 = vmor %vm7300, %vm7301
  %v7303 = vsel %vm7302, %v7295, %v7299
  %v7304 = vand.u32 2147483647, %v6808
  %vm7305 = vcmp.eq.f32.partialorder %v7304, 8.507059e+37
  %v7306 = vand.u32 %v6808, 2147483648
  %v7307 = vor.u32 1.1754944e-38, %v7306
  %v7308 = vsel %vm7305, %v7307, %v7303
  %v7309 = vmul.f32 1.0, %v7308
  %v7310 = vrcp.pop %v6809
  %v7311 = vmul.f32 %v6809, %v7310
  %v7312 = vsub.f32 1.0, %v7311
  %v7313 = vmul.f32 %v7310, %v7312
  %v7314 = vadd.f32 %v7310, %v7313
  %vm7315 = vweird.f32 %v6809
  %vm7316 = vweird.f32 %v7310
  %vm7317 = vmor %vm7315, %vm7316
  %v7318 = vsel %vm7317, %v7310, %v7314
  %v7319 = vand.u32 2147483647, %v6809
  %vm7320 = vcmp.eq.f32.partialorder %v7319, 8.507059e+37
  %v7321 = vand.u32 %v6809, 2147483648
  %v7322 = vor.u32 1.1754944e-38, %v7321
  %v7323 = vsel %vm7320, %v7322, %v7318
  %v7324 = vmul.f32 1.0, %v7323
  %v7325 = vrcp.pop %v6810
  %v7326 = vmul.f32 %v6810, %v7325
  %v7327 = vsub.f32 1.0, %v7326
  %v7328 = vmul.f32 %v7325, %v7327
  %v7329 = vadd.f32 %v7325, %v7328
  %vm7330 = vweird.f32 %v6810
  %vm7331 = vweird.f32 %v7325
  %vm7332 = vmor %vm7330, %vm7331
  %v7333 = vsel %vm7332, %v7325, %v7329
  %v7334 = vand.u32 2147483647, %v6810
  %vm7335 = vcmp.eq.f32.partialorder %v7334, 8.507059e+37
  %v7336 = vand.u32 %v6810, 2147483648
  %v7337 = vor.u32 1.1754944e-38, %v7336
  %v7338 = vsel %vm7335, %v7337, %v7333
  %v7339 = vmul.f32 1.0, %v7338
  %v7340 = vrcp.pop %v6811
  %v7341 = vmul.f32 %v6811, %v7340
  %v7342 = vsub.f32 1.0, %v7341
  %v7343 = vmul.f32 %v7340, %v7342
  %v7344 = vadd.f32 %v7340, %v7343
  %vm7345 = vweird.f32 %v6811
  %vm7346 = vweird.f32 %v7340
  %vm7347 = vmor %vm7345, %vm7346
  %v7348 = vsel %vm7347, %v7340, %v7344
  %v7349 = vand.u32 2147483647, %v6811
  %vm7350 = vcmp.eq.f32.partialorder %v7349, 8.507059e+37
  %v7351 = vand.u32 %v6811, 2147483648
  %v7352 = vor.u32 1.1754944e-38, %v7351
  %v7353 = vsel %vm7350, %v7352, %v7348
  %v7354 = vmul.f32 1.0, %v7353
  %v7355 = vrcp.pop %v6812
  %v7356 = vmul.f32 %v6812, %v7355
  %v7357 = vsub.f32 1.0, %v7356
  %v7358 = vmul.f32 %v7355, %v7357
  %v7359 = vadd.f32 %v7355, %v7358
  %vm7360 = vweird.f32 %v6812
  %vm7361 = vweird.f32 %v7355
  %vm7362 = vmor %vm7360, %vm7361
  %v7363 = vsel %vm7362, %v7355, %v7359
  %v7364 = vand.u32 2147483647, %v6812
  %vm7365 = vcmp.eq.f32.partialorder %v7364, 8.507059e+37
  %v7366 = vand.u32 %v6812, 2147483648
  %v7367 = vor.u32 1.1754944e-38, %v7366
  %v7368 = vsel %vm7365, %v7367, %v7363
  %v7369 = vmul.f32 1.0, %v7368
  %v7370 = vrcp.pop %v6813
  %v7371 = vmul.f32 %v6813, %v7370
  %v7372 = vsub.f32 1.0, %v7371
  %v7373 = vmul.f32 %v7370, %v7372
  %v7374 = vadd.f32 %v7370, %v7373
  %vm7375 = vweird.f32 %v6813
  %vm7376 = vweird.f32 %v7370
  %vm7377 = vmor %vm7375, %vm7376
  %v7378 = vsel %vm7377, %v7370, %v7374
  %v7379 = vand.u32 2147483647, %v6813
  %vm7380 = vcmp.eq.f32.partialorder %v7379, 8.507059e+37
  %v7381 = vand.u32 %v6813, 2147483648
  %v7382 = vor.u32 1.1754944e-38, %v7381
  %v7383 = vsel %vm7380, %v7382, %v7378
  %v7384 = vmul.f32 1.0, %v7383
  %v7385 = vrcp.pop %v6814
  %v7386 = vmul.f32 %v6814, %v7385
  %v7387 = vsub.f32 1.0, %v7386
  %v7388 = vmul.f32 %v7385, %v7387
  %v7389 = vadd.f32 %v7385, %v7388
  %vm7390 = vweird.f32 %v6814
  %vm7391 = vweird.f32 %v7385
  %vm7392 = vmor %vm7390, %vm7391
  %v7393 = vsel %vm7392, %v7385, %v7389
  %v7394 = vand.u32 2147483647, %v6814
  %vm7395 = vcmp.eq.f32.partialorder %v7394, 8.507059e+37
  %v7396 = vand.u32 %v6814, 2147483648
  %v7397 = vor.u32 1.1754944e-38, %v7396
  %v7398 = vsel %vm7395, %v7397, %v7393
  %v7399 = vmul.f32 1.0, %v7398
  %v7400 = vrcp.pop %v6815
  %v7401 = vmul.f32 %v6815, %v7400
  %v7402 = vsub.f32 1.0, %v7401
  %v7403 = vmul.f32 %v7400, %v7402
  %v7404 = vadd.f32 %v7400, %v7403
  %vm7405 = vweird.f32 %v6815
  %vm7406 = vweird.f32 %v7400
  %vm7407 = vmor %vm7405, %vm7406
  %v7408 = vsel %vm7407, %v7400, %v7404
  %v7409 = vand.u32 2147483647, %v6815
  %vm7410 = vcmp.eq.f32.partialorder %v7409, 8.507059e+37
  %v7411 = vand.u32 %v6815, 2147483648
  %v7412 = vor.u32 1.1754944e-38, %v7411
  %v7413 = vsel %vm7410, %v7412, %v7408
  %v7414 = vmul.f32 1.0, %v7413
  %v7415 = vrcp.pop %v6816
  %v7416 = vmul.f32 %v6816, %v7415
  %v7417 = vsub.f32 1.0, %v7416
  %v7418 = vmul.f32 %v7415, %v7417
  %v7419 = vadd.f32 %v7415, %v7418
  %vm7420 = vweird.f32 %v6816
  %vm7421 = vweird.f32 %v7415
  %vm7422 = vmor %vm7420, %vm7421
  %v7423 = vsel %vm7422, %v7415, %v7419
  %v7424 = vand.u32 2147483647, %v6816
  %vm7425 = vcmp.eq.f32.partialorder %v7424, 8.507059e+37
  %v7426 = vand.u32 %v6816, 2147483648
  %v7427 = vor.u32 1.1754944e-38, %v7426
  %v7428 = vsel %vm7425, %v7427, %v7423
  %v7429 = vmul.f32 1.0, %v7428
  %v7430 = vrcp.pop %v6817
  %v7431 = vmul.f32 %v6817, %v7430
  %v7432 = vsub.f32 1.0, %v7431
  %v7433 = vmul.f32 %v7430, %v7432
  %v7434 = vadd.f32 %v7430, %v7433
  %vm7435 = vweird.f32 %v6817
  %vm7436 = vweird.f32 %v7430
  %vm7437 = vmor %vm7435, %vm7436
  %v7438 = vsel %vm7437, %v7430, %v7434
  %v7439 = vand.u32 2147483647, %v6817
  %vm7440 = vcmp.eq.f32.partialorder %v7439, 8.507059e+37
  %v7441 = vand.u32 %v6817, 2147483648
  %v7442 = vor.u32 1.1754944e-38, %v7441
  %v7443 = vsel %vm7440, %v7442, %v7438
  %v7444 = vmul.f32 1.0, %v7443
  %v7445 = vrcp.pop %v6818
  %v7446 = vmul.f32 %v6818, %v7445
  %v7447 = vsub.f32 1.0, %v7446
  %v7448 = vmul.f32 %v7445, %v7447
  %v7449 = vadd.f32 %v7445, %v7448
  %vm7450 = vweird.f32 %v6818
  %vm7451 = vweird.f32 %v7445
  %vm7452 = vmor %vm7450, %vm7451
  %v7453 = vsel %vm7452, %v7445, %v7449
  %v7454 = vand.u32 2147483647, %v6818
  %vm7455 = vcmp.eq.f32.partialorder %v7454, 8.507059e+37
  %v7456 = vand.u32 %v6818, 2147483648
  %v7457 = vor.u32 1.1754944e-38, %v7456
  %v7458 = vsel %vm7455, %v7457, %v7453
  %v7459 = vmul.f32 1.0, %v7458
  %v7460 = vrcp.pop %v6819
  %v7461 = vmul.f32 %v6819, %v7460
  %v7462 = vsub.f32 1.0, %v7461
  %v7463 = vmul.f32 %v7460, %v7462
  %v7464 = vadd.f32 %v7460, %v7463
  %vm7465 = vweird.f32 %v6819
  %vm7466 = vweird.f32 %v7460
  %vm7467 = vmor %vm7465, %vm7466
  %v7468 = vsel %vm7467, %v7460, %v7464
  %v7469 = vand.u32 2147483647, %v6819
  %vm7470 = vcmp.eq.f32.partialorder %v7469, 8.507059e+37
  %v7471 = vand.u32 %v6819, 2147483648
  %v7472 = vor.u32 1.1754944e-38, %v7471
  %v7473 = vsel %vm7470, %v7472, %v7468
  %v7474 = vmul.f32 1.0, %v7473
  %v7475 = vrcp.pop %v6820
  %v7476 = vmul.f32 %v6820, %v7475
  %v7477 = vsub.f32 1.0, %v7476
  %v7478 = vmul.f32 %v7475, %v7477
  %v7479 = vadd.f32 %v7475, %v7478
  %vm7480 = vweird.f32 %v6820
  %vm7481 = vweird.f32 %v7475
  %vm7482 = vmor %vm7480, %vm7481
  %v7483 = vsel %vm7482, %v7475, %v7479
  %v7484 = vand.u32 2147483647, %v6820
  %vm7485 = vcmp.eq.f32.partialorder %v7484, 8.507059e+37
  %v7486 = vand.u32 %v6820, 2147483648
  %v7487 = vor.u32 1.1754944e-38, %v7486
  %v7488 = vsel %vm7485, %v7487, %v7483
  %v7489 = vmul.f32 1.0, %v7488
  %v7490 = vrcp.pop %v6821
  %v7491 = vmul.f32 %v6821, %v7490
  %v7492 = vsub.f32 1.0, %v7491
  %v7493 = vmul.f32 %v7490, %v7492
  %v7494 = vadd.f32 %v7490, %v7493
  %vm7495 = vweird.f32 %v6821
  %vm7496 = vweird.f32 %v7490
  %vm7497 = vmor %vm7495, %vm7496
  %v7498 = vsel %vm7497, %v7490, %v7494
  %v7499 = vand.u32 2147483647, %v6821
  %vm7500 = vcmp.eq.f32.partialorder %v7499, 8.507059e+37
  %v7501 = vand.u32 %v6821, 2147483648
  %v7502 = vor.u32 1.1754944e-38, %v7501
  %v7503 = vsel %vm7500, %v7502, %v7498
  %v7504 = vmul.f32 1.0, %v7503
  %v7505 = vrcp.pop %v6822
  %v7506 = vmul.f32 %v6822, %v7505
  %v7507 = vsub.f32 1.0, %v7506
  %v7508 = vmul.f32 %v7505, %v7507
  %v7509 = vadd.f32 %v7505, %v7508
  %vm7510 = vweird.f32 %v6822
  %vm7511 = vweird.f32 %v7505
  %vm7512 = vmor %vm7510, %vm7511
  %v7513 = vsel %vm7512, %v7505, %v7509
  %v7514 = vand.u32 2147483647, %v6822
  %vm7515 = vcmp.eq.f32.partialorder %v7514, 8.507059e+37
  %v7516 = vand.u32 %v6822, 2147483648
  %v7517 = vor.u32 1.1754944e-38, %v7516
  %v7518 = vsel %vm7515, %v7517, %v7513
  %v7519 = vmul.f32 1.0, %v7518
  %v7520 = vrcp.pop %v6823
  %v7521 = vmul.f32 %v6823, %v7520
  %v7522 = vsub.f32 1.0, %v7521
  %v7523 = vmul.f32 %v7520, %v7522
  %v7524 = vadd.f32 %v7520, %v7523
  %vm7525 = vweird.f32 %v6823
  %vm7526 = vweird.f32 %v7520
  %vm7527 = vmor %vm7525, %vm7526
  %v7528 = vsel %vm7527, %v7520, %v7524
  %v7529 = vand.u32 2147483647, %v6823
  %vm7530 = vcmp.eq.f32.partialorder %v7529, 8.507059e+37
  %v7531 = vand.u32 %v6823, 2147483648
  %v7532 = vor.u32 1.1754944e-38, %v7531
  %v7533 = vsel %vm7530, %v7532, %v7528
  %v7534 = vmul.f32 1.0, %v7533
  %v7535 = vrcp.pop %v6824
  %v7536 = vmul.f32 %v6824, %v7535
  %v7537 = vsub.f32 1.0, %v7536
  %v7538 = vmul.f32 %v7535, %v7537
  %v7539 = vadd.f32 %v7535, %v7538
  %vm7540 = vweird.f32 %v6824
  %vm7541 = vweird.f32 %v7535
  %vm7542 = vmor %vm7540, %vm7541
  %v7543 = vsel %vm7542, %v7535, %v7539
  %v7544 = vand.u32 2147483647, %v6824
  %vm7545 = vcmp.eq.f32.partialorder %v7544, 8.507059e+37
  %v7546 = vand.u32 %v6824, 2147483648
  %v7547 = vor.u32 1.1754944e-38, %v7546
  %v7548 = vsel %vm7545, %v7547, %v7543
  %v7549 = vmul.f32 1.0, %v7548
  %v7550 = vrcp.pop %v6825
  %v7551 = vmul.f32 %v6825, %v7550
  %v7552 = vsub.f32 1.0, %v7551
  %v7553 = vmul.f32 %v7550, %v7552
  %v7554 = vadd.f32 %v7550, %v7553
  %vm7555 = vweird.f32 %v6825
  %vm7556 = vweird.f32 %v7550
  %vm7557 = vmor %vm7555, %vm7556
  %v7558 = vsel %vm7557, %v7550, %v7554
  %v7559 = vand.u32 2147483647, %v6825
  %vm7560 = vcmp.eq.f32.partialorder %v7559, 8.507059e+37
  %v7561 = vand.u32 %v6825, 2147483648
  %v7562 = vor.u32 1.1754944e-38, %v7561
  %v7563 = vsel %vm7560, %v7562, %v7558
  %v7564 = vmul.f32 1.0, %v7563
  %v7565 = vrcp.pop %v6826
  %v7566 = vmul.f32 %v6826, %v7565
  %v7567 = vsub.f32 1.0, %v7566
  %v7568 = vmul.f32 %v7565, %v7567
  %v7569 = vadd.f32 %v7565, %v7568
  %vm7570 = vweird.f32 %v6826
  %vm7571 = vweird.f32 %v7565
  %vm7572 = vmor %vm7570, %vm7571
  %v7573 = vsel %vm7572, %v7565, %v7569
  %v7574 = vand.u32 2147483647, %v6826
  %vm7575 = vcmp.eq.f32.partialorder %v7574, 8.507059e+37
  %v7576 = vand.u32 %v6826, 2147483648
  %v7577 = vor.u32 1.1754944e-38, %v7576
  %v7578 = vsel %vm7575, %v7577, %v7573
  %v7579 = vmul.f32 1.0, %v7578
  %v7580 = vrcp.pop %v6827
  %v7581 = vmul.f32 %v6827, %v7580
  %v7582 = vsub.f32 1.0, %v7581
  %v7583 = vmul.f32 %v7580, %v7582
  %v7584 = vadd.f32 %v7580, %v7583
  %vm7585 = vweird.f32 %v6827
  %vm7586 = vweird.f32 %v7580
  %vm7587 = vmor %vm7585, %vm7586
  %v7588 = vsel %vm7587, %v7580, %v7584
  %v7589 = vand.u32 2147483647, %v6827
  %vm7590 = vcmp.eq.f32.partialorder %v7589, 8.507059e+37
  %v7591 = vand.u32 %v6827, 2147483648
  %v7592 = vor.u32 1.1754944e-38, %v7591
  %v7593 = vsel %vm7590, %v7592, %v7588
  %v7594 = vmul.f32 1.0, %v7593
  %v7595 = vrcp.pop %v6828
  %v7596 = vmul.f32 %v6828, %v7595
  %v7597 = vsub.f32 1.0, %v7596
  %v7598 = vmul.f32 %v7595, %v7597
  %v7599 = vadd.f32 %v7595, %v7598
  %vm7600 = vweird.f32 %v6828
  %vm7601 = vweird.f32 %v7595
  %vm7602 = vmor %vm7600, %vm7601
  %v7603 = vsel %vm7602, %v7595, %v7599
  %v7604 = vand.u32 2147483647, %v6828
  %vm7605 = vcmp.eq.f32.partialorder %v7604, 8.507059e+37
  %v7606 = vand.u32 %v6828, 2147483648
  %v7607 = vor.u32 1.1754944e-38, %v7606
  %v7608 = vsel %vm7605, %v7607, %v7603
  %v7609 = vmul.f32 1.0, %v7608
  %v7610 = vrcp.pop %v6829
  %v7611 = vmul.f32 %v6829, %v7610
  %v7612 = vsub.f32 1.0, %v7611
  %v7613 = vmul.f32 %v7610, %v7612
  %v7614 = vadd.f32 %v7610, %v7613
  %vm7615 = vweird.f32 %v6829
  %vm7616 = vweird.f32 %v7610
  %vm7617 = vmor %vm7615, %vm7616
  %v7618 = vsel %vm7617, %v7610, %v7614
  %v7619 = vand.u32 2147483647, %v6829
  %vm7620 = vcmp.eq.f32.partialorder %v7619, 8.507059e+37
  %v7621 = vand.u32 %v6829, 2147483648
  %v7622 = vor.u32 1.1754944e-38, %v7621
  %v7623 = vsel %vm7620, %v7622, %v7618
  %v7624 = vmul.f32 1.0, %v7623
  %v7625 = vrcp.pop %v6830
  %v7626 = vmul.f32 %v6830, %v7625
  %v7627 = vsub.f32 1.0, %v7626
  %v7628 = vmul.f32 %v7625, %v7627
  %v7629 = vadd.f32 %v7625, %v7628
  %vm7630 = vweird.f32 %v6830
  %vm7631 = vweird.f32 %v7625
  %vm7632 = vmor %vm7630, %vm7631
  %v7633 = vsel %vm7632, %v7625, %v7629
  %v7634 = vand.u32 2147483647, %v6830
  %vm7635 = vcmp.eq.f32.partialorder %v7634, 8.507059e+37
  %v7636 = vand.u32 %v6830, 2147483648
  %v7637 = vor.u32 1.1754944e-38, %v7636
  %v7638 = vsel %vm7635, %v7637, %v7633
  %v7639 = vmul.f32 1.0, %v7638
  %v7640 = vrcp.pop %v6831
  %v7641 = vmul.f32 %v6831, %v7640
  %v7642 = vsub.f32 1.0, %v7641
  %v7643 = vmul.f32 %v7640, %v7642
  %v7644 = vadd.f32 %v7640, %v7643
  %vm7645 = vweird.f32 %v6831
  %vm7646 = vweird.f32 %v7640
  %vm7647 = vmor %vm7645, %vm7646
  %v7648 = vsel %vm7647, %v7640, %v7644
  %v7649 = vand.u32 2147483647, %v6831
  %vm7650 = vcmp.eq.f32.partialorder %v7649, 8.507059e+37
  %v7651 = vand.u32 %v6831, 2147483648
  %v7652 = vor.u32 1.1754944e-38, %v7651
  %v7653 = vsel %vm7650, %v7652, %v7648
  %v7654 = vmul.f32 1.0, %v7653
  %v7655 = vrcp.pop %v6832
  %v7656 = vmul.f32 %v6832, %v7655
  %v7657 = vsub.f32 1.0, %v7656
  %v7658 = vmul.f32 %v7655, %v7657
  %v7659 = vadd.f32 %v7655, %v7658
  %vm7660 = vweird.f32 %v6832
  %vm7661 = vweird.f32 %v7655
  %vm7662 = vmor %vm7660, %vm7661
  %v7663 = vsel %vm7662, %v7655, %v7659
  %v7664 = vand.u32 2147483647, %v6832
  %vm7665 = vcmp.eq.f32.partialorder %v7664, 8.507059e+37
  %v7666 = vand.u32 %v6832, 2147483648
  %v7667 = vor.u32 1.1754944e-38, %v7666
  %v7668 = vsel %vm7665, %v7667, %v7663
  %v7669 = vmul.f32 1.0, %v7668
  %v7670 = vrcp.pop %v6833
  %v7671 = vmul.f32 %v6833, %v7670
  %v7672 = vsub.f32 1.0, %v7671
  %v7673 = vmul.f32 %v7670, %v7672
  %v7674 = vadd.f32 %v7670, %v7673
  %vm7675 = vweird.f32 %v6833
  %vm7676 = vweird.f32 %v7670
  %vm7677 = vmor %vm7675, %vm7676
  %v7678 = vsel %vm7677, %v7670, %v7674
  %v7679 = vand.u32 2147483647, %v6833
  %vm7680 = vcmp.eq.f32.partialorder %v7679, 8.507059e+37
  %v7681 = vand.u32 %v6833, 2147483648
  %v7682 = vor.u32 1.1754944e-38, %v7681
  %v7683 = vsel %vm7680, %v7682, %v7678
  %v7684 = vmul.f32 1.0, %v7683
  %v7685 = vrcp.pop %v6834
  %v7686 = vmul.f32 %v6834, %v7685
  %v7687 = vsub.f32 1.0, %v7686
  %v7688 = vmul.f32 %v7685, %v7687
  %v7689 = vadd.f32 %v7685, %v7688
  %vm7690 = vweird.f32 %v6834
  %vm7691 = vweird.f32 %v7685
  %vm7692 = vmor %vm7690, %vm7691
  %v7693 = vsel %vm7692, %v7685, %v7689
  %v7694 = vand.u32 2147483647, %v6834
  %vm7695 = vcmp.eq.f32.partialorder %v7694, 8.507059e+37
  %v7696 = vand.u32 %v6834, 2147483648
  %v7697 = vor.u32 1.1754944e-38, %v7696
  %v7698 = vsel %vm7695, %v7697, %v7693
  %v7699 = vmul.f32 1.0, %v7698
  %v7700 = vrcp.pop %v6835
  %v7701 = vmul.f32 %v6835, %v7700
  %v7702 = vsub.f32 1.0, %v7701
  %v7703 = vmul.f32 %v7700, %v7702
  %v7704 = vadd.f32 %v7700, %v7703
  %vm7705 = vweird.f32 %v6835
  %vm7706 = vweird.f32 %v7700
  %vm7707 = vmor %vm7705, %vm7706
  %v7708 = vsel %vm7707, %v7700, %v7704
  %v7709 = vand.u32 2147483647, %v6835
  %vm7710 = vcmp.eq.f32.partialorder %v7709, 8.507059e+37
  %v7711 = vand.u32 %v6835, 2147483648
  %v7712 = vor.u32 1.1754944e-38, %v7711
  %v7713 = vsel %vm7710, %v7712, %v7708
  %v7714 = vmul.f32 1.0, %v7713
  %v7715 = vrcp.pop %v6836
  %v7716 = vmul.f32 %v6836, %v7715
  %v7717 = vsub.f32 1.0, %v7716
  %v7718 = vmul.f32 %v7715, %v7717
  %v7719 = vadd.f32 %v7715, %v7718
  %vm7720 = vweird.f32 %v6836
  %vm7721 = vweird.f32 %v7715
  %vm7722 = vmor %vm7720, %vm7721
  %v7723 = vsel %vm7722, %v7715, %v7719
  %v7724 = vand.u32 2147483647, %v6836
  %vm7725 = vcmp.eq.f32.partialorder %v7724, 8.507059e+37
  %v7726 = vand.u32 %v6836, 2147483648
  %v7727 = vor.u32 1.1754944e-38, %v7726
  %v7728 = vsel %vm7725, %v7727, %v7723
  %v7729 = vmul.f32 1.0, %v7728
  %v7730 = vrcp.pop %v6837
  %v7731 = vmul.f32 %v6837, %v7730
  %v7732 = vsub.f32 1.0, %v7731
  %v7733 = vmul.f32 %v7730, %v7732
  %v7734 = vadd.f32 %v7730, %v7733
  %vm7735 = vweird.f32 %v6837
  %vm7736 = vweird.f32 %v7730
  %vm7737 = vmor %vm7735, %vm7736
  %v7738 = vsel %vm7737, %v7730, %v7734
  %v7739 = vand.u32 2147483647, %v6837
  %vm7740 = vcmp.eq.f32.partialorder %v7739, 8.507059e+37
  %v7741 = vand.u32 %v6837, 2147483648
  %v7742 = vor.u32 1.1754944e-38, %v7741
  %v7743 = vsel %vm7740, %v7742, %v7738
  %v7744 = vmul.f32 1.0, %v7743
  %v7745 = vrcp.pop %v6838
  %v7746 = vmul.f32 %v6838, %v7745
  %v7747 = vsub.f32 1.0, %v7746
  %v7748 = vmul.f32 %v7745, %v7747
  %v7749 = vadd.f32 %v7745, %v7748
  %vm7750 = vweird.f32 %v6838
  %vm7751 = vweird.f32 %v7745
  %vm7752 = vmor %vm7750, %vm7751
  %v7753 = vsel %vm7752, %v7745, %v7749
  %v7754 = vand.u32 2147483647, %v6838
  %vm7755 = vcmp.eq.f32.partialorder %v7754, 8.507059e+37
  %v7756 = vand.u32 %v6838, 2147483648
  %v7757 = vor.u32 1.1754944e-38, %v7756
  %v7758 = vsel %vm7755, %v7757, %v7753
  %v7759 = vmul.f32 1.0, %v7758
  %v7760 = vrcp.pop %v6839
  %v7761 = vmul.f32 %v6839, %v7760
  %v7762 = vsub.f32 1.0, %v7761
  %v7763 = vmul.f32 %v7760, %v7762
  %v7764 = vadd.f32 %v7760, %v7763
  %vm7765 = vweird.f32 %v6839
  %vm7766 = vweird.f32 %v7760
  %vm7767 = vmor %vm7765, %vm7766
  %v7768 = vsel %vm7767, %v7760, %v7764
  %v7769 = vand.u32 2147483647, %v6839
  %vm7770 = vcmp.eq.f32.partialorder %v7769, 8.507059e+37
  %v7771 = vand.u32 %v6839, 2147483648
  %v7772 = vor.u32 1.1754944e-38, %v7771
  %v7773 = vsel %vm7770, %v7772, %v7768
  %v7774 = vmul.f32 1.0, %v7773
  %v7775 = vrcp.pop %v6840
  %v7776 = vmul.f32 %v6840, %v7775
  %v7777 = vsub.f32 1.0, %v7776
  %v7778 = vmul.f32 %v7775, %v7777
  %v7779 = vadd.f32 %v7775, %v7778
  %vm7780 = vweird.f32 %v6840
  %vm7781 = vweird.f32 %v7775
  %vm7782 = vmor %vm7780, %vm7781
  %v7783 = vsel %vm7782, %v7775, %v7779
  %v7784 = vand.u32 2147483647, %v6840
  %vm7785 = vcmp.eq.f32.partialorder %v7784, 8.507059e+37
  %v7786 = vand.u32 %v6840, 2147483648
  %v7787 = vor.u32 1.1754944e-38, %v7786
  %v7788 = vsel %vm7785, %v7787, %v7783
  %v7789 = vmul.f32 1.0, %v7788
  %v7790 = vrcp.pop %v6841
  %v7791 = vmul.f32 %v6841, %v7790
  %v7792 = vsub.f32 1.0, %v7791
  %v7793 = vmul.f32 %v7790, %v7792
  %v7794 = vadd.f32 %v7790, %v7793
  %vm7795 = vweird.f32 %v6841
  %vm7796 = vweird.f32 %v7790
  %vm7797 = vmor %vm7795, %vm7796
  %v7798 = vsel %vm7797, %v7790, %v7794
  %v7799 = vand.u32 2147483647, %v6841
  %vm7800 = vcmp.eq.f32.partialorder %v7799, 8.507059e+37
  %v7801 = vand.u32 %v6841, 2147483648
  %v7802 = vor.u32 1.1754944e-38, %v7801
  %v7803 = vsel %vm7800, %v7802, %v7798
  %v7804 = vmul.f32 1.0, %v7803
  %v7805 = vrcp.pop %v6842
  %v7806 = vmul.f32 %v6842, %v7805
  %v7807 = vsub.f32 1.0, %v7806
  %v7808 = vmul.f32 %v7805, %v7807
  %v7809 = vadd.f32 %v7805, %v7808
  %vm7810 = vweird.f32 %v6842
  %vm7811 = vweird.f32 %v7805
  %vm7812 = vmor %vm7810, %vm7811
  %v7813 = vsel %vm7812, %v7805, %v7809
  %v7814 = vand.u32 2147483647, %v6842
  %vm7815 = vcmp.eq.f32.partialorder %v7814, 8.507059e+37
  %v7816 = vand.u32 %v6842, 2147483648
  %v7817 = vor.u32 1.1754944e-38, %v7816
  %v7818 = vsel %vm7815, %v7817, %v7813
  %v7819 = vmul.f32 1.0, %v7818
  %v7820 = vrcp.pop %v6843
  %v7821 = vmul.f32 %v6843, %v7820
  %v7822 = vsub.f32 1.0, %v7821
  %v7823 = vmul.f32 %v7820, %v7822
  %v7824 = vadd.f32 %v7820, %v7823
  %vm7825 = vweird.f32 %v6843
  %vm7826 = vweird.f32 %v7820
  %vm7827 = vmor %vm7825, %vm7826
  %v7828 = vsel %vm7827, %v7820, %v7824
  %v7829 = vand.u32 2147483647, %v6843
  %vm7830 = vcmp.eq.f32.partialorder %v7829, 8.507059e+37
  %v7831 = vand.u32 %v6843, 2147483648
  %v7832 = vor.u32 1.1754944e-38, %v7831
  %v7833 = vsel %vm7830, %v7832, %v7828
  %v7834 = vmul.f32 1.0, %v7833
  %v7835 = vrcp.pop %v6844
  %v7836 = vmul.f32 %v6844, %v7835
  %v7837 = vsub.f32 1.0, %v7836
  %v7838 = vmul.f32 %v7835, %v7837
  %v7839 = vadd.f32 %v7835, %v7838
  %vm7840 = vweird.f32 %v6844
  %vm7841 = vweird.f32 %v7835
  %vm7842 = vmor %vm7840, %vm7841
  %v7843 = vsel %vm7842, %v7835, %v7839
  %v7844 = vand.u32 2147483647, %v6844
  %vm7845 = vcmp.eq.f32.partialorder %v7844, 8.507059e+37
  %v7846 = vand.u32 %v6844, 2147483648
  %v7847 = vor.u32 1.1754944e-38, %v7846
  %v7848 = vsel %vm7845, %v7847, %v7843
  %v7849 = vmul.f32 1.0, %v7848
  %v7850 = vrcp.pop %v6845
  %v7851 = vmul.f32 %v6845, %v7850
  %v7852 = vsub.f32 1.0, %v7851
  %v7853 = vmul.f32 %v7850, %v7852
  %v7854 = vadd.f32 %v7850, %v7853
  %vm7855 = vweird.f32 %v6845
  %vm7856 = vweird.f32 %v7850
  %vm7857 = vmor %vm7855, %vm7856
  %v7858 = vsel %vm7857, %v7850, %v7854
  %v7859 = vand.u32 2147483647, %v6845
  %vm7860 = vcmp.eq.f32.partialorder %v7859, 8.507059e+37
  %v7861 = vand.u32 %v6845, 2147483648
  %v7862 = vor.u32 1.1754944e-38, %v7861
  %v7863 = vsel %vm7860, %v7862, %v7858
  %v7864 = vmul.f32 1.0, %v7863
  %v7865 = vrcp.pop %v6846
  %v7866 = vmul.f32 %v6846, %v7865
  %v7867 = vsub.f32 1.0, %v7866
  %v7868 = vmul.f32 %v7865, %v7867
  %v7869 = vadd.f32 %v7865, %v7868
  %vm7870 = vweird.f32 %v6846
  %vm7871 = vweird.f32 %v7865
  %vm7872 = vmor %vm7870, %vm7871
  %v7873 = vsel %vm7872, %v7865, %v7869
  %v7874 = vand.u32 2147483647, %v6846
  %vm7875 = vcmp.eq.f32.partialorder %v7874, 8.507059e+37
  %v7876 = vand.u32 %v6846, 2147483648
  %v7877 = vor.u32 1.1754944e-38, %v7876
  %v7878 = vsel %vm7875, %v7877, %v7873
  %v7879 = vmul.f32 1.0, %v7878
  %v7880 = vrcp.pop %v6847
  %v7881 = vmul.f32 %v6847, %v7880
  %v7882 = vsub.f32 1.0, %v7881
  %v7883 = vmul.f32 %v7880, %v7882
  %v7884 = vadd.f32 %v7880, %v7883
  %vm7885 = vweird.f32 %v6847
  %vm7886 = vweird.f32 %v7880
  %vm7887 = vmor %vm7885, %vm7886
  %v7888 = vsel %vm7887, %v7880, %v7884
  %v7889 = vand.u32 2147483647, %v6847
  %vm7890 = vcmp.eq.f32.partialorder %v7889, 8.507059e+37
  %v7891 = vand.u32 %v6847, 2147483648
  %v7892 = vor.u32 1.1754944e-38, %v7891
  %v7893 = vsel %vm7890, %v7892, %v7888
  %v7894 = vmul.f32 1.0, %v7893
  %v7895 = vrcp.pop %v6848
  %v7896 = vmul.f32 %v6848, %v7895
  %v7897 = vsub.f32 1.0, %v7896
  %v7898 = vmul.f32 %v7895, %v7897
  %v7899 = vadd.f32 %v7895, %v7898
  %vm7900 = vweird.f32 %v6848
  %vm7901 = vweird.f32 %v7895
  %vm7902 = vmor %vm7900, %vm7901
  %v7903 = vsel %vm7902, %v7895, %v7899
  %v7904 = vand.u32 2147483647, %v6848
  %vm7905 = vcmp.eq.f32.partialorder %v7904, 8.507059e+37
  %v7906 = vand.u32 %v6848, 2147483648
  %v7907 = vor.u32 1.1754944e-38, %v7906
  %v7908 = vsel %vm7905, %v7907, %v7903
  %v7909 = vmul.f32 1.0, %v7908
  %v7910 = vrcp.pop %v6849
  %v7911 = vmul.f32 %v6849, %v7910
  %v7912 = vsub.f32 1.0, %v7911
  %v7913 = vmul.f32 %v7910, %v7912
  %v7914 = vadd.f32 %v7910, %v7913
  %vm7915 = vweird.f32 %v6849
  %vm7916 = vweird.f32 %v7910
  %vm7917 = vmor %vm7915, %vm7916
  %v7918 = vsel %vm7917, %v7910, %v7914
  %v7919 = vand.u32 2147483647, %v6849
  %vm7920 = vcmp.eq.f32.partialorder %v7919, 8.507059e+37
  %v7921 = vand.u32 %v6849, 2147483648
  %v7922 = vor.u32 1.1754944e-38, %v7921
  %v7923 = vsel %vm7920, %v7922, %v7918
  %v7924 = vmul.f32 1.0, %v7923
  %v7925 = vrcp.pop %v6850
  %v7926 = vmul.f32 %v6850, %v7925
  %v7927 = vsub.f32 1.0, %v7926
  %v7928 = vmul.f32 %v7925, %v7927
  %v7929 = vadd.f32 %v7925, %v7928
  %vm7930 = vweird.f32 %v6850
  %vm7931 = vweird.f32 %v7925
  %vm7932 = vmor %vm7930, %vm7931
  %v7933 = vsel %vm7932, %v7925, %v7929
  %v7934 = vand.u32 2147483647, %v6850
  %vm7935 = vcmp.eq.f32.partialorder %v7934, 8.507059e+37
  %v7936 = vand.u32 %v6850, 2147483648
  %v7937 = vor.u32 1.1754944e-38, %v7936
  %v7938 = vsel %vm7935, %v7937, %v7933
  %v7939 = vmul.f32 1.0, %v7938
  %v7940 = vrcp.pop %v6851
  %v7941 = vmul.f32 %v6851, %v7940
  %v7942 = vsub.f32 1.0, %v7941
  %v7943 = vmul.f32 %v7940, %v7942
  %v7944 = vadd.f32 %v7940, %v7943
  %vm7945 = vweird.f32 %v6851
  %vm7946 = vweird.f32 %v7940
  %vm7947 = vmor %vm7945, %vm7946
  %v7948 = vsel %vm7947, %v7940, %v7944
  %v7949 = vand.u32 2147483647, %v6851
  %vm7950 = vcmp.eq.f32.partialorder %v7949, 8.507059e+37
  %v7951 = vand.u32 %v6851, 2147483648
  %v7952 = vor.u32 1.1754944e-38, %v7951
  %v7953 = vsel %vm7950, %v7952, %v7948
  %v7954 = vmul.f32 1.0, %v7953
  %v7955 = vrcp.pop %v6852
  %v7956 = vmul.f32 %v6852, %v7955
  %v7957 = vsub.f32 1.0, %v7956
  %v7958 = vmul.f32 %v7955, %v7957
  %v7959 = vadd.f32 %v7955, %v7958
  %vm7960 = vweird.f32 %v6852
  %vm7961 = vweird.f32 %v7955
  %vm7962 = vmor %vm7960, %vm7961
  %v7963 = vsel %vm7962, %v7955, %v7959
  %v7964 = vand.u32 2147483647, %v6852
  %vm7965 = vcmp.eq.f32.partialorder %v7964, 8.507059e+37
  %v7966 = vand.u32 %v6852, 2147483648
  %v7967 = vor.u32 1.1754944e-38, %v7966
  %v7968 = vsel %vm7965, %v7967, %v7963
  %v7969 = vmul.f32 1.0, %v7968
  %v7970 = vrcp.pop %v6853
  %v7971 = vmul.f32 %v6853, %v7970
  %v7972 = vsub.f32 1.0, %v7971
  %v7973 = vmul.f32 %v7970, %v7972
  %v7974 = vadd.f32 %v7970, %v7973
  %vm7975 = vweird.f32 %v6853
  %vm7976 = vweird.f32 %v7970
  %vm7977 = vmor %vm7975, %vm7976
  %v7978 = vsel %vm7977, %v7970, %v7974
  %v7979 = vand.u32 2147483647, %v6853
  %vm7980 = vcmp.eq.f32.partialorder %v7979, 8.507059e+37
  %v7981 = vand.u32 %v6853, 2147483648
  %v7982 = vor.u32 1.1754944e-38, %v7981
  %v7983 = vsel %vm7980, %v7982, %v7978
  %v7984 = vmul.f32 1.0, %v7983
  %v7985 = vrcp.pop %v6854
  %v7986 = vmul.f32 %v6854, %v7985
  %v7987 = vsub.f32 1.0, %v7986
  %v7988 = vmul.f32 %v7985, %v7987
  %v7989 = vadd.f32 %v7985, %v7988
  %vm7990 = vweird.f32 %v6854
  %vm7991 = vweird.f32 %v7985
  %vm7992 = vmor %vm7990, %vm7991
  %v7993 = vsel %vm7992, %v7985, %v7989
  %v7994 = vand.u32 2147483647, %v6854
  %vm7995 = vcmp.eq.f32.partialorder %v7994, 8.507059e+37
  %v7996 = vand.u32 %v6854, 2147483648
  %v7997 = vor.u32 1.1754944e-38, %v7996
  %v7998 = vsel %vm7995, %v7997, %v7993
  %v7999 = vmul.f32 1.0, %v7998
  %v8000 = vrcp.pop %v6855
  %v8001 = vmul.f32 %v6855, %v8000
  %v8002 = vsub.f32 1.0, %v8001
  %v8003 = vmul.f32 %v8000, %v8002
  %v8004 = vadd.f32 %v8000, %v8003
  %vm8005 = vweird.f32 %v6855
  %vm8006 = vweird.f32 %v8000
  %vm8007 = vmor %vm8005, %vm8006
  %v8008 = vsel %vm8007, %v8000, %v8004
  %v8009 = vand.u32 2147483647, %v6855
  %vm8010 = vcmp.eq.f32.partialorder %v8009, 8.507059e+37
  %v8011 = vand.u32 %v6855, 2147483648
  %v8012 = vor.u32 1.1754944e-38, %v8011
  %v8013 = vsel %vm8010, %v8012, %v8008
  %v8014 = vmul.f32 1.0, %v8013
  %v8015 = vrcp.pop %v6856
  %v8016 = vmul.f32 %v6856, %v8015
  %v8017 = vsub.f32 1.0, %v8016
  %v8018 = vmul.f32 %v8015, %v8017
  %v8019 = vadd.f32 %v8015, %v8018
  %vm8020 = vweird.f32 %v6856
  %vm8021 = vweird.f32 %v8015
  %vm8022 = vmor %vm8020, %vm8021
  %v8023 = vsel %vm8022, %v8015, %v8019
  %v8024 = vand.u32 2147483647, %v6856
  %vm8025 = vcmp.eq.f32.partialorder %v8024, 8.507059e+37
  %v8026 = vand.u32 %v6856, 2147483648
  %v8027 = vor.u32 1.1754944e-38, %v8026
  %v8028 = vsel %vm8025, %v8027, %v8023
  %v8029 = vmul.f32 1.0, %v8028
  %v8030 = vrcp.pop %v6857
  %v8031 = vmul.f32 %v6857, %v8030
  %v8032 = vsub.f32 1.0, %v8031
  %v8033 = vmul.f32 %v8030, %v8032
  %v8034 = vadd.f32 %v8030, %v8033
  %vm8035 = vweird.f32 %v6857
  %vm8036 = vweird.f32 %v8030
  %vm8037 = vmor %vm8035, %vm8036
  %v8038 = vsel %vm8037, %v8030, %v8034
  %v8039 = vand.u32 2147483647, %v6857
  %vm8040 = vcmp.eq.f32.partialorder %v8039, 8.507059e+37
  %v8041 = vand.u32 %v6857, 2147483648
  %v8042 = vor.u32 1.1754944e-38, %v8041
  %v8043 = vsel %vm8040, %v8042, %v8038
  %v8044 = vmul.f32 1.0, %v8043
  %v8045 = vrcp.pop %v6858
  %v8046 = vmul.f32 %v6858, %v8045
  %v8047 = vsub.f32 1.0, %v8046
  %v8048 = vmul.f32 %v8045, %v8047
  %v8049 = vadd.f32 %v8045, %v8048
  %vm8050 = vweird.f32 %v6858
  %vm8051 = vweird.f32 %v8045
  %vm8052 = vmor %vm8050, %vm8051
  %v8053 = vsel %vm8052, %v8045, %v8049
  %v8054 = vand.u32 2147483647, %v6858
  %vm8055 = vcmp.eq.f32.partialorder %v8054, 8.507059e+37
  %v8056 = vand.u32 %v6858, 2147483648
  %v8057 = vor.u32 1.1754944e-38, %v8056
  %v8058 = vsel %vm8055, %v8057, %v8053
  %v8059 = vmul.f32 1.0, %v8058
  %v8060 = vrcp.pop %v6859
  %v8061 = vmul.f32 %v6859, %v8060
  %v8062 = vsub.f32 1.0, %v8061
  %v8063 = vmul.f32 %v8060, %v8062
  %v8064 = vadd.f32 %v8060, %v8063
  %vm8065 = vweird.f32 %v6859
  %vm8066 = vweird.f32 %v8060
  %vm8067 = vmor %vm8065, %vm8066
  %v8068 = vsel %vm8067, %v8060, %v8064
  %v8069 = vand.u32 2147483647, %v6859
  %vm8070 = vcmp.eq.f32.partialorder %v8069, 8.507059e+37
  %v8071 = vand.u32 %v6859, 2147483648
  %v8072 = vor.u32 1.1754944e-38, %v8071
  %v8073 = vsel %vm8070, %v8072, %v8068
  %v8074 = vmul.f32 1.0, %v8073
  %8076 = vset.pattern.permute.xlu0 0
  %8077 = vperm.xlu0 %8076, %v6874
  %v8078 = vpop.permute.xlu0 %8077
  %8081 = vset.pattern.permute.xlu0 0
  %8082 = vperm.xlu0 %8081, %v6889
  %v8083 = vpop.permute.xlu0 %8082
  %8086 = vset.pattern.permute.xlu0 0
  %8087 = vperm.xlu0 %8086, %v6904
  %v8088 = vpop.permute.xlu0 %8087
  %8091 = vset.pattern.permute.xlu0 0
  %8092 = vperm.xlu0 %8091, %v6919
  %v8093 = vpop.permute.xlu0 %8092
  %8096 = vset.pattern.permute.xlu0 0
  %8097 = vperm.xlu0 %8096, %v6934
  %v8098 = vpop.permute.xlu0 %8097
  %8101 = vset.pattern.permute.xlu0 0
  %8102 = vperm.xlu0 %8101, %v6949
  %v8103 = vpop.permute.xlu0 %8102
  %8106 = vset.pattern.permute.xlu0 0
  %8107 = vperm.xlu0 %8106, %v6964
  %v8108 = vpop.permute.xlu0 %8107
  %8111 = vset.pattern.permute.xlu0 0
  %8112 = vperm.xlu0 %8111, %v6979
  %v8113 = vpop.permute.xlu0 %8112
  %8116 = vset.pattern.permute.xlu0 0
  %8117 = vperm.xlu0 %8116, %v6994
  %v8118 = vpop.permute.xlu0 %8117
  %8121 = vset.pattern.permute.xlu0 0
  %8122 = vperm.xlu0 %8121, %v7009
  %v8123 = vpop.permute.xlu0 %8122
  %8126 = vset.pattern.permute.xlu0 0
  %8127 = vperm.xlu0 %8126, %v7024
  %v8128 = vpop.permute.xlu0 %8127
  %8131 = vset.pattern.permute.xlu0 0
  %8132 = vperm.xlu0 %8131, %v7039
  %v8133 = vpop.permute.xlu0 %8132
  %8136 = vset.pattern.permute.xlu0 0
  %8137 = vperm.xlu0 %8136, %v7054
  %v8138 = vpop.permute.xlu0 %8137
  %8141 = vset.pattern.permute.xlu0 0
  %8142 = vperm.xlu0 %8141, %v7069
  %v8143 = vpop.permute.xlu0 %8142
  %8146 = vset.pattern.permute.xlu0 0
  %8147 = vperm.xlu0 %8146, %v7084
  %v8148 = vpop.permute.xlu0 %8147
  %8151 = vset.pattern.permute.xlu0 0
  %8152 = vperm.xlu0 %8151, %v7099
  %v8153 = vpop.permute.xlu0 %8152
  %8156 = vset.pattern.permute.xlu0 0
  %8157 = vperm.xlu0 %8156, %v7114
  %v8158 = vpop.permute.xlu0 %8157
  %8161 = vset.pattern.permute.xlu0 0
  %8162 = vperm.xlu0 %8161, %v7129
  %v8163 = vpop.permute.xlu0 %8162
  %8166 = vset.pattern.permute.xlu0 0
  %8167 = vperm.xlu0 %8166, %v7144
  %v8168 = vpop.permute.xlu0 %8167
  %8171 = vset.pattern.permute.xlu0 0
  %8172 = vperm.xlu0 %8171, %v7159
  %v8173 = vpop.permute.xlu0 %8172
  %8176 = vset.pattern.permute.xlu0 0
  %8177 = vperm.xlu0 %8176, %v7174
  %v8178 = vpop.permute.xlu0 %8177
  %8181 = vset.pattern.permute.xlu0 0
  %8182 = vperm.xlu0 %8181, %v7189
  %v8183 = vpop.permute.xlu0 %8182
  %8186 = vset.pattern.permute.xlu0 0
  %8187 = vperm.xlu0 %8186, %v7204
  %v8188 = vpop.permute.xlu0 %8187
  %8191 = vset.pattern.permute.xlu0 0
  %8192 = vperm.xlu0 %8191, %v7219
  %v8193 = vpop.permute.xlu0 %8192
  %8196 = vset.pattern.permute.xlu0 0
  %8197 = vperm.xlu0 %8196, %v7234
  %v8198 = vpop.permute.xlu0 %8197
  %8201 = vset.pattern.permute.xlu0 0
  %8202 = vperm.xlu0 %8201, %v7249
  %v8203 = vpop.permute.xlu0 %8202
  %8206 = vset.pattern.permute.xlu0 0
  %8207 = vperm.xlu0 %8206, %v7264
  %v8208 = vpop.permute.xlu0 %8207
  %8211 = vset.pattern.permute.xlu0 0
  %8212 = vperm.xlu0 %8211, %v7279
  %v8213 = vpop.permute.xlu0 %8212
  %8216 = vset.pattern.permute.xlu0 0
  %8217 = vperm.xlu0 %8216, %v7294
  %v8218 = vpop.permute.xlu0 %8217
  %8221 = vset.pattern.permute.xlu0 0
  %8222 = vperm.xlu0 %8221, %v7309
  %v8223 = vpop.permute.xlu0 %8222
  %8226 = vset.pattern.permute.xlu0 0
  %8227 = vperm.xlu0 %8226, %v7324
  %v8228 = vpop.permute.xlu0 %8227
  %8231 = vset.pattern.permute.xlu0 0
  %8232 = vperm.xlu0 %8231, %v7339
  %v8233 = vpop.permute.xlu0 %8232
  %8236 = vset.pattern.permute.xlu0 0
  %8237 = vperm.xlu0 %8236, %v7354
  %v8238 = vpop.permute.xlu0 %8237
  %8241 = vset.pattern.permute.xlu0 0
  %8242 = vperm.xlu0 %8241, %v7369
  %v8243 = vpop.permute.xlu0 %8242
  %8246 = vset.pattern.permute.xlu0 0
  %8247 = vperm.xlu0 %8246, %v7384
  %v8248 = vpop.permute.xlu0 %8247
  %8251 = vset.pattern.permute.xlu0 0
  %8252 = vperm.xlu0 %8251, %v7399
  %v8253 = vpop.permute.xlu0 %8252
  %8256 = vset.pattern.permute.xlu0 0
  %8257 = vperm.xlu0 %8256, %v7414
  %v8258 = vpop.permute.xlu0 %8257
  %8261 = vset.pattern.permute.xlu0 0
  %8262 = vperm.xlu0 %8261, %v7429
  %v8263 = vpop.permute.xlu0 %8262
  %8266 = vset.pattern.permute.xlu0 0
  %8267 = vperm.xlu0 %8266, %v7444
  %v8268 = vpop.permute.xlu0 %8267
  %8271 = vset.pattern.permute.xlu0 0
  %8272 = vperm.xlu0 %8271, %v7459
  %v8273 = vpop.permute.xlu0 %8272
  %8276 = vset.pattern.permute.xlu0 0
  %8277 = vperm.xlu0 %8276, %v7474
  %v8278 = vpop.permute.xlu0 %8277
  %8281 = vset.pattern.permute.xlu0 0
  %8282 = vperm.xlu0 %8281, %v7489
  %v8283 = vpop.permute.xlu0 %8282
  %8286 = vset.pattern.permute.xlu0 0
  %8287 = vperm.xlu0 %8286, %v7504
  %v8288 = vpop.permute.xlu0 %8287
  %8291 = vset.pattern.permute.xlu0 0
  %8292 = vperm.xlu0 %8291, %v7519
  %v8293 = vpop.permute.xlu0 %8292
  %8296 = vset.pattern.permute.xlu0 0
  %8297 = vperm.xlu0 %8296, %v7534
  %v8298 = vpop.permute.xlu0 %8297
  %8301 = vset.pattern.permute.xlu0 0
  %8302 = vperm.xlu0 %8301, %v7549
  %v8303 = vpop.permute.xlu0 %8302
  %8306 = vset.pattern.permute.xlu0 0
  %8307 = vperm.xlu0 %8306, %v7564
  %v8308 = vpop.permute.xlu0 %8307
  %8311 = vset.pattern.permute.xlu0 0
  %8312 = vperm.xlu0 %8311, %v7579
  %v8313 = vpop.permute.xlu0 %8312
  %8316 = vset.pattern.permute.xlu0 0
  %8317 = vperm.xlu0 %8316, %v7594
  %v8318 = vpop.permute.xlu0 %8317
  %8321 = vset.pattern.permute.xlu0 0
  %8322 = vperm.xlu0 %8321, %v7609
  %v8323 = vpop.permute.xlu0 %8322
  %8326 = vset.pattern.permute.xlu0 0
  %8327 = vperm.xlu0 %8326, %v7624
  %v8328 = vpop.permute.xlu0 %8327
  %8331 = vset.pattern.permute.xlu0 0
  %8332 = vperm.xlu0 %8331, %v7639
  %v8333 = vpop.permute.xlu0 %8332
  %8336 = vset.pattern.permute.xlu0 0
  %8337 = vperm.xlu0 %8336, %v7654
  %v8338 = vpop.permute.xlu0 %8337
  %8341 = vset.pattern.permute.xlu0 0
  %8342 = vperm.xlu0 %8341, %v7669
  %v8343 = vpop.permute.xlu0 %8342
  %8346 = vset.pattern.permute.xlu0 0
  %8347 = vperm.xlu0 %8346, %v7684
  %v8348 = vpop.permute.xlu0 %8347
  %8351 = vset.pattern.permute.xlu0 0
  %8352 = vperm.xlu0 %8351, %v7699
  %v8353 = vpop.permute.xlu0 %8352
  %8356 = vset.pattern.permute.xlu0 0
  %8357 = vperm.xlu0 %8356, %v7714
  %v8358 = vpop.permute.xlu0 %8357
  %8361 = vset.pattern.permute.xlu0 0
  %8362 = vperm.xlu0 %8361, %v7729
  %v8363 = vpop.permute.xlu0 %8362
  %8366 = vset.pattern.permute.xlu0 0
  %8367 = vperm.xlu0 %8366, %v7744
  %v8368 = vpop.permute.xlu0 %8367
  %8371 = vset.pattern.permute.xlu0 0
  %8372 = vperm.xlu0 %8371, %v7759
  %v8373 = vpop.permute.xlu0 %8372
  %8376 = vset.pattern.permute.xlu0 0
  %8377 = vperm.xlu0 %8376, %v7774
  %v8378 = vpop.permute.xlu0 %8377
  %8381 = vset.pattern.permute.xlu0 0
  %8382 = vperm.xlu0 %8381, %v7789
  %v8383 = vpop.permute.xlu0 %8382
  %8386 = vset.pattern.permute.xlu0 0
  %8387 = vperm.xlu0 %8386, %v7804
  %v8388 = vpop.permute.xlu0 %8387
  %8391 = vset.pattern.permute.xlu0 0
  %8392 = vperm.xlu0 %8391, %v7819
  %v8393 = vpop.permute.xlu0 %8392
  %8396 = vset.pattern.permute.xlu0 0
  %8397 = vperm.xlu0 %8396, %v7834
  %v8398 = vpop.permute.xlu0 %8397
  %8401 = vset.pattern.permute.xlu0 0
  %8402 = vperm.xlu0 %8401, %v7849
  %v8403 = vpop.permute.xlu0 %8402
  %8406 = vset.pattern.permute.xlu0 0
  %8407 = vperm.xlu0 %8406, %v7864
  %v8408 = vpop.permute.xlu0 %8407
  %8411 = vset.pattern.permute.xlu0 0
  %8412 = vperm.xlu0 %8411, %v7879
  %v8413 = vpop.permute.xlu0 %8412
  %8416 = vset.pattern.permute.xlu0 0
  %8417 = vperm.xlu0 %8416, %v7894
  %v8418 = vpop.permute.xlu0 %8417
  %8421 = vset.pattern.permute.xlu0 0
  %8422 = vperm.xlu0 %8421, %v7909
  %v8423 = vpop.permute.xlu0 %8422
  %8426 = vset.pattern.permute.xlu0 0
  %8427 = vperm.xlu0 %8426, %v7924
  %v8428 = vpop.permute.xlu0 %8427
  %8431 = vset.pattern.permute.xlu0 0
  %8432 = vperm.xlu0 %8431, %v7939
  %v8433 = vpop.permute.xlu0 %8432
  %8436 = vset.pattern.permute.xlu0 0
  %8437 = vperm.xlu0 %8436, %v7954
  %v8438 = vpop.permute.xlu0 %8437
  %8441 = vset.pattern.permute.xlu0 0
  %8442 = vperm.xlu0 %8441, %v7969
  %v8443 = vpop.permute.xlu0 %8442
  %8446 = vset.pattern.permute.xlu0 0
  %8447 = vperm.xlu0 %8446, %v7984
  %v8448 = vpop.permute.xlu0 %8447
  %8451 = vset.pattern.permute.xlu0 0
  %8452 = vperm.xlu0 %8451, %v7999
  %v8453 = vpop.permute.xlu0 %8452
  %8456 = vset.pattern.permute.xlu0 0
  %8457 = vperm.xlu0 %8456, %v8014
  %v8458 = vpop.permute.xlu0 %8457
  %8461 = vset.pattern.permute.xlu0 0
  %8462 = vperm.xlu0 %8461, %v8029
  %v8463 = vpop.permute.xlu0 %8462
  %8466 = vset.pattern.permute.xlu0 0
  %8467 = vperm.xlu0 %8466, %v8044
  %v8468 = vpop.permute.xlu0 %8467
  %8471 = vset.pattern.permute.xlu0 0
  %8472 = vperm.xlu0 %8471, %v8059
  %v8473 = vpop.permute.xlu0 %8472
  %8476 = vset.pattern.permute.xlu0 0
  %8477 = vperm.xlu0 %8476, %v8074
  %v8478 = vpop.permute.xlu0 %8477
  %v8480 = vmul.f32 %v6042, %v8078
  %v8481 = vmul.f32 %v6043, %v8083
  %v8482 = vmul.f32 %v6044, %v8088
  %v8483 = vmul.f32 %v6045, %v8093
  %v8484 = vmul.f32 %v6046, %v8098
  %v8485 = vmul.f32 %v6047, %v8103
  %v8486 = vmul.f32 %v6048, %v8108
  %v8487 = vmul.f32 %v6049, %v8113
  %v8488 = vmul.f32 %v6050, %v8118
  %v8489 = vmul.f32 %v6051, %v8123
  %v8490 = vmul.f32 %v6052, %v8128
  %v8491 = vmul.f32 %v6053, %v8133
  %v8492 = vmul.f32 %v6054, %v8138
  %v8493 = vmul.f32 %v6055, %v8143
  %v8494 = vmul.f32 %v6056, %v8148
  %v8495 = vmul.f32 %v6057, %v8153
  %v8496 = vmul.f32 %v6058, %v8158
  %v8497 = vmul.f32 %v6059, %v8163
  %v8498 = vmul.f32 %v6060, %v8168
  %v8499 = vmul.f32 %v6061, %v8173
  %v8500 = vmul.f32 %v6062, %v8178
  %v8501 = vmul.f32 %v6063, %v8183
  %v8502 = vmul.f32 %v6064, %v8188
  %v8503 = vmul.f32 %v6065, %v8193
  %v8504 = vmul.f32 %v6066, %v8198
  %v8505 = vmul.f32 %v6067, %v8203
  %v8506 = vmul.f32 %v6068, %v8208
  %v8507 = vmul.f32 %v6069, %v8213
  %v8508 = vmul.f32 %v6070, %v8218
  %v8509 = vmul.f32 %v6071, %v8223
  %v8510 = vmul.f32 %v6072, %v8228
  %v8511 = vmul.f32 %v6073, %v8233
  %v8512 = vmul.f32 %v6074, %v8238
  %v8513 = vmul.f32 %v6075, %v8243
  %v8514 = vmul.f32 %v6076, %v8248
  %v8515 = vmul.f32 %v6077, %v8253
  %v8516 = vmul.f32 %v6078, %v8258
  %v8517 = vmul.f32 %v6079, %v8263
  %v8518 = vmul.f32 %v6080, %v8268
  %v8519 = vmul.f32 %v6081, %v8273
  %v8520 = vmul.f32 %v6082, %v8278
  %v8521 = vmul.f32 %v6083, %v8283
  %v8522 = vmul.f32 %v6084, %v8288
  %v8523 = vmul.f32 %v6085, %v8293
  %v8524 = vmul.f32 %v6086, %v8298
  %v8525 = vmul.f32 %v6087, %v8303
  %v8526 = vmul.f32 %v6088, %v8308
  %v8527 = vmul.f32 %v6089, %v8313
  %v8528 = vmul.f32 %v6090, %v8318
  %v8529 = vmul.f32 %v6091, %v8323
  %v8530 = vmul.f32 %v6092, %v8328
  %v8531 = vmul.f32 %v6093, %v8333
  %v8532 = vmul.f32 %v6094, %v8338
  %v8533 = vmul.f32 %v6095, %v8343
  %v8534 = vmul.f32 %v6096, %v8348
  %v8535 = vmul.f32 %v6097, %v8353
  %v8536 = vmul.f32 %v6098, %v8358
  %v8537 = vmul.f32 %v6099, %v8363
  %v8538 = vmul.f32 %v6100, %v8368
  %v8539 = vmul.f32 %v6101, %v8373
  %v8540 = vmul.f32 %v6102, %v8378
  %v8541 = vmul.f32 %v6103, %v8383
  %v8542 = vmul.f32 %v6104, %v8388
  %v8543 = vmul.f32 %v6105, %v8393
  %v8544 = vmul.f32 %v6106, %v8398
  %v8545 = vmul.f32 %v6107, %v8403
  %v8546 = vmul.f32 %v6108, %v8408
  %v8547 = vmul.f32 %v6109, %v8413
  %v8548 = vmul.f32 %v6110, %v8418
  %v8549 = vmul.f32 %v6111, %v8423
  %v8550 = vmul.f32 %v6112, %v8428
  %v8551 = vmul.f32 %v6113, %v8433
  %v8552 = vmul.f32 %v6114, %v8438
  %v8553 = vmul.f32 %v6115, %v8443
  %v8554 = vmul.f32 %v6116, %v8448
  %v8555 = vmul.f32 %v6117, %v8453
  %v8556 = vmul.f32 %v6118, %v8458
  %v8557 = vmul.f32 %v6119, %v8463
  %v8558 = vmul.f32 %v6120, %v8468
  %v8559 = vmul.f32 %v6121, %v8473
  %v8560 = vmul.f32 %v6122, %v8478
  %8561 = vst.msk [vmem:[%s8] sm:$0xff] %vm3490, %v8480
  %8562 = vst.msk [vmem:[%s8 + $0x8] sm:$0xff] %vm3490, %v8481
  %8563 = vst.msk [vmem:[%s8 + $0x10] sm:$0xff] %vm3490, %v8482
  %8564 = vst.msk [vmem:[%s8 + $0x18] sm:$0xff] %vm3490, %v8483
  %8565 = vst.msk [vmem:[%s8 + $0x20] sm:$0xff] %vm3490, %v8484
  %8566 = vst.msk [vmem:[%s8 + $0x28] sm:$0xff] %vm3490, %v8485
  %8567 = vst.msk [vmem:[%s8 + $0x30] sm:$0xff] %vm3490, %v8486
  %8568 = vst.msk [vmem:[%s8 + $0x38] sm:$0xff] %vm3490, %v8487
  %8569 = vst.msk [vmem:[%s8 + $0x40] sm:$0xff] %vm3490, %v8488
  %8570 = vst.msk [vmem:[%s8 + $0x48] sm:$0xff] %vm3490, %v8489
  %8571 = vst.msk [vmem:[%s8 + $0x50] sm:$0xff] %vm3490, %v8490
  %8572 = vst.msk [vmem:[%s8 + $0x58] sm:$0xff] %vm3490, %v8491
  %8573 = vst.msk [vmem:[%s8 + $0x60] sm:$0xff] %vm3490, %v8492
  %8574 = vst.msk [vmem:[%s8 + $0x68] sm:$0xff] %vm3490, %v8493
  %8575 = vst.msk [vmem:[%s8 + $0x70] sm:$0xff] %vm3490, %v8494
  %8576 = vst.msk [vmem:[%s8 + $0x78] sm:$0xff] %vm3490, %v8495
  %8577 = vst.msk [vmem:[%s8 + $0x80] sm:$0xff] %vm3490, %v8496
  %8578 = vst.msk [vmem:[%s8 + $0x88] sm:$0xff] %vm3490, %v8497
  %8579 = vst.msk [vmem:[%s8 + $0x90] sm:$0xff] %vm3490, %v8498
  %8580 = vst.msk [vmem:[%s8 + $0x98] sm:$0xff] %vm3490, %v8499
  %8581 = vst.msk [vmem:[%s8 + $0xa0] sm:$0xff] %vm3490, %v8500
  %8582 = vst.msk [vmem:[%s8 + $0xa8] sm:$0xff] %vm3490, %v8501
  %8583 = vst.msk [vmem:[%s8 + $0xb0] sm:$0xff] %vm3490, %v8502
  %8584 = vst.msk [vmem:[%s8 + $0xb8] sm:$0xff] %vm3490, %v8503
  %8585 = vst.msk [vmem:[%s8 + $0xc0] sm:$0xff] %vm3490, %v8504
  %8586 = vst.msk [vmem:[%s8 + $0xc8] sm:$0xff] %vm3490, %v8505
  %8587 = vst.msk [vmem:[%s8 + $0xd0] sm:$0xff] %vm3490, %v8506
  %8588 = vst.msk [vmem:[%s8 + $0xd8] sm:$0xff] %vm3490, %v8507
  %8589 = vst.msk [vmem:[%s8 + $0xe0] sm:$0xff] %vm3490, %v8508
  %8590 = vst.msk [vmem:[%s8 + $0xe8] sm:$0xff] %vm3490, %v8509
  %8591 = vst.msk [vmem:[%s8 + $0xf0] sm:$0xff] %vm3490, %v8510
  %8592 = vst.msk [vmem:[%s8 + $0xf8] sm:$0xff] %vm3490, %v8511
  %8593 = vst.msk [vmem:[%s8 + $0x100] sm:$0xff] %vm3490, %v8512
  %8594 = vst.msk [vmem:[%s8 + $0x108] sm:$0xff] %vm3490, %v8513
  %8595 = vst.msk [vmem:[%s8 + $0x110] sm:$0xff] %vm3490, %v8514
  %8596 = vst.msk [vmem:[%s8 + $0x118] sm:$0xff] %vm3490, %v8515
  %8597 = vst.msk [vmem:[%s8 + $0x120] sm:$0xff] %vm3490, %v8516
  %8598 = vst.msk [vmem:[%s8 + $0x128] sm:$0xff] %vm3490, %v8517
  %8599 = vst.msk [vmem:[%s8 + $0x130] sm:$0xff] %vm3490, %v8518
  %8600 = vst.msk [vmem:[%s8 + $0x138] sm:$0xff] %vm3490, %v8519
  %8601 = vst.msk [vmem:[%s8 + $0x140] sm:$0xff] %vm3490, %v8520
  %8602 = vst.msk [vmem:[%s8 + $0x148] sm:$0xff] %vm3490, %v8521
  %8603 = vst.msk [vmem:[%s8 + $0x150] sm:$0xff] %vm3490, %v8522
  %8604 = vst.msk [vmem:[%s8 + $0x158] sm:$0xff] %vm3490, %v8523
  %8605 = vst.msk [vmem:[%s8 + $0x160] sm:$0xff] %vm3490, %v8524
  %8606 = vst.msk [vmem:[%s8 + $0x168] sm:$0xff] %vm3490, %v8525
  %8607 = vst.msk [vmem:[%s8 + $0x170] sm:$0xff] %vm3490, %v8526
  %8608 = vst.msk [vmem:[%s8 + $0x178] sm:$0xff] %vm3490, %v8527
  %8609 = vst.msk [vmem:[%s8 + $0x180] sm:$0xff] %vm3490, %v8528
  %8610 = vst.msk [vmem:[%s8 + $0x188] sm:$0xff] %vm3490, %v8529
  %8611 = vst.msk [vmem:[%s8 + $0x190] sm:$0xff] %vm3490, %v8530
  %8612 = vst.msk [vmem:[%s8 + $0x198] sm:$0xff] %vm3490, %v8531
  %8613 = vst.msk [vmem:[%s8 + $0x1a0] sm:$0xff] %vm3490, %v8532
  %8614 = vst.msk [vmem:[%s8 + $0x1a8] sm:$0xff] %vm3490, %v8533
  %8615 = vst.msk [vmem:[%s8 + $0x1b0] sm:$0xff] %vm3490, %v8534
  %8616 = vst.msk [vmem:[%s8 + $0x1b8] sm:$0xff] %vm3490, %v8535
  %8617 = vst.msk [vmem:[%s8 + $0x1c0] sm:$0xff] %vm3490, %v8536
  %8618 = vst.msk [vmem:[%s8 + $0x1c8] sm:$0xff] %vm3490, %v8537
  %8619 = vst.msk [vmem:[%s8 + $0x1d0] sm:$0xff] %vm3490, %v8538
  %8620 = vst.msk [vmem:[%s8 + $0x1d8] sm:$0xff] %vm3490, %v8539
  %8621 = vst.msk [vmem:[%s8 + $0x1e0] sm:$0xff] %vm3490, %v8540
  %8622 = vst.msk [vmem:[%s8 + $0x1e8] sm:$0xff] %vm3490, %v8541
  %8623 = vst.msk [vmem:[%s8 + $0x1f0] sm:$0xff] %vm3490, %v8542
  %8624 = vst.msk [vmem:[%s8 + $0x1f8] sm:$0xff] %vm3490, %v8543
  %8625 = vst.msk [vmem:[%s8 + $0x200] sm:$0xff] %vm3490, %v8544
  %8626 = vst.msk [vmem:[%s8 + $0x208] sm:$0xff] %vm3490, %v8545
  %8627 = vst.msk [vmem:[%s8 + $0x210] sm:$0xff] %vm3490, %v8546
  %8628 = vst.msk [vmem:[%s8 + $0x218] sm:$0xff] %vm3490, %v8547
  %8629 = vst.msk [vmem:[%s8 + $0x220] sm:$0xff] %vm3490, %v8548
  %8630 = vst.msk [vmem:[%s8 + $0x228] sm:$0xff] %vm3490, %v8549
  %8631 = vst.msk [vmem:[%s8 + $0x230] sm:$0xff] %vm3490, %v8550
  %8632 = vst.msk [vmem:[%s8 + $0x238] sm:$0xff] %vm3490, %v8551
  %8633 = vst.msk [vmem:[%s8 + $0x240] sm:$0xff] %vm3490, %v8552
  %8634 = vst.msk [vmem:[%s8 + $0x248] sm:$0xff] %vm3490, %v8553
  %8635 = vst.msk [vmem:[%s8 + $0x250] sm:$0xff] %vm3490, %v8554
  %8636 = vst.msk [vmem:[%s8 + $0x258] sm:$0xff] %vm3490, %v8555
  %8637 = vst.msk [vmem:[%s8 + $0x260] sm:$0xff] %vm3490, %v8556
  %8638 = vst.msk [vmem:[%s8 + $0x268] sm:$0xff] %vm3490, %v8557
  %8639 = vst.msk [vmem:[%s8 + $0x270] sm:$0xff] %vm3490, %v8558
  %8640 = vst.msk [vmem:[%s8 + $0x278] sm:$0xff] %vm3490, %v8559
  %8641 = vst.msk [vmem:[%s8 + $0x280] sm:$0xff] %vm3490, %v8560
  // Predicated region
  $region34: #{tpu_custom_call.1} parent=0 // pred_check
    _
  $region35: #{tpu_custom_call.1} parent=0 // pred_check_branch
    %8643 = sbr.rel (0) target = $region37
  $region36: #{tpu_custom_call.1} parent=0 // pred_region
    _
  $region37: #{tpu_custom_call.1} parent=0 // pred_fallthru
    _
  // Predicated region
  $region38: #{tpu_custom_call.1} parent=0 // pred_check
    _
  $region39: #{tpu_custom_call.1} parent=0 // pred_check_branch
    %8645 = sbr.rel (0) target = $region41
  $region40: #{tpu_custom_call.1} parent=0 // pred_region
    _
  $region41: #{tpu_custom_call.1} parent=0 // pred_fallthru
    _

</llo_original>
